<compile_context>
chip_gen: v7x
topology: tpu7x:2x2x1
jax: 0.10.0
libtpu: 0.0.40
codegen_flags: <defaults>
</compile_context>

<pallas_src>
import functools
import math

import jax
import jax.numpy as jnp
from jax import lax
from jax.experimental import pallas as pl
from jax.experimental.pallas import tpu as pltpu

F32 = jnp.float32
VMEM = pltpu.MemorySpace.VMEM
SMEM = pltpu.MemorySpace.SMEM

# -------------------- problem sizes (small, CLIP-shaped) --------------------
B = 2                    # batch
IMG_C, IMG_HW, PATCH = 3, 16, 8
GRID = IMG_HW // PATCH   # 2
NUM_PATCHES = GRID * GRID            # 4
SEQ_V = NUM_PATCHES + 1              # 5 = class token + patches
SEQ_V_PAD = 8                        # padded vision seq len (pad keys masked)
VIS_WIDTH = 32
VIS_HEADS = 2
VIS_LAYERS = 2
VIS_FEAT_DIM = 48                    # visual.proj output dim
HIDDEN = 32                          # text_projection.shape[1]
TXT_WIDTH = HIDDEN                   # token_embedding.embedding_dim
TXT_HEADS = 2
TXT_LAYERS = 2
VOCAB = 64
CTX = 8                              # text context length
N_DEF = 8                            # number of definitions
NUM_CLASSES = 200
NUM_CLASSES_PAD = 256                # lane-dense head output width
NEG_INF = -1e9


# -------------------- in-kernel helpers (traced inside the kernel) ----------

def _layernorm(x, g, b, eps=1e-5):
    mu = jnp.mean(x, axis=-1, keepdims=True)
    xc = x - mu
    var = jnp.mean(xc * xc, axis=-1, keepdims=True)
    return xc * lax.rsqrt(var + eps) * g + b


def _leaky_relu(x):                       # nn.LeakyReLU default slope 0.01
    return jnp.where(x >= 0, x, 0.01 * x)


def _quick_gelu(x):                       # CLIP QuickGELU
    return x * jax.nn.sigmoid(1.702 * x)


def _attn_softmax(s):
    # Exact divide (no approximate reciprocal) for parity with the reference.
    s = s - jnp.max(s, axis=-1, keepdims=True)
    e = jnp.exp(s)
    return e / jnp.sum(e, axis=-1, keepdims=True)


def _flat_attn_mask(n_seq, seq, key_limit, causal):
    """Additive mask for flat [n_seq*seq, n_seq*seq] attention:
    block-diagonal over sequences, keys >= key_limit masked, optional causal.
    seq must be a power of two (8 here) so the index math lowers to shifts."""
    t = n_seq * seq
    shift = int(math.log2(seq))
    assert seq == (1 << shift)
    r = lax.broadcasted_iota(jnp.int32, (t, t), 0)
    c = lax.broadcasted_iota(jnp.int32, (t, t), 1)
    same_seq = (r >> shift) == (c >> shift)
    ck = c & (seq - 1)
    ok = jnp.logical_and(same_seq, ck < key_limit)
    if causal:
        ok = jnp.logical_and(ok, ck <= (r & (seq - 1)))
    return jnp.where(ok, 0.0, NEG_INF).astype(F32)


def _select_first_positions(x, n_seq, seq):
    """Rows 0, seq, 2*seq, ... of a [n_seq*seq, width] activation, extracted
    via a tiny selector matmul (avoids strided-slice/squeeze relayouts)."""
    r = lax.broadcasted_iota(jnp.int32, (n_seq, n_seq * seq), 0)
    c = lax.broadcasted_iota(jnp.int32, (n_seq, n_seq * seq), 1)
    sel = (c == r * seq).astype(F32)
    return jnp.dot(sel, x, preferred_element_type=F32)


def _transformer_blocks(x, heads, num_layers, mask, mats_ref, w2_ref, vecs_ref):
    """Pre-LN CLIP residual attention blocks on a flat [T, width] activation.

    Per-layer weights come from packed slabs (statically indexed / sliced):
      mats_ref : [L, W, 8W]  = qkv_w | out_proj_w | mlp_w1   (lane-concat)
      w2_ref   : [L, 4W, W]  = mlp_w2
      vecs_ref : [L, 13W]    = ln1_g|ln1_b|qkv_b|out_b|ln2_g|ln2_b|mlp_b1|mlp_b2
    Attention is one block-masked full matmul per head per layer."""
    t, width = x.shape
    dh = width // heads
    scale = 1.0 / math.sqrt(dh)
    w = width
    for l in range(num_layers):
        wm = mats_ref[l]                               # [W, 8W]
        w2 = w2_ref[l]                                 # [4W, W]
        v = vecs_ref[l]                                # [13W]
        ln1_g, ln1_b = v[0:w], v[w:2 * w]
        qkv_b = v[2 * w:5 * w]
        out_b = v[5 * w:6 * w]
        ln2_g, ln2_b = v[6 * w:7 * w], v[7 * w:8 * w]
        mlp_b1, mlp_b2 = v[8 * w:12 * w], v[12 * w:13 * w]
        qkv_w = wm[:, 0:3 * w]
        out_w = wm[:, 3 * w:4 * w]
        mlp_w1 = wm[:, 4 * w:8 * w]

        # ---- multi-head self-attention (block-masked full matmuls) ----
        xn = _layernorm(x, ln1_g, ln1_b)
        qkv = jnp.dot(xn, qkv_w, preferred_element_type=F32) + qkv_b   # [T, 3W]
        attn = None
        for h in range(heads):
            qf = qkv[:, 0 * w + h * dh:0 * w + (h + 1) * dh] * scale   # [T, dh]
            kf = qkv[:, 1 * w + h * dh:1 * w + (h + 1) * dh]
            vf = qkv[:, 2 * w + h * dh:2 * w + (h + 1) * dh]
            s = lax.dot_general(qf, kf, (((1,), (1,)), ((), ())),
                                preferred_element_type=F32) + mask     # [T, T]
            p = _attn_softmax(s)
            o = jnp.dot(p, vf, preferred_element_type=F32)             # [T, dh]
            # accumulate the per-head slice of the output projection (avoids a
            # lane-concat of the head outputs)
            contrib = jnp.dot(o, out_w[h * dh:(h + 1) * dh, :],
                              preferred_element_type=F32)
            attn = contrib if attn is None else attn + contrib
        x = x + attn + out_b
        # ---- MLP (QuickGELU) ----
        xn = _layernorm(x, ln2_g, ln2_b)
        hmid = _quick_gelu(jnp.dot(xn, mlp_w1, preferred_element_type=F32) + mlp_b1)
        x = x + jnp.dot(hmid, w2, preferred_element_type=F32) + mlp_b2
    return x


# -------------------- the single fused kernel --------------------

def _fused_kernel(ids_ref, patch_ref, temb_ref, tpos_ref,
                  t_mats, t_w2s, t_vecs, t_tail, gfl_w1, gfl_w2,
                  conv_w, v_pre, v_mats, v_w2s, v_vecs, v_tail,
                  v_proj, va_w, efl_w1, efl_w2,
                  off_ref, out_ref):
    # ======================= text tower (definitions) =======================
    w = TXT_WIDTH
    tt_rows = N_DEF * CTX
    ids = ids_ref[...]                                  # [tt_rows + N_DEF, 1] int32
    tok = ids[0:tt_rows]                                # [tt_rows, 1]
    didx = ids[tt_rows:tt_rows + N_DEF]                 # [N_DEF, 1]

    # token embedding as an in-kernel one-hot matmul (VOCAB=64 table in VMEM)
    onehot = (tok == lax.broadcasted_iota(jnp.int32, (tt_rows, VOCAB), 1)).astype(F32)
    x = jnp.dot(onehot, temb_ref[...], preferred_element_type=F32)      # [tt_rows, W]
    x = (x.reshape(N_DEF, CTX, w) + tpos_ref[...][None]).reshape(tt_rows, w)

    tmask = _flat_attn_mask(N_DEF, CTX, key_limit=CTX, causal=True)
    x = _transformer_blocks(x, TXT_HEADS, TXT_LAYERS, tmask, t_mats, t_w2s, t_vecs)

    ttail = t_tail[0]                                   # [5W]: lnf_g|lnf_b|gfl_b1|gfl_b2
    x = _layernorm(x, ttail[0:w], ttail[w:2 * w])       # ln_final
    # 'linear' guideline feature layer applied at position 0 only: only
    # guideline_cls = guideline_feature_layer(features)[:, 0] is consumed and
    # the layer is position-wise.
    gcls = _select_first_positions(x, N_DEF, CTX)                       # [N_DEF, W]
    gmid = _leaky_relu(jnp.dot(gcls, gfl_w1[...], preferred_element_type=F32)
                       + ttail[2 * w:4 * w])
    gcls = jnp.dot(gmid, gfl_w2[...], preferred_element_type=F32) + ttail[4 * w:5 * w]
    # TODO(synk): CLIP's EOT-argmax-pooled `x @ text_projection` feature is dead
    # in this configuration (similarity=True, 'linear' guideline layer), so it
    # is not computed.

    # ======================= vision tower (images) ==========================
    wv = VIS_WIDTH
    tv_rows = B * SEQ_V_PAD
    pre = v_pre[...]                                    # [11, Wv]: cls|pos(8)|lnpre_g|lnpre_b
    # patch embedding (stride==kernel conv rewritten as matmul); row 0 of each
    # padded sequence is zero, so adding the class embedding there is exact.
    xv = jnp.dot(patch_ref[...], conv_w[...], preferred_element_type=F32)  # [tv_rows, Wv]
    row = lax.broadcasted_iota(jnp.int32, (SEQ_V_PAD, wv), 0)
    add = pre[1:1 + SEQ_V_PAD] + jnp.where(row == 0, pre[0], 0.0)
    xv = (xv.reshape(B, SEQ_V_PAD, wv) + add[None]).reshape(tv_rows, wv)
    xv = _layernorm(xv, pre[9], pre[10])                # ln_pre
    # padded key positions (>= SEQ_V) masked; padded query rows stay bounded
    # (zero-variance LN collapses them to the bias) and are never selected.
    vmask = _flat_attn_mask(B, SEQ_V_PAD, key_limit=SEQ_V, causal=False)
    xv = _transformer_blocks(xv, VIS_HEADS, VIS_LAYERS, vmask, v_mats, v_w2s, v_vecs)

    vtail = v_tail[0]                    # [6W]: lnpost_g|lnpost_b|va_b|efl_b1(2W)|efl_b2
    # only the class position feeds the similarity head; remaining layers are
    # position-wise, so apply them to that row only.
    vcls = _select_first_positions(xv, B, SEQ_V_PAD)                    # [B, Wv]
    vcls = _layernorm(vcls, vtail[0:wv], vtail[wv:2 * wv])              # ln_post
    vcls = jnp.dot(vcls, v_proj[...], preferred_element_type=F32)       # visual.proj
    vcls = jnp.dot(vcls, va_w[...], preferred_element_type=F32) + vtail[2 * wv:3 * wv]
    emid = _leaky_relu(jnp.dot(vcls, efl_w1[...], preferred_element_type=F32)
                       + vtail[3 * wv:5 * wv])
    enc = jnp.dot(emid, efl_w2[...], preferred_element_type=F32) + vtail[5 * wv:6 * wv]

    # ======================= similarity head ================================
    # scores = encoder_outputs[:, 0] @ guideline_cls.T                  [B, N_DEF]
    scores = lax.dot_general(enc, gcls, (((1,), (1,)), ((), ())),
                             preferred_element_type=F32)
    # 'sum' program pooler + uniform_offset: with is_train=False every one of
    # the 200 class columns is overwritten by the reference loop (empty sum ->
    # 0 + offset), so the -100 init never survives; one-hot matmul is exact.
    cls_iota = lax.broadcasted_iota(jnp.int32, (N_DEF, NUM_CLASSES_PAD), 1)
    onehot_c = (didx == cls_iota).astype(F32)
    out_ref[...] = (jnp.dot(scores, onehot_c, preferred_element_type=F32)
                    + off_ref[0, 0])


# -------------------- full forward --------------------

@functools.partial(jax.jit, static_argnames=("is_train",))
def guided_clip_cub_forward(packed, images, targets, definitions_tokenized,
                            definition_indices, is_train=False):
    # Configured as: similarity=True, program_pooler='sum',
    # encoder_feature_layer='linear', guideline_feature_layer='linear',
    # is_train=False (target_set = range(200), related_definitions all True).
    del targets
    bb = images.shape[0]

    # TODO(synk): patch extraction could be folded into the kernel via an
    # in-kernel regroup / permutation matmul; kept here as one tiny XLA fusion.
    patches = images.reshape(bb, IMG_C, GRID, PATCH, GRID, PATCH)
    patches = patches.transpose(0, 2, 4, 1, 3, 5).reshape(bb, NUM_PATCHES, -1)
    patches = jnp.pad(patches, ((0, 0), (1, SEQ_V_PAD - SEQ_V), (0, 0)))
    patches = patches.reshape(bb * SEQ_V_PAD, IMG_C * PATCH * PATCH).astype(F32)

    # token ids + definition indices as a single int32 operand
    ids = jnp.concatenate([definitions_tokenized.reshape(-1),
                           definition_indices.reshape(-1)]).astype(jnp.int32)
    ids = ids.reshape(-1, 1)

    inputs = [ids, patches, packed["temb"], packed["tpos"],
              packed["t_mats"], packed["t_w2s"], packed["t_vecs"], packed["t_tail"],
              packed["gfl_w1"], packed["gfl_w2"],
              packed["conv_w"], packed["v_pre"],
              packed["v_mats"], packed["v_w2s"], packed["v_vecs"], packed["v_tail"],
              packed["v_proj"], packed["va_w"], packed["efl_w1"], packed["efl_w2"],
              packed["uniform_offset"].reshape(1, 1).astype(F32)]

    out = pl.pallas_call(
        _fused_kernel,
        out_shape=jax.ShapeDtypeStruct((bb, NUM_CLASSES_PAD), F32),
        in_specs=[pl.BlockSpec(memory_space=VMEM)] * 20
                 + [pl.BlockSpec(memory_space=SMEM)],
        out_specs=pl.BlockSpec(memory_space=VMEM),
    )(*inputs)
    return out[:, :NUM_CLASSES]

# TODO(synk): similarity=False path (guided_program.AttnDecoderRNN /
# ProgramExecutor) has no provided source; 'transformer-encoder' feature-layer
# variant and is_train=True dynamic target_set are not exercised here.


# -------------------- parameters --------------------

def init_params(key):
    keys = iter(jax.random.split(key, 32))

    def nrm(shape, scale=0.02):
        return scale * jax.random.normal(next(keys), shape, dtype=F32)

    def stacked_blocks(width, layers):
        return dict(
            ln1_g=jnp.ones((layers, width), F32), ln1_b=jnp.zeros((layers, width), F32),
            qkv_w=nrm((layers, width, 3 * width)), qkv_b=jnp.zeros((layers, 3 * width), F32),
            out_w=nrm((layers, width, width)), out_b=jnp.zeros((layers, width), F32),
            ln2_g=jnp.ones((layers, width), F32), ln2_b=jnp.zeros((layers, width), F32),
            mlp_w1=nrm((layers, width, 4 * width)), mlp_b1=jnp.zeros((layers, 4 * width), F32),
            mlp_w2=nrm((layers, 4 * width, width)), mlp_b2=jnp.zeros((layers, width), F32),
        )

    vision = dict(
        conv_w=nrm((IMG_C * PATCH * PATCH, VIS_WIDTH)),
        class_emb=nrm((1, VIS_WIDTH)),
        pos_emb=jnp.concatenate(
            [nrm((SEQ_V, VIS_WIDTH)),
             jnp.zeros((SEQ_V_PAD - SEQ_V, VIS_WIDTH), F32)], axis=0),
        ln_pre_g=jnp.ones((1, VIS_WIDTH), F32), ln_pre_b=jnp.zeros((1, VIS_WIDTH), F32),
        blocks=stacked_blocks(VIS_WIDTH, VIS_LAYERS),
        ln_post_g=jnp.ones((1, VIS_WIDTH), F32), ln_post_b=jnp.zeros((1, VIS_WIDTH), F32),
        proj=nrm((VIS_WIDTH, VIS_FEAT_DIM)),
    )
    text = dict(
        token_emb=nrm((VOCAB, TXT_WIDTH)),
        pos_emb=nrm((CTX, TXT_WIDTH)),
        blocks=stacked_blocks(TXT_WIDTH, TXT_LAYERS),
        ln_final_g=jnp.ones((1, TXT_WIDTH), F32), ln_final_b=jnp.zeros((1, TXT_WIDTH), F32),
    )
    gfl = dict(w1=nrm((HIDDEN, 2 * HIDDEN)), b1=jnp.zeros((1, 2 * HIDDEN), F32),
               w2=nrm((2 * HIDDEN, HIDDEN)), b2=jnp.zeros((1, HIDDEN), F32))
    efl = dict(w1=nrm((HIDDEN, 2 * HIDDEN)), b1=jnp.zeros((1, 2 * HIDDEN), F32),
               w2=nrm((2 * HIDDEN, HIDDEN)), b2=jnp.zeros((1, HIDDEN), F32))
    va = dict(w=nrm((VIS_FEAT_DIM, HIDDEN)), b=jnp.zeros((1, HIDDEN), F32))
    uniform_offset = jnp.full((1, 1), -2.0, F32)   # nn.Parameter(torch.zeros(1)[0] - 2)
    return dict(vision=vision, text=text, gfl=gfl, efl=efl, va=va,
                uniform_offset=uniform_offset)


def pack_params(p):
    """Pack logical parameters into the few contiguous slabs the kernel expects
    (done once, outside the jitted forward)."""
    def pack_blocks(blk):
        mats = jnp.concatenate([blk["qkv_w"], blk["out_w"], blk["mlp_w1"]], axis=-1)
        vecs = jnp.concatenate([blk["ln1_g"], blk["ln1_b"], blk["qkv_b"], blk["out_b"],
                                blk["ln2_g"], blk["ln2_b"], blk["mlp_b1"], blk["mlp_b2"]],
                               axis=-1)
        return mats, blk["mlp_w2"], vecs

    t_mats, t_w2s, t_vecs = pack_blocks(p["text"]["blocks"])
    v_mats, v_w2s, v_vecs = pack_blocks(p["vision"]["blocks"])
    t_tail = jnp.concatenate([p["text"]["ln_final_g"], p["text"]["ln_final_b"],
                              p["gfl"]["b1"], p["gfl"]["b2"]], axis=-1)      # [1, 5W]
    v_pre = jnp.concatenate([p["vision"]["class_emb"], p["vision"]["pos_emb"],
                             p["vision"]["ln_pre_g"], p["vision"]["ln_pre_b"]],
                            axis=0)                                          # [11, W]
    v_tail = jnp.concatenate([p["vision"]["ln_post_g"], p["vision"]["ln_post_b"],
                              p["va"]["b"], p["efl"]["b1"], p["efl"]["b2"]],
                             axis=-1)                                        # [1, 6W]
    return dict(
        temb=p["text"]["token_emb"], tpos=p["text"]["pos_emb"],
        t_mats=t_mats, t_w2s=t_w2s, t_vecs=t_vecs, t_tail=t_tail,
        gfl_w1=p["gfl"]["w1"], gfl_w2=p["gfl"]["w2"],
        conv_w=p["vision"]["conv_w"], v_pre=v_pre,
        v_mats=v_mats, v_w2s=v_w2s, v_vecs=v_vecs, v_tail=v_tail,
        v_proj=p["vision"]["proj"], va_w=p["va"]["w"],
        efl_w1=p["efl"]["w1"], efl_w2=p["efl"]["w2"],
        uniform_offset=p["uniform_offset"],
    )


if __name__ == "__main__":
    key = jax.random.PRNGKey(0)
    k_par, k_img, k_tgt, k_def, k_idx = jax.random.split(key, 5)
    params = init_params(k_par)
    packed = pack_params(params)

    images = jax.random.normal(k_img, (B, IMG_C, IMG_HW, IMG_HW), dtype=F32)
    targets = jax.random.randint(k_tgt, (B,), 0, NUM_CLASSES)
    definitions_tokenized = jax.random.randint(k_def, (N_DEF, CTX), 1, VOCAB)
    definition_indices = jax.random.randint(k_idx, (N_DEF,), 0, NUM_CLASSES)

    out = guided_clip_cub_forward(packed, images, targets,
                                  definitions_tokenized, definition_indices,
                                  is_train=False)
    out = jax.block_until_ready(out)
    assert out.shape == (B, NUM_CLASSES) and out.dtype == jnp.float32
    assert bool(jnp.all(jnp.isfinite(out)))
    print("KERNEL_OK")
</pallas_src>

<mosaic_0001>
module attributes {stable_mosaic.version = 11 : i64} {
  func.func @_fused_kernel(%arg0: memref<72x1xi32, #tpu.memory_space<vmem>>, %arg1: memref<16x192xf32, #tpu.memory_space<vmem>>, %arg2: memref<64x32xf32, #tpu.memory_space<vmem>>, %arg3: memref<8x32xf32, #tpu.memory_space<vmem>>, %arg4: memref<2x32x256xf32, #tpu.memory_space<vmem>>, %arg5: memref<2x128x32xf32, #tpu.memory_space<vmem>>, %arg6: memref<2x416xf32, #tpu.memory_space<vmem>>, %arg7: memref<1x160xf32, #tpu.memory_space<vmem>>, %arg8: memref<32x64xf32, #tpu.memory_space<vmem>>, %arg9: memref<64x32xf32, #tpu.memory_space<vmem>>, %arg10: memref<192x32xf32, #tpu.memory_space<vmem>>, %arg11: memref<11x32xf32, #tpu.memory_space<vmem>>, %arg12: memref<2x32x256xf32, #tpu.memory_space<vmem>>, %arg13: memref<2x128x32xf32, #tpu.memory_space<vmem>>, %arg14: memref<2x416xf32, #tpu.memory_space<vmem>>, %arg15: memref<1x192xf32, #tpu.memory_space<vmem>>, %arg16: memref<32x48xf32, #tpu.memory_space<vmem>>, %arg17: memref<48x32xf32, #tpu.memory_space<vmem>>, %arg18: memref<32x64xf32, #tpu.memory_space<vmem>>, %arg19: memref<64x32xf32, #tpu.memory_space<vmem>>, %arg20: memref<1x1xf32, #tpu.memory_space<smem>>, %arg21: memref<2x256xf32, #tpu.memory_space<vmem>>) attributes {dimension_semantics = [], scalar_prefetch = 0 : i64, scratch_operands = 0 : i64, tpu.core_type = #tpu.core_type<tc>} {
    %c0 = arith.constant 0 : index
    %c0_0 = arith.constant 0 : index
    %0 = vector.load %arg0[%c0, %c0_0] : memref<72x1xi32, #tpu.memory_space<vmem>>, vector<72x1xi32>
    %1 = vector.extract_strided_slice %0 {offsets = [0, 0], sizes = [64, 1], strides = [1, 1]} : vector<72x1xi32> to vector<64x1xi32>
    %2 = vector.extract_strided_slice %0 {offsets = [64, 0], sizes = [8, 1], strides = [1, 1]} : vector<72x1xi32> to vector<8x1xi32>
    %3 = tpu.iota {dimensions = array<i32: 1>} : vector<64x64xi32>
    %4 = vector.broadcast %1 : vector<64x1xi32> to vector<64x64xi32>
    %5 = arith.cmpi eq, %4, %3 : vector<64x64xi32>
    %6 = arith.extui %5 : vector<64x64xi1> to vector<64x64xi32>
    %7 = arith.sitofp %6 : vector<64x64xi32> to vector<64x64xf32>
    %c0_1 = arith.constant 0 : index
    %c0_2 = arith.constant 0 : index
    %8 = vector.load %arg2[%c0_1, %c0_2] : memref<64x32xf32, #tpu.memory_space<vmem>>, vector<64x32xf32>
    %cst = arith.constant dense<0.000000e+00> : vector<64x32xf32>
    %9 = tpu.matmul %7, %8, %cst {dimension_numbers = #tpu.dot_dimension_numbers<[1], [0], [0], [1], [0, 0, 1, 1], [], []>} : vector<64x64xf32>, vector<64x32xf32>, vector<64x32xf32> -> vector<64x32xf32>
    %10 = vector.shape_cast %9 : vector<64x32xf32> to vector<8x8x32xf32>
    %c0_3 = arith.constant 0 : index
    %c0_4 = arith.constant 0 : index
    %11 = vector.load %arg3[%c0_3, %c0_4] : memref<8x32xf32, #tpu.memory_space<vmem>>, vector<8x32xf32>
    %12 = vector.shape_cast %11 : vector<8x32xf32> to vector<1x8x32xf32>
    %13 = vector.broadcast %12 : vector<1x8x32xf32> to vector<8x8x32xf32>
    %14 = arith.addf %10, %13 : vector<8x8x32xf32>
    %15 = vector.shape_cast %14 : vector<8x8x32xf32> to vector<64x32xf32>
    %16 = tpu.iota {dimensions = array<i32: 0>} : vector<64x64xi32>
    %17 = tpu.iota {dimensions = array<i32: 1>} : vector<64x64xi32>
    %c3_i32 = arith.constant 3 : i32
    %18 = vector.broadcast %c3_i32 : i32 to vector<64x64xi32>
    %19 = arith.shrsi %16, %18 : vector<64x64xi32>
    %c3_i32_5 = arith.constant 3 : i32
    %20 = vector.broadcast %c3_i32_5 : i32 to vector<64x64xi32>
    %21 = arith.shrsi %17, %20 : vector<64x64xi32>
    %22 = arith.cmpi eq, %19, %21 : vector<64x64xi32>
    %c7_i32 = arith.constant 7 : i32
    %23 = vector.broadcast %c7_i32 : i32 to vector<64x64xi32>
    %24 = arith.andi %17, %23 : vector<64x64xi32>
    %c8_i32 = arith.constant 8 : i32
    %25 = vector.broadcast %c8_i32 : i32 to vector<64x64xi32>
    %26 = arith.cmpi slt, %24, %25 : vector<64x64xi32>
    %27 = arith.andi %22, %26 : vector<64x64xi1>
    %c7_i32_6 = arith.constant 7 : i32
    %28 = vector.broadcast %c7_i32_6 : i32 to vector<64x64xi32>
    %29 = arith.andi %16, %28 : vector<64x64xi32>
    %30 = arith.cmpi sle, %24, %29 : vector<64x64xi32>
    %31 = arith.andi %27, %30 : vector<64x64xi1>
    %cst_7 = arith.constant 0.000000e+00 : f32
    %cst_8 = arith.constant -1.000000e+09 : f32
    %32 = vector.broadcast %cst_7 : f32 to vector<64x64xf32>
    %33 = vector.broadcast %cst_8 : f32 to vector<64x64xf32>
    %34 = arith.select %31, %32, %33 : vector<64x64xi1>, vector<64x64xf32>
    %c0_9 = arith.constant 0 : index
    %c0_10 = arith.constant 0 : index
    %c0_11 = arith.constant 0 : index
    %35 = vector.load %arg4[%c0_9, %c0_10, %c0_11] : memref<2x32x256xf32, #tpu.memory_space<vmem>>, vector<1x32x256xf32>
    %36 = vector.shape_cast %35 : vector<1x32x256xf32> to vector<32x256xf32>
    %c0_12 = arith.constant 0 : index
    %c0_13 = arith.constant 0 : index
    %c0_14 = arith.constant 0 : index
    %37 = vector.load %arg5[%c0_12, %c0_13, %c0_14] : memref<2x128x32xf32, #tpu.memory_space<vmem>>, vector<1x128x32xf32>
    %38 = vector.shape_cast %37 : vector<1x128x32xf32> to vector<128x32xf32>
    %c0_15 = arith.constant 0 : index
    %c0_16 = arith.constant 0 : index
    %39 = vector.load %arg6[%c0_15, %c0_16] : memref<2x416xf32, #tpu.memory_space<vmem>>, vector<1x416xf32>
    %40 = vector.shape_cast %39 : vector<1x416xf32> to vector<416xf32>
    %41 = vector.extract_strided_slice %40 {offsets = [0], sizes = [32], strides = [1]} : vector<416xf32> to vector<32xf32>
    %42 = vector.extract_strided_slice %40 {offsets = [32], sizes = [32], strides = [1]} : vector<416xf32> to vector<32xf32>
    %43 = vector.extract_strided_slice %40 {offsets = [64], sizes = [96], strides = [1]} : vector<416xf32> to vector<96xf32>
    %44 = vector.extract_strided_slice %40 {offsets = [160], sizes = [32], strides = [1]} : vector<416xf32> to vector<32xf32>
    %45 = vector.extract_strided_slice %40 {offsets = [192], sizes = [32], strides = [1]} : vector<416xf32> to vector<32xf32>
    %46 = vector.extract_strided_slice %40 {offsets = [224], sizes = [32], strides = [1]} : vector<416xf32> to vector<32xf32>
    %47 = vector.extract_strided_slice %40 {offsets = [256], sizes = [128], strides = [1]} : vector<416xf32> to vector<128xf32>
    %48 = vector.extract_strided_slice %40 {offsets = [384], sizes = [32], strides = [1]} : vector<416xf32> to vector<32xf32>
    %49 = vector.extract_strided_slice %36 {offsets = [0, 0], sizes = [32, 96], strides = [1, 1]} : vector<32x256xf32> to vector<32x96xf32>
    %50 = vector.extract_strided_slice %36 {offsets = [0, 96], sizes = [32, 32], strides = [1, 1]} : vector<32x256xf32> to vector<32x32xf32>
    %51 = vector.extract_strided_slice %36 {offsets = [0, 128], sizes = [32, 128], strides = [1, 1]} : vector<32x256xf32> to vector<32x128xf32>
    %cst_17 = arith.constant dense<0.000000e+00> : vector<64xf32>
    %52 = vector.multi_reduction <add>, %15, %cst_17 [1] : vector<64x32xf32> to vector<64xf32>
    %53 = vector.shape_cast %52 : vector<64xf32> to vector<64x1xf32>
    %cst_18 = arith.constant 3.200000e+01 : f32
    %54 = vector.broadcast %cst_18 : f32 to vector<64x1xf32>
    %55 = arith.divf %53, %54 : vector<64x1xf32>
    %56 = vector.broadcast %55 : vector<64x1xf32> to vector<64x32xf32>
    %57 = arith.subf %15, %56 : vector<64x32xf32>
    %58 = arith.mulf %57, %57 : vector<64x32xf32>
    %cst_19 = arith.constant dense<0.000000e+00> : vector<64xf32>
    %59 = vector.multi_reduction <add>, %58, %cst_19 [1] : vector<64x32xf32> to vector<64xf32>
    %60 = vector.shape_cast %59 : vector<64xf32> to vector<64x1xf32>
    %cst_20 = arith.constant 3.200000e+01 : f32
    %61 = vector.broadcast %cst_20 : f32 to vector<64x1xf32>
    %62 = arith.divf %60, %61 : vector<64x1xf32>
    %cst_21 = arith.constant 9.99999974E-6 : f32
    %63 = vector.broadcast %cst_21 : f32 to vector<64x1xf32>
    %64 = arith.addf %62, %63 : vector<64x1xf32>
    %65 = math.rsqrt %64 : vector<64x1xf32>
    %66 = vector.broadcast %65 : vector<64x1xf32> to vector<64x32xf32>
    %67 = arith.mulf %57, %66 : vector<64x32xf32>
    %68 = vector.shape_cast %41 : vector<32xf32> to vector<1x32xf32>
    %69 = vector.broadcast %68 : vector<1x32xf32> to vector<64x32xf32>
    %70 = arith.mulf %67, %69 : vector<64x32xf32>
    %71 = vector.shape_cast %42 : vector<32xf32> to vector<1x32xf32>
    %72 = vector.broadcast %71 : vector<1x32xf32> to vector<64x32xf32>
    %73 = arith.addf %70, %72 : vector<64x32xf32>
    %cst_22 = arith.constant dense<0.000000e+00> : vector<64x96xf32>
    %74 = tpu.matmul %73, %49, %cst_22 {dimension_numbers = #tpu.dot_dimension_numbers<[1], [0], [0], [1], [0, 0, 1, 1], [], []>} : vector<64x32xf32>, vector<32x96xf32>, vector<64x96xf32> -> vector<64x96xf32>
    %75 = vector.shape_cast %43 : vector<96xf32> to vector<1x96xf32>
    %76 = vector.broadcast %75 : vector<1x96xf32> to vector<64x96xf32>
    %77 = arith.addf %74, %76 : vector<64x96xf32>
    %78 = vector.extract_strided_slice %77 {offsets = [0, 0], sizes = [64, 16], strides = [1, 1]} : vector<64x96xf32> to vector<64x16xf32>
    %cst_23 = arith.constant 2.500000e-01 : f32
    %79 = vector.broadcast %cst_23 : f32 to vector<64x16xf32>
    %80 = arith.mulf %78, %79 : vector<64x16xf32>
    %81 = vector.extract_strided_slice %77 {offsets = [0, 32], sizes = [64, 16], strides = [1, 1]} : vector<64x96xf32> to vector<64x16xf32>
    %82 = vector.extract_strided_slice %77 {offsets = [0, 64], sizes = [64, 16], strides = [1, 1]} : vector<64x96xf32> to vector<64x16xf32>
    %cst_24 = arith.constant dense<0.000000e+00> : vector<64x64xf32>
    %83 = tpu.matmul %80, %81, %cst_24 {dimension_numbers = #tpu.dot_dimension_numbers<[1], [1], [0], [0], [0, 0, 1, 0], [], []>} : vector<64x16xf32>, vector<64x16xf32>, vector<64x64xf32> -> vector<64x64xf32>
    %84 = arith.addf %83, %34 : vector<64x64xf32>
    %cst_25 = arith.constant dense<0xFF800000> : vector<64xf32>
    %85 = vector.multi_reduction <maximumf>, %84, %cst_25 [1] : vector<64x64xf32> to vector<64xf32>
    %86 = vector.shape_cast %85 : vector<64xf32> to vector<64x1xf32>
    %87 = vector.broadcast %86 : vector<64x1xf32> to vector<64x64xf32>
    %88 = arith.subf %84, %87 : vector<64x64xf32>
    %89 = math.exp %88 : vector<64x64xf32>
    %cst_26 = arith.constant dense<0.000000e+00> : vector<64xf32>
    %90 = vector.multi_reduction <add>, %89, %cst_26 [1] : vector<64x64xf32> to vector<64xf32>
    %91 = vector.shape_cast %90 : vector<64xf32> to vector<64x1xf32>
    %92 = vector.broadcast %91 : vector<64x1xf32> to vector<64x64xf32>
    %93 = arith.divf %89, %92 : vector<64x64xf32>
    %cst_27 = arith.constant dense<0.000000e+00> : vector<64x16xf32>
    %94 = tpu.matmul %93, %82, %cst_27 {dimension_numbers = #tpu.dot_dimension_numbers<[1], [0], [0], [1], [0, 0, 1, 1], [], []>} : vector<64x64xf32>, vector<64x16xf32>, vector<64x16xf32> -> vector<64x16xf32>
    %95 = vector.extract_strided_slice %50 {offsets = [0, 0], sizes = [16, 32], strides = [1, 1]} : vector<32x32xf32> to vector<16x32xf32>
    %cst_28 = arith.constant dense<0.000000e+00> : vector<64x32xf32>
    %96 = tpu.matmul %94, %95, %cst_28 {dimension_numbers = #tpu.dot_dimension_numbers<[1], [0], [0], [1], [0, 0, 1, 1], [], []>} : vector<64x16xf32>, vector<16x32xf32>, vector<64x32xf32> -> vector<64x32xf32>
    %97 = vector.extract_strided_slice %77 {offsets = [0, 16], sizes = [64, 16], strides = [1, 1]} : vector<64x96xf32> to vector<64x16xf32>
    %cst_29 = arith.constant 2.500000e-01 : f32
    %98 = vector.broadcast %cst_29 : f32 to vector<64x16xf32>
    %99 = arith.mulf %97, %98 : vector<64x16xf32>
    %100 = vector.extract_strided_slice %77 {offsets = [0, 48], sizes = [64, 16], strides = [1, 1]} : vector<64x96xf32> to vector<64x16xf32>
    %101 = vector.extract_strided_slice %77 {offsets = [0, 80], sizes = [64, 16], strides = [1, 1]} : vector<64x96xf32> to vector<64x16xf32>
    %cst_30 = arith.constant dense<0.000000e+00> : vector<64x64xf32>
    %102 = tpu.matmul %99, %100, %cst_30 {dimension_numbers = #tpu.dot_dimension_numbers<[1], [1], [0], [0], [0, 0, 1, 0], [], []>} : vector<64x16xf32>, vector<64x16xf32>, vector<64x64xf32> -> vector<64x64xf32>
    %103 = arith.addf %102, %34 : vector<64x64xf32>
    %cst_31 = arith.constant dense<0xFF800000> : vector<64xf32>
    %104 = vector.multi_reduction <maximumf>, %103, %cst_31 [1] : vector<64x64xf32> to vector<64xf32>
    %105 = vector.shape_cast %104 : vector<64xf32> to vector<64x1xf32>
    %106 = vector.broadcast %105 : vector<64x1xf32> to vector<64x64xf32>
    %107 = arith.subf %103, %106 : vector<64x64xf32>
    %108 = math.exp %107 : vector<64x64xf32>
    %cst_32 = arith.constant dense<0.000000e+00> : vector<64xf32>
    %109 = vector.multi_reduction <add>, %108, %cst_32 [1] : vector<64x64xf32> to vector<64xf32>
    %110 = vector.shape_cast %109 : vector<64xf32> to vector<64x1xf32>
    %111 = vector.broadcast %110 : vector<64x1xf32> to vector<64x64xf32>
    %112 = arith.divf %108, %111 : vector<64x64xf32>
    %cst_33 = arith.constant dense<0.000000e+00> : vector<64x16xf32>
    %113 = tpu.matmul %112, %101, %cst_33 {dimension_numbers = #tpu.dot_dimension_numbers<[1], [0], [0], [1], [0, 0, 1, 1], [], []>} : vector<64x64xf32>, vector<64x16xf32>, vector<64x16xf32> -> vector<64x16xf32>
    %114 = vector.extract_strided_slice %50 {offsets = [16, 0], sizes = [16, 32], strides = [1, 1]} : vector<32x32xf32> to vector<16x32xf32>
    %cst_34 = arith.constant dense<0.000000e+00> : vector<64x32xf32>
    %115 = tpu.matmul %113, %114, %cst_34 {dimension_numbers = #tpu.dot_dimension_numbers<[1], [0], [0], [1], [0, 0, 1, 1], [], []>} : vector<64x16xf32>, vector<16x32xf32>, vector<64x32xf32> -> vector<64x32xf32>
    %116 = arith.addf %96, %115 : vector<64x32xf32>
    %117 = arith.addf %15, %116 : vector<64x32xf32>
    %118 = vector.shape_cast %44 : vector<32xf32> to vector<1x32xf32>
    %119 = vector.broadcast %118 : vector<1x32xf32> to vector<64x32xf32>
    %120 = arith.addf %117, %119 : vector<64x32xf32>
    %cst_35 = arith.constant dense<0.000000e+00> : vector<64xf32>
    %121 = vector.multi_reduction <add>, %120, %cst_35 [1] : vector<64x32xf32> to vector<64xf32>
    %122 = vector.shape_cast %121 : vector<64xf32> to vector<64x1xf32>
    %cst_36 = arith.constant 3.200000e+01 : f32
    %123 = vector.broadcast %cst_36 : f32 to vector<64x1xf32>
    %124 = arith.divf %122, %123 : vector<64x1xf32>
    %125 = vector.broadcast %124 : vector<64x1xf32> to vector<64x32xf32>
    %126 = arith.subf %120, %125 : vector<64x32xf32>
    %127 = arith.mulf %126, %126 : vector<64x32xf32>
    %cst_37 = arith.constant dense<0.000000e+00> : vector<64xf32>
    %128 = vector.multi_reduction <add>, %127, %cst_37 [1] : vector<64x32xf32> to vector<64xf32>
    %129 = vector.shape_cast %128 : vector<64xf32> to vector<64x1xf32>
    %cst_38 = arith.constant 3.200000e+01 : f32
    %130 = vector.broadcast %cst_38 : f32 to vector<64x1xf32>
    %131 = arith.divf %129, %130 : vector<64x1xf32>
    %cst_39 = arith.constant 9.99999974E-6 : f32
    %132 = vector.broadcast %cst_39 : f32 to vector<64x1xf32>
    %133 = arith.addf %131, %132 : vector<64x1xf32>
    %134 = math.rsqrt %133 : vector<64x1xf32>
    %135 = vector.broadcast %134 : vector<64x1xf32> to vector<64x32xf32>
    %136 = arith.mulf %126, %135 : vector<64x32xf32>
    %137 = vector.shape_cast %45 : vector<32xf32> to vector<1x32xf32>
    %138 = vector.broadcast %137 : vector<1x32xf32> to vector<64x32xf32>
    %139 = arith.mulf %136, %138 : vector<64x32xf32>
    %140 = vector.shape_cast %46 : vector<32xf32> to vector<1x32xf32>
    %141 = vector.broadcast %140 : vector<1x32xf32> to vector<64x32xf32>
    %142 = arith.addf %139, %141 : vector<64x32xf32>
    %cst_40 = arith.constant dense<0.000000e+00> : vector<64x128xf32>
    %143 = tpu.matmul %142, %51, %cst_40 {dimension_numbers = #tpu.dot_dimension_numbers<[1], [0], [0], [1], [0, 0, 1, 1], [], []>} : vector<64x32xf32>, vector<32x128xf32>, vector<64x128xf32> -> vector<64x128xf32>
    %144 = vector.shape_cast %47 : vector<128xf32> to vector<1x128xf32>
    %145 = vector.broadcast %144 : vector<1x128xf32> to vector<64x128xf32>
    %146 = arith.addf %143, %145 : vector<64x128xf32>
    %cst_41 = arith.constant 1.702000e+00 : f32
    %147 = vector.broadcast %cst_41 : f32 to vector<64x128xf32>
    %148 = arith.mulf %147, %146 : vector<64x128xf32>
    %149 = arith.negf %148 : vector<64x128xf32>
    %150 = math.exp %149 : vector<64x128xf32>
    %cst_42 = arith.constant 1.000000e+00 : f32
    %151 = vector.broadcast %cst_42 : f32 to vector<64x128xf32>
    %152 = arith.addf %151, %150 : vector<64x128xf32>
    %153 = arith.divf %151, %152 : vector<64x128xf32>
    %154 = arith.mulf %146, %153 : vector<64x128xf32>
    %cst_43 = arith.constant dense<0.000000e+00> : vector<64x32xf32>
    %155 = tpu.matmul %154, %38, %cst_43 {dimension_numbers = #tpu.dot_dimension_numbers<[1], [0], [0], [1], [0, 0, 1, 1], [], []>} : vector<64x128xf32>, vector<128x32xf32>, vector<64x32xf32> -> vector<64x32xf32>
    %156 = arith.addf %120, %155 : vector<64x32xf32>
    %157 = vector.shape_cast %48 : vector<32xf32> to vector<1x32xf32>
    %158 = vector.broadcast %157 : vector<1x32xf32> to vector<64x32xf32>
    %159 = arith.addf %156, %158 : vector<64x32xf32>
    %c1 = arith.constant 1 : index
    %c0_44 = arith.constant 0 : index
    %c0_45 = arith.constant 0 : index
    %160 = vector.load %arg4[%c1, %c0_44, %c0_45] : memref<2x32x256xf32, #tpu.memory_space<vmem>>, vector<1x32x256xf32>
    %161 = vector.shape_cast %160 : vector<1x32x256xf32> to vector<32x256xf32>
    %c1_46 = arith.constant 1 : index
    %c0_47 = arith.constant 0 : index
    %c0_48 = arith.constant 0 : index
    %162 = vector.load %arg5[%c1_46, %c0_47, %c0_48] : memref<2x128x32xf32, #tpu.memory_space<vmem>>, vector<1x128x32xf32>
    %163 = vector.shape_cast %162 : vector<1x128x32xf32> to vector<128x32xf32>
    %c1_49 = arith.constant 1 : index
    %c0_50 = arith.constant 0 : index
    %164 = vector.load %arg6[%c1_49, %c0_50] : memref<2x416xf32, #tpu.memory_space<vmem>>, vector<1x416xf32>
    %165 = vector.shape_cast %164 : vector<1x416xf32> to vector<416xf32>
    %166 = vector.extract_strided_slice %165 {offsets = [0], sizes = [32], strides = [1]} : vector<416xf32> to vector<32xf32>
    %167 = vector.extract_strided_slice %165 {offsets = [32], sizes = [32], strides = [1]} : vector<416xf32> to vector<32xf32>
    %168 = vector.extract_strided_slice %165 {offsets = [64], sizes = [96], strides = [1]} : vector<416xf32> to vector<96xf32>
    %169 = vector.extract_strided_slice %165 {offsets = [160], sizes = [32], strides = [1]} : vector<416xf32> to vector<32xf32>
    %170 = vector.extract_strided_slice %165 {offsets = [192], sizes = [32], strides = [1]} : vector<416xf32> to vector<32xf32>
    %171 = vector.extract_strided_slice %165 {offsets = [224], sizes = [32], strides = [1]} : vector<416xf32> to vector<32xf32>
    %172 = vector.extract_strided_slice %165 {offsets = [256], sizes = [128], strides = [1]} : vector<416xf32> to vector<128xf32>
    %173 = vector.extract_strided_slice %165 {offsets = [384], sizes = [32], strides = [1]} : vector<416xf32> to vector<32xf32>
    %174 = vector.extract_strided_slice %161 {offsets = [0, 0], sizes = [32, 96], strides = [1, 1]} : vector<32x256xf32> to vector<32x96xf32>
    %175 = vector.extract_strided_slice %161 {offsets = [0, 96], sizes = [32, 32], strides = [1, 1]} : vector<32x256xf32> to vector<32x32xf32>
    %176 = vector.extract_strided_slice %161 {offsets = [0, 128], sizes = [32, 128], strides = [1, 1]} : vector<32x256xf32> to vector<32x128xf32>
    %cst_51 = arith.constant dense<0.000000e+00> : vector<64xf32>
    %177 = vector.multi_reduction <add>, %159, %cst_51 [1] : vector<64x32xf32> to vector<64xf32>
    %178 = vector.shape_cast %177 : vector<64xf32> to vector<64x1xf32>
    %cst_52 = arith.constant 3.200000e+01 : f32
    %179 = vector.broadcast %cst_52 : f32 to vector<64x1xf32>
    %180 = arith.divf %178, %179 : vector<64x1xf32>
    %181 = vector.broadcast %180 : vector<64x1xf32> to vector<64x32xf32>
    %182 = arith.subf %159, %181 : vector<64x32xf32>
    %183 = arith.mulf %182, %182 : vector<64x32xf32>
    %cst_53 = arith.constant dense<0.000000e+00> : vector<64xf32>
    %184 = vector.multi_reduction <add>, %183, %cst_53 [1] : vector<64x32xf32> to vector<64xf32>
    %185 = vector.shape_cast %184 : vector<64xf32> to vector<64x1xf32>
    %cst_54 = arith.constant 3.200000e+01 : f32
    %186 = vector.broadcast %cst_54 : f32 to vector<64x1xf32>
    %187 = arith.divf %185, %186 : vector<64x1xf32>
    %cst_55 = arith.constant 9.99999974E-6 : f32
    %188 = vector.broadcast %cst_55 : f32 to vector<64x1xf32>
    %189 = arith.addf %187, %188 : vector<64x1xf32>
    %190 = math.rsqrt %189 : vector<64x1xf32>
    %191 = vector.broadcast %190 : vector<64x1xf32> to vector<64x32xf32>
    %192 = arith.mulf %182, %191 : vector<64x32xf32>
    %193 = vector.shape_cast %166 : vector<32xf32> to vector<1x32xf32>
    %194 = vector.broadcast %193 : vector<1x32xf32> to vector<64x32xf32>
    %195 = arith.mulf %192, %194 : vector<64x32xf32>
    %196 = vector.shape_cast %167 : vector<32xf32> to vector<1x32xf32>
    %197 = vector.broadcast %196 : vector<1x32xf32> to vector<64x32xf32>
    %198 = arith.addf %195, %197 : vector<64x32xf32>
    %cst_56 = arith.constant dense<0.000000e+00> : vector<64x96xf32>
    %199 = tpu.matmul %198, %174, %cst_56 {dimension_numbers = #tpu.dot_dimension_numbers<[1], [0], [0], [1], [0, 0, 1, 1], [], []>} : vector<64x32xf32>, vector<32x96xf32>, vector<64x96xf32> -> vector<64x96xf32>
    %200 = vector.shape_cast %168 : vector<96xf32> to vector<1x96xf32>
    %201 = vector.broadcast %200 : vector<1x96xf32> to vector<64x96xf32>
    %202 = arith.addf %199, %201 : vector<64x96xf32>
    %203 = vector.extract_strided_slice %202 {offsets = [0, 0], sizes = [64, 16], strides = [1, 1]} : vector<64x96xf32> to vector<64x16xf32>
    %cst_57 = arith.constant 2.500000e-01 : f32
    %204 = vector.broadcast %cst_57 : f32 to vector<64x16xf32>
    %205 = arith.mulf %203, %204 : vector<64x16xf32>
    %206 = vector.extract_strided_slice %202 {offsets = [0, 32], sizes = [64, 16], strides = [1, 1]} : vector<64x96xf32> to vector<64x16xf32>
    %207 = vector.extract_strided_slice %202 {offsets = [0, 64], sizes = [64, 16], strides = [1, 1]} : vector<64x96xf32> to vector<64x16xf32>
    %cst_58 = arith.constant dense<0.000000e+00> : vector<64x64xf32>
    %208 = tpu.matmul %205, %206, %cst_58 {dimension_numbers = #tpu.dot_dimension_numbers<[1], [1], [0], [0], [0, 0, 1, 0], [], []>} : vector<64x16xf32>, vector<64x16xf32>, vector<64x64xf32> -> vector<64x64xf32>
    %209 = arith.addf %208, %34 : vector<64x64xf32>
    %cst_59 = arith.constant dense<0xFF800000> : vector<64xf32>
    %210 = vector.multi_reduction <maximumf>, %209, %cst_59 [1] : vector<64x64xf32> to vector<64xf32>
    %211 = vector.shape_cast %210 : vector<64xf32> to vector<64x1xf32>
    %212 = vector.broadcast %211 : vector<64x1xf32> to vector<64x64xf32>
    %213 = arith.subf %209, %212 : vector<64x64xf32>
    %214 = math.exp %213 : vector<64x64xf32>
    %cst_60 = arith.constant dense<0.000000e+00> : vector<64xf32>
    %215 = vector.multi_reduction <add>, %214, %cst_60 [1] : vector<64x64xf32> to vector<64xf32>
    %216 = vector.shape_cast %215 : vector<64xf32> to vector<64x1xf32>
    %217 = vector.broadcast %216 : vector<64x1xf32> to vector<64x64xf32>
    %218 = arith.divf %214, %217 : vector<64x64xf32>
    %cst_61 = arith.constant dense<0.000000e+00> : vector<64x16xf32>
    %219 = tpu.matmul %218, %207, %cst_61 {dimension_numbers = #tpu.dot_dimension_numbers<[1], [0], [0], [1], [0, 0, 1, 1], [], []>} : vector<64x64xf32>, vector<64x16xf32>, vector<64x16xf32> -> vector<64x16xf32>
    %220 = vector.extract_strided_slice %175 {offsets = [0, 0], sizes = [16, 32], strides = [1, 1]} : vector<32x32xf32> to vector<16x32xf32>
    %cst_62 = arith.constant dense<0.000000e+00> : vector<64x32xf32>
    %221 = tpu.matmul %219, %220, %cst_62 {dimension_numbers = #tpu.dot_dimension_numbers<[1], [0], [0], [1], [0, 0, 1, 1], [], []>} : vector<64x16xf32>, vector<16x32xf32>, vector<64x32xf32> -> vector<64x32xf32>
    %222 = vector.extract_strided_slice %202 {offsets = [0, 16], sizes = [64, 16], strides = [1, 1]} : vector<64x96xf32> to vector<64x16xf32>
    %cst_63 = arith.constant 2.500000e-01 : f32
    %223 = vector.broadcast %cst_63 : f32 to vector<64x16xf32>
    %224 = arith.mulf %222, %223 : vector<64x16xf32>
    %225 = vector.extract_strided_slice %202 {offsets = [0, 48], sizes = [64, 16], strides = [1, 1]} : vector<64x96xf32> to vector<64x16xf32>
    %226 = vector.extract_strided_slice %202 {offsets = [0, 80], sizes = [64, 16], strides = [1, 1]} : vector<64x96xf32> to vector<64x16xf32>
    %cst_64 = arith.constant dense<0.000000e+00> : vector<64x64xf32>
    %227 = tpu.matmul %224, %225, %cst_64 {dimension_numbers = #tpu.dot_dimension_numbers<[1], [1], [0], [0], [0, 0, 1, 0], [], []>} : vector<64x16xf32>, vector<64x16xf32>, vector<64x64xf32> -> vector<64x64xf32>
    %228 = arith.addf %227, %34 : vector<64x64xf32>
    %cst_65 = arith.constant dense<0xFF800000> : vector<64xf32>
    %229 = vector.multi_reduction <maximumf>, %228, %cst_65 [1] : vector<64x64xf32> to vector<64xf32>
    %230 = vector.shape_cast %229 : vector<64xf32> to vector<64x1xf32>
    %231 = vector.broadcast %230 : vector<64x1xf32> to vector<64x64xf32>
    %232 = arith.subf %228, %231 : vector<64x64xf32>
    %233 = math.exp %232 : vector<64x64xf32>
    %cst_66 = arith.constant dense<0.000000e+00> : vector<64xf32>
    %234 = vector.multi_reduction <add>, %233, %cst_66 [1] : vector<64x64xf32> to vector<64xf32>
    %235 = vector.shape_cast %234 : vector<64xf32> to vector<64x1xf32>
    %236 = vector.broadcast %235 : vector<64x1xf32> to vector<64x64xf32>
    %237 = arith.divf %233, %236 : vector<64x64xf32>
    %cst_67 = arith.constant dense<0.000000e+00> : vector<64x16xf32>
    %238 = tpu.matmul %237, %226, %cst_67 {dimension_numbers = #tpu.dot_dimension_numbers<[1], [0], [0], [1], [0, 0, 1, 1], [], []>} : vector<64x64xf32>, vector<64x16xf32>, vector<64x16xf32> -> vector<64x16xf32>
    %239 = vector.extract_strided_slice %175 {offsets = [16, 0], sizes = [16, 32], strides = [1, 1]} : vector<32x32xf32> to vector<16x32xf32>
    %cst_68 = arith.constant dense<0.000000e+00> : vector<64x32xf32>
    %240 = tpu.matmul %238, %239, %cst_68 {dimension_numbers = #tpu.dot_dimension_numbers<[1], [0], [0], [1], [0, 0, 1, 1], [], []>} : vector<64x16xf32>, vector<16x32xf32>, vector<64x32xf32> -> vector<64x32xf32>
    %241 = arith.addf %221, %240 : vector<64x32xf32>
    %242 = arith.addf %159, %241 : vector<64x32xf32>
    %243 = vector.shape_cast %169 : vector<32xf32> to vector<1x32xf32>
    %244 = vector.broadcast %243 : vector<1x32xf32> to vector<64x32xf32>
    %245 = arith.addf %242, %244 : vector<64x32xf32>
    %cst_69 = arith.constant dense<0.000000e+00> : vector<64xf32>
    %246 = vector.multi_reduction <add>, %245, %cst_69 [1] : vector<64x32xf32> to vector<64xf32>
    %247 = vector.shape_cast %246 : vector<64xf32> to vector<64x1xf32>
    %cst_70 = arith.constant 3.200000e+01 : f32
    %248 = vector.broadcast %cst_70 : f32 to vector<64x1xf32>
    %249 = arith.divf %247, %248 : vector<64x1xf32>
    %250 = vector.broadcast %249 : vector<64x1xf32> to vector<64x32xf32>
    %251 = arith.subf %245, %250 : vector<64x32xf32>
    %252 = arith.mulf %251, %251 : vector<64x32xf32>
    %cst_71 = arith.constant dense<0.000000e+00> : vector<64xf32>
    %253 = vector.multi_reduction <add>, %252, %cst_71 [1] : vector<64x32xf32> to vector<64xf32>
    %254 = vector.shape_cast %253 : vector<64xf32> to vector<64x1xf32>
    %cst_72 = arith.constant 3.200000e+01 : f32
    %255 = vector.broadcast %cst_72 : f32 to vector<64x1xf32>
    %256 = arith.divf %254, %255 : vector<64x1xf32>
    %cst_73 = arith.constant 9.99999974E-6 : f32
    %257 = vector.broadcast %cst_73 : f32 to vector<64x1xf32>
    %258 = arith.addf %256, %257 : vector<64x1xf32>
    %259 = math.rsqrt %258 : vector<64x1xf32>
    %260 = vector.broadcast %259 : vector<64x1xf32> to vector<64x32xf32>
    %261 = arith.mulf %251, %260 : vector<64x32xf32>
    %262 = vector.shape_cast %170 : vector<32xf32> to vector<1x32xf32>
    %263 = vector.broadcast %262 : vector<1x32xf32> to vector<64x32xf32>
    %264 = arith.mulf %261, %263 : vector<64x32xf32>
    %265 = vector.shape_cast %171 : vector<32xf32> to vector<1x32xf32>
    %266 = vector.broadcast %265 : vector<1x32xf32> to vector<64x32xf32>
    %267 = arith.addf %264, %266 : vector<64x32xf32>
    %cst_74 = arith.constant dense<0.000000e+00> : vector<64x128xf32>
    %268 = tpu.matmul %267, %176, %cst_74 {dimension_numbers = #tpu.dot_dimension_numbers<[1], [0], [0], [1], [0, 0, 1, 1], [], []>} : vector<64x32xf32>, vector<32x128xf32>, vector<64x128xf32> -> vector<64x128xf32>
    %269 = vector.shape_cast %172 : vector<128xf32> to vector<1x128xf32>
    %270 = vector.broadcast %269 : vector<1x128xf32> to vector<64x128xf32>
    %271 = arith.addf %268, %270 : vector<64x128xf32>
    %cst_75 = arith.constant 1.702000e+00 : f32
    %272 = vector.broadcast %cst_75 : f32 to vector<64x128xf32>
    %273 = arith.mulf %272, %271 : vector<64x128xf32>
    %274 = arith.negf %273 : vector<64x128xf32>
    %275 = math.exp %274 : vector<64x128xf32>
    %cst_76 = arith.constant 1.000000e+00 : f32
    %276 = vector.broadcast %cst_76 : f32 to vector<64x128xf32>
    %277 = arith.addf %276, %275 : vector<64x128xf32>
    %278 = arith.divf %276, %277 : vector<64x128xf32>
    %279 = arith.mulf %271, %278 : vector<64x128xf32>
    %cst_77 = arith.constant dense<0.000000e+00> : vector<64x32xf32>
    %280 = tpu.matmul %279, %163, %cst_77 {dimension_numbers = #tpu.dot_dimension_numbers<[1], [0], [0], [1], [0, 0, 1, 1], [], []>} : vector<64x128xf32>, vector<128x32xf32>, vector<64x32xf32> -> vector<64x32xf32>
    %281 = arith.addf %245, %280 : vector<64x32xf32>
    %282 = vector.shape_cast %173 : vector<32xf32> to vector<1x32xf32>
    %283 = vector.broadcast %282 : vector<1x32xf32> to vector<64x32xf32>
    %284 = arith.addf %281, %283 : vector<64x32xf32>
    %c0_78 = arith.constant 0 : index
    %c0_79 = arith.constant 0 : index
    %285 = vector.load %arg7[%c0_78, %c0_79] : memref<1x160xf32, #tpu.memory_space<vmem>>, vector<1x160xf32>
    %286 = vector.shape_cast %285 : vector<1x160xf32> to vector<160xf32>
    %287 = vector.extract_strided_slice %286 {offsets = [0], sizes = [32], strides = [1]} : vector<160xf32> to vector<32xf32>
    %288 = vector.extract_strided_slice %286 {offsets = [32], sizes = [32], strides = [1]} : vector<160xf32> to vector<32xf32>
    %cst_80 = arith.constant dense<0.000000e+00> : vector<64xf32>
    %289 = vector.multi_reduction <add>, %284, %cst_80 [1] : vector<64x32xf32> to vector<64xf32>
    %290 = vector.shape_cast %289 : vector<64xf32> to vector<64x1xf32>
    %cst_81 = arith.constant 3.200000e+01 : f32
    %291 = vector.broadcast %cst_81 : f32 to vector<64x1xf32>
    %292 = arith.divf %290, %291 : vector<64x1xf32>
    %293 = vector.broadcast %292 : vector<64x1xf32> to vector<64x32xf32>
    %294 = arith.subf %284, %293 : vector<64x32xf32>
    %295 = arith.mulf %294, %294 : vector<64x32xf32>
    %cst_82 = arith.constant dense<0.000000e+00> : vector<64xf32>
    %296 = vector.multi_reduction <add>, %295, %cst_82 [1] : vector<64x32xf32> to vector<64xf32>
    %297 = vector.shape_cast %296 : vector<64xf32> to vector<64x1xf32>
    %cst_83 = arith.constant 3.200000e+01 : f32
    %298 = vector.broadcast %cst_83 : f32 to vector<64x1xf32>
    %299 = arith.divf %297, %298 : vector<64x1xf32>
    %cst_84 = arith.constant 9.99999974E-6 : f32
    %300 = vector.broadcast %cst_84 : f32 to vector<64x1xf32>
    %301 = arith.addf %299, %300 : vector<64x1xf32>
    %302 = math.rsqrt %301 : vector<64x1xf32>
    %303 = vector.broadcast %302 : vector<64x1xf32> to vector<64x32xf32>
    %304 = arith.mulf %294, %303 : vector<64x32xf32>
    %305 = vector.shape_cast %287 : vector<32xf32> to vector<1x32xf32>
    %306 = vector.broadcast %305 : vector<1x32xf32> to vector<64x32xf32>
    %307 = arith.mulf %304, %306 : vector<64x32xf32>
    %308 = vector.shape_cast %288 : vector<32xf32> to vector<1x32xf32>
    %309 = vector.broadcast %308 : vector<1x32xf32> to vector<64x32xf32>
    %310 = arith.addf %307, %309 : vector<64x32xf32>
    %311 = tpu.iota {dimensions = array<i32: 0>} : vector<8x64xi32>
    %312 = tpu.iota {dimensions = array<i32: 1>} : vector<8x64xi32>
    %c8_i32_85 = arith.constant 8 : i32
    %313 = vector.broadcast %c8_i32_85 : i32 to vector<8x64xi32>
    %314 = arith.muli %311, %313 : vector<8x64xi32>
    %315 = arith.cmpi eq, %312, %314 : vector<8x64xi32>
    %316 = arith.extui %315 : vector<8x64xi1> to vector<8x64xi32>
    %317 = arith.sitofp %316 : vector<8x64xi32> to vector<8x64xf32>
    %cst_86 = arith.constant dense<0.000000e+00> : vector<8x32xf32>
    %318 = tpu.matmul %317, %310, %cst_86 {dimension_numbers = #tpu.dot_dimension_numbers<[1], [0], [0], [1], [0, 0, 1, 1], [], []>} : vector<8x64xf32>, vector<64x32xf32>, vector<8x32xf32> -> vector<8x32xf32>
    %c0_87 = arith.constant 0 : index
    %c0_88 = arith.constant 0 : index
    %319 = vector.load %arg8[%c0_87, %c0_88] : memref<32x64xf32, #tpu.memory_space<vmem>>, vector<32x64xf32>
    %cst_89 = arith.constant dense<0.000000e+00> : vector<8x64xf32>
    %320 = tpu.matmul %318, %319, %cst_89 {dimension_numbers = #tpu.dot_dimension_numbers<[1], [0], [0], [1], [0, 0, 1, 1], [], []>} : vector<8x32xf32>, vector<32x64xf32>, vector<8x64xf32> -> vector<8x64xf32>
    %321 = vector.extract_strided_slice %286 {offsets = [64], sizes = [64], strides = [1]} : vector<160xf32> to vector<64xf32>
    %322 = vector.shape_cast %321 : vector<64xf32> to vector<1x64xf32>
    %323 = vector.broadcast %322 : vector<1x64xf32> to vector<8x64xf32>
    %324 = arith.addf %320, %323 : vector<8x64xf32>
    %cst_90 = arith.constant 0.000000e+00 : f32
    %325 = vector.broadcast %cst_90 : f32 to vector<8x64xf32>
    %326 = arith.cmpf oge, %324, %325 : vector<8x64xf32>
    %cst_91 = arith.constant 0.00999999977 : f32
    %327 = vector.broadcast %cst_91 : f32 to vector<8x64xf32>
    %328 = arith.mulf %327, %324 : vector<8x64xf32>
    %329 = arith.select %326, %324, %328 : vector<8x64xi1>, vector<8x64xf32>
    %c0_92 = arith.constant 0 : index
    %c0_93 = arith.constant 0 : index
    %330 = vector.load %arg9[%c0_92, %c0_93] : memref<64x32xf32, #tpu.memory_space<vmem>>, vector<64x32xf32>
    %cst_94 = arith.constant dense<0.000000e+00> : vector<8x32xf32>
    %331 = tpu.matmul %329, %330, %cst_94 {dimension_numbers = #tpu.dot_dimension_numbers<[1], [0], [0], [1], [0, 0, 1, 1], [], []>} : vector<8x64xf32>, vector<64x32xf32>, vector<8x32xf32> -> vector<8x32xf32>
    %332 = vector.extract_strided_slice %286 {offsets = [128], sizes = [32], strides = [1]} : vector<160xf32> to vector<32xf32>
    %333 = vector.shape_cast %332 : vector<32xf32> to vector<1x32xf32>
    %334 = vector.broadcast %333 : vector<1x32xf32> to vector<8x32xf32>
    %335 = arith.addf %331, %334 : vector<8x32xf32>
    %c0_95 = arith.constant 0 : index
    %c0_96 = arith.constant 0 : index
    %336 = vector.load %arg11[%c0_95, %c0_96] : memref<11x32xf32, #tpu.memory_space<vmem>>, vector<11x32xf32>
    %c0_97 = arith.constant 0 : index
    %c0_98 = arith.constant 0 : index
    %337 = vector.load %arg1[%c0_97, %c0_98] : memref<16x192xf32, #tpu.memory_space<vmem>>, vector<16x192xf32>
    %c0_99 = arith.constant 0 : index
    %c0_100 = arith.constant 0 : index
    %338 = vector.load %arg10[%c0_99, %c0_100] : memref<192x32xf32, #tpu.memory_space<vmem>>, vector<192x32xf32>
    %cst_101 = arith.constant dense<0.000000e+00> : vector<16x32xf32>
    %339 = tpu.matmul %337, %338, %cst_101 {dimension_numbers = #tpu.dot_dimension_numbers<[1], [0], [0], [1], [0, 0, 1, 1], [], []>} : vector<16x192xf32>, vector<192x32xf32>, vector<16x32xf32> -> vector<16x32xf32>
    %340 = tpu.iota {dimensions = array<i32: 0>} : vector<8x32xi32>
    %341 = vector.extract_strided_slice %336 {offsets = [1, 0], sizes = [8, 32], strides = [1, 1]} : vector<11x32xf32> to vector<8x32xf32>
    %c0_i32 = arith.constant 0 : i32
    %342 = vector.broadcast %c0_i32 : i32 to vector<8x32xi32>
    %343 = arith.cmpi eq, %340, %342 : vector<8x32xi32>
    %344 = vector.extract_strided_slice %336 {offsets = [0, 0], sizes = [1, 32], strides = [1, 1]} : vector<11x32xf32> to vector<1x32xf32>
    %345 = vector.shape_cast %344 : vector<1x32xf32> to vector<32xf32>
    %cst_102 = arith.constant 0.000000e+00 : f32
    %346 = vector.shape_cast %345 : vector<32xf32> to vector<1x32xf32>
    %347 = vector.broadcast %346 : vector<1x32xf32> to vector<8x32xf32>
    %348 = vector.broadcast %cst_102 : f32 to vector<8x32xf32>
    %349 = arith.select %343, %347, %348 : vector<8x32xi1>, vector<8x32xf32>
    %350 = arith.addf %341, %349 : vector<8x32xf32>
    %351 = vector.shape_cast %339 : vector<16x32xf32> to vector<2x8x32xf32>
    %352 = vector.shape_cast %350 : vector<8x32xf32> to vector<1x8x32xf32>
    %353 = vector.broadcast %352 : vector<1x8x32xf32> to vector<2x8x32xf32>
    %354 = arith.addf %351, %353 : vector<2x8x32xf32>
    %355 = vector.shape_cast %354 : vector<2x8x32xf32> to vector<16x32xf32>
    %356 = vector.extract_strided_slice %336 {offsets = [9, 0], sizes = [1, 32], strides = [1, 1]} : vector<11x32xf32> to vector<1x32xf32>
    %357 = vector.shape_cast %356 : vector<1x32xf32> to vector<32xf32>
    %358 = vector.extract_strided_slice %336 {offsets = [10, 0], sizes = [1, 32], strides = [1, 1]} : vector<11x32xf32> to vector<1x32xf32>
    %359 = vector.shape_cast %358 : vector<1x32xf32> to vector<32xf32>
    %cst_103 = arith.constant dense<0.000000e+00> : vector<16xf32>
    %360 = vector.multi_reduction <add>, %355, %cst_103 [1] : vector<16x32xf32> to vector<16xf32>
    %361 = vector.shape_cast %360 : vector<16xf32> to vector<16x1xf32>
    %cst_104 = arith.constant 3.200000e+01 : f32
    %362 = vector.broadcast %cst_104 : f32 to vector<16x1xf32>
    %363 = arith.divf %361, %362 : vector<16x1xf32>
    %364 = vector.broadcast %363 : vector<16x1xf32> to vector<16x32xf32>
    %365 = arith.subf %355, %364 : vector<16x32xf32>
    %366 = arith.mulf %365, %365 : vector<16x32xf32>
    %cst_105 = arith.constant dense<0.000000e+00> : vector<16xf32>
    %367 = vector.multi_reduction <add>, %366, %cst_105 [1] : vector<16x32xf32> to vector<16xf32>
    %368 = vector.shape_cast %367 : vector<16xf32> to vector<16x1xf32>
    %cst_106 = arith.constant 3.200000e+01 : f32
    %369 = vector.broadcast %cst_106 : f32 to vector<16x1xf32>
    %370 = arith.divf %368, %369 : vector<16x1xf32>
    %cst_107 = arith.constant 9.99999974E-6 : f32
    %371 = vector.broadcast %cst_107 : f32 to vector<16x1xf32>
    %372 = arith.addf %370, %371 : vector<16x1xf32>
    %373 = math.rsqrt %372 : vector<16x1xf32>
    %374 = vector.broadcast %373 : vector<16x1xf32> to vector<16x32xf32>
    %375 = arith.mulf %365, %374 : vector<16x32xf32>
    %376 = vector.shape_cast %357 : vector<32xf32> to vector<1x32xf32>
    %377 = vector.broadcast %376 : vector<1x32xf32> to vector<16x32xf32>
    %378 = arith.mulf %375, %377 : vector<16x32xf32>
    %379 = vector.shape_cast %359 : vector<32xf32> to vector<1x32xf32>
    %380 = vector.broadcast %379 : vector<1x32xf32> to vector<16x32xf32>
    %381 = arith.addf %378, %380 : vector<16x32xf32>
    %382 = tpu.iota {dimensions = array<i32: 0>} : vector<16x16xi32>
    %383 = tpu.iota {dimensions = array<i32: 1>} : vector<16x16xi32>
    %c3_i32_108 = arith.constant 3 : i32
    %384 = vector.broadcast %c3_i32_108 : i32 to vector<16x16xi32>
    %385 = arith.shrsi %382, %384 : vector<16x16xi32>
    %c3_i32_109 = arith.constant 3 : i32
    %386 = vector.broadcast %c3_i32_109 : i32 to vector<16x16xi32>
    %387 = arith.shrsi %383, %386 : vector<16x16xi32>
    %388 = arith.cmpi eq, %385, %387 : vector<16x16xi32>
    %c7_i32_110 = arith.constant 7 : i32
    %389 = vector.broadcast %c7_i32_110 : i32 to vector<16x16xi32>
    %390 = arith.andi %383, %389 : vector<16x16xi32>
    %c5_i32 = arith.constant 5 : i32
    %391 = vector.broadcast %c5_i32 : i32 to vector<16x16xi32>
    %392 = arith.cmpi slt, %390, %391 : vector<16x16xi32>
    %393 = arith.andi %388, %392 : vector<16x16xi1>
    %cst_111 = arith.constant 0.000000e+00 : f32
    %cst_112 = arith.constant -1.000000e+09 : f32
    %394 = vector.broadcast %cst_111 : f32 to vector<16x16xf32>
    %395 = vector.broadcast %cst_112 : f32 to vector<16x16xf32>
    %396 = arith.select %393, %394, %395 : vector<16x16xi1>, vector<16x16xf32>
    %c0_113 = arith.constant 0 : index
    %c0_114 = arith.constant 0 : index
    %c0_115 = arith.constant 0 : index
    %397 = vector.load %arg12[%c0_113, %c0_114, %c0_115] : memref<2x32x256xf32, #tpu.memory_space<vmem>>, vector<1x32x256xf32>
    %398 = vector.shape_cast %397 : vector<1x32x256xf32> to vector<32x256xf32>
    %c0_116 = arith.constant 0 : index
    %c0_117 = arith.constant 0 : index
    %c0_118 = arith.constant 0 : index
    %399 = vector.load %arg13[%c0_116, %c0_117, %c0_118] : memref<2x128x32xf32, #tpu.memory_space<vmem>>, vector<1x128x32xf32>
    %400 = vector.shape_cast %399 : vector<1x128x32xf32> to vector<128x32xf32>
    %c0_119 = arith.constant 0 : index
    %c0_120 = arith.constant 0 : index
    %401 = vector.load %arg14[%c0_119, %c0_120] : memref<2x416xf32, #tpu.memory_space<vmem>>, vector<1x416xf32>
    %402 = vector.shape_cast %401 : vector<1x416xf32> to vector<416xf32>
    %403 = vector.extract_strided_slice %402 {offsets = [0], sizes = [32], strides = [1]} : vector<416xf32> to vector<32xf32>
    %404 = vector.extract_strided_slice %402 {offsets = [32], sizes = [32], strides = [1]} : vector<416xf32> to vector<32xf32>
    %405 = vector.extract_strided_slice %402 {offsets = [64], sizes = [96], strides = [1]} : vector<416xf32> to vector<96xf32>
    %406 = vector.extract_strided_slice %402 {offsets = [160], sizes = [32], strides = [1]} : vector<416xf32> to vector<32xf32>
    %407 = vector.extract_strided_slice %402 {offsets = [192], sizes = [32], strides = [1]} : vector<416xf32> to vector<32xf32>
    %408 = vector.extract_strided_slice %402 {offsets = [224], sizes = [32], strides = [1]} : vector<416xf32> to vector<32xf32>
    %409 = vector.extract_strided_slice %402 {offsets = [256], sizes = [128], strides = [1]} : vector<416xf32> to vector<128xf32>
    %410 = vector.extract_strided_slice %402 {offsets = [384], sizes = [32], strides = [1]} : vector<416xf32> to vector<32xf32>
    %411 = vector.extract_strided_slice %398 {offsets = [0, 0], sizes = [32, 96], strides = [1, 1]} : vector<32x256xf32> to vector<32x96xf32>
    %412 = vector.extract_strided_slice %398 {offsets = [0, 96], sizes = [32, 32], strides = [1, 1]} : vector<32x256xf32> to vector<32x32xf32>
    %413 = vector.extract_strided_slice %398 {offsets = [0, 128], sizes = [32, 128], strides = [1, 1]} : vector<32x256xf32> to vector<32x128xf32>
    %cst_121 = arith.constant dense<0.000000e+00> : vector<16xf32>
    %414 = vector.multi_reduction <add>, %381, %cst_121 [1] : vector<16x32xf32> to vector<16xf32>
    %415 = vector.shape_cast %414 : vector<16xf32> to vector<16x1xf32>
    %cst_122 = arith.constant 3.200000e+01 : f32
    %416 = vector.broadcast %cst_122 : f32 to vector<16x1xf32>
    %417 = arith.divf %415, %416 : vector<16x1xf32>
    %418 = vector.broadcast %417 : vector<16x1xf32> to vector<16x32xf32>
    %419 = arith.subf %381, %418 : vector<16x32xf32>
    %420 = arith.mulf %419, %419 : vector<16x32xf32>
    %cst_123 = arith.constant dense<0.000000e+00> : vector<16xf32>
    %421 = vector.multi_reduction <add>, %420, %cst_123 [1] : vector<16x32xf32> to vector<16xf32>
    %422 = vector.shape_cast %421 : vector<16xf32> to vector<16x1xf32>
    %cst_124 = arith.constant 3.200000e+01 : f32
    %423 = vector.broadcast %cst_124 : f32 to vector<16x1xf32>
    %424 = arith.divf %422, %423 : vector<16x1xf32>
    %cst_125 = arith.constant 9.99999974E-6 : f32
    %425 = vector.broadcast %cst_125 : f32 to vector<16x1xf32>
    %426 = arith.addf %424, %425 : vector<16x1xf32>
    %427 = math.rsqrt %426 : vector<16x1xf32>
    %428 = vector.broadcast %427 : vector<16x1xf32> to vector<16x32xf32>
    %429 = arith.mulf %419, %428 : vector<16x32xf32>
    %430 = vector.shape_cast %403 : vector<32xf32> to vector<1x32xf32>
    %431 = vector.broadcast %430 : vector<1x32xf32> to vector<16x32xf32>
    %432 = arith.mulf %429, %431 : vector<16x32xf32>
    %433 = vector.shape_cast %404 : vector<32xf32> to vector<1x32xf32>
    %434 = vector.broadcast %433 : vector<1x32xf32> to vector<16x32xf32>
    %435 = arith.addf %432, %434 : vector<16x32xf32>
    %cst_126 = arith.constant dense<0.000000e+00> : vector<16x96xf32>
    %436 = tpu.matmul %435, %411, %cst_126 {dimension_numbers = #tpu.dot_dimension_numbers<[1], [0], [0], [1], [0, 0, 1, 1], [], []>} : vector<16x32xf32>, vector<32x96xf32>, vector<16x96xf32> -> vector<16x96xf32>
    %437 = vector.shape_cast %405 : vector<96xf32> to vector<1x96xf32>
    %438 = vector.broadcast %437 : vector<1x96xf32> to vector<16x96xf32>
    %439 = arith.addf %436, %438 : vector<16x96xf32>
    %440 = vector.extract_strided_slice %439 {offsets = [0, 0], sizes = [16, 16], strides = [1, 1]} : vector<16x96xf32> to vector<16x16xf32>
    %cst_127 = arith.constant 2.500000e-01 : f32
    %441 = vector.broadcast %cst_127 : f32 to vector<16x16xf32>
    %442 = arith.mulf %440, %441 : vector<16x16xf32>
    %443 = vector.extract_strided_slice %439 {offsets = [0, 32], sizes = [16, 16], strides = [1, 1]} : vector<16x96xf32> to vector<16x16xf32>
    %444 = vector.extract_strided_slice %439 {offsets = [0, 64], sizes = [16, 16], strides = [1, 1]} : vector<16x96xf32> to vector<16x16xf32>
    %cst_128 = arith.constant dense<0.000000e+00> : vector<16x16xf32>
    %445 = tpu.matmul %442, %443, %cst_128 {dimension_numbers = #tpu.dot_dimension_numbers<[1], [1], [0], [0], [0, 0, 1, 0], [], []>} : vector<16x16xf32>, vector<16x16xf32>, vector<16x16xf32> -> vector<16x16xf32>
    %446 = arith.addf %445, %396 : vector<16x16xf32>
    %cst_129 = arith.constant dense<0xFF800000> : vector<16xf32>
    %447 = vector.multi_reduction <maximumf>, %446, %cst_129 [1] : vector<16x16xf32> to vector<16xf32>
    %448 = vector.shape_cast %447 : vector<16xf32> to vector<16x1xf32>
    %449 = vector.broadcast %448 : vector<16x1xf32> to vector<16x16xf32>
    %450 = arith.subf %446, %449 : vector<16x16xf32>
    %451 = math.exp %450 : vector<16x16xf32>
    %cst_130 = arith.constant dense<0.000000e+00> : vector<16xf32>
    %452 = vector.multi_reduction <add>, %451, %cst_130 [1] : vector<16x16xf32> to vector<16xf32>
    %453 = vector.shape_cast %452 : vector<16xf32> to vector<16x1xf32>
    %454 = vector.broadcast %453 : vector<16x1xf32> to vector<16x16xf32>
    %455 = arith.divf %451, %454 : vector<16x16xf32>
    %cst_131 = arith.constant dense<0.000000e+00> : vector<16x16xf32>
    %456 = tpu.matmul %455, %444, %cst_131 {dimension_numbers = #tpu.dot_dimension_numbers<[1], [0], [0], [1], [0, 0, 1, 1], [], []>} : vector<16x16xf32>, vector<16x16xf32>, vector<16x16xf32> -> vector<16x16xf32>
    %457 = vector.extract_strided_slice %412 {offsets = [0, 0], sizes = [16, 32], strides = [1, 1]} : vector<32x32xf32> to vector<16x32xf32>
    %cst_132 = arith.constant dense<0.000000e+00> : vector<16x32xf32>
    %458 = tpu.matmul %456, %457, %cst_132 {dimension_numbers = #tpu.dot_dimension_numbers<[1], [0], [0], [1], [0, 0, 1, 1], [], []>} : vector<16x16xf32>, vector<16x32xf32>, vector<16x32xf32> -> vector<16x32xf32>
    %459 = vector.extract_strided_slice %439 {offsets = [0, 16], sizes = [16, 16], strides = [1, 1]} : vector<16x96xf32> to vector<16x16xf32>
    %cst_133 = arith.constant 2.500000e-01 : f32
    %460 = vector.broadcast %cst_133 : f32 to vector<16x16xf32>
    %461 = arith.mulf %459, %460 : vector<16x16xf32>
    %462 = vector.extract_strided_slice %439 {offsets = [0, 48], sizes = [16, 16], strides = [1, 1]} : vector<16x96xf32> to vector<16x16xf32>
    %463 = vector.extract_strided_slice %439 {offsets = [0, 80], sizes = [16, 16], strides = [1, 1]} : vector<16x96xf32> to vector<16x16xf32>
    %cst_134 = arith.constant dense<0.000000e+00> : vector<16x16xf32>
    %464 = tpu.matmul %461, %462, %cst_134 {dimension_numbers = #tpu.dot_dimension_numbers<[1], [1], [0], [0], [0, 0, 1, 0], [], []>} : vector<16x16xf32>, vector<16x16xf32>, vector<16x16xf32> -> vector<16x16xf32>
    %465 = arith.addf %464, %396 : vector<16x16xf32>
    %cst_135 = arith.constant dense<0xFF800000> : vector<16xf32>
    %466 = vector.multi_reduction <maximumf>, %465, %cst_135 [1] : vector<16x16xf32> to vector<16xf32>
    %467 = vector.shape_cast %466 : vector<16xf32> to vector<16x1xf32>
    %468 = vector.broadcast %467 : vector<16x1xf32> to vector<16x16xf32>
    %469 = arith.subf %465, %468 : vector<16x16xf32>
    %470 = math.exp %469 : vector<16x16xf32>
    %cst_136 = arith.constant dense<0.000000e+00> : vector<16xf32>
    %471 = vector.multi_reduction <add>, %470, %cst_136 [1] : vector<16x16xf32> to vector<16xf32>
    %472 = vector.shape_cast %471 : vector<16xf32> to vector<16x1xf32>
    %473 = vector.broadcast %472 : vector<16x1xf32> to vector<16x16xf32>
    %474 = arith.divf %470, %473 : vector<16x16xf32>
    %cst_137 = arith.constant dense<0.000000e+00> : vector<16x16xf32>
    %475 = tpu.matmul %474, %463, %cst_137 {dimension_numbers = #tpu.dot_dimension_numbers<[1], [0], [0], [1], [0, 0, 1, 1], [], []>} : vector<16x16xf32>, vector<16x16xf32>, vector<16x16xf32> -> vector<16x16xf32>
    %476 = vector.extract_strided_slice %412 {offsets = [16, 0], sizes = [16, 32], strides = [1, 1]} : vector<32x32xf32> to vector<16x32xf32>
    %cst_138 = arith.constant dense<0.000000e+00> : vector<16x32xf32>
    %477 = tpu.matmul %475, %476, %cst_138 {dimension_numbers = #tpu.dot_dimension_numbers<[1], [0], [0], [1], [0, 0, 1, 1], [], []>} : vector<16x16xf32>, vector<16x32xf32>, vector<16x32xf32> -> vector<16x32xf32>
    %478 = arith.addf %458, %477 : vector<16x32xf32>
    %479 = arith.addf %381, %478 : vector<16x32xf32>
    %480 = vector.shape_cast %406 : vector<32xf32> to vector<1x32xf32>
    %481 = vector.broadcast %480 : vector<1x32xf32> to vector<16x32xf32>
    %482 = arith.addf %479, %481 : vector<16x32xf32>
    %cst_139 = arith.constant dense<0.000000e+00> : vector<16xf32>
    %483 = vector.multi_reduction <add>, %482, %cst_139 [1] : vector<16x32xf32> to vector<16xf32>
    %484 = vector.shape_cast %483 : vector<16xf32> to vector<16x1xf32>
    %cst_140 = arith.constant 3.200000e+01 : f32
    %485 = vector.broadcast %cst_140 : f32 to vector<16x1xf32>
    %486 = arith.divf %484, %485 : vector<16x1xf32>
    %487 = vector.broadcast %486 : vector<16x1xf32> to vector<16x32xf32>
    %488 = arith.subf %482, %487 : vector<16x32xf32>
    %489 = arith.mulf %488, %488 : vector<16x32xf32>
    %cst_141 = arith.constant dense<0.000000e+00> : vector<16xf32>
    %490 = vector.multi_reduction <add>, %489, %cst_141 [1] : vector<16x32xf32> to vector<16xf32>
    %491 = vector.shape_cast %490 : vector<16xf32> to vector<16x1xf32>
    %cst_142 = arith.constant 3.200000e+01 : f32
    %492 = vector.broadcast %cst_142 : f32 to vector<16x1xf32>
    %493 = arith.divf %491, %492 : vector<16x1xf32>
    %cst_143 = arith.constant 9.99999974E-6 : f32
    %494 = vector.broadcast %cst_143 : f32 to vector<16x1xf32>
    %495 = arith.addf %493, %494 : vector<16x1xf32>
    %496 = math.rsqrt %495 : vector<16x1xf32>
    %497 = vector.broadcast %496 : vector<16x1xf32> to vector<16x32xf32>
    %498 = arith.mulf %488, %497 : vector<16x32xf32>
    %499 = vector.shape_cast %407 : vector<32xf32> to vector<1x32xf32>
    %500 = vector.broadcast %499 : vector<1x32xf32> to vector<16x32xf32>
    %501 = arith.mulf %498, %500 : vector<16x32xf32>
    %502 = vector.shape_cast %408 : vector<32xf32> to vector<1x32xf32>
    %503 = vector.broadcast %502 : vector<1x32xf32> to vector<16x32xf32>
    %504 = arith.addf %501, %503 : vector<16x32xf32>
    %cst_144 = arith.constant dense<0.000000e+00> : vector<16x128xf32>
    %505 = tpu.matmul %504, %413, %cst_144 {dimension_numbers = #tpu.dot_dimension_numbers<[1], [0], [0], [1], [0, 0, 1, 1], [], []>} : vector<16x32xf32>, vector<32x128xf32>, vector<16x128xf32> -> vector<16x128xf32>
    %506 = vector.shape_cast %409 : vector<128xf32> to vector<1x128xf32>
    %507 = vector.broadcast %506 : vector<1x128xf32> to vector<16x128xf32>
    %508 = arith.addf %505, %507 : vector<16x128xf32>
    %cst_145 = arith.constant 1.702000e+00 : f32
    %509 = vector.broadcast %cst_145 : f32 to vector<16x128xf32>
    %510 = arith.mulf %509, %508 : vector<16x128xf32>
    %511 = arith.negf %510 : vector<16x128xf32>
    %512 = math.exp %511 : vector<16x128xf32>
    %cst_146 = arith.constant 1.000000e+00 : f32
    %513 = vector.broadcast %cst_146 : f32 to vector<16x128xf32>
    %514 = arith.addf %513, %512 : vector<16x128xf32>
    %515 = arith.divf %513, %514 : vector<16x128xf32>
    %516 = arith.mulf %508, %515 : vector<16x128xf32>
    %cst_147 = arith.constant dense<0.000000e+00> : vector<16x32xf32>
    %517 = tpu.matmul %516, %400, %cst_147 {dimension_numbers = #tpu.dot_dimension_numbers<[1], [0], [0], [1], [0, 0, 1, 1], [], []>} : vector<16x128xf32>, vector<128x32xf32>, vector<16x32xf32> -> vector<16x32xf32>
    %518 = arith.addf %482, %517 : vector<16x32xf32>
    %519 = vector.shape_cast %410 : vector<32xf32> to vector<1x32xf32>
    %520 = vector.broadcast %519 : vector<1x32xf32> to vector<16x32xf32>
    %521 = arith.addf %518, %520 : vector<16x32xf32>
    %c1_148 = arith.constant 1 : index
    %c0_149 = arith.constant 0 : index
    %c0_150 = arith.constant 0 : index
    %522 = vector.load %arg12[%c1_148, %c0_149, %c0_150] : memref<2x32x256xf32, #tpu.memory_space<vmem>>, vector<1x32x256xf32>
    %523 = vector.shape_cast %522 : vector<1x32x256xf32> to vector<32x256xf32>
    %c1_151 = arith.constant 1 : index
    %c0_152 = arith.constant 0 : index
    %c0_153 = arith.constant 0 : index
    %524 = vector.load %arg13[%c1_151, %c0_152, %c0_153] : memref<2x128x32xf32, #tpu.memory_space<vmem>>, vector<1x128x32xf32>
    %525 = vector.shape_cast %524 : vector<1x128x32xf32> to vector<128x32xf32>
    %c1_154 = arith.constant 1 : index
    %c0_155 = arith.constant 0 : index
    %526 = vector.load %arg14[%c1_154, %c0_155] : memref<2x416xf32, #tpu.memory_space<vmem>>, vector<1x416xf32>
    %527 = vector.shape_cast %526 : vector<1x416xf32> to vector<416xf32>
    %528 = vector.extract_strided_slice %527 {offsets = [0], sizes = [32], strides = [1]} : vector<416xf32> to vector<32xf32>
    %529 = vector.extract_strided_slice %527 {offsets = [32], sizes = [32], strides = [1]} : vector<416xf32> to vector<32xf32>
    %530 = vector.extract_strided_slice %527 {offsets = [64], sizes = [96], strides = [1]} : vector<416xf32> to vector<96xf32>
    %531 = vector.extract_strided_slice %527 {offsets = [160], sizes = [32], strides = [1]} : vector<416xf32> to vector<32xf32>
    %532 = vector.extract_strided_slice %527 {offsets = [192], sizes = [32], strides = [1]} : vector<416xf32> to vector<32xf32>
    %533 = vector.extract_strided_slice %527 {offsets = [224], sizes = [32], strides = [1]} : vector<416xf32> to vector<32xf32>
    %534 = vector.extract_strided_slice %527 {offsets = [256], sizes = [128], strides = [1]} : vector<416xf32> to vector<128xf32>
    %535 = vector.extract_strided_slice %527 {offsets = [384], sizes = [32], strides = [1]} : vector<416xf32> to vector<32xf32>
    %536 = vector.extract_strided_slice %523 {offsets = [0, 0], sizes = [32, 96], strides = [1, 1]} : vector<32x256xf32> to vector<32x96xf32>
    %537 = vector.extract_strided_slice %523 {offsets = [0, 96], sizes = [32, 32], strides = [1, 1]} : vector<32x256xf32> to vector<32x32xf32>
    %538 = vector.extract_strided_slice %523 {offsets = [0, 128], sizes = [32, 128], strides = [1, 1]} : vector<32x256xf32> to vector<32x128xf32>
    %cst_156 = arith.constant dense<0.000000e+00> : vector<16xf32>
    %539 = vector.multi_reduction <add>, %521, %cst_156 [1] : vector<16x32xf32> to vector<16xf32>
    %540 = vector.shape_cast %539 : vector<16xf32> to vector<16x1xf32>
    %cst_157 = arith.constant 3.200000e+01 : f32
    %541 = vector.broadcast %cst_157 : f32 to vector<16x1xf32>
    %542 = arith.divf %540, %541 : vector<16x1xf32>
    %543 = vector.broadcast %542 : vector<16x1xf32> to vector<16x32xf32>
    %544 = arith.subf %521, %543 : vector<16x32xf32>
    %545 = arith.mulf %544, %544 : vector<16x32xf32>
    %cst_158 = arith.constant dense<0.000000e+00> : vector<16xf32>
    %546 = vector.multi_reduction <add>, %545, %cst_158 [1] : vector<16x32xf32> to vector<16xf32>
    %547 = vector.shape_cast %546 : vector<16xf32> to vector<16x1xf32>
    %cst_159 = arith.constant 3.200000e+01 : f32
    %548 = vector.broadcast %cst_159 : f32 to vector<16x1xf32>
    %549 = arith.divf %547, %548 : vector<16x1xf32>
    %cst_160 = arith.constant 9.99999974E-6 : f32
    %550 = vector.broadcast %cst_160 : f32 to vector<16x1xf32>
    %551 = arith.addf %549, %550 : vector<16x1xf32>
    %552 = math.rsqrt %551 : vector<16x1xf32>
    %553 = vector.broadcast %552 : vector<16x1xf32> to vector<16x32xf32>
    %554 = arith.mulf %544, %553 : vector<16x32xf32>
    %555 = vector.shape_cast %528 : vector<32xf32> to vector<1x32xf32>
    %556 = vector.broadcast %555 : vector<1x32xf32> to vector<16x32xf32>
    %557 = arith.mulf %554, %556 : vector<16x32xf32>
    %558 = vector.shape_cast %529 : vector<32xf32> to vector<1x32xf32>
    %559 = vector.broadcast %558 : vector<1x32xf32> to vector<16x32xf32>
    %560 = arith.addf %557, %559 : vector<16x32xf32>
    %cst_161 = arith.constant dense<0.000000e+00> : vector<16x96xf32>
    %561 = tpu.matmul %560, %536, %cst_161 {dimension_numbers = #tpu.dot_dimension_numbers<[1], [0], [0], [1], [0, 0, 1, 1], [], []>} : vector<16x32xf32>, vector<32x96xf32>, vector<16x96xf32> -> vector<16x96xf32>
    %562 = vector.shape_cast %530 : vector<96xf32> to vector<1x96xf32>
    %563 = vector.broadcast %562 : vector<1x96xf32> to vector<16x96xf32>
    %564 = arith.addf %561, %563 : vector<16x96xf32>
    %565 = vector.extract_strided_slice %564 {offsets = [0, 0], sizes = [16, 16], strides = [1, 1]} : vector<16x96xf32> to vector<16x16xf32>
    %cst_162 = arith.constant 2.500000e-01 : f32
    %566 = vector.broadcast %cst_162 : f32 to vector<16x16xf32>
    %567 = arith.mulf %565, %566 : vector<16x16xf32>
    %568 = vector.extract_strided_slice %564 {offsets = [0, 32], sizes = [16, 16], strides = [1, 1]} : vector<16x96xf32> to vector<16x16xf32>
    %569 = vector.extract_strided_slice %564 {offsets = [0, 64], sizes = [16, 16], strides = [1, 1]} : vector<16x96xf32> to vector<16x16xf32>
    %cst_163 = arith.constant dense<0.000000e+00> : vector<16x16xf32>
    %570 = tpu.matmul %567, %568, %cst_163 {dimension_numbers = #tpu.dot_dimension_numbers<[1], [1], [0], [0], [0, 0, 1, 0], [], []>} : vector<16x16xf32>, vector<16x16xf32>, vector<16x16xf32> -> vector<16x16xf32>
    %571 = arith.addf %570, %396 : vector<16x16xf32>
    %cst_164 = arith.constant dense<0xFF800000> : vector<16xf32>
    %572 = vector.multi_reduction <maximumf>, %571, %cst_164 [1] : vector<16x16xf32> to vector<16xf32>
    %573 = vector.shape_cast %572 : vector<16xf32> to vector<16x1xf32>
    %574 = vector.broadcast %573 : vector<16x1xf32> to vector<16x16xf32>
    %575 = arith.subf %571, %574 : vector<16x16xf32>
    %576 = math.exp %575 : vector<16x16xf32>
    %cst_165 = arith.constant dense<0.000000e+00> : vector<16xf32>
    %577 = vector.multi_reduction <add>, %576, %cst_165 [1] : vector<16x16xf32> to vector<16xf32>
    %578 = vector.shape_cast %577 : vector<16xf32> to vector<16x1xf32>
    %579 = vector.broadcast %578 : vector<16x1xf32> to vector<16x16xf32>
    %580 = arith.divf %576, %579 : vector<16x16xf32>
    %cst_166 = arith.constant dense<0.000000e+00> : vector<16x16xf32>
    %581 = tpu.matmul %580, %569, %cst_166 {dimension_numbers = #tpu.dot_dimension_numbers<[1], [0], [0], [1], [0, 0, 1, 1], [], []>} : vector<16x16xf32>, vector<16x16xf32>, vector<16x16xf32> -> vector<16x16xf32>
    %582 = vector.extract_strided_slice %537 {offsets = [0, 0], sizes = [16, 32], strides = [1, 1]} : vector<32x32xf32> to vector<16x32xf32>
    %cst_167 = arith.constant dense<0.000000e+00> : vector<16x32xf32>
    %583 = tpu.matmul %581, %582, %cst_167 {dimension_numbers = #tpu.dot_dimension_numbers<[1], [0], [0], [1], [0, 0, 1, 1], [], []>} : vector<16x16xf32>, vector<16x32xf32>, vector<16x32xf32> -> vector<16x32xf32>
    %584 = vector.extract_strided_slice %564 {offsets = [0, 16], sizes = [16, 16], strides = [1, 1]} : vector<16x96xf32> to vector<16x16xf32>
    %cst_168 = arith.constant 2.500000e-01 : f32
    %585 = vector.broadcast %cst_168 : f32 to vector<16x16xf32>
    %586 = arith.mulf %584, %585 : vector<16x16xf32>
    %587 = vector.extract_strided_slice %564 {offsets = [0, 48], sizes = [16, 16], strides = [1, 1]} : vector<16x96xf32> to vector<16x16xf32>
    %588 = vector.extract_strided_slice %564 {offsets = [0, 80], sizes = [16, 16], strides = [1, 1]} : vector<16x96xf32> to vector<16x16xf32>
    %cst_169 = arith.constant dense<0.000000e+00> : vector<16x16xf32>
    %589 = tpu.matmul %586, %587, %cst_169 {dimension_numbers = #tpu.dot_dimension_numbers<[1], [1], [0], [0], [0, 0, 1, 0], [], []>} : vector<16x16xf32>, vector<16x16xf32>, vector<16x16xf32> -> vector<16x16xf32>
    %590 = arith.addf %589, %396 : vector<16x16xf32>
    %cst_170 = arith.constant dense<0xFF800000> : vector<16xf32>
    %591 = vector.multi_reduction <maximumf>, %590, %cst_170 [1] : vector<16x16xf32> to vector<16xf32>
    %592 = vector.shape_cast %591 : vector<16xf32> to vector<16x1xf32>
    %593 = vector.broadcast %592 : vector<16x1xf32> to vector<16x16xf32>
    %594 = arith.subf %590, %593 : vector<16x16xf32>
    %595 = math.exp %594 : vector<16x16xf32>
    %cst_171 = arith.constant dense<0.000000e+00> : vector<16xf32>
    %596 = vector.multi_reduction <add>, %595, %cst_171 [1] : vector<16x16xf32> to vector<16xf32>
    %597 = vector.shape_cast %596 : vector<16xf32> to vector<16x1xf32>
    %598 = vector.broadcast %597 : vector<16x1xf32> to vector<16x16xf32>
    %599 = arith.divf %595, %598 : vector<16x16xf32>
    %cst_172 = arith.constant dense<0.000000e+00> : vector<16x16xf32>
    %600 = tpu.matmul %599, %588, %cst_172 {dimension_numbers = #tpu.dot_dimension_numbers<[1], [0], [0], [1], [0, 0, 1, 1], [], []>} : vector<16x16xf32>, vector<16x16xf32>, vector<16x16xf32> -> vector<16x16xf32>
    %601 = vector.extract_strided_slice %537 {offsets = [16, 0], sizes = [16, 32], strides = [1, 1]} : vector<32x32xf32> to vector<16x32xf32>
    %cst_173 = arith.constant dense<0.000000e+00> : vector<16x32xf32>
    %602 = tpu.matmul %600, %601, %cst_173 {dimension_numbers = #tpu.dot_dimension_numbers<[1], [0], [0], [1], [0, 0, 1, 1], [], []>} : vector<16x16xf32>, vector<16x32xf32>, vector<16x32xf32> -> vector<16x32xf32>
    %603 = arith.addf %583, %602 : vector<16x32xf32>
    %604 = arith.addf %521, %603 : vector<16x32xf32>
    %605 = vector.shape_cast %531 : vector<32xf32> to vector<1x32xf32>
    %606 = vector.broadcast %605 : vector<1x32xf32> to vector<16x32xf32>
    %607 = arith.addf %604, %606 : vector<16x32xf32>
    %cst_174 = arith.constant dense<0.000000e+00> : vector<16xf32>
    %608 = vector.multi_reduction <add>, %607, %cst_174 [1] : vector<16x32xf32> to vector<16xf32>
    %609 = vector.shape_cast %608 : vector<16xf32> to vector<16x1xf32>
    %cst_175 = arith.constant 3.200000e+01 : f32
    %610 = vector.broadcast %cst_175 : f32 to vector<16x1xf32>
    %611 = arith.divf %609, %610 : vector<16x1xf32>
    %612 = vector.broadcast %611 : vector<16x1xf32> to vector<16x32xf32>
    %613 = arith.subf %607, %612 : vector<16x32xf32>
    %614 = arith.mulf %613, %613 : vector<16x32xf32>
    %cst_176 = arith.constant dense<0.000000e+00> : vector<16xf32>
    %615 = vector.multi_reduction <add>, %614, %cst_176 [1] : vector<16x32xf32> to vector<16xf32>
    %616 = vector.shape_cast %615 : vector<16xf32> to vector<16x1xf32>
    %cst_177 = arith.constant 3.200000e+01 : f32
    %617 = vector.broadcast %cst_177 : f32 to vector<16x1xf32>
    %618 = arith.divf %616, %617 : vector<16x1xf32>
    %cst_178 = arith.constant 9.99999974E-6 : f32
    %619 = vector.broadcast %cst_178 : f32 to vector<16x1xf32>
    %620 = arith.addf %618, %619 : vector<16x1xf32>
    %621 = math.rsqrt %620 : vector<16x1xf32>
    %622 = vector.broadcast %621 : vector<16x1xf32> to vector<16x32xf32>
    %623 = arith.mulf %613, %622 : vector<16x32xf32>
    %624 = vector.shape_cast %532 : vector<32xf32> to vector<1x32xf32>
    %625 = vector.broadcast %624 : vector<1x32xf32> to vector<16x32xf32>
    %626 = arith.mulf %623, %625 : vector<16x32xf32>
    %627 = vector.shape_cast %533 : vector<32xf32> to vector<1x32xf32>
    %628 = vector.broadcast %627 : vector<1x32xf32> to vector<16x32xf32>
    %629 = arith.addf %626, %628 : vector<16x32xf32>
    %cst_179 = arith.constant dense<0.000000e+00> : vector<16x128xf32>
    %630 = tpu.matmul %629, %538, %cst_179 {dimension_numbers = #tpu.dot_dimension_numbers<[1], [0], [0], [1], [0, 0, 1, 1], [], []>} : vector<16x32xf32>, vector<32x128xf32>, vector<16x128xf32> -> vector<16x128xf32>
    %631 = vector.shape_cast %534 : vector<128xf32> to vector<1x128xf32>
    %632 = vector.broadcast %631 : vector<1x128xf32> to vector<16x128xf32>
    %633 = arith.addf %630, %632 : vector<16x128xf32>
    %cst_180 = arith.constant 1.702000e+00 : f32
    %634 = vector.broadcast %cst_180 : f32 to vector<16x128xf32>
    %635 = arith.mulf %634, %633 : vector<16x128xf32>
    %636 = arith.negf %635 : vector<16x128xf32>
    %637 = math.exp %636 : vector<16x128xf32>
    %cst_181 = arith.constant 1.000000e+00 : f32
    %638 = vector.broadcast %cst_181 : f32 to vector<16x128xf32>
    %639 = arith.addf %638, %637 : vector<16x128xf32>
    %640 = arith.divf %638, %639 : vector<16x128xf32>
    %641 = arith.mulf %633, %640 : vector<16x128xf32>
    %cst_182 = arith.constant dense<0.000000e+00> : vector<16x32xf32>
    %642 = tpu.matmul %641, %525, %cst_182 {dimension_numbers = #tpu.dot_dimension_numbers<[1], [0], [0], [1], [0, 0, 1, 1], [], []>} : vector<16x128xf32>, vector<128x32xf32>, vector<16x32xf32> -> vector<16x32xf32>
    %643 = arith.addf %607, %642 : vector<16x32xf32>
    %644 = vector.shape_cast %535 : vector<32xf32> to vector<1x32xf32>
    %645 = vector.broadcast %644 : vector<1x32xf32> to vector<16x32xf32>
    %646 = arith.addf %643, %645 : vector<16x32xf32>
    %c0_183 = arith.constant 0 : index
    %c0_184 = arith.constant 0 : index
    %647 = vector.load %arg15[%c0_183, %c0_184] : memref<1x192xf32, #tpu.memory_space<vmem>>, vector<1x192xf32>
    %648 = vector.shape_cast %647 : vector<1x192xf32> to vector<192xf32>
    %649 = tpu.iota {dimensions = array<i32: 0>} : vector<2x16xi32>
    %650 = tpu.iota {dimensions = array<i32: 1>} : vector<2x16xi32>
    %c8_i32_185 = arith.constant 8 : i32
    %651 = vector.broadcast %c8_i32_185 : i32 to vector<2x16xi32>
    %652 = arith.muli %649, %651 : vector<2x16xi32>
    %653 = arith.cmpi eq, %650, %652 : vector<2x16xi32>
    %654 = arith.extui %653 : vector<2x16xi1> to vector<2x16xi32>
    %655 = arith.sitofp %654 : vector<2x16xi32> to vector<2x16xf32>
    %cst_186 = arith.constant dense<0.000000e+00> : vector<2x32xf32>
    %656 = tpu.matmul %655, %646, %cst_186 {dimension_numbers = #tpu.dot_dimension_numbers<[1], [0], [0], [1], [0, 0, 1, 1], [], []>} : vector<2x16xf32>, vector<16x32xf32>, vector<2x32xf32> -> vector<2x32xf32>
    %657 = vector.extract_strided_slice %648 {offsets = [0], sizes = [32], strides = [1]} : vector<192xf32> to vector<32xf32>
    %658 = vector.extract_strided_slice %648 {offsets = [32], sizes = [32], strides = [1]} : vector<192xf32> to vector<32xf32>
    %cst_187 = arith.constant dense<0.000000e+00> : vector<2xf32>
    %659 = vector.multi_reduction <add>, %656, %cst_187 [1] : vector<2x32xf32> to vector<2xf32>
    %660 = vector.shape_cast %659 : vector<2xf32> to vector<2x1xf32>
    %cst_188 = arith.constant 3.200000e+01 : f32
    %661 = vector.broadcast %cst_188 : f32 to vector<2x1xf32>
    %662 = arith.divf %660, %661 : vector<2x1xf32>
    %663 = vector.broadcast %662 : vector<2x1xf32> to vector<2x32xf32>
    %664 = arith.subf %656, %663 : vector<2x32xf32>
    %665 = arith.mulf %664, %664 : vector<2x32xf32>
    %cst_189 = arith.constant dense<0.000000e+00> : vector<2xf32>
    %666 = vector.multi_reduction <add>, %665, %cst_189 [1] : vector<2x32xf32> to vector<2xf32>
    %667 = vector.shape_cast %666 : vector<2xf32> to vector<2x1xf32>
    %cst_190 = arith.constant 3.200000e+01 : f32
    %668 = vector.broadcast %cst_190 : f32 to vector<2x1xf32>
    %669 = arith.divf %667, %668 : vector<2x1xf32>
    %cst_191 = arith.constant 9.99999974E-6 : f32
    %670 = vector.broadcast %cst_191 : f32 to vector<2x1xf32>
    %671 = arith.addf %669, %670 : vector<2x1xf32>
    %672 = math.rsqrt %671 : vector<2x1xf32>
    %673 = vector.broadcast %672 : vector<2x1xf32> to vector<2x32xf32>
    %674 = arith.mulf %664, %673 : vector<2x32xf32>
    %675 = vector.shape_cast %657 : vector<32xf32> to vector<1x32xf32>
    %676 = vector.broadcast %675 : vector<1x32xf32> to vector<2x32xf32>
    %677 = arith.mulf %674, %676 : vector<2x32xf32>
    %678 = vector.shape_cast %658 : vector<32xf32> to vector<1x32xf32>
    %679 = vector.broadcast %678 : vector<1x32xf32> to vector<2x32xf32>
    %680 = arith.addf %677, %679 : vector<2x32xf32>
    %c0_192 = arith.constant 0 : index
    %c0_193 = arith.constant 0 : index
    %681 = vector.load %arg16[%c0_192, %c0_193] : memref<32x48xf32, #tpu.memory_space<vmem>>, vector<32x48xf32>
    %cst_194 = arith.constant dense<0.000000e+00> : vector<2x48xf32>
    %682 = tpu.matmul %680, %681, %cst_194 {dimension_numbers = #tpu.dot_dimension_numbers<[1], [0], [0], [1], [0, 0, 1, 1], [], []>} : vector<2x32xf32>, vector<32x48xf32>, vector<2x48xf32> -> vector<2x48xf32>
    %c0_195 = arith.constant 0 : index
    %c0_196 = arith.constant 0 : index
    %683 = vector.load %arg17[%c0_195, %c0_196] : memref<48x32xf32, #tpu.memory_space<vmem>>, vector<48x32xf32>
    %cst_197 = arith.constant dense<0.000000e+00> : vector<2x32xf32>
    %684 = tpu.matmul %682, %683, %cst_197 {dimension_numbers = #tpu.dot_dimension_numbers<[1], [0], [0], [1], [0, 0, 1, 1], [], []>} : vector<2x48xf32>, vector<48x32xf32>, vector<2x32xf32> -> vector<2x32xf32>
    %685 = vector.extract_strided_slice %648 {offsets = [64], sizes = [32], strides = [1]} : vector<192xf32> to vector<32xf32>
    %686 = vector.shape_cast %685 : vector<32xf32> to vector<1x32xf32>
    %687 = vector.broadcast %686 : vector<1x32xf32> to vector<2x32xf32>
    %688 = arith.addf %684, %687 : vector<2x32xf32>
    %c0_198 = arith.constant 0 : index
    %c0_199 = arith.constant 0 : index
    %689 = vector.load %arg18[%c0_198, %c0_199] : memref<32x64xf32, #tpu.memory_space<vmem>>, vector<32x64xf32>
    %cst_200 = arith.constant dense<0.000000e+00> : vector<2x64xf32>
    %690 = tpu.matmul %688, %689, %cst_200 {dimension_numbers = #tpu.dot_dimension_numbers<[1], [0], [0], [1], [0, 0, 1, 1], [], []>} : vector<2x32xf32>, vector<32x64xf32>, vector<2x64xf32> -> vector<2x64xf32>
    %691 = vector.extract_strided_slice %648 {offsets = [96], sizes = [64], strides = [1]} : vector<192xf32> to vector<64xf32>
    %692 = vector.shape_cast %691 : vector<64xf32> to vector<1x64xf32>
    %693 = vector.broadcast %692 : vector<1x64xf32> to vector<2x64xf32>
    %694 = arith.addf %690, %693 : vector<2x64xf32>
    %cst_201 = arith.constant 0.000000e+00 : f32
    %695 = vector.broadcast %cst_201 : f32 to vector<2x64xf32>
    %696 = arith.cmpf oge, %694, %695 : vector<2x64xf32>
    %cst_202 = arith.constant 0.00999999977 : f32
    %697 = vector.broadcast %cst_202 : f32 to vector<2x64xf32>
    %698 = arith.mulf %697, %694 : vector<2x64xf32>
    %699 = arith.select %696, %694, %698 : vector<2x64xi1>, vector<2x64xf32>
    %c0_203 = arith.constant 0 : index
    %c0_204 = arith.constant 0 : index
    %700 = vector.load %arg19[%c0_203, %c0_204] : memref<64x32xf32, #tpu.memory_space<vmem>>, vector<64x32xf32>
    %cst_205 = arith.constant dense<0.000000e+00> : vector<2x32xf32>
    %701 = tpu.matmul %699, %700, %cst_205 {dimension_numbers = #tpu.dot_dimension_numbers<[1], [0], [0], [1], [0, 0, 1, 1], [], []>} : vector<2x64xf32>, vector<64x32xf32>, vector<2x32xf32> -> vector<2x32xf32>
    %702 = vector.extract_strided_slice %648 {offsets = [160], sizes = [32], strides = [1]} : vector<192xf32> to vector<32xf32>
    %703 = vector.shape_cast %702 : vector<32xf32> to vector<1x32xf32>
    %704 = vector.broadcast %703 : vector<1x32xf32> to vector<2x32xf32>
    %705 = arith.addf %701, %704 : vector<2x32xf32>
    %cst_206 = arith.constant dense<0.000000e+00> : vector<2x8xf32>
    %706 = tpu.matmul %705, %335, %cst_206 {dimension_numbers = #tpu.dot_dimension_numbers<[1], [1], [0], [0], [0, 0, 1, 0], [], []>} : vector<2x32xf32>, vector<8x32xf32>, vector<2x8xf32> -> vector<2x8xf32>
    %707 = tpu.iota {dimensions = array<i32: 1>} : vector<8x256xi32>
    %708 = vector.broadcast %2 : vector<8x1xi32> to vector<8x256xi32>
    %709 = arith.cmpi eq, %708, %707 : vector<8x256xi32>
    %710 = arith.extui %709 : vector<8x256xi1> to vector<8x256xi32>
    %711 = arith.sitofp %710 : vector<8x256xi32> to vector<8x256xf32>
    %cst_207 = arith.constant dense<0.000000e+00> : vector<2x256xf32>
    %712 = tpu.matmul %706, %711, %cst_207 {dimension_numbers = #tpu.dot_dimension_numbers<[1], [0], [0], [1], [0, 0, 1, 1], [], []>} : vector<2x8xf32>, vector<8x256xf32>, vector<2x256xf32> -> vector<2x256xf32>
    %c0_208 = arith.constant 0 : index
    %c0_209 = arith.constant 0 : index
    %713 = memref.load %arg20[%c0_208, %c0_209] : memref<1x1xf32, #tpu.memory_space<smem>>
    %714 = vector.broadcast %713 : f32 to vector<2x256xf32>
    %715 = arith.addf %712, %714 : vector<2x256xf32>
    %c0_210 = arith.constant 0 : index
    %c0_211 = arith.constant 0 : index
    %716 = vector.load %arg21[%c0_210, %c0_211] : memref<2x256xf32, #tpu.memory_space<vmem>>, vector<2x256xf32>
    tpu.vector_store %arg21[%c0_210, %c0_211], %715 {strides = array<i32>} : memref<2x256xf32, #tpu.memory_space<vmem>>, vector<2x256xf32>,
    return
  }
}

</mosaic_0001>

<llo_original>
// kernel: guided_clip_cub_forward.1
$region0: #{guided_clip_cub_forward.1}
  #allocation0 [shape = 'u32[]', space=smem, size = 0x4, offset = 0x4, fixed_abs, tag = 'smem constant byte address 0x4 - core index']
  #allocation1 [shape = 'u32[144,128]{1,0:T(1,128)}', space=vmem, size = 0x12000, scoped, tag = 'internal scratch']
  #allocation2 [shape = 'f32[1,1]{1,0:T(1,128)S(6)}', space=smem, size = 0x200, scoped, tag = 'scoped memory for guided_clip_cub_forward.1']
  %s0 = inlined_call_operand.vmem [shape: s32[72,1], index: 0, kind: input, shape index: {}]
  %s1 = inlined_call_operand.vmem [shape: f32[16,192], index: 1, kind: input, shape index: {}]
  %s2 = inlined_call_operand.vmem [shape: f32[64,32], index: 2, kind: input, shape index: {}]
  %s3 = inlined_call_operand.vmem [shape: f32[8,32], index: 3, kind: input, shape index: {}]
  %s4 = inlined_call_operand.vmem [shape: f32[2,32,256], index: 4, kind: input, shape index: {}]
  %s5 = inlined_call_operand.vmem [shape: f32[2,128,32], index: 5, kind: input, shape index: {}]
  %s6 = inlined_call_operand.vmem [shape: f32[2,416], index: 6, kind: input, shape index: {}]
  %s7 = inlined_call_operand.vmem [shape: f32[1,160], index: 7, kind: input, shape index: {}]
  %s8 = inlined_call_operand.vmem [shape: f32[32,64], index: 8, kind: input, shape index: {}]
  %s9 = inlined_call_operand.vmem [shape: f32[64,32], index: 9, kind: input, shape index: {}]
  %s10 = inlined_call_operand.vmem [shape: f32[192,32], index: 10, kind: input, shape index: {}]
  %s11 = inlined_call_operand.vmem [shape: f32[11,32], index: 11, kind: input, shape index: {}]
  %s12 = inlined_call_operand.vmem [shape: f32[2,32,256], index: 12, kind: input, shape index: {}]
  %s13 = inlined_call_operand.vmem [shape: f32[2,128,32], index: 13, kind: input, shape index: {}]
  %s14 = inlined_call_operand.vmem [shape: f32[2,416], index: 14, kind: input, shape index: {}]
  %s15 = inlined_call_operand.vmem [shape: f32[1,192], index: 15, kind: input, shape index: {}]
  %s16 = inlined_call_operand.vmem [shape: f32[32,48], index: 16, kind: input, shape index: {}]
  %s17 = inlined_call_operand.vmem [shape: f32[48,32], index: 17, kind: input, shape index: {}]
  %s18 = inlined_call_operand.vmem [shape: f32[32,64], index: 18, kind: input, shape index: {}]
  %s19 = inlined_call_operand.vmem [shape: f32[64,32], index: 19, kind: input, shape index: {}]
  %s20 = inlined_call_operand.<no memory space> [shape: f32[1,1], index: 20, kind: input, shape index: {}]
  %s21 = inlined_call_operand.hbm [shape: f32[2,256], index: 21, kind: output, shape index: {}]
  %s22 = sld [smem:[#allocation0]]
  $region94: #{guided_clip_cub_forward.1} parent=0
    _
  %s24 = ssub.s32 1, %s22
  %s25 = scalar_select 0, %s24, %s22
  %26 = sst [smem:[#allocation2]] %s20
  $region1: #{guided_clip_cub_forward.1} parent=0
    #allocation3 [shape = 'u8[2048]{0}', space=vmem, size = 0x800, scoped, tag = 'output window, operand 0, single buffered']
    #allocation4 [shape = 's32[1]{0}', space=sflag, size = 0x4, scoped, tag = 'scoped memory for guided_clip_cub_forward.1']
    %27 = vsyncpa [#allocation4], 0
    // Predicated region
    $region2: #{guided_clip_cub_forward.1} parent=1 // pred_check
      _
    $region3: #{guided_clip_cub_forward.1} parent=1 // pred_check_branch
      %29 = sbr.rel (0) target = $region5
    $region4: #{guided_clip_cub_forward.1} parent=1 // pred_region
      _
    $region5: #{guided_clip_cub_forward.1} parent=1 // pred_fallthru
      _
    // Predicated region
    $region6: #{guided_clip_cub_forward.1} parent=1 // pred_check
      _
    $region7: #{guided_clip_cub_forward.1} parent=1 // pred_check_branch
      %31 = sbr.rel (0) target = $region9
    $region8: #{guided_clip_cub_forward.1} parent=1 // pred_region
      _
    $region9: #{guided_clip_cub_forward.1} parent=1 // pred_fallthru
      _
    // Predicated region
    $region10: #{guided_clip_cub_forward.1} parent=1 // pred_check
      _
    $region11: #{guided_clip_cub_forward.1} parent=1 // pred_check_branch
      %33 = sbr.rel (0) target = $region13
    $region12: #{guided_clip_cub_forward.1} parent=1 // pred_region
      _
    $region13: #{guided_clip_cub_forward.1} parent=1 // pred_fallthru
      _
    // Predicated region
    $region14: #{guided_clip_cub_forward.1} parent=1 // pred_check
      _
    $region15: #{guided_clip_cub_forward.1} parent=1 // pred_check_branch
      %35 = sbr.rel (0) target = $region17
    $region16: #{guided_clip_cub_forward.1} parent=1 // pred_region
      _
    $region17: #{guided_clip_cub_forward.1} parent=1 // pred_fallthru
      _
    // Predicated region
    $region18: #{guided_clip_cub_forward.1} parent=1 // pred_check
      _
    $region19: #{guided_clip_cub_forward.1} parent=1 // pred_check_branch
      %37 = sbr.rel (0) target = $region21
    $region20: #{guided_clip_cub_forward.1} parent=1 // pred_region
      _
    $region21: #{guided_clip_cub_forward.1} parent=1 // pred_fallthru
      _
    // Predicated region
    $region22: #{guided_clip_cub_forward.1} parent=1 // pred_check
      _
    $region23: #{guided_clip_cub_forward.1} parent=1 // pred_check_branch
      %39 = sbr.rel (0) target = $region25
    $region24: #{guided_clip_cub_forward.1} parent=1 // pred_region
      _
    $region25: #{guided_clip_cub_forward.1} parent=1 // pred_fallthru
      _
    // Predicated region
    $region26: #{guided_clip_cub_forward.1} parent=1 // pred_check
      _
    $region27: #{guided_clip_cub_forward.1} parent=1 // pred_check_branch
      %41 = sbr.rel (0) target = $region29
    $region28: #{guided_clip_cub_forward.1} parent=1 // pred_region
      _
    $region29: #{guided_clip_cub_forward.1} parent=1 // pred_fallthru
      _
    // Predicated region
    $region30: #{guided_clip_cub_forward.1} parent=1 // pred_check
      _
    $region31: #{guided_clip_cub_forward.1} parent=1 // pred_check_branch
      %43 = sbr.rel (0) target = $region33
    $region32: #{guided_clip_cub_forward.1} parent=1 // pred_region
      _
    $region33: #{guided_clip_cub_forward.1} parent=1 // pred_fallthru
      _
    // Predicated region
    $region34: #{guided_clip_cub_forward.1} parent=1 // pred_check
      _
    $region35: #{guided_clip_cub_forward.1} parent=1 // pred_check_branch
      %45 = sbr.rel (0) target = $region37
    $region36: #{guided_clip_cub_forward.1} parent=1 // pred_region
      _
    $region37: #{guided_clip_cub_forward.1} parent=1 // pred_fallthru
      _
    // Predicated region
    $region38: #{guided_clip_cub_forward.1} parent=1 // pred_check
      _
    $region39: #{guided_clip_cub_forward.1} parent=1 // pred_check_branch
      %47 = sbr.rel (0) target = $region41
    $region40: #{guided_clip_cub_forward.1} parent=1 // pred_region
      _
    $region41: #{guided_clip_cub_forward.1} parent=1 // pred_fallthru
      _
    // Predicated region
    $region42: #{guided_clip_cub_forward.1} parent=1 // pred_check
      _
    $region43: #{guided_clip_cub_forward.1} parent=1 // pred_check_branch
      %49 = sbr.rel (0) target = $region45
    $region44: #{guided_clip_cub_forward.1} parent=1 // pred_region
      _
    $region45: #{guided_clip_cub_forward.1} parent=1 // pred_fallthru
      _
    // Predicated region
    $region46: #{guided_clip_cub_forward.1} parent=1 // pred_check
      _
    $region47: #{guided_clip_cub_forward.1} parent=1 // pred_check_branch
      %51 = sbr.rel (0) target = $region49
    $region48: #{guided_clip_cub_forward.1} parent=1 // pred_region
      _
    $region49: #{guided_clip_cub_forward.1} parent=1 // pred_fallthru
      _
    // Predicated region
    $region50: #{guided_clip_cub_forward.1} parent=1 // pred_check
      _
    $region51: #{guided_clip_cub_forward.1} parent=1 // pred_check_branch
      %53 = sbr.rel (0) target = $region53
    $region52: #{guided_clip_cub_forward.1} parent=1 // pred_region
      _
    $region53: #{guided_clip_cub_forward.1} parent=1 // pred_fallthru
      _
    // Predicated region
    $region54: #{guided_clip_cub_forward.1} parent=1 // pred_check
      _
    $region55: #{guided_clip_cub_forward.1} parent=1 // pred_check_branch
      %55 = sbr.rel (0) target = $region57
    $region56: #{guided_clip_cub_forward.1} parent=1 // pred_region
      _
    $region57: #{guided_clip_cub_forward.1} parent=1 // pred_fallthru
      _
    // Predicated region
    $region58: #{guided_clip_cub_forward.1} parent=1 // pred_check
      _
    $region59: #{guided_clip_cub_forward.1} parent=1 // pred_check_branch
      %57 = sbr.rel (0) target = $region61
    $region60: #{guided_clip_cub_forward.1} parent=1 // pred_region
      _
    $region61: #{guided_clip_cub_forward.1} parent=1 // pred_fallthru
      _
    // Predicated region
    $region62: #{guided_clip_cub_forward.1} parent=1 // pred_check
      _
    $region63: #{guided_clip_cub_forward.1} parent=1 // pred_check_branch
      %59 = sbr.rel (0) target = $region65
    $region64: #{guided_clip_cub_forward.1} parent=1 // pred_region
      _
    $region65: #{guided_clip_cub_forward.1} parent=1 // pred_fallthru
      _
    // Predicated region
    $region66: #{guided_clip_cub_forward.1} parent=1 // pred_check
      _
    $region67: #{guided_clip_cub_forward.1} parent=1 // pred_check_branch
      %61 = sbr.rel (0) target = $region69
    $region68: #{guided_clip_cub_forward.1} parent=1 // pred_region
      _
    $region69: #{guided_clip_cub_forward.1} parent=1 // pred_fallthru
      _
    // Predicated region
    $region70: #{guided_clip_cub_forward.1} parent=1 // pred_check
      _
    $region71: #{guided_clip_cub_forward.1} parent=1 // pred_check_branch
      %63 = sbr.rel (0) target = $region73
    $region72: #{guided_clip_cub_forward.1} parent=1 // pred_region
      _
    $region73: #{guided_clip_cub_forward.1} parent=1 // pred_fallthru
      _
    // Predicated region
    $region74: #{guided_clip_cub_forward.1} parent=1 // pred_check
      _
    $region75: #{guided_clip_cub_forward.1} parent=1 // pred_check_branch
      %65 = sbr.rel (0) target = $region77
    $region76: #{guided_clip_cub_forward.1} parent=1 // pred_region
      _
    $region77: #{guided_clip_cub_forward.1} parent=1 // pred_fallthru
      _
    // Predicated region
    $region78: #{guided_clip_cub_forward.1} parent=1 // pred_check
      _
    $region79: #{guided_clip_cub_forward.1} parent=1 // pred_check_branch
      %67 = sbr.rel (0) target = $region81
    $region80: #{guided_clip_cub_forward.1} parent=1 // pred_region
      _
    $region81: #{guided_clip_cub_forward.1} parent=1 // pred_fallthru
      _
    // Predicated region
    $region82: #{guided_clip_cub_forward.1} parent=1 // pred_check
      _
    $region83: #{guided_clip_cub_forward.1} parent=1 // pred_check_branch
      %69 = sbr.rel (0) target = $region85
    $region84: #{guided_clip_cub_forward.1} parent=1 // pred_region
      _
    $region85: #{guided_clip_cub_forward.1} parent=1 // pred_fallthru
      _
    %v70 = vld [vmem:[%s0] sm:$0xff]
    %v71 = vld [vmem:[%s0 + $0x8] sm:$0xff]
    %v72 = vld [vmem:[%s0 + $0x10] sm:$0xff]
    %v73 = vld [vmem:[%s0 + $0x18] sm:$0xff]
    %v74 = vld [vmem:[%s0 + $0x20] sm:$0xff]
    %v75 = vld [vmem:[%s0 + $0x28] sm:$0xff]
    %v76 = vld [vmem:[%s0 + $0x30] sm:$0xff]
    %v77 = vld [vmem:[%s0 + $0x38] sm:$0xff]
    %v78 = vld [vmem:[%s0 + $0x40] sm:$0xff]
    %v79 = vlaneseq
    %v80 = vand.u32 %v79, 127
    %81 = vset.pattern.permute.xlu0 0
    %82 = vperm.xlu0 %81, %v70
    %v83 = vpop.permute.xlu0 %82
    %84 = vset.pattern.permute.xlu0 0
    %85 = vperm.xlu0 %84, %v71
    %v86 = vpop.permute.xlu0 %85
    %87 = vset.pattern.permute.xlu0 0
    %88 = vperm.xlu0 %87, %v72
    %v89 = vpop.permute.xlu0 %88
    %90 = vset.pattern.permute.xlu0 0
    %91 = vperm.xlu0 %90, %v73
    %v92 = vpop.permute.xlu0 %91
    %93 = vset.pattern.permute.xlu0 0
    %94 = vperm.xlu0 %93, %v74
    %v95 = vpop.permute.xlu0 %94
    %96 = vset.pattern.permute.xlu0 0
    %97 = vperm.xlu0 %96, %v75
    %v98 = vpop.permute.xlu0 %97
    %99 = vset.pattern.permute.xlu0 0
    %100 = vperm.xlu0 %99, %v76
    %v101 = vpop.permute.xlu0 %100
    %102 = vset.pattern.permute.xlu0 0
    %103 = vperm.xlu0 %102, %v77
    %v104 = vpop.permute.xlu0 %103
    %vm105 = vcmp.eq.s32.totalorder %v83, %v80
    %vm106 = vcmp.eq.s32.totalorder %v86, %v80
    %vm107 = vcmp.eq.s32.totalorder %v89, %v80
    %vm108 = vcmp.eq.s32.totalorder %v92, %v80
    %vm109 = vcmp.eq.s32.totalorder %v95, %v80
    %vm110 = vcmp.eq.s32.totalorder %v98, %v80
    %vm111 = vcmp.eq.s32.totalorder %v101, %v80
    %vm112 = vcmp.eq.s32.totalorder %v104, %v80
    %v113 = vsel %vm105, 1, 0
    %v114 = vsel %vm106, 1, 0
    %v115 = vsel %vm107, 1, 0
    %v116 = vsel %vm108, 1, 0
    %v117 = vsel %vm109, 1, 0
    %v118 = vsel %vm110, 1, 0
    %v119 = vsel %vm111, 1, 0
    %v120 = vsel %vm112, 1, 0
    %v121 = vcvt.s32.f32 %v113
    %v122 = vcvt.s32.f32 %v114
    %v123 = vcvt.s32.f32 %v115
    %v124 = vcvt.s32.f32 %v116
    %v125 = vcvt.s32.f32 %v117
    %v126 = vcvt.s32.f32 %v118
    %v127 = vcvt.s32.f32 %v119
    %v128 = vcvt.s32.f32 %v120
    %v129 = vld [vmem:[%s2] sm:$0xff]
    %v130 = vld [vmem:[%s2 + $0x8] sm:$0xff]
    %v131 = vld [vmem:[%s2 + $0x10] sm:$0xff]
    %v132 = vld [vmem:[%s2 + $0x18] sm:$0xff]
    %v133 = vld [vmem:[%s2 + $0x20] sm:$0xff]
    %v134 = vld [vmem:[%s2 + $0x28] sm:$0xff]
    %v135 = vld [vmem:[%s2 + $0x30] sm:$0xff]
    %v136 = vld [vmem:[%s2 + $0x38] sm:$0xff]
    %vm137 = vcmask 523264
    %v139 = vsel %vm137, %v121, 0
    %v142 = vsel %vm137, %v122, 0
    %v145 = vsel %vm137, %v123, 0
    %v148 = vsel %vm137, %v124, 0
    %v151 = vsel %vm137, %v125, 0
    %v154 = vsel %vm137, %v126, 0
    %v157 = vsel %vm137, %v127, 0
    %v160 = vsel %vm137, %v128, 0
    %162 = vmatprep.subr.mxu0 0.0
    %163 = vmatpush1.msra.mxu0 %v129
    %164 = vmatprep.subr.mxu0 0.0
    %165 = vmatpush1.msra.mxu0 %v130
    %166 = vmatprep.subr.mxu0 0.0
    %167 = vmatpush1.msra.mxu0 %v131
    %168 = vmatprep.subr.mxu0 0.0
    %169 = vmatpush1.msra.mxu0 %v132
    %170 = vmatprep.subr.mxu0 0.0
    %171 = vmatpush1.msra.mxu0 %v133
    %172 = vmatprep.subr.mxu0 0.0
    %173 = vmatpush1.msra.mxu0 %v134
    %174 = vmatprep.subr.mxu0 0.0
    %175 = vmatpush1.msra.mxu0 %v135
    %176 = vmatprep.subr.mxu0 0.0
    %177 = vmatpush1.msra.mxu0 %v136
    %178 = vmatprep.subr.mxu0 0.0
    %179 = vmatpush1.msra.mxu0 0.0
    %180 = vmatprep.subr.mxu0 0.0
    %181 = vmatpush1.msra.mxu0 0.0
    %182 = vmatprep.subr.mxu0 0.0
    %183 = vmatpush1.msra.mxu0 0.0
    %184 = vmatprep.subr.mxu0 0.0
    %185 = vmatpush1.msra.mxu0 0.0
    %186 = vmatprep.subr.mxu0 0.0
    %187 = vmatpush1.msra.mxu0 0.0
    %188 = vmatprep.subr.mxu0 0.0
    %189 = vmatpush1.msra.mxu0 0.0
    %190 = vmatprep.subr.mxu0 0.0
    %191 = vmatpush1.msra.mxu0 0.0
    %192 = vmatprep.subr.mxu0 0.0
    %193 = vmatpush1.msra.mxu0 0.0
    %194 = vmatprep.subr.mxu0 0.0
    %195 = vmatpush1.msra.mxu0 0.0
    %196 = vmatprep.subr.mxu0 0.0
    %197 = vmatpush1.msra.mxu0 0.0
    %198 = vmatprep.subr.mxu0 0.0
    %199 = vmatpush1.msra.mxu0 0.0
    %200 = vmatprep.subr.mxu0 0.0
    %201 = vmatpush1.msra.mxu0 0.0
    %202 = vmatprep.subr.mxu0 0.0
    %203 = vmatpush1.msra.mxu0 0.0
    %204 = vmatprep.subr.mxu0 0.0
    %205 = vmatpush1.msra.mxu0 0.0
    %206 = vmatprep.subr.mxu0 0.0
    %207 = vmatpush1.msra.mxu0 0.0
    %208 = vmatprep.subr.mxu0 0.0
    %209 = vmatpush1.msra.mxu0 0.0
    %210 = vmatprep.subr.mxu0 0.0
    %211 = vmatpush1.msra.mxu0 0.0
    %212 = vmatprep.subr.mxu0 0.0
    %213 = vmatpush1.msra.mxu0 0.0
    %214 = vmatprep.subr.mxu0 0.0
    %215 = vmatpush1.msra.mxu0 0.0
    %216 = vmatprep.subr.mxu0 0.0
    %217 = vmatpush1.msra.mxu0 0.0
    %218 = vmatprep.subr.mxu0 0.0
    %219 = vmatpush1.msra.mxu0 0.0
    %220 = vmatprep.subr.mxu0 0.0
    %221 = vmatpush1.msra.mxu0 0.0
    %222 = vmatprep.subr.mxu0 0.0
    %223 = vmatpush1.msra.mxu0 0.0
    %224 = vmatprep.subr.mxu0 0.0
    %225 = vmatpush1.msra.mxu0 0.0
    %226 = vmatprep.mubr.f32.mxu0 0.0
    %227 = vmatmul.mubr.f32.gmra.mrb[0].mxu0 %v139
    %v228 = vpop.f32.mrb[0].mxu0
    %v229 = vadd.f32 0.0, %v228
    %v230 = vpop.f32.mrb[0].mxu0
    %231 = vmatprep.mubr.f32.mxu0 0.0
    %232 = vmatmul.mubr.f32.gmra.mrb[0].mxu0 %v142
    %v233 = vpop.f32.mrb[0].mxu0
    %v234 = vadd.f32 0.0, %v233
    %v235 = vpop.f32.mrb[0].mxu0
    %236 = vmatprep.mubr.f32.mxu0 0.0
    %237 = vmatmul.mubr.f32.gmra.mrb[0].mxu0 %v145
    %v238 = vpop.f32.mrb[0].mxu0
    %v239 = vadd.f32 0.0, %v238
    %v240 = vpop.f32.mrb[0].mxu0
    %241 = vmatprep.mubr.f32.mxu0 0.0
    %242 = vmatmul.mubr.f32.gmra.mrb[0].mxu0 %v148
    %v243 = vpop.f32.mrb[0].mxu0
    %v244 = vadd.f32 0.0, %v243
    %v245 = vpop.f32.mrb[0].mxu0
    %246 = vmatprep.mubr.f32.mxu0 0.0
    %247 = vmatmul.mubr.f32.gmra.mrb[0].mxu0 %v151
    %v248 = vpop.f32.mrb[0].mxu0
    %v249 = vadd.f32 0.0, %v248
    %v250 = vpop.f32.mrb[0].mxu0
    %251 = vmatprep.mubr.f32.mxu0 0.0
    %252 = vmatmul.mubr.f32.gmra.mrb[0].mxu0 %v154
    %v253 = vpop.f32.mrb[0].mxu0
    %v254 = vadd.f32 0.0, %v253
    %v255 = vpop.f32.mrb[0].mxu0
    %256 = vmatprep.mubr.f32.mxu0 0.0
    %257 = vmatmul.mubr.f32.gmra.mrb[0].mxu0 %v157
    %v258 = vpop.f32.mrb[0].mxu0
    %v259 = vadd.f32 0.0, %v258
    %v260 = vpop.f32.mrb[0].mxu0
    %261 = vmatprep.mubr.f32.mxu0 0.0
    %262 = vmatmul.mubr.f32.gmra.mrb[0].mxu0 %v160
    %v263 = vpop.f32.mrb[0].mxu0
    %v264 = vadd.f32 0.0, %v263
    %v265 = vpop.f32.mrb[0].mxu0
    %266 = vdwg.mxu0
    %v267 = vld [vmem:[%s3] sm:$0xff]
    %v268 = vadd.f32 %v229, %v267
    %v269 = vadd.f32 %v234, %v267
    %v270 = vadd.f32 %v239, %v267
    %v271 = vadd.f32 %v244, %v267
    %v272 = vadd.f32 %v249, %v267
    %v273 = vadd.f32 %v254, %v267
    %v274 = vadd.f32 %v259, %v267
    %v275 = vadd.f32 %v264, %v267
    %v276 = vlaneseq
    %v277 = vshrl.u32 %v276, 7
    %v278 = vadd.s32 %v277, 8
    %v279 = vadd.s32 %v277, 16
    %v280 = vadd.s32 %v277, 24
    %v281 = vadd.s32 %v277, 32
    %v282 = vadd.s32 %v277, 40
    %v283 = vadd.s32 %v277, 48
    %v284 = vadd.s32 %v277, 56
    %v285 = vshra.s32 %v277, 3
    %v286 = vshra.s32 %v278, 3
    %v287 = vshra.s32 %v279, 3
    %v288 = vshra.s32 %v280, 3
    %v289 = vshra.s32 %v281, 3
    %v290 = vshra.s32 %v282, 3
    %v291 = vshra.s32 %v283, 3
    %v292 = vshra.s32 %v284, 3
    %v293 = vshra.s32 %v80, 3
    %vm294 = vcmp.eq.s32.totalorder %v285, %v293
    %vm295 = vcmp.eq.s32.totalorder %v286, %v293
    %vm296 = vcmp.eq.s32.totalorder %v287, %v293
    %vm297 = vcmp.eq.s32.totalorder %v288, %v293
    %vm298 = vcmp.eq.s32.totalorder %v289, %v293
    %vm299 = vcmp.eq.s32.totalorder %v290, %v293
    %vm300 = vcmp.eq.s32.totalorder %v291, %v293
    %vm301 = vcmp.eq.s32.totalorder %v292, %v293
    %v302 = vand.u32 %v80, 7
    %vm303 = vcmp.lt.s32.totalorder %v302, 8
    %vm304 = vmand %vm294, %vm303
    %vm305 = vmand %vm295, %vm303
    %vm306 = vmand %vm296, %vm303
    %vm307 = vmand %vm297, %vm303
    %vm308 = vmand %vm298, %vm303
    %vm309 = vmand %vm299, %vm303
    %vm310 = vmand %vm300, %vm303
    %vm311 = vmand %vm301, %vm303
    %v312 = vand.u32 %v277, 7
    %v313 = vand.u32 %v278, 7
    %v314 = vand.u32 %v279, 7
    %v315 = vand.u32 %v280, 7
    %v316 = vand.u32 %v281, 7
    %v317 = vand.u32 %v282, 7
    %v318 = vand.u32 %v283, 7
    %v319 = vand.u32 %v284, 7
    %vm320 = vcmp.le.s32.totalorder %v302, %v312
    %vm321 = vcmp.le.s32.totalorder %v302, %v313
    %vm322 = vcmp.le.s32.totalorder %v302, %v314
    %vm323 = vcmp.le.s32.totalorder %v302, %v315
    %vm324 = vcmp.le.s32.totalorder %v302, %v316
    %vm325 = vcmp.le.s32.totalorder %v302, %v317
    %vm326 = vcmp.le.s32.totalorder %v302, %v318
    %vm327 = vcmp.le.s32.totalorder %v302, %v319
    %vm328 = vmand %vm304, %vm320
    %vm329 = vmand %vm305, %vm321
    %vm330 = vmand %vm306, %vm322
    %vm331 = vmand %vm307, %vm323
    %vm332 = vmand %vm308, %vm324
    %vm333 = vmand %vm309, %vm325
    %vm334 = vmand %vm310, %vm326
    %vm335 = vmand %vm311, %vm327
    %v336 = vsel %vm328, 0.0, -1e+09
    %v337 = vsel %vm329, 0.0, -1e+09
    %v338 = vsel %vm330, 0.0, -1e+09
    %v339 = vsel %vm331, 0.0, -1e+09
    %v340 = vsel %vm332, 0.0, -1e+09
    %v341 = vsel %vm333, 0.0, -1e+09
    %v342 = vsel %vm334, 0.0, -1e+09
    %v343 = vsel %vm335, 0.0, -1e+09
    %v344 = vld [vmem:[%s4] sm:$0xff]
    %v345 = vld [vmem:[%s4 + $0x8] sm:$0xff]
    %v346 = vld [vmem:[%s4 + $0x10] sm:$0xff]
    %v347 = vld [vmem:[%s4 + $0x18] sm:$0xff]
    %v348 = vld [vmem:[%s4 + $0x20] sm:$0xff]
    %v349 = vld [vmem:[%s4 + $0x28] sm:$0xff]
    %v350 = vld [vmem:[%s4 + $0x30] sm:$0xff]
    %v351 = vld [vmem:[%s4 + $0x38] sm:$0xff]
    %v352 = vld [vmem:[%s5] sm:$0xff]
    %v353 = vld [vmem:[%s5 + $0x8] sm:$0xff]
    %v354 = vld [vmem:[%s5 + $0x10] sm:$0xff]
    %v355 = vld [vmem:[%s5 + $0x18] sm:$0xff]
    %v356 = vld [vmem:[%s5 + $0x20] sm:$0xff]
    %v357 = vld [vmem:[%s5 + $0x28] sm:$0xff]
    %v358 = vld [vmem:[%s5 + $0x30] sm:$0xff]
    %v359 = vld [vmem:[%s5 + $0x38] sm:$0xff]
    %v360 = vld [vmem:[%s5 + $0x40] sm:$0xff]
    %v361 = vld [vmem:[%s5 + $0x48] sm:$0xff]
    %v362 = vld [vmem:[%s5 + $0x50] sm:$0xff]
    %v363 = vld [vmem:[%s5 + $0x58] sm:$0xff]
    %v364 = vld [vmem:[%s5 + $0x60] sm:$0xff]
    %v365 = vld [vmem:[%s5 + $0x68] sm:$0xff]
    %v366 = vld [vmem:[%s5 + $0x70] sm:$0xff]
    %v367 = vld [vmem:[%s5 + $0x78] sm:$0xff]
    %v368 = vld [vmem:[%s6] ss:$2 sm:$0xf]
    %vm369 = vcmask 261120
    %v370 = vsel %vm369, %v268, 0.0
    %371 = vadd.xlane.f32.xlu0 %v370
    %v372 = vpop.xlane.xlu0 %371
    %v373 = vsel %vm369, %v269, 0.0
    %374 = vadd.xlane.f32.xlu0 %v373
    %v375 = vpop.xlane.xlu0 %374
    %v376 = vsel %vm369, %v270, 0.0
    %377 = vadd.xlane.f32.xlu0 %v376
    %v378 = vpop.xlane.xlu0 %377
    %v379 = vsel %vm369, %v271, 0.0
    %380 = vadd.xlane.f32.xlu0 %v379
    %v381 = vpop.xlane.xlu0 %380
    %v382 = vsel %vm369, %v272, 0.0
    %383 = vadd.xlane.f32.xlu0 %v382
    %v384 = vpop.xlane.xlu0 %383
    %v385 = vsel %vm369, %v273, 0.0
    %386 = vadd.xlane.f32.xlu0 %v385
    %v387 = vpop.xlane.xlu0 %386
    %v388 = vsel %vm369, %v274, 0.0
    %389 = vadd.xlane.f32.xlu0 %v388
    %v390 = vpop.xlane.xlu0 %389
    %v391 = vsel %vm369, %v275, 0.0
    %392 = vadd.xlane.f32.xlu0 %v391
    %v393 = vpop.xlane.xlu0 %392
    %v394 = vrcp.pop 32.0
    %v395 = vmul.f32 %v372, %v394
    %v396 = vmul.f32 %v375, %v394
    %v397 = vmul.f32 %v378, %v394
    %v398 = vmul.f32 %v381, %v394
    %v399 = vmul.f32 %v384, %v394
    %v400 = vmul.f32 %v387, %v394
    %v401 = vmul.f32 %v390, %v394
    %v402 = vmul.f32 %v393, %v394
    %v403 = vsub.f32 %v268, %v395
    %v404 = vsub.f32 %v269, %v396
    %v405 = vsub.f32 %v270, %v397
    %v406 = vsub.f32 %v271, %v398
    %v407 = vsub.f32 %v272, %v399
    %v408 = vsub.f32 %v273, %v400
    %v409 = vsub.f32 %v274, %v401
    %v410 = vsub.f32 %v275, %v402
    %v411 = vmul.f32 %v403, %v403
    %v412 = vmul.f32 %v404, %v404
    %v413 = vmul.f32 %v405, %v405
    %v414 = vmul.f32 %v406, %v406
    %v415 = vmul.f32 %v407, %v407
    %v416 = vmul.f32 %v408, %v408
    %v417 = vmul.f32 %v409, %v409
    %v418 = vmul.f32 %v410, %v410
    %v419 = vsel %vm369, %v411, 0.0
    %420 = vadd.xlane.f32.xlu0 %v419
    %v421 = vpop.xlane.xlu0 %420
    %v422 = vsel %vm369, %v412, 0.0
    %423 = vadd.xlane.f32.xlu0 %v422
    %v424 = vpop.xlane.xlu0 %423
    %v425 = vsel %vm369, %v413, 0.0
    %426 = vadd.xlane.f32.xlu0 %v425
    %v427 = vpop.xlane.xlu0 %426
    %v428 = vsel %vm369, %v414, 0.0
    %429 = vadd.xlane.f32.xlu0 %v428
    %v430 = vpop.xlane.xlu0 %429
    %v431 = vsel %vm369, %v415, 0.0
    %432 = vadd.xlane.f32.xlu0 %v431
    %v433 = vpop.xlane.xlu0 %432
    %v434 = vsel %vm369, %v416, 0.0
    %435 = vadd.xlane.f32.xlu0 %v434
    %v436 = vpop.xlane.xlu0 %435
    %v437 = vsel %vm369, %v417, 0.0
    %438 = vadd.xlane.f32.xlu0 %v437
    %v439 = vpop.xlane.xlu0 %438
    %v440 = vsel %vm369, %v418, 0.0
    %441 = vadd.xlane.f32.xlu0 %v440
    %v442 = vpop.xlane.xlu0 %441
    %v443 = vmul.f32 %v421, %v394
    %v444 = vmul.f32 %v424, %v394
    %v445 = vmul.f32 %v427, %v394
    %v446 = vmul.f32 %v430, %v394
    %v447 = vmul.f32 %v433, %v394
    %v448 = vmul.f32 %v436, %v394
    %v449 = vmul.f32 %v439, %v394
    %v450 = vmul.f32 %v442, %v394
    %v451 = vadd.f32 %v443, 1e-05
    %v452 = vadd.f32 %v444, 1e-05
    %v453 = vadd.f32 %v445, 1e-05
    %v454 = vadd.f32 %v446, 1e-05
    %v455 = vadd.f32 %v447, 1e-05
    %v456 = vadd.f32 %v448, 1e-05
    %v457 = vadd.f32 %v449, 1e-05
    %v458 = vadd.f32 %v450, 1e-05
    %v459 = vrsqrt.pop %v451
    %v460 = vrsqrt.pop %v452
    %v461 = vrsqrt.pop %v453
    %v462 = vrsqrt.pop %v454
    %v463 = vrsqrt.pop %v455
    %v464 = vrsqrt.pop %v456
    %v465 = vrsqrt.pop %v457
    %v466 = vrsqrt.pop %v458
    %v467 = vmul.f32 %v403, %v459
    %v468 = vmul.f32 %v404, %v460
    %v469 = vmul.f32 %v405, %v461
    %v470 = vmul.f32 %v406, %v462
    %v471 = vmul.f32 %v407, %v463
    %v472 = vmul.f32 %v408, %v464
    %v473 = vmul.f32 %v409, %v465
    %v474 = vmul.f32 %v410, %v466
    %v476 = vlaneseq
    %v477 = vshrl.u32 %v476, 7
    %v478 = vsub.s32 0, %v477
    %v479 = vrot.slane %v368, %v478
    %v481 = vmul.f32 %v467, %v479
    %v482 = vmul.f32 %v468, %v479
    %v483 = vmul.f32 %v469, %v479
    %v484 = vmul.f32 %v470, %v479
    %v485 = vmul.f32 %v471, %v479
    %v486 = vmul.f32 %v472, %v479
    %v487 = vmul.f32 %v473, %v479
    %v488 = vmul.f32 %v474, %v479
    %489 = vrot.lane.b32.xlu0 %v479, 96
    %v490 = vpop.permute.xlu0 %489
    %v492 = vadd.f32 %v481, %v490
    %v493 = vadd.f32 %v482, %v490
    %v494 = vadd.f32 %v483, %v490
    %v495 = vadd.f32 %v484, %v490
    %v496 = vadd.f32 %v485, %v490
    %v497 = vadd.f32 %v486, %v490
    %v498 = vadd.f32 %v487, %v490
    %v499 = vadd.f32 %v488, %v490
    %v500 = vlaneseq
    %v501 = vshrl.u32 %v500, 7
    %v502 = vsub.s32 1, %v501
    %v503 = vrot.slane %v368, %v502
    %504 = vrot.lane.b32.xlu0 %v479, 64
    %v505 = vpop.permute.xlu0 %504
    %506 = vrot.lane.b32.xlu0 %v503, 64
    %v507 = vpop.permute.xlu0 %506
    %v508 = vsel %vm137, %v505, %v507
    %v511 = vsel %vm369, %v492, 0
    %v514 = vsel %vm369, %v493, 0
    %v517 = vsel %vm369, %v494, 0
    %v520 = vsel %vm369, %v495, 0
    %v523 = vsel %vm369, %v496, 0
    %v526 = vsel %vm369, %v497, 0
    %v529 = vsel %vm369, %v498, 0
    %v532 = vsel %vm369, %v499, 0
    %534 = vmatprep.subr.mxu0 0.0
    %535 = vmatpush1.msra.mxu0 %v344
    %536 = vmatprep.subr.mxu0 0.0
    %537 = vmatpush1.msra.mxu0 %v346
    %538 = vmatprep.subr.mxu0 0.0
    %539 = vmatpush1.msra.mxu0 %v348
    %540 = vmatprep.subr.mxu0 0.0
    %541 = vmatpush1.msra.mxu0 %v350
    %542 = vmatprep.subr.mxu0 0.0
    %543 = vmatpush1.msra.mxu0 0.0
    %544 = vmatprep.subr.mxu0 0.0
    %545 = vmatpush1.msra.mxu0 0.0
    %546 = vmatprep.subr.mxu0 0.0
    %547 = vmatpush1.msra.mxu0 0.0
    %548 = vmatprep.subr.mxu0 0.0
    %549 = vmatpush1.msra.mxu0 0.0
    %550 = vmatprep.subr.mxu0 0.0
    %551 = vmatpush1.msra.mxu0 0.0
    %552 = vmatprep.subr.mxu0 0.0
    %553 = vmatpush1.msra.mxu0 0.0
    %554 = vmatprep.subr.mxu0 0.0
    %555 = vmatpush1.msra.mxu0 0.0
    %556 = vmatprep.subr.mxu0 0.0
    %557 = vmatpush1.msra.mxu0 0.0
    %558 = vmatprep.subr.mxu0 0.0
    %559 = vmatpush1.msra.mxu0 0.0
    %560 = vmatprep.subr.mxu0 0.0
    %561 = vmatpush1.msra.mxu0 0.0
    %562 = vmatprep.subr.mxu0 0.0
    %563 = vmatpush1.msra.mxu0 0.0
    %564 = vmatprep.subr.mxu0 0.0
    %565 = vmatpush1.msra.mxu0 0.0
    %566 = vmatprep.subr.mxu0 0.0
    %567 = vmatpush1.msra.mxu0 0.0
    %568 = vmatprep.subr.mxu0 0.0
    %569 = vmatpush1.msra.mxu0 0.0
    %570 = vmatprep.subr.mxu0 0.0
    %571 = vmatpush1.msra.mxu0 0.0
    %572 = vmatprep.subr.mxu0 0.0
    %573 = vmatpush1.msra.mxu0 0.0
    %574 = vmatprep.subr.mxu0 0.0
    %575 = vmatpush1.msra.mxu0 0.0
    %576 = vmatprep.subr.mxu0 0.0
    %577 = vmatpush1.msra.mxu0 0.0
    %578 = vmatprep.subr.mxu0 0.0
    %579 = vmatpush1.msra.mxu0 0.0
    %580 = vmatprep.subr.mxu0 0.0
    %581 = vmatpush1.msra.mxu0 0.0
    %582 = vmatprep.subr.mxu0 0.0
    %583 = vmatpush1.msra.mxu0 0.0
    %584 = vmatprep.subr.mxu0 0.0
    %585 = vmatpush1.msra.mxu0 0.0
    %586 = vmatprep.subr.mxu0 0.0
    %587 = vmatpush1.msra.mxu0 0.0
    %588 = vmatprep.subr.mxu0 0.0
    %589 = vmatpush1.msra.mxu0 0.0
    %590 = vmatprep.subr.mxu0 0.0
    %591 = vmatpush1.msra.mxu0 0.0
    %592 = vmatprep.subr.mxu0 0.0
    %593 = vmatpush1.msra.mxu0 0.0
    %594 = vmatprep.subr.mxu0 0.0
    %595 = vmatpush1.msra.mxu0 0.0
    %596 = vmatprep.subr.mxu0 0.0
    %597 = vmatpush1.msra.mxu0 0.0
    %598 = vmatprep.mubr.f32.mxu0 0.0
    %599 = vmatmul.mubr.f32.gmra.mrb[0].mxu0 %v511
    %v600 = vpop.f32.mrb[0].mxu0
    %v601 = vadd.f32 %v508, %v600
    %v602 = vpop.f32.mrb[0].mxu0
    %603 = vmatprep.mubr.f32.mxu0 0.0
    %604 = vmatmul.mubr.f32.gmra.mrb[0].mxu0 %v514
    %v605 = vpop.f32.mrb[0].mxu0
    %v606 = vadd.f32 %v508, %v605
    %v607 = vpop.f32.mrb[0].mxu0
    %608 = vmatprep.mubr.f32.mxu0 0.0
    %609 = vmatmul.mubr.f32.gmra.mrb[0].mxu0 %v517
    %v610 = vpop.f32.mrb[0].mxu0
    %v611 = vadd.f32 %v508, %v610
    %v612 = vpop.f32.mrb[0].mxu0
    %613 = vmatprep.mubr.f32.mxu0 0.0
    %614 = vmatmul.mubr.f32.gmra.mrb[0].mxu0 %v520
    %v615 = vpop.f32.mrb[0].mxu0
    %v616 = vadd.f32 %v508, %v615
    %v617 = vpop.f32.mrb[0].mxu0
    %618 = vmatprep.mubr.f32.mxu0 0.0
    %619 = vmatmul.mubr.f32.gmra.mrb[0].mxu0 %v523
    %v620 = vpop.f32.mrb[0].mxu0
    %v621 = vadd.f32 %v508, %v620
    %v622 = vpop.f32.mrb[0].mxu0
    %623 = vmatprep.mubr.f32.mxu0 0.0
    %624 = vmatmul.mubr.f32.gmra.mrb[0].mxu0 %v526
    %v625 = vpop.f32.mrb[0].mxu0
    %v626 = vadd.f32 %v508, %v625
    %v627 = vpop.f32.mrb[0].mxu0
    %628 = vmatprep.mubr.f32.mxu0 0.0
    %629 = vmatmul.mubr.f32.gmra.mrb[0].mxu0 %v529
    %v630 = vpop.f32.mrb[0].mxu0
    %v631 = vadd.f32 %v508, %v630
    %v632 = vpop.f32.mrb[0].mxu0
    %633 = vmatprep.mubr.f32.mxu0 0.0
    %634 = vmatmul.mubr.f32.gmra.mrb[0].mxu0 %v532
    %v635 = vpop.f32.mrb[0].mxu0
    %v636 = vadd.f32 %v508, %v635
    %v637 = vpop.f32.mrb[0].mxu0
    %638 = vdwg.mxu0
    %v639 = vmul.f32 %v601, 0.25
    %v640 = vmul.f32 %v606, 0.25
    %v641 = vmul.f32 %v611, 0.25
    %v642 = vmul.f32 %v616, 0.25
    %v643 = vmul.f32 %v621, 0.25
    %v644 = vmul.f32 %v626, 0.25
    %v645 = vmul.f32 %v631, 0.25
    %v646 = vmul.f32 %v636, 0.25
    %655 = vrot.lane.b32.xlu0 %v601, 96
    %v656 = vpop.permute.xlu0 %655
    %657 = vrot.lane.b32.xlu0 %v606, 96
    %v658 = vpop.permute.xlu0 %657
    %659 = vrot.lane.b32.xlu0 %v611, 96
    %v660 = vpop.permute.xlu0 %659
    %661 = vrot.lane.b32.xlu0 %v616, 96
    %v662 = vpop.permute.xlu0 %661
    %663 = vrot.lane.b32.xlu0 %v621, 96
    %v664 = vpop.permute.xlu0 %663
    %665 = vrot.lane.b32.xlu0 %v626, 96
    %v666 = vpop.permute.xlu0 %665
    %667 = vrot.lane.b32.xlu0 %v631, 96
    %v668 = vpop.permute.xlu0 %667
    %669 = vrot.lane.b32.xlu0 %v636, 96
    %v670 = vpop.permute.xlu0 %669
    %vm671 = vcmask 130048
    %v673 = vsel %vm671, %v639, 0
    %v676 = vsel %vm671, %v640, 0
    %v679 = vsel %vm671, %v641, 0
    %v682 = vsel %vm671, %v642, 0
    %v685 = vsel %vm671, %v643, 0
    %v688 = vsel %vm671, %v644, 0
    %v691 = vsel %vm671, %v645, 0
    %v694 = vsel %vm671, %v646, 0
    %v696 = vsel %vm671, %v656, 0
    %v698 = vsel %vm671, %v658, 0
    %v700 = vsel %vm671, %v660, 0
    %v702 = vsel %vm671, %v662, 0
    %v704 = vsel %vm671, %v664, 0
    %v706 = vsel %vm671, %v666, 0
    %v708 = vsel %vm671, %v668, 0
    %v710 = vsel %vm671, %v670, 0
    %712 = vmatprep.subr.mxu0 0.0
    %713 = vmatpush1.xpose.msra.mxu0 %v696
    %714 = vmatprep.subr.mxu0 0.0
    %715 = vmatpush1.xpose.msra.mxu0 %v698
    %716 = vmatprep.subr.mxu0 0.0
    %717 = vmatpush1.xpose.msra.mxu0 %v700
    %718 = vmatprep.subr.mxu0 0.0
    %719 = vmatpush1.xpose.msra.mxu0 %v702
    %720 = vmatprep.subr.mxu0 0.0
    %721 = vmatpush1.xpose.msra.mxu0 %v704
    %722 = vmatprep.subr.mxu0 0.0
    %723 = vmatpush1.xpose.msra.mxu0 %v706
    %724 = vmatprep.subr.mxu0 0.0
    %725 = vmatpush1.xpose.msra.mxu0 %v708
    %726 = vmatprep.subr.mxu0 0.0
    %727 = vmatpush1.xpose.msra.mxu0 %v710
    %728 = vmatprep.subr.mxu0 0.0
    %729 = vmatpush1.xpose.msra.mxu0 0.0
    %730 = vmatprep.subr.mxu0 0.0
    %731 = vmatpush1.xpose.msra.mxu0 0.0
    %732 = vmatprep.subr.mxu0 0.0
    %733 = vmatpush1.xpose.msra.mxu0 0.0
    %734 = vmatprep.subr.mxu0 0.0
    %735 = vmatpush1.xpose.msra.mxu0 0.0
    %736 = vmatprep.subr.mxu0 0.0
    %737 = vmatpush1.xpose.msra.mxu0 0.0
    %738 = vmatprep.subr.mxu0 0.0
    %739 = vmatpush1.xpose.msra.mxu0 0.0
    %740 = vmatprep.subr.mxu0 0.0
    %741 = vmatpush1.xpose.msra.mxu0 0.0
    %742 = vmatprep.subr.mxu0 0.0
    %743 = vmatpush1.xpose.msra.mxu0 0.0
    %744 = vmatprep.subr.mxu0 0.0
    %745 = vmatpush1.xpose.msra.mxu0 0.0
    %746 = vmatprep.subr.mxu0 0.0
    %747 = vmatpush1.xpose.msra.mxu0 0.0
    %748 = vmatprep.subr.mxu0 0.0
    %749 = vmatpush1.xpose.msra.mxu0 0.0
    %750 = vmatprep.subr.mxu0 0.0
    %751 = vmatpush1.xpose.msra.mxu0 0.0
    %752 = vmatprep.subr.mxu0 0.0
    %753 = vmatpush1.xpose.msra.mxu0 0.0
    %754 = vmatprep.subr.mxu0 0.0
    %755 = vmatpush1.xpose.msra.mxu0 0.0
    %756 = vmatprep.subr.mxu0 0.0
    %757 = vmatpush1.xpose.msra.mxu0 0.0
    %758 = vmatprep.subr.mxu0 0.0
    %759 = vmatpush1.xpose.msra.mxu0 0.0
    %760 = vmatprep.subr.mxu0 0.0
    %761 = vmatpush1.xpose.msra.mxu0 0.0
    %762 = vmatprep.subr.mxu0 0.0
    %763 = vmatpush1.xpose.msra.mxu0 0.0
    %764 = vmatprep.subr.mxu0 0.0
    %765 = vmatpush1.xpose.msra.mxu0 0.0
    %766 = vmatprep.subr.mxu0 0.0
    %767 = vmatpush1.xpose.msra.mxu0 0.0
    %768 = vmatprep.subr.mxu0 0.0
    %769 = vmatpush1.xpose.msra.mxu0 0.0
    %770 = vmatprep.subr.mxu0 0.0
    %771 = vmatpush1.xpose.msra.mxu0 0.0
    %772 = vmatprep.subr.mxu0 0.0
    %773 = vmatpush1.xpose.msra.mxu0 0.0
    %774 = vmatprep.subr.mxu0 0.0
    %775 = vmatpush1.xpose.msra.mxu0 0.0
    %776 = vmatprep.mubr.f32.mxu0 0.0
    %777 = vmatmul.mubr.f32.gmra.mrb[0].mxu0 %v673
    %v778 = vpop.f32.mrb[0].mxu0
    %v779 = vadd.f32 %v336, %v778
    %v780 = vpop.f32.mrb[0].mxu0
    %781 = vmatprep.mubr.f32.mxu0 0.0
    %782 = vmatmul.mubr.f32.gmra.mrb[0].mxu0 %v676
    %v783 = vpop.f32.mrb[0].mxu0
    %v784 = vadd.f32 %v337, %v783
    %v785 = vpop.f32.mrb[0].mxu0
    %786 = vmatprep.mubr.f32.mxu0 0.0
    %787 = vmatmul.mubr.f32.gmra.mrb[0].mxu0 %v679
    %v788 = vpop.f32.mrb[0].mxu0
    %v789 = vadd.f32 %v338, %v788
    %v790 = vpop.f32.mrb[0].mxu0
    %791 = vmatprep.mubr.f32.mxu0 0.0
    %792 = vmatmul.mubr.f32.gmra.mrb[0].mxu0 %v682
    %v793 = vpop.f32.mrb[0].mxu0
    %v794 = vadd.f32 %v339, %v793
    %v795 = vpop.f32.mrb[0].mxu0
    %796 = vmatprep.mubr.f32.mxu0 0.0
    %797 = vmatmul.mubr.f32.gmra.mrb[0].mxu0 %v685
    %v798 = vpop.f32.mrb[0].mxu0
    %v799 = vadd.f32 %v340, %v798
    %v800 = vpop.f32.mrb[0].mxu0
    %801 = vmatprep.mubr.f32.mxu0 0.0
    %802 = vmatmul.mubr.f32.gmra.mrb[0].mxu0 %v688
    %v803 = vpop.f32.mrb[0].mxu0
    %v804 = vadd.f32 %v341, %v803
    %v805 = vpop.f32.mrb[0].mxu0
    %806 = vmatprep.mubr.f32.mxu0 0.0
    %807 = vmatmul.mubr.f32.gmra.mrb[0].mxu0 %v691
    %v808 = vpop.f32.mrb[0].mxu0
    %v809 = vadd.f32 %v342, %v808
    %v810 = vpop.f32.mrb[0].mxu0
    %811 = vmatprep.mubr.f32.mxu0 0.0
    %812 = vmatmul.mubr.f32.gmra.mrb[0].mxu0 %v694
    %v813 = vpop.f32.mrb[0].mxu0
    %v814 = vadd.f32 %v343, %v813
    %v815 = vpop.f32.mrb[0].mxu0
    %816 = vdwg.mxu0
    %v817 = vsel %vm137, %v779, -inf
    %818 = vmax.xlane.f32.xlu0 %v817
    %v819 = vpop.xlane.xlu0 %818
    %v820 = vsel %vm137, %v784, -inf
    %821 = vmax.xlane.f32.xlu0 %v820
    %v822 = vpop.xlane.xlu0 %821
    %v823 = vsel %vm137, %v789, -inf
    %824 = vmax.xlane.f32.xlu0 %v823
    %v825 = vpop.xlane.xlu0 %824
    %v826 = vsel %vm137, %v794, -inf
    %827 = vmax.xlane.f32.xlu0 %v826
    %v828 = vpop.xlane.xlu0 %827
    %v829 = vsel %vm137, %v799, -inf
    %830 = vmax.xlane.f32.xlu0 %v829
    %v831 = vpop.xlane.xlu0 %830
    %v832 = vsel %vm137, %v804, -inf
    %833 = vmax.xlane.f32.xlu0 %v832
    %v834 = vpop.xlane.xlu0 %833
    %v835 = vsel %vm137, %v809, -inf
    %836 = vmax.xlane.f32.xlu0 %v835
    %v837 = vpop.xlane.xlu0 %836
    %v838 = vsel %vm137, %v814, -inf
    %839 = vmax.xlane.f32.xlu0 %v838
    %v840 = vpop.xlane.xlu0 %839
    %v841 = vsub.f32 %v779, %v819
    %v842 = vsub.f32 %v784, %v822
    %v843 = vsub.f32 %v789, %v825
    %v844 = vsub.f32 %v794, %v828
    %v845 = vsub.f32 %v799, %v831
    %v846 = vsub.f32 %v804, %v834
    %v847 = vsub.f32 %v809, %v837
    %v848 = vsub.f32 %v814, %v840
    %v849 = vmul.f32 %v841, 1.442695
    %v850 = vpow.pop %v849
    %v851 = vmul.f32 %v842, 1.442695
    %v852 = vpow.pop %v851
    %v853 = vmul.f32 %v843, 1.442695
    %v854 = vpow.pop %v853
    %v855 = vmul.f32 %v844, 1.442695
    %v856 = vpow.pop %v855
    %v857 = vmul.f32 %v845, 1.442695
    %v858 = vpow.pop %v857
    %v859 = vmul.f32 %v846, 1.442695
    %v860 = vpow.pop %v859
    %v861 = vmul.f32 %v847, 1.442695
    %v862 = vpow.pop %v861
    %v863 = vmul.f32 %v848, 1.442695
    %v864 = vpow.pop %v863
    %v865 = vsel %vm137, %v850, 0.0
    %866 = vadd.xlane.f32.xlu0 %v865
    %v867 = vpop.xlane.xlu0 %866
    %v868 = vsel %vm137, %v852, 0.0
    %869 = vadd.xlane.f32.xlu0 %v868
    %v870 = vpop.xlane.xlu0 %869
    %v871 = vsel %vm137, %v854, 0.0
    %872 = vadd.xlane.f32.xlu0 %v871
    %v873 = vpop.xlane.xlu0 %872
    %v874 = vsel %vm137, %v856, 0.0
    %875 = vadd.xlane.f32.xlu0 %v874
    %v876 = vpop.xlane.xlu0 %875
    %v877 = vsel %vm137, %v858, 0.0
    %878 = vadd.xlane.f32.xlu0 %v877
    %v879 = vpop.xlane.xlu0 %878
    %v880 = vsel %vm137, %v860, 0.0
    %881 = vadd.xlane.f32.xlu0 %v880
    %v882 = vpop.xlane.xlu0 %881
    %v883 = vsel %vm137, %v862, 0.0
    %884 = vadd.xlane.f32.xlu0 %v883
    %v885 = vpop.xlane.xlu0 %884
    %v886 = vsel %vm137, %v864, 0.0
    %887 = vadd.xlane.f32.xlu0 %v886
    %v888 = vpop.xlane.xlu0 %887
    %v889 = vrcp.pop %v867
    %v890 = vmul.f32 %v850, %v889
    %v891 = vrcp.pop %v870
    %v892 = vmul.f32 %v852, %v891
    %v893 = vrcp.pop %v873
    %v894 = vmul.f32 %v854, %v893
    %v895 = vrcp.pop %v876
    %v896 = vmul.f32 %v856, %v895
    %v897 = vrcp.pop %v879
    %v898 = vmul.f32 %v858, %v897
    %v899 = vrcp.pop %v882
    %v900 = vmul.f32 %v860, %v899
    %v901 = vrcp.pop %v885
    %v902 = vmul.f32 %v862, %v901
    %v903 = vrcp.pop %v888
    %v904 = vmul.f32 %v864, %v903
    %905 = vrot.lane.b32.xlu0 %v601, 64
    %v906 = vpop.permute.xlu0 %905
    %907 = vrot.lane.b32.xlu0 %v606, 64
    %v908 = vpop.permute.xlu0 %907
    %909 = vrot.lane.b32.xlu0 %v611, 64
    %v910 = vpop.permute.xlu0 %909
    %911 = vrot.lane.b32.xlu0 %v616, 64
    %v912 = vpop.permute.xlu0 %911
    %913 = vrot.lane.b32.xlu0 %v621, 64
    %v914 = vpop.permute.xlu0 %913
    %915 = vrot.lane.b32.xlu0 %v626, 64
    %v916 = vpop.permute.xlu0 %915
    %917 = vrot.lane.b32.xlu0 %v631, 64
    %v918 = vpop.permute.xlu0 %917
    %919 = vrot.lane.b32.xlu0 %v636, 64
    %v920 = vpop.permute.xlu0 %919
    %v930 = vsel %vm137, %v890, 0
    %v933 = vsel %vm137, %v892, 0
    %v936 = vsel %vm137, %v894, 0
    %v939 = vsel %vm137, %v896, 0
    %v942 = vsel %vm137, %v898, 0
    %v945 = vsel %vm137, %v900, 0
    %v948 = vsel %vm137, %v902, 0
    %v951 = vsel %vm137, %v904, 0
    %953 = vmatprep.subr.mxu0 0.0
    %954 = vmatpush1.msra.mxu0 %v906
    %955 = vmatprep.subr.mxu0 0.0
    %956 = vmatpush1.msra.mxu0 %v908
    %957 = vmatprep.subr.mxu0 0.0
    %958 = vmatpush1.msra.mxu0 %v910
    %959 = vmatprep.subr.mxu0 0.0
    %960 = vmatpush1.msra.mxu0 %v912
    %961 = vmatprep.subr.mxu0 0.0
    %962 = vmatpush1.msra.mxu0 %v914
    %963 = vmatprep.subr.mxu0 0.0
    %964 = vmatpush1.msra.mxu0 %v916
    %965 = vmatprep.subr.mxu0 0.0
    %966 = vmatpush1.msra.mxu0 %v918
    %967 = vmatprep.subr.mxu0 0.0
    %968 = vmatpush1.msra.mxu0 %v920
    %969 = vmatprep.subr.mxu0 0.0
    %970 = vmatpush1.msra.mxu0 0.0
    %971 = vmatprep.subr.mxu0 0.0
    %972 = vmatpush1.msra.mxu0 0.0
    %973 = vmatprep.subr.mxu0 0.0
    %974 = vmatpush1.msra.mxu0 0.0
    %975 = vmatprep.subr.mxu0 0.0
    %976 = vmatpush1.msra.mxu0 0.0
    %977 = vmatprep.subr.mxu0 0.0
    %978 = vmatpush1.msra.mxu0 0.0
    %979 = vmatprep.subr.mxu0 0.0
    %980 = vmatpush1.msra.mxu0 0.0
    %981 = vmatprep.subr.mxu0 0.0
    %982 = vmatpush1.msra.mxu0 0.0
    %983 = vmatprep.subr.mxu0 0.0
    %984 = vmatpush1.msra.mxu0 0.0
    %985 = vmatprep.subr.mxu0 0.0
    %986 = vmatpush1.msra.mxu0 0.0
    %987 = vmatprep.subr.mxu0 0.0
    %988 = vmatpush1.msra.mxu0 0.0
    %989 = vmatprep.subr.mxu0 0.0
    %990 = vmatpush1.msra.mxu0 0.0
    %991 = vmatprep.subr.mxu0 0.0
    %992 = vmatpush1.msra.mxu0 0.0
    %993 = vmatprep.subr.mxu0 0.0
    %994 = vmatpush1.msra.mxu0 0.0
    %995 = vmatprep.subr.mxu0 0.0
    %996 = vmatpush1.msra.mxu0 0.0
    %997 = vmatprep.subr.mxu0 0.0
    %998 = vmatpush1.msra.mxu0 0.0
    %999 = vmatprep.subr.mxu0 0.0
    %1000 = vmatpush1.msra.mxu0 0.0
    %1001 = vmatprep.subr.mxu0 0.0
    %1002 = vmatpush1.msra.mxu0 0.0
    %1003 = vmatprep.subr.mxu0 0.0
    %1004 = vmatpush1.msra.mxu0 0.0
    %1005 = vmatprep.subr.mxu0 0.0
    %1006 = vmatpush1.msra.mxu0 0.0
    %1007 = vmatprep.subr.mxu0 0.0
    %1008 = vmatpush1.msra.mxu0 0.0
    %1009 = vmatprep.subr.mxu0 0.0
    %1010 = vmatpush1.msra.mxu0 0.0
    %1011 = vmatprep.subr.mxu0 0.0
    %1012 = vmatpush1.msra.mxu0 0.0
    %1013 = vmatprep.subr.mxu0 0.0
    %1014 = vmatpush1.msra.mxu0 0.0
    %1015 = vmatprep.subr.mxu0 0.0
    %1016 = vmatpush1.msra.mxu0 0.0
    %1017 = vmatprep.mubr.f32.mxu0 0.0
    %1018 = vmatmul.mubr.f32.gmra.mrb[0].mxu0 %v930
    %v1019 = vpop.f32.mrb[0].mxu0
    %v1020 = vadd.f32 0.0, %v1019
    %v1021 = vpop.f32.mrb[0].mxu0
    %1022 = vmatprep.mubr.f32.mxu0 0.0
    %1023 = vmatmul.mubr.f32.gmra.mrb[0].mxu0 %v933
    %v1024 = vpop.f32.mrb[0].mxu0
    %v1025 = vadd.f32 0.0, %v1024
    %v1026 = vpop.f32.mrb[0].mxu0
    %1027 = vmatprep.mubr.f32.mxu0 0.0
    %1028 = vmatmul.mubr.f32.gmra.mrb[0].mxu0 %v936
    %v1029 = vpop.f32.mrb[0].mxu0
    %v1030 = vadd.f32 0.0, %v1029
    %v1031 = vpop.f32.mrb[0].mxu0
    %1032 = vmatprep.mubr.f32.mxu0 0.0
    %1033 = vmatmul.mubr.f32.gmra.mrb[0].mxu0 %v939
    %v1034 = vpop.f32.mrb[0].mxu0
    %v1035 = vadd.f32 0.0, %v1034
    %v1036 = vpop.f32.mrb[0].mxu0
    %1037 = vmatprep.mubr.f32.mxu0 0.0
    %1038 = vmatmul.mubr.f32.gmra.mrb[0].mxu0 %v942
    %v1039 = vpop.f32.mrb[0].mxu0
    %v1040 = vadd.f32 0.0, %v1039
    %v1041 = vpop.f32.mrb[0].mxu0
    %1042 = vmatprep.mubr.f32.mxu0 0.0
    %1043 = vmatmul.mubr.f32.gmra.mrb[0].mxu0 %v945
    %v1044 = vpop.f32.mrb[0].mxu0
    %v1045 = vadd.f32 0.0, %v1044
    %v1046 = vpop.f32.mrb[0].mxu0
    %1047 = vmatprep.mubr.f32.mxu0 0.0
    %1048 = vmatmul.mubr.f32.gmra.mrb[0].mxu0 %v948
    %v1049 = vpop.f32.mrb[0].mxu0
    %v1050 = vadd.f32 0.0, %v1049
    %v1051 = vpop.f32.mrb[0].mxu0
    %1052 = vmatprep.mubr.f32.mxu0 0.0
    %1053 = vmatmul.mubr.f32.gmra.mrb[0].mxu0 %v951
    %v1054 = vpop.f32.mrb[0].mxu0
    %v1055 = vadd.f32 0.0, %v1054
    %v1056 = vpop.f32.mrb[0].mxu0
    %1057 = vdwg.mxu0
    %1058 = vrot.lane.b32.xlu0 %v639, 112
    %v1059 = vpop.permute.xlu0 %1058
    %1060 = vrot.lane.b32.xlu0 %v640, 112
    %v1061 = vpop.permute.xlu0 %1060
    %1062 = vrot.lane.b32.xlu0 %v641, 112
    %v1063 = vpop.permute.xlu0 %1062
    %1064 = vrot.lane.b32.xlu0 %v642, 112
    %v1065 = vpop.permute.xlu0 %1064
    %1066 = vrot.lane.b32.xlu0 %v643, 112
    %v1067 = vpop.permute.xlu0 %1066
    %1068 = vrot.lane.b32.xlu0 %v644, 112
    %v1069 = vpop.permute.xlu0 %1068
    %1070 = vrot.lane.b32.xlu0 %v645, 112
    %v1071 = vpop.permute.xlu0 %1070
    %1072 = vrot.lane.b32.xlu0 %v646, 112
    %v1073 = vpop.permute.xlu0 %1072
    %1074 = vrot.lane.b32.xlu0 %v601, 80
    %v1075 = vpop.permute.xlu0 %1074
    %1076 = vrot.lane.b32.xlu0 %v606, 80
    %v1077 = vpop.permute.xlu0 %1076
    %1078 = vrot.lane.b32.xlu0 %v611, 80
    %v1079 = vpop.permute.xlu0 %1078
    %1080 = vrot.lane.b32.xlu0 %v616, 80
    %v1081 = vpop.permute.xlu0 %1080
    %1082 = vrot.lane.b32.xlu0 %v621, 80
    %v1083 = vpop.permute.xlu0 %1082
    %1084 = vrot.lane.b32.xlu0 %v626, 80
    %v1085 = vpop.permute.xlu0 %1084
    %1086 = vrot.lane.b32.xlu0 %v631, 80
    %v1087 = vpop.permute.xlu0 %1086
    %1088 = vrot.lane.b32.xlu0 %v636, 80
    %v1089 = vpop.permute.xlu0 %1088
    %v1090 = vsel %vm671, %v1059, 0
    %v1092 = vsel %vm671, %v1061, 0
    %v1094 = vsel %vm671, %v1063, 0
    %v1096 = vsel %vm671, %v1065, 0
    %v1098 = vsel %vm671, %v1067, 0
    %v1100 = vsel %vm671, %v1069, 0
    %v1102 = vsel %vm671, %v1071, 0
    %v1104 = vsel %vm671, %v1073, 0
    %v1106 = vsel %vm671, %v1075, 0
    %v1108 = vsel %vm671, %v1077, 0
    %v1110 = vsel %vm671, %v1079, 0
    %v1112 = vsel %vm671, %v1081, 0
    %v1114 = vsel %vm671, %v1083, 0
    %v1116 = vsel %vm671, %v1085, 0
    %v1118 = vsel %vm671, %v1087, 0
    %v1120 = vsel %vm671, %v1089, 0
    %1122 = vmatprep.subr.mxu0 0.0
    %1123 = vmatpush1.xpose.msra.mxu0 %v1106
    %1124 = vmatprep.subr.mxu0 0.0
    %1125 = vmatpush1.xpose.msra.mxu0 %v1108
    %1126 = vmatprep.subr.mxu0 0.0
    %1127 = vmatpush1.xpose.msra.mxu0 %v1110
    %1128 = vmatprep.subr.mxu0 0.0
    %1129 = vmatpush1.xpose.msra.mxu0 %v1112
    %1130 = vmatprep.subr.mxu0 0.0
    %1131 = vmatpush1.xpose.msra.mxu0 %v1114
    %1132 = vmatprep.subr.mxu0 0.0
    %1133 = vmatpush1.xpose.msra.mxu0 %v1116
    %1134 = vmatprep.subr.mxu0 0.0
    %1135 = vmatpush1.xpose.msra.mxu0 %v1118
    %1136 = vmatprep.subr.mxu0 0.0
    %1137 = vmatpush1.xpose.msra.mxu0 %v1120
    %1138 = vmatprep.subr.mxu0 0.0
    %1139 = vmatpush1.xpose.msra.mxu0 0.0
    %1140 = vmatprep.subr.mxu0 0.0
    %1141 = vmatpush1.xpose.msra.mxu0 0.0
    %1142 = vmatprep.subr.mxu0 0.0
    %1143 = vmatpush1.xpose.msra.mxu0 0.0
    %1144 = vmatprep.subr.mxu0 0.0
    %1145 = vmatpush1.xpose.msra.mxu0 0.0
    %1146 = vmatprep.subr.mxu0 0.0
    %1147 = vmatpush1.xpose.msra.mxu0 0.0
    %1148 = vmatprep.subr.mxu0 0.0
    %1149 = vmatpush1.xpose.msra.mxu0 0.0
    %1150 = vmatprep.subr.mxu0 0.0
    %1151 = vmatpush1.xpose.msra.mxu0 0.0
    %1152 = vmatprep.subr.mxu0 0.0
    %1153 = vmatpush1.xpose.msra.mxu0 0.0
    %1154 = vmatprep.subr.mxu0 0.0
    %1155 = vmatpush1.xpose.msra.mxu0 0.0
    %1156 = vmatprep.subr.mxu0 0.0
    %1157 = vmatpush1.xpose.msra.mxu0 0.0
    %1158 = vmatprep.subr.mxu0 0.0
    %1159 = vmatpush1.xpose.msra.mxu0 0.0
    %1160 = vmatprep.subr.mxu0 0.0
    %1161 = vmatpush1.xpose.msra.mxu0 0.0
    %1162 = vmatprep.subr.mxu0 0.0
    %1163 = vmatpush1.xpose.msra.mxu0 0.0
    %1164 = vmatprep.subr.mxu0 0.0
    %1165 = vmatpush1.xpose.msra.mxu0 0.0
    %1166 = vmatprep.subr.mxu0 0.0
    %1167 = vmatpush1.xpose.msra.mxu0 0.0
    %1168 = vmatprep.subr.mxu0 0.0
    %1169 = vmatpush1.xpose.msra.mxu0 0.0
    %1170 = vmatprep.subr.mxu0 0.0
    %1171 = vmatpush1.xpose.msra.mxu0 0.0
    %1172 = vmatprep.subr.mxu0 0.0
    %1173 = vmatpush1.xpose.msra.mxu0 0.0
    %1174 = vmatprep.subr.mxu0 0.0
    %1175 = vmatpush1.xpose.msra.mxu0 0.0
    %1176 = vmatprep.subr.mxu0 0.0
    %1177 = vmatpush1.xpose.msra.mxu0 0.0
    %1178 = vmatprep.subr.mxu0 0.0
    %1179 = vmatpush1.xpose.msra.mxu0 0.0
    %1180 = vmatprep.subr.mxu0 0.0
    %1181 = vmatpush1.xpose.msra.mxu0 0.0
    %1182 = vmatprep.subr.mxu0 0.0
    %1183 = vmatpush1.xpose.msra.mxu0 0.0
    %1184 = vmatprep.subr.mxu0 0.0
    %1185 = vmatpush1.xpose.msra.mxu0 0.0
    %1186 = vmatprep.mubr.f32.mxu0 0.0
    %1187 = vmatmul.mubr.f32.gmra.mrb[0].mxu0 %v1090
    %v1188 = vpop.f32.mrb[0].mxu0
    %v1189 = vadd.f32 %v336, %v1188
    %v1190 = vpop.f32.mrb[0].mxu0
    %1191 = vmatprep.mubr.f32.mxu0 0.0
    %1192 = vmatmul.mubr.f32.gmra.mrb[0].mxu0 %v1092
    %v1193 = vpop.f32.mrb[0].mxu0
    %v1194 = vadd.f32 %v337, %v1193
    %v1195 = vpop.f32.mrb[0].mxu0
    %1196 = vmatprep.mubr.f32.mxu0 0.0
    %1197 = vmatmul.mubr.f32.gmra.mrb[0].mxu0 %v1094
    %v1198 = vpop.f32.mrb[0].mxu0
    %v1199 = vadd.f32 %v338, %v1198
    %v1200 = vpop.f32.mrb[0].mxu0
    %1201 = vmatprep.mubr.f32.mxu0 0.0
    %1202 = vmatmul.mubr.f32.gmra.mrb[0].mxu0 %v1096
    %v1203 = vpop.f32.mrb[0].mxu0
    %v1204 = vadd.f32 %v339, %v1203
    %v1205 = vpop.f32.mrb[0].mxu0
    %1206 = vmatprep.mubr.f32.mxu0 0.0
    %1207 = vmatmul.mubr.f32.gmra.mrb[0].mxu0 %v1098
    %v1208 = vpop.f32.mrb[0].mxu0
    %v1209 = vadd.f32 %v340, %v1208
    %v1210 = vpop.f32.mrb[0].mxu0
    %1211 = vmatprep.mubr.f32.mxu0 0.0
    %1212 = vmatmul.mubr.f32.gmra.mrb[0].mxu0 %v1100
    %v1213 = vpop.f32.mrb[0].mxu0
    %v1214 = vadd.f32 %v341, %v1213
    %v1215 = vpop.f32.mrb[0].mxu0
    %1216 = vmatprep.mubr.f32.mxu0 0.0
    %1217 = vmatmul.mubr.f32.gmra.mrb[0].mxu0 %v1102
    %v1218 = vpop.f32.mrb[0].mxu0
    %v1219 = vadd.f32 %v342, %v1218
    %v1220 = vpop.f32.mrb[0].mxu0
    %1221 = vmatprep.mubr.f32.mxu0 0.0
    %1222 = vmatmul.mubr.f32.gmra.mrb[0].mxu0 %v1104
    %v1223 = vpop.f32.mrb[0].mxu0
    %v1224 = vadd.f32 %v343, %v1223
    %v1225 = vpop.f32.mrb[0].mxu0
    %1226 = vdwg.mxu0
    %v1227 = vsel %vm137, %v1189, -inf
    %1228 = vmax.xlane.f32.xlu0 %v1227
    %v1229 = vpop.xlane.xlu0 %1228
    %v1230 = vsel %vm137, %v1194, -inf
    %1231 = vmax.xlane.f32.xlu0 %v1230
    %v1232 = vpop.xlane.xlu0 %1231
    %v1233 = vsel %vm137, %v1199, -inf
    %1234 = vmax.xlane.f32.xlu0 %v1233
    %v1235 = vpop.xlane.xlu0 %1234
    %v1236 = vsel %vm137, %v1204, -inf
    %1237 = vmax.xlane.f32.xlu0 %v1236
    %v1238 = vpop.xlane.xlu0 %1237
    %v1239 = vsel %vm137, %v1209, -inf
    %1240 = vmax.xlane.f32.xlu0 %v1239
    %v1241 = vpop.xlane.xlu0 %1240
    %v1242 = vsel %vm137, %v1214, -inf
    %1243 = vmax.xlane.f32.xlu0 %v1242
    %v1244 = vpop.xlane.xlu0 %1243
    %v1245 = vsel %vm137, %v1219, -inf
    %1246 = vmax.xlane.f32.xlu0 %v1245
    %v1247 = vpop.xlane.xlu0 %1246
    %v1248 = vsel %vm137, %v1224, -inf
    %1249 = vmax.xlane.f32.xlu0 %v1248
    %v1250 = vpop.xlane.xlu0 %1249
    %v1251 = vsub.f32 %v1189, %v1229
    %v1252 = vsub.f32 %v1194, %v1232
    %v1253 = vsub.f32 %v1199, %v1235
    %v1254 = vsub.f32 %v1204, %v1238
    %v1255 = vsub.f32 %v1209, %v1241
    %v1256 = vsub.f32 %v1214, %v1244
    %v1257 = vsub.f32 %v1219, %v1247
    %v1258 = vsub.f32 %v1224, %v1250
    %v1259 = vmul.f32 %v1251, 1.442695
    %v1260 = vpow.pop %v1259
    %v1261 = vmul.f32 %v1252, 1.442695
    %v1262 = vpow.pop %v1261
    %v1263 = vmul.f32 %v1253, 1.442695
    %v1264 = vpow.pop %v1263
    %v1265 = vmul.f32 %v1254, 1.442695
    %v1266 = vpow.pop %v1265
    %v1267 = vmul.f32 %v1255, 1.442695
    %v1268 = vpow.pop %v1267
    %v1269 = vmul.f32 %v1256, 1.442695
    %v1270 = vpow.pop %v1269
    %v1271 = vmul.f32 %v1257, 1.442695
    %v1272 = vpow.pop %v1271
    %v1273 = vmul.f32 %v1258, 1.442695
    %v1274 = vpow.pop %v1273
    %v1275 = vsel %vm137, %v1260, 0.0
    %1276 = vadd.xlane.f32.xlu0 %v1275
    %v1277 = vpop.xlane.xlu0 %1276
    %v1278 = vsel %vm137, %v1262, 0.0
    %1279 = vadd.xlane.f32.xlu0 %v1278
    %v1280 = vpop.xlane.xlu0 %1279
    %v1281 = vsel %vm137, %v1264, 0.0
    %1282 = vadd.xlane.f32.xlu0 %v1281
    %v1283 = vpop.xlane.xlu0 %1282
    %v1284 = vsel %vm137, %v1266, 0.0
    %1285 = vadd.xlane.f32.xlu0 %v1284
    %v1286 = vpop.xlane.xlu0 %1285
    %v1287 = vsel %vm137, %v1268, 0.0
    %1288 = vadd.xlane.f32.xlu0 %v1287
    %v1289 = vpop.xlane.xlu0 %1288
    %v1290 = vsel %vm137, %v1270, 0.0
    %1291 = vadd.xlane.f32.xlu0 %v1290
    %v1292 = vpop.xlane.xlu0 %1291
    %v1293 = vsel %vm137, %v1272, 0.0
    %1294 = vadd.xlane.f32.xlu0 %v1293
    %v1295 = vpop.xlane.xlu0 %1294
    %v1296 = vsel %vm137, %v1274, 0.0
    %1297 = vadd.xlane.f32.xlu0 %v1296
    %v1298 = vpop.xlane.xlu0 %1297
    %v1299 = vrcp.pop %v1277
    %v1300 = vmul.f32 %v1260, %v1299
    %v1301 = vrcp.pop %v1280
    %v1302 = vmul.f32 %v1262, %v1301
    %v1303 = vrcp.pop %v1283
    %v1304 = vmul.f32 %v1264, %v1303
    %v1305 = vrcp.pop %v1286
    %v1306 = vmul.f32 %v1266, %v1305
    %v1307 = vrcp.pop %v1289
    %v1308 = vmul.f32 %v1268, %v1307
    %v1309 = vrcp.pop %v1292
    %v1310 = vmul.f32 %v1270, %v1309
    %v1311 = vrcp.pop %v1295
    %v1312 = vmul.f32 %v1272, %v1311
    %v1313 = vrcp.pop %v1298
    %v1314 = vmul.f32 %v1274, %v1313
    %1315 = vrot.lane.b32.xlu0 %v601, 48
    %v1316 = vpop.permute.xlu0 %1315
    %1317 = vrot.lane.b32.xlu0 %v606, 48
    %v1318 = vpop.permute.xlu0 %1317
    %1319 = vrot.lane.b32.xlu0 %v611, 48
    %v1320 = vpop.permute.xlu0 %1319
    %1321 = vrot.lane.b32.xlu0 %v616, 48
    %v1322 = vpop.permute.xlu0 %1321
    %1323 = vrot.lane.b32.xlu0 %v621, 48
    %v1324 = vpop.permute.xlu0 %1323
    %1325 = vrot.lane.b32.xlu0 %v626, 48
    %v1326 = vpop.permute.xlu0 %1325
    %1327 = vrot.lane.b32.xlu0 %v631, 48
    %v1328 = vpop.permute.xlu0 %1327
    %1329 = vrot.lane.b32.xlu0 %v636, 48
    %v1330 = vpop.permute.xlu0 %1329
    %v1340 = vsel %vm137, %v1300, 0
    %v1343 = vsel %vm137, %v1302, 0
    %v1346 = vsel %vm137, %v1304, 0
    %v1349 = vsel %vm137, %v1306, 0
    %v1352 = vsel %vm137, %v1308, 0
    %v1355 = vsel %vm137, %v1310, 0
    %v1358 = vsel %vm137, %v1312, 0
    %v1361 = vsel %vm137, %v1314, 0
    %1363 = vmatprep.subr.mxu0 0.0
    %1364 = vmatpush1.msra.mxu0 %v1316
    %1365 = vmatprep.subr.mxu0 0.0
    %1366 = vmatpush1.msra.mxu0 %v1318
    %1367 = vmatprep.subr.mxu0 0.0
    %1368 = vmatpush1.msra.mxu0 %v1320
    %1369 = vmatprep.subr.mxu0 0.0
    %1370 = vmatpush1.msra.mxu0 %v1322
    %1371 = vmatprep.subr.mxu0 0.0
    %1372 = vmatpush1.msra.mxu0 %v1324
    %1373 = vmatprep.subr.mxu0 0.0
    %1374 = vmatpush1.msra.mxu0 %v1326
    %1375 = vmatprep.subr.mxu0 0.0
    %1376 = vmatpush1.msra.mxu0 %v1328
    %1377 = vmatprep.subr.mxu0 0.0
    %1378 = vmatpush1.msra.mxu0 %v1330
    %1379 = vmatprep.subr.mxu0 0.0
    %1380 = vmatpush1.msra.mxu0 0.0
    %1381 = vmatprep.subr.mxu0 0.0
    %1382 = vmatpush1.msra.mxu0 0.0
    %1383 = vmatprep.subr.mxu0 0.0
    %1384 = vmatpush1.msra.mxu0 0.0
    %1385 = vmatprep.subr.mxu0 0.0
    %1386 = vmatpush1.msra.mxu0 0.0
    %1387 = vmatprep.subr.mxu0 0.0
    %1388 = vmatpush1.msra.mxu0 0.0
    %1389 = vmatprep.subr.mxu0 0.0
    %1390 = vmatpush1.msra.mxu0 0.0
    %1391 = vmatprep.subr.mxu0 0.0
    %1392 = vmatpush1.msra.mxu0 0.0
    %1393 = vmatprep.subr.mxu0 0.0
    %1394 = vmatpush1.msra.mxu0 0.0
    %1395 = vmatprep.subr.mxu0 0.0
    %1396 = vmatpush1.msra.mxu0 0.0
    %1397 = vmatprep.subr.mxu0 0.0
    %1398 = vmatpush1.msra.mxu0 0.0
    %1399 = vmatprep.subr.mxu0 0.0
    %1400 = vmatpush1.msra.mxu0 0.0
    %1401 = vmatprep.subr.mxu0 0.0
    %1402 = vmatpush1.msra.mxu0 0.0
    %1403 = vmatprep.subr.mxu0 0.0
    %1404 = vmatpush1.msra.mxu0 0.0
    %1405 = vmatprep.subr.mxu0 0.0
    %1406 = vmatpush1.msra.mxu0 0.0
    %1407 = vmatprep.subr.mxu0 0.0
    %1408 = vmatpush1.msra.mxu0 0.0
    %1409 = vmatprep.subr.mxu0 0.0
    %1410 = vmatpush1.msra.mxu0 0.0
    %1411 = vmatprep.subr.mxu0 0.0
    %1412 = vmatpush1.msra.mxu0 0.0
    %1413 = vmatprep.subr.mxu0 0.0
    %1414 = vmatpush1.msra.mxu0 0.0
    %1415 = vmatprep.subr.mxu0 0.0
    %1416 = vmatpush1.msra.mxu0 0.0
    %1417 = vmatprep.subr.mxu0 0.0
    %1418 = vmatpush1.msra.mxu0 0.0
    %1419 = vmatprep.subr.mxu0 0.0
    %1420 = vmatpush1.msra.mxu0 0.0
    %1421 = vmatprep.subr.mxu0 0.0
    %1422 = vmatpush1.msra.mxu0 0.0
    %1423 = vmatprep.subr.mxu0 0.0
    %1424 = vmatpush1.msra.mxu0 0.0
    %1425 = vmatprep.subr.mxu0 0.0
    %1426 = vmatpush1.msra.mxu0 0.0
    %1427 = vmatprep.mubr.f32.mxu0 0.0
    %1428 = vmatmul.mubr.f32.gmra.mrb[0].mxu0 %v1340
    %v1429 = vpop.f32.mrb[0].mxu0
    %v1430 = vadd.f32 0.0, %v1429
    %v1431 = vpop.f32.mrb[0].mxu0
    %1432 = vmatprep.mubr.f32.mxu0 0.0
    %1433 = vmatmul.mubr.f32.gmra.mrb[0].mxu0 %v1343
    %v1434 = vpop.f32.mrb[0].mxu0
    %v1435 = vadd.f32 0.0, %v1434
    %v1436 = vpop.f32.mrb[0].mxu0
    %1437 = vmatprep.mubr.f32.mxu0 0.0
    %1438 = vmatmul.mubr.f32.gmra.mrb[0].mxu0 %v1346
    %v1439 = vpop.f32.mrb[0].mxu0
    %v1440 = vadd.f32 0.0, %v1439
    %v1441 = vpop.f32.mrb[0].mxu0
    %1442 = vmatprep.mubr.f32.mxu0 0.0
    %1443 = vmatmul.mubr.f32.gmra.mrb[0].mxu0 %v1349
    %v1444 = vpop.f32.mrb[0].mxu0
    %v1445 = vadd.f32 0.0, %v1444
    %v1446 = vpop.f32.mrb[0].mxu0
    %1447 = vmatprep.mubr.f32.mxu0 0.0
    %1448 = vmatmul.mubr.f32.gmra.mrb[0].mxu0 %v1352
    %v1449 = vpop.f32.mrb[0].mxu0
    %v1450 = vadd.f32 0.0, %v1449
    %v1451 = vpop.f32.mrb[0].mxu0
    %1452 = vmatprep.mubr.f32.mxu0 0.0
    %1453 = vmatmul.mubr.f32.gmra.mrb[0].mxu0 %v1355
    %v1454 = vpop.f32.mrb[0].mxu0
    %v1455 = vadd.f32 0.0, %v1454
    %v1456 = vpop.f32.mrb[0].mxu0
    %1457 = vmatprep.mubr.f32.mxu0 0.0
    %1458 = vmatmul.mubr.f32.gmra.mrb[0].mxu0 %v1358
    %v1459 = vpop.f32.mrb[0].mxu0
    %v1460 = vadd.f32 0.0, %v1459
    %v1461 = vpop.f32.mrb[0].mxu0
    %1462 = vmatprep.mubr.f32.mxu0 0.0
    %1463 = vmatmul.mubr.f32.gmra.mrb[0].mxu0 %v1361
    %v1464 = vpop.f32.mrb[0].mxu0
    %v1465 = vadd.f32 0.0, %v1464
    %v1466 = vpop.f32.mrb[0].mxu0
    %1467 = vdwg.mxu0
    %1470 = vrot.lane.b32.xlu0 %v348, 32
    %v1471 = vpop.permute.xlu0 %1470
    %1472 = vrot.lane.b32.xlu0 %v350, 32
    %v1473 = vpop.permute.xlu0 %1472
    %v1477 = vsel %vm671, %v1430, 0
    %v1480 = vsel %vm671, %v1435, 0
    %v1483 = vsel %vm671, %v1440, 0
    %v1486 = vsel %vm671, %v1445, 0
    %v1489 = vsel %vm671, %v1450, 0
    %v1492 = vsel %vm671, %v1455, 0
    %v1495 = vsel %vm671, %v1460, 0
    %v1498 = vsel %vm671, %v1465, 0
    %1500 = vmatprep.subr.mxu0 0.0
    %1501 = vmatpush1.msra.mxu0 %v1471
    %1502 = vmatprep.subr.mxu0 0.0
    %1503 = vmatpush1.msra.mxu0 %v1473
    %1504 = vmatprep.subr.mxu0 0.0
    %1505 = vmatpush1.msra.mxu0 0.0
    %1506 = vmatprep.subr.mxu0 0.0
    %1507 = vmatpush1.msra.mxu0 0.0
    %1508 = vmatprep.subr.mxu0 0.0
    %1509 = vmatpush1.msra.mxu0 0.0
    %1510 = vmatprep.subr.mxu0 0.0
    %1511 = vmatpush1.msra.mxu0 0.0
    %1512 = vmatprep.subr.mxu0 0.0
    %1513 = vmatpush1.msra.mxu0 0.0
    %1514 = vmatprep.subr.mxu0 0.0
    %1515 = vmatpush1.msra.mxu0 0.0
    %1516 = vmatprep.subr.mxu0 0.0
    %1517 = vmatpush1.msra.mxu0 0.0
    %1518 = vmatprep.subr.mxu0 0.0
    %1519 = vmatpush1.msra.mxu0 0.0
    %1520 = vmatprep.subr.mxu0 0.0
    %1521 = vmatpush1.msra.mxu0 0.0
    %1522 = vmatprep.subr.mxu0 0.0
    %1523 = vmatpush1.msra.mxu0 0.0
    %1524 = vmatprep.subr.mxu0 0.0
    %1525 = vmatpush1.msra.mxu0 0.0
    %1526 = vmatprep.subr.mxu0 0.0
    %1527 = vmatpush1.msra.mxu0 0.0
    %1528 = vmatprep.subr.mxu0 0.0
    %1529 = vmatpush1.msra.mxu0 0.0
    %1530 = vmatprep.subr.mxu0 0.0
    %1531 = vmatpush1.msra.mxu0 0.0
    %1532 = vmatprep.subr.mxu0 0.0
    %1533 = vmatpush1.msra.mxu0 0.0
    %1534 = vmatprep.subr.mxu0 0.0
    %1535 = vmatpush1.msra.mxu0 0.0
    %1536 = vmatprep.subr.mxu0 0.0
    %1537 = vmatpush1.msra.mxu0 0.0
    %1538 = vmatprep.subr.mxu0 0.0
    %1539 = vmatpush1.msra.mxu0 0.0
    %1540 = vmatprep.subr.mxu0 0.0
    %1541 = vmatpush1.msra.mxu0 0.0
    %1542 = vmatprep.subr.mxu0 0.0
    %1543 = vmatpush1.msra.mxu0 0.0
    %1544 = vmatprep.subr.mxu0 0.0
    %1545 = vmatpush1.msra.mxu0 0.0
    %1546 = vmatprep.subr.mxu0 0.0
    %1547 = vmatpush1.msra.mxu0 0.0
    %1548 = vmatprep.subr.mxu0 0.0
    %1549 = vmatpush1.msra.mxu0 0.0
    %1550 = vmatprep.subr.mxu0 0.0
    %1551 = vmatpush1.msra.mxu0 0.0
    %1552 = vmatprep.subr.mxu0 0.0
    %1553 = vmatpush1.msra.mxu0 0.0
    %1554 = vmatprep.subr.mxu0 0.0
    %1555 = vmatpush1.msra.mxu0 0.0
    %1556 = vmatprep.subr.mxu0 0.0
    %1557 = vmatpush1.msra.mxu0 0.0
    %1558 = vmatprep.subr.mxu0 0.0
    %1559 = vmatpush1.msra.mxu0 0.0
    %1560 = vmatprep.subr.mxu0 0.0
    %1561 = vmatpush1.msra.mxu0 0.0
    %1562 = vmatprep.subr.mxu0 0.0
    %1563 = vmatpush1.msra.mxu0 0.0
    %1564 = vmatprep.mubr.f32.mxu0 0.0
    %1565 = vmatmul.mubr.f32.gmra.mrb[0].mxu0 %v1477
    %v1566 = vpop.f32.mrb[0].mxu0
    %v1567 = vadd.f32 0.0, %v1566
    %v1568 = vpop.f32.mrb[0].mxu0
    %1569 = vmatprep.mubr.f32.mxu0 0.0
    %1570 = vmatmul.mubr.f32.gmra.mrb[0].mxu0 %v1480
    %v1571 = vpop.f32.mrb[0].mxu0
    %v1572 = vadd.f32 0.0, %v1571
    %v1573 = vpop.f32.mrb[0].mxu0
    %1574 = vmatprep.mubr.f32.mxu0 0.0
    %1575 = vmatmul.mubr.f32.gmra.mrb[0].mxu0 %v1483
    %v1576 = vpop.f32.mrb[0].mxu0
    %v1577 = vadd.f32 0.0, %v1576
    %v1578 = vpop.f32.mrb[0].mxu0
    %1579 = vmatprep.mubr.f32.mxu0 0.0
    %1580 = vmatmul.mubr.f32.gmra.mrb[0].mxu0 %v1486
    %v1581 = vpop.f32.mrb[0].mxu0
    %v1582 = vadd.f32 0.0, %v1581
    %v1583 = vpop.f32.mrb[0].mxu0
    %1584 = vmatprep.mubr.f32.mxu0 0.0
    %1585 = vmatmul.mubr.f32.gmra.mrb[0].mxu0 %v1489
    %v1586 = vpop.f32.mrb[0].mxu0
    %v1587 = vadd.f32 0.0, %v1586
    %v1588 = vpop.f32.mrb[0].mxu0
    %1589 = vmatprep.mubr.f32.mxu0 0.0
    %1590 = vmatmul.mubr.f32.gmra.mrb[0].mxu0 %v1492
    %v1591 = vpop.f32.mrb[0].mxu0
    %v1592 = vadd.f32 0.0, %v1591
    %v1593 = vpop.f32.mrb[0].mxu0
    %1594 = vmatprep.mubr.f32.mxu0 0.0
    %1595 = vmatmul.mubr.f32.gmra.mrb[0].mxu0 %v1495
    %v1596 = vpop.f32.mrb[0].mxu0
    %v1597 = vadd.f32 0.0, %v1596
    %v1598 = vpop.f32.mrb[0].mxu0
    %1599 = vmatprep.mubr.f32.mxu0 0.0
    %1600 = vmatmul.mubr.f32.gmra.mrb[0].mxu0 %v1498
    %v1601 = vpop.f32.mrb[0].mxu0
    %v1602 = vadd.f32 0.0, %v1601
    %v1603 = vpop.f32.mrb[0].mxu0
    %1604 = vdwg.mxu0
    %1607 = vrot.lane.b32.xlu0 %v344, 32
    %v1608 = vpop.permute.xlu0 %1607
    %1609 = vrot.lane.b32.xlu0 %v346, 32
    %v1610 = vpop.permute.xlu0 %1609
    %v1614 = vsel %vm671, %v1020, 0
    %v1617 = vsel %vm671, %v1025, 0
    %v1620 = vsel %vm671, %v1030, 0
    %v1623 = vsel %vm671, %v1035, 0
    %v1626 = vsel %vm671, %v1040, 0
    %v1629 = vsel %vm671, %v1045, 0
    %v1632 = vsel %vm671, %v1050, 0
    %v1635 = vsel %vm671, %v1055, 0
    %1637 = vmatprep.subr.mxu0 0.0
    %1638 = vmatpush1.msra.mxu0 %v1608
    %1639 = vmatprep.subr.mxu0 0.0
    %1640 = vmatpush1.msra.mxu0 %v1610
    %1641 = vmatprep.subr.mxu0 0.0
    %1642 = vmatpush1.msra.mxu0 0.0
    %1643 = vmatprep.subr.mxu0 0.0
    %1644 = vmatpush1.msra.mxu0 0.0
    %1645 = vmatprep.subr.mxu0 0.0
    %1646 = vmatpush1.msra.mxu0 0.0
    %1647 = vmatprep.subr.mxu0 0.0
    %1648 = vmatpush1.msra.mxu0 0.0
    %1649 = vmatprep.subr.mxu0 0.0
    %1650 = vmatpush1.msra.mxu0 0.0
    %1651 = vmatprep.subr.mxu0 0.0
    %1652 = vmatpush1.msra.mxu0 0.0
    %1653 = vmatprep.subr.mxu0 0.0
    %1654 = vmatpush1.msra.mxu0 0.0
    %1655 = vmatprep.subr.mxu0 0.0
    %1656 = vmatpush1.msra.mxu0 0.0
    %1657 = vmatprep.subr.mxu0 0.0
    %1658 = vmatpush1.msra.mxu0 0.0
    %1659 = vmatprep.subr.mxu0 0.0
    %1660 = vmatpush1.msra.mxu0 0.0
    %1661 = vmatprep.subr.mxu0 0.0
    %1662 = vmatpush1.msra.mxu0 0.0
    %1663 = vmatprep.subr.mxu0 0.0
    %1664 = vmatpush1.msra.mxu0 0.0
    %1665 = vmatprep.subr.mxu0 0.0
    %1666 = vmatpush1.msra.mxu0 0.0
    %1667 = vmatprep.subr.mxu0 0.0
    %1668 = vmatpush1.msra.mxu0 0.0
    %1669 = vmatprep.subr.mxu0 0.0
    %1670 = vmatpush1.msra.mxu0 0.0
    %1671 = vmatprep.subr.mxu0 0.0
    %1672 = vmatpush1.msra.mxu0 0.0
    %1673 = vmatprep.subr.mxu0 0.0
    %1674 = vmatpush1.msra.mxu0 0.0
    %1675 = vmatprep.subr.mxu0 0.0
    %1676 = vmatpush1.msra.mxu0 0.0
    %1677 = vmatprep.subr.mxu0 0.0
    %1678 = vmatpush1.msra.mxu0 0.0
    %1679 = vmatprep.subr.mxu0 0.0
    %1680 = vmatpush1.msra.mxu0 0.0
    %1681 = vmatprep.subr.mxu0 0.0
    %1682 = vmatpush1.msra.mxu0 0.0
    %1683 = vmatprep.subr.mxu0 0.0
    %1684 = vmatpush1.msra.mxu0 0.0
    %1685 = vmatprep.subr.mxu0 0.0
    %1686 = vmatpush1.msra.mxu0 0.0
    %1687 = vmatprep.subr.mxu0 0.0
    %1688 = vmatpush1.msra.mxu0 0.0
    %1689 = vmatprep.subr.mxu0 0.0
    %1690 = vmatpush1.msra.mxu0 0.0
    %1691 = vmatprep.subr.mxu0 0.0
    %1692 = vmatpush1.msra.mxu0 0.0
    %1693 = vmatprep.subr.mxu0 0.0
    %1694 = vmatpush1.msra.mxu0 0.0
    %1695 = vmatprep.subr.mxu0 0.0
    %1696 = vmatpush1.msra.mxu0 0.0
    %1697 = vmatprep.subr.mxu0 0.0
    %1698 = vmatpush1.msra.mxu0 0.0
    %1699 = vmatprep.subr.mxu0 0.0
    %1700 = vmatpush1.msra.mxu0 0.0
    %1701 = vmatprep.mubr.f32.mxu0 0.0
    %1702 = vmatmul.mubr.f32.gmra.mrb[0].mxu0 %v1614
    %v1703 = vpop.f32.mrb[0].mxu0
    %v1704 = vadd.f32 %v1567, %v1703
    %v1705 = vpop.f32.mrb[0].mxu0
    %1706 = vmatprep.mubr.f32.mxu0 0.0
    %1707 = vmatmul.mubr.f32.gmra.mrb[0].mxu0 %v1617
    %v1708 = vpop.f32.mrb[0].mxu0
    %v1709 = vadd.f32 %v1572, %v1708
    %v1710 = vpop.f32.mrb[0].mxu0
    %1711 = vmatprep.mubr.f32.mxu0 0.0
    %1712 = vmatmul.mubr.f32.gmra.mrb[0].mxu0 %v1620
    %v1713 = vpop.f32.mrb[0].mxu0
    %v1714 = vadd.f32 %v1577, %v1713
    %v1715 = vpop.f32.mrb[0].mxu0
    %1716 = vmatprep.mubr.f32.mxu0 0.0
    %1717 = vmatmul.mubr.f32.gmra.mrb[0].mxu0 %v1623
    %v1718 = vpop.f32.mrb[0].mxu0
    %v1719 = vadd.f32 %v1582, %v1718
    %v1720 = vpop.f32.mrb[0].mxu0
    %1721 = vmatprep.mubr.f32.mxu0 0.0
    %1722 = vmatmul.mubr.f32.gmra.mrb[0].mxu0 %v1626
    %v1723 = vpop.f32.mrb[0].mxu0
    %v1724 = vadd.f32 %v1587, %v1723
    %v1725 = vpop.f32.mrb[0].mxu0
    %1726 = vmatprep.mubr.f32.mxu0 0.0
    %1727 = vmatmul.mubr.f32.gmra.mrb[0].mxu0 %v1629
    %v1728 = vpop.f32.mrb[0].mxu0
    %v1729 = vadd.f32 %v1592, %v1728
    %v1730 = vpop.f32.mrb[0].mxu0
    %1731 = vmatprep.mubr.f32.mxu0 0.0
    %1732 = vmatmul.mubr.f32.gmra.mrb[0].mxu0 %v1632
    %v1733 = vpop.f32.mrb[0].mxu0
    %v1734 = vadd.f32 %v1597, %v1733
    %v1735 = vpop.f32.mrb[0].mxu0
    %1736 = vmatprep.mubr.f32.mxu0 0.0
    %1737 = vmatmul.mubr.f32.gmra.mrb[0].mxu0 %v1635
    %v1738 = vpop.f32.mrb[0].mxu0
    %v1739 = vadd.f32 %v1602, %v1738
    %v1740 = vpop.f32.mrb[0].mxu0
    %1741 = vdwg.mxu0
    %v1742 = vadd.f32 %v268, %v1704
    %v1743 = vadd.f32 %v269, %v1709
    %v1744 = vadd.f32 %v270, %v1714
    %v1745 = vadd.f32 %v271, %v1719
    %v1746 = vadd.f32 %v272, %v1724
    %v1747 = vadd.f32 %v273, %v1729
    %v1748 = vadd.f32 %v274, %v1734
    %v1749 = vadd.f32 %v275, %v1739
    %1750 = vrot.lane.b32.xlu0 %v368, 96
    %v1751 = vpop.permute.xlu0 %1750
    %v1752 = vrot.slane %v1751, 1
    %v1753 = vlaneseq
    %v1754 = vshrl.u32 %v1753, 7
    %v1755 = vsub.s32 0, %v1754
    %v1756 = vrot.slane %v1752, %v1755
    %v1758 = vadd.f32 %v1742, %v1756
    %v1759 = vadd.f32 %v1743, %v1756
    %v1760 = vadd.f32 %v1744, %v1756
    %v1761 = vadd.f32 %v1745, %v1756
    %v1762 = vadd.f32 %v1746, %v1756
    %v1763 = vadd.f32 %v1747, %v1756
    %v1764 = vadd.f32 %v1748, %v1756
    %v1765 = vadd.f32 %v1749, %v1756
    %v1766 = vsel %vm369, %v1758, 0.0
    %1767 = vadd.xlane.f32.xlu0 %v1766
    %v1768 = vpop.xlane.xlu0 %1767
    %v1769 = vsel %vm369, %v1759, 0.0
    %1770 = vadd.xlane.f32.xlu0 %v1769
    %v1771 = vpop.xlane.xlu0 %1770
    %v1772 = vsel %vm369, %v1760, 0.0
    %1773 = vadd.xlane.f32.xlu0 %v1772
    %v1774 = vpop.xlane.xlu0 %1773
    %v1775 = vsel %vm369, %v1761, 0.0
    %1776 = vadd.xlane.f32.xlu0 %v1775
    %v1777 = vpop.xlane.xlu0 %1776
    %v1778 = vsel %vm369, %v1762, 0.0
    %1779 = vadd.xlane.f32.xlu0 %v1778
    %v1780 = vpop.xlane.xlu0 %1779
    %v1781 = vsel %vm369, %v1763, 0.0
    %1782 = vadd.xlane.f32.xlu0 %v1781
    %v1783 = vpop.xlane.xlu0 %1782
    %v1784 = vsel %vm369, %v1764, 0.0
    %1785 = vadd.xlane.f32.xlu0 %v1784
    %v1786 = vpop.xlane.xlu0 %1785
    %v1787 = vsel %vm369, %v1765, 0.0
    %1788 = vadd.xlane.f32.xlu0 %v1787
    %v1789 = vpop.xlane.xlu0 %1788
    %v1790 = vmul.f32 %v1768, %v394
    %v1791 = vmul.f32 %v1771, %v394
    %v1792 = vmul.f32 %v1774, %v394
    %v1793 = vmul.f32 %v1777, %v394
    %v1794 = vmul.f32 %v1780, %v394
    %v1795 = vmul.f32 %v1783, %v394
    %v1796 = vmul.f32 %v1786, %v394
    %v1797 = vmul.f32 %v1789, %v394
    %v1798 = vsub.f32 %v1758, %v1790
    %v1799 = vsub.f32 %v1759, %v1791
    %v1800 = vsub.f32 %v1760, %v1792
    %v1801 = vsub.f32 %v1761, %v1793
    %v1802 = vsub.f32 %v1762, %v1794
    %v1803 = vsub.f32 %v1763, %v1795
    %v1804 = vsub.f32 %v1764, %v1796
    %v1805 = vsub.f32 %v1765, %v1797
    %v1806 = vmul.f32 %v1798, %v1798
    %v1807 = vmul.f32 %v1799, %v1799
    %v1808 = vmul.f32 %v1800, %v1800
    %v1809 = vmul.f32 %v1801, %v1801
    %v1810 = vmul.f32 %v1802, %v1802
    %v1811 = vmul.f32 %v1803, %v1803
    %v1812 = vmul.f32 %v1804, %v1804
    %v1813 = vmul.f32 %v1805, %v1805
    %v1814 = vsel %vm369, %v1806, 0.0
    %1815 = vadd.xlane.f32.xlu0 %v1814
    %v1816 = vpop.xlane.xlu0 %1815
    %v1817 = vsel %vm369, %v1807, 0.0
    %1818 = vadd.xlane.f32.xlu0 %v1817
    %v1819 = vpop.xlane.xlu0 %1818
    %v1820 = vsel %vm369, %v1808, 0.0
    %1821 = vadd.xlane.f32.xlu0 %v1820
    %v1822 = vpop.xlane.xlu0 %1821
    %v1823 = vsel %vm369, %v1809, 0.0
    %1824 = vadd.xlane.f32.xlu0 %v1823
    %v1825 = vpop.xlane.xlu0 %1824
    %v1826 = vsel %vm369, %v1810, 0.0
    %1827 = vadd.xlane.f32.xlu0 %v1826
    %v1828 = vpop.xlane.xlu0 %1827
    %v1829 = vsel %vm369, %v1811, 0.0
    %1830 = vadd.xlane.f32.xlu0 %v1829
    %v1831 = vpop.xlane.xlu0 %1830
    %v1832 = vsel %vm369, %v1812, 0.0
    %1833 = vadd.xlane.f32.xlu0 %v1832
    %v1834 = vpop.xlane.xlu0 %1833
    %v1835 = vsel %vm369, %v1813, 0.0
    %1836 = vadd.xlane.f32.xlu0 %v1835
    %v1837 = vpop.xlane.xlu0 %1836
    %v1838 = vmul.f32 %v1816, %v394
    %v1839 = vmul.f32 %v1819, %v394
    %v1840 = vmul.f32 %v1822, %v394
    %v1841 = vmul.f32 %v1825, %v394
    %v1842 = vmul.f32 %v1828, %v394
    %v1843 = vmul.f32 %v1831, %v394
    %v1844 = vmul.f32 %v1834, %v394
    %v1845 = vmul.f32 %v1837, %v394
    %v1846 = vadd.f32 %v1838, 1e-05
    %v1847 = vadd.f32 %v1839, 1e-05
    %v1848 = vadd.f32 %v1840, 1e-05
    %v1849 = vadd.f32 %v1841, 1e-05
    %v1850 = vadd.f32 %v1842, 1e-05
    %v1851 = vadd.f32 %v1843, 1e-05
    %v1852 = vadd.f32 %v1844, 1e-05
    %v1853 = vadd.f32 %v1845, 1e-05
    %v1854 = vrsqrt.pop %v1846
    %v1855 = vrsqrt.pop %v1847
    %v1856 = vrsqrt.pop %v1848
    %v1857 = vrsqrt.pop %v1849
    %v1858 = vrsqrt.pop %v1850
    %v1859 = vrsqrt.pop %v1851
    %v1860 = vrsqrt.pop %v1852
    %v1861 = vrsqrt.pop %v1853
    %v1862 = vmul.f32 %v1798, %v1854
    %v1863 = vmul.f32 %v1799, %v1855
    %v1864 = vmul.f32 %v1800, %v1856
    %v1865 = vmul.f32 %v1801, %v1857
    %v1866 = vmul.f32 %v1802, %v1858
    %v1867 = vmul.f32 %v1803, %v1859
    %v1868 = vmul.f32 %v1804, %v1860
    %v1869 = vmul.f32 %v1805, %v1861
    %1870 = vrot.lane.b32.xlu0 %v368, 64
    %v1871 = vpop.permute.xlu0 %1870
    %v1872 = vrot.slane %v1871, 1
    %v1873 = vlaneseq
    %v1874 = vshrl.u32 %v1873, 7
    %v1875 = vsub.s32 0, %v1874
    %v1876 = vrot.slane %v1872, %v1875
    %v1878 = vmul.f32 %v1862, %v1876
    %v1879 = vmul.f32 %v1863, %v1876
    %v1880 = vmul.f32 %v1864, %v1876
    %v1881 = vmul.f32 %v1865, %v1876
    %v1882 = vmul.f32 %v1866, %v1876
    %v1883 = vmul.f32 %v1867, %v1876
    %v1884 = vmul.f32 %v1868, %v1876
    %v1885 = vmul.f32 %v1869, %v1876
    %1886 = vrot.lane.b32.xlu0 %v368, 32
    %v1887 = vpop.permute.xlu0 %1886
    %v1888 = vrot.slane %v1887, 1
    %v1889 = vlaneseq
    %v1890 = vshrl.u32 %v1889, 7
    %v1891 = vsub.s32 0, %v1890
    %v1892 = vrot.slane %v1888, %v1891
    %v1894 = vadd.f32 %v1878, %v1892
    %v1895 = vadd.f32 %v1879, %v1892
    %v1896 = vadd.f32 %v1880, %v1892
    %v1897 = vadd.f32 %v1881, %v1892
    %v1898 = vadd.f32 %v1882, %v1892
    %v1899 = vadd.f32 %v1883, %v1892
    %v1900 = vadd.f32 %v1884, %v1892
    %v1901 = vadd.f32 %v1885, %v1892
    %v1902 = vrot.slane %v368, 2
    %v1903 = vlaneseq
    %v1904 = vshrl.u32 %v1903, 7
    %v1905 = vsub.s32 0, %v1904
    %v1906 = vrot.slane %v1902, %v1905
    %v1909 = vsel %vm369, %v1894, 0
    %v1912 = vsel %vm369, %v1895, 0
    %v1915 = vsel %vm369, %v1896, 0
    %v1918 = vsel %vm369, %v1897, 0
    %v1921 = vsel %vm369, %v1898, 0
    %v1924 = vsel %vm369, %v1899, 0
    %v1927 = vsel %vm369, %v1900, 0
    %v1930 = vsel %vm369, %v1901, 0
    %1932 = vmatprep.subr.mxu0 0.0
    %1933 = vmatpush1.msra.mxu0 %v345
    %1934 = vmatprep.subr.mxu0 0.0
    %1935 = vmatpush1.msra.mxu0 %v347
    %1936 = vmatprep.subr.mxu0 0.0
    %1937 = vmatpush1.msra.mxu0 %v349
    %1938 = vmatprep.subr.mxu0 0.0
    %1939 = vmatpush1.msra.mxu0 %v351
    %1940 = vmatprep.subr.mxu0 0.0
    %1941 = vmatpush1.msra.mxu0 0.0
    %1942 = vmatprep.subr.mxu0 0.0
    %1943 = vmatpush1.msra.mxu0 0.0
    %1944 = vmatprep.subr.mxu0 0.0
    %1945 = vmatpush1.msra.mxu0 0.0
    %1946 = vmatprep.subr.mxu0 0.0
    %1947 = vmatpush1.msra.mxu0 0.0
    %1948 = vmatprep.subr.mxu0 0.0
    %1949 = vmatpush1.msra.mxu0 0.0
    %1950 = vmatprep.subr.mxu0 0.0
    %1951 = vmatpush1.msra.mxu0 0.0
    %1952 = vmatprep.subr.mxu0 0.0
    %1953 = vmatpush1.msra.mxu0 0.0
    %1954 = vmatprep.subr.mxu0 0.0
    %1955 = vmatpush1.msra.mxu0 0.0
    %1956 = vmatprep.subr.mxu0 0.0
    %1957 = vmatpush1.msra.mxu0 0.0
    %1958 = vmatprep.subr.mxu0 0.0
    %1959 = vmatpush1.msra.mxu0 0.0
    %1960 = vmatprep.subr.mxu0 0.0
    %1961 = vmatpush1.msra.mxu0 0.0
    %1962 = vmatprep.subr.mxu0 0.0
    %1963 = vmatpush1.msra.mxu0 0.0
    %1964 = vmatprep.subr.mxu0 0.0
    %1965 = vmatpush1.msra.mxu0 0.0
    %1966 = vmatprep.subr.mxu0 0.0
    %1967 = vmatpush1.msra.mxu0 0.0
    %1968 = vmatprep.subr.mxu0 0.0
    %1969 = vmatpush1.msra.mxu0 0.0
    %1970 = vmatprep.subr.mxu0 0.0
    %1971 = vmatpush1.msra.mxu0 0.0
    %1972 = vmatprep.subr.mxu0 0.0
    %1973 = vmatpush1.msra.mxu0 0.0
    %1974 = vmatprep.subr.mxu0 0.0
    %1975 = vmatpush1.msra.mxu0 0.0
    %1976 = vmatprep.subr.mxu0 0.0
    %1977 = vmatpush1.msra.mxu0 0.0
    %1978 = vmatprep.subr.mxu0 0.0
    %1979 = vmatpush1.msra.mxu0 0.0
    %1980 = vmatprep.subr.mxu0 0.0
    %1981 = vmatpush1.msra.mxu0 0.0
    %1982 = vmatprep.subr.mxu0 0.0
    %1983 = vmatpush1.msra.mxu0 0.0
    %1984 = vmatprep.subr.mxu0 0.0
    %1985 = vmatpush1.msra.mxu0 0.0
    %1986 = vmatprep.subr.mxu0 0.0
    %1987 = vmatpush1.msra.mxu0 0.0
    %1988 = vmatprep.subr.mxu0 0.0
    %1989 = vmatpush1.msra.mxu0 0.0
    %1990 = vmatprep.subr.mxu0 0.0
    %1991 = vmatpush1.msra.mxu0 0.0
    %1992 = vmatprep.subr.mxu0 0.0
    %1993 = vmatpush1.msra.mxu0 0.0
    %1994 = vmatprep.subr.mxu0 0.0
    %1995 = vmatpush1.msra.mxu0 0.0
    %1996 = vmatprep.mubr.f32.mxu0 0.0
    %1997 = vmatmul.mubr.f32.gmra.mrb[0].mxu0 %v1909
    %v1998 = vpop.f32.mrb[0].mxu0
    %v1999 = vadd.f32 %v1906, %v1998
    %v2000 = vpop.f32.mrb[0].mxu0
    %2001 = vmatprep.mubr.f32.mxu0 0.0
    %2002 = vmatmul.mubr.f32.gmra.mrb[0].mxu0 %v1912
    %v2003 = vpop.f32.mrb[0].mxu0
    %v2004 = vadd.f32 %v1906, %v2003
    %v2005 = vpop.f32.mrb[0].mxu0
    %2006 = vmatprep.mubr.f32.mxu0 0.0
    %2007 = vmatmul.mubr.f32.gmra.mrb[0].mxu0 %v1915
    %v2008 = vpop.f32.mrb[0].mxu0
    %v2009 = vadd.f32 %v1906, %v2008
    %v2010 = vpop.f32.mrb[0].mxu0
    %2011 = vmatprep.mubr.f32.mxu0 0.0
    %2012 = vmatmul.mubr.f32.gmra.mrb[0].mxu0 %v1918
    %v2013 = vpop.f32.mrb[0].mxu0
    %v2014 = vadd.f32 %v1906, %v2013
    %v2015 = vpop.f32.mrb[0].mxu0
    %2016 = vmatprep.mubr.f32.mxu0 0.0
    %2017 = vmatmul.mubr.f32.gmra.mrb[0].mxu0 %v1921
    %v2018 = vpop.f32.mrb[0].mxu0
    %v2019 = vadd.f32 %v1906, %v2018
    %v2020 = vpop.f32.mrb[0].mxu0
    %2021 = vmatprep.mubr.f32.mxu0 0.0
    %2022 = vmatmul.mubr.f32.gmra.mrb[0].mxu0 %v1924
    %v2023 = vpop.f32.mrb[0].mxu0
    %v2024 = vadd.f32 %v1906, %v2023
    %v2025 = vpop.f32.mrb[0].mxu0
    %2026 = vmatprep.mubr.f32.mxu0 0.0
    %2027 = vmatmul.mubr.f32.gmra.mrb[0].mxu0 %v1927
    %v2028 = vpop.f32.mrb[0].mxu0
    %v2029 = vadd.f32 %v1906, %v2028
    %v2030 = vpop.f32.mrb[0].mxu0
    %2031 = vmatprep.mubr.f32.mxu0 0.0
    %2032 = vmatmul.mubr.f32.gmra.mrb[0].mxu0 %v1930
    %v2033 = vpop.f32.mrb[0].mxu0
    %v2034 = vadd.f32 %v1906, %v2033
    %v2035 = vpop.f32.mrb[0].mxu0
    %2036 = vdwg.mxu0
    %v2037 = vmul.f32 %v1999, 1.702
    %v2038 = vmul.f32 %v2004, 1.702
    %v2039 = vmul.f32 %v2009, 1.702
    %v2040 = vmul.f32 %v2014, 1.702
    %v2041 = vmul.f32 %v2019, 1.702
    %v2042 = vmul.f32 %v2024, 1.702
    %v2043 = vmul.f32 %v2029, 1.702
    %v2044 = vmul.f32 %v2034, 1.702
    %v2045 = vxor.u32 %v2037, 2147483648
    %v2046 = vxor.u32 %v2038, 2147483648
    %v2047 = vxor.u32 %v2039, 2147483648
    %v2048 = vxor.u32 %v2040, 2147483648
    %v2049 = vxor.u32 %v2041, 2147483648
    %v2050 = vxor.u32 %v2042, 2147483648
    %v2051 = vxor.u32 %v2043, 2147483648
    %v2052 = vxor.u32 %v2044, 2147483648
    %v2053 = vmul.f32 %v2045, 1.442695
    %v2054 = vpow.pop %v2053
    %v2055 = vmul.f32 %v2046, 1.442695
    %v2056 = vpow.pop %v2055
    %v2057 = vmul.f32 %v2047, 1.442695
    %v2058 = vpow.pop %v2057
    %v2059 = vmul.f32 %v2048, 1.442695
    %v2060 = vpow.pop %v2059
    %v2061 = vmul.f32 %v2049, 1.442695
    %v2062 = vpow.pop %v2061
    %v2063 = vmul.f32 %v2050, 1.442695
    %v2064 = vpow.pop %v2063
    %v2065 = vmul.f32 %v2051, 1.442695
    %v2066 = vpow.pop %v2065
    %v2067 = vmul.f32 %v2052, 1.442695
    %v2068 = vpow.pop %v2067
    %v2069 = vadd.f32 %v2054, 1.0
    %v2070 = vadd.f32 %v2056, 1.0
    %v2071 = vadd.f32 %v2058, 1.0
    %v2072 = vadd.f32 %v2060, 1.0
    %v2073 = vadd.f32 %v2062, 1.0
    %v2074 = vadd.f32 %v2064, 1.0
    %v2075 = vadd.f32 %v2066, 1.0
    %v2076 = vadd.f32 %v2068, 1.0
    %v2077 = vrcp.pop %v2069
    %v2078 = vmul.f32 1.0, %v2077
    %v2079 = vrcp.pop %v2070
    %v2080 = vmul.f32 1.0, %v2079
    %v2081 = vrcp.pop %v2071
    %v2082 = vmul.f32 1.0, %v2081
    %v2083 = vrcp.pop %v2072
    %v2084 = vmul.f32 1.0, %v2083
    %v2085 = vrcp.pop %v2073
    %v2086 = vmul.f32 1.0, %v2085
    %v2087 = vrcp.pop %v2074
    %v2088 = vmul.f32 1.0, %v2087
    %v2089 = vrcp.pop %v2075
    %v2090 = vmul.f32 1.0, %v2089
    %v2091 = vrcp.pop %v2076
    %v2092 = vmul.f32 1.0, %v2091
    %v2093 = vmul.f32 %v1999, %v2078
    %v2094 = vmul.f32 %v2004, %v2080
    %v2095 = vmul.f32 %v2009, %v2082
    %v2096 = vmul.f32 %v2014, %v2084
    %v2097 = vmul.f32 %v2019, %v2086
    %v2098 = vmul.f32 %v2024, %v2088
    %v2099 = vmul.f32 %v2029, %v2090
    %v2100 = vmul.f32 %v2034, %v2092
    %2101 = vmatprep.subr.mxu0 0.0
    %2102 = vmatpush1.msra.mxu0 %v352
    %2103 = vmatprep.subr.mxu0 0.0
    %2104 = vmatpush1.msra.mxu0 %v353
    %2105 = vmatprep.subr.mxu0 0.0
    %2106 = vmatpush1.msra.mxu0 %v354
    %2107 = vmatprep.subr.mxu0 0.0
    %2108 = vmatpush1.msra.mxu0 %v355
    %2109 = vmatprep.subr.mxu0 0.0
    %2110 = vmatpush1.msra.mxu0 %v356
    %2111 = vmatprep.subr.mxu0 0.0
    %2112 = vmatpush1.msra.mxu0 %v357
    %2113 = vmatprep.subr.mxu0 0.0
    %2114 = vmatpush1.msra.mxu0 %v358
    %2115 = vmatprep.subr.mxu0 0.0
    %2116 = vmatpush1.msra.mxu0 %v359
    %2117 = vmatprep.subr.mxu0 0.0
    %2118 = vmatpush1.msra.mxu0 %v360
    %2119 = vmatprep.subr.mxu0 0.0
    %2120 = vmatpush1.msra.mxu0 %v361
    %2121 = vmatprep.subr.mxu0 0.0
    %2122 = vmatpush1.msra.mxu0 %v362
    %2123 = vmatprep.subr.mxu0 0.0
    %2124 = vmatpush1.msra.mxu0 %v363
    %2125 = vmatprep.subr.mxu0 0.0
    %2126 = vmatpush1.msra.mxu0 %v364
    %2127 = vmatprep.subr.mxu0 0.0
    %2128 = vmatpush1.msra.mxu0 %v365
    %2129 = vmatprep.subr.mxu0 0.0
    %2130 = vmatpush1.msra.mxu0 %v366
    %2131 = vmatprep.subr.mxu0 0.0
    %2132 = vmatpush1.msra.mxu0 %v367
    %2133 = vmatprep.subr.mxu0 0.0
    %2134 = vmatpush1.msra.mxu0 0.0
    %2135 = vmatprep.subr.mxu0 0.0
    %2136 = vmatpush1.msra.mxu0 0.0
    %2137 = vmatprep.subr.mxu0 0.0
    %2138 = vmatpush1.msra.mxu0 0.0
    %2139 = vmatprep.subr.mxu0 0.0
    %2140 = vmatpush1.msra.mxu0 0.0
    %2141 = vmatprep.subr.mxu0 0.0
    %2142 = vmatpush1.msra.mxu0 0.0
    %2143 = vmatprep.subr.mxu0 0.0
    %2144 = vmatpush1.msra.mxu0 0.0
    %2145 = vmatprep.subr.mxu0 0.0
    %2146 = vmatpush1.msra.mxu0 0.0
    %2147 = vmatprep.subr.mxu0 0.0
    %2148 = vmatpush1.msra.mxu0 0.0
    %2149 = vmatprep.subr.mxu0 0.0
    %2150 = vmatpush1.msra.mxu0 0.0
    %2151 = vmatprep.subr.mxu0 0.0
    %2152 = vmatpush1.msra.mxu0 0.0
    %2153 = vmatprep.subr.mxu0 0.0
    %2154 = vmatpush1.msra.mxu0 0.0
    %2155 = vmatprep.subr.mxu0 0.0
    %2156 = vmatpush1.msra.mxu0 0.0
    %2157 = vmatprep.subr.mxu0 0.0
    %2158 = vmatpush1.msra.mxu0 0.0
    %2159 = vmatprep.subr.mxu0 0.0
    %2160 = vmatpush1.msra.mxu0 0.0
    %2161 = vmatprep.subr.mxu0 0.0
    %2162 = vmatpush1.msra.mxu0 0.0
    %2163 = vmatprep.subr.mxu0 0.0
    %2164 = vmatpush1.msra.mxu0 0.0
    %2165 = vmatprep.mubr.f32.mxu0 0.0
    %2166 = vmatmul.mubr.f32.gmra.mrb[0].mxu0 %v2093
    %v2167 = vpop.f32.mrb[0].mxu0
    %v2168 = vadd.f32 0.0, %v2167
    %v2169 = vpop.f32.mrb[0].mxu0
    %2170 = vmatprep.mubr.f32.mxu0 0.0
    %2171 = vmatmul.mubr.f32.gmra.mrb[0].mxu0 %v2094
    %v2172 = vpop.f32.mrb[0].mxu0
    %v2173 = vadd.f32 0.0, %v2172
    %v2174 = vpop.f32.mrb[0].mxu0
    %2175 = vmatprep.mubr.f32.mxu0 0.0
    %2176 = vmatmul.mubr.f32.gmra.mrb[0].mxu0 %v2095
    %v2177 = vpop.f32.mrb[0].mxu0
    %v2178 = vadd.f32 0.0, %v2177
    %v2179 = vpop.f32.mrb[0].mxu0
    %2180 = vmatprep.mubr.f32.mxu0 0.0
    %2181 = vmatmul.mubr.f32.gmra.mrb[0].mxu0 %v2096
    %v2182 = vpop.f32.mrb[0].mxu0
    %v2183 = vadd.f32 0.0, %v2182
    %v2184 = vpop.f32.mrb[0].mxu0
    %2185 = vmatprep.mubr.f32.mxu0 0.0
    %2186 = vmatmul.mubr.f32.gmra.mrb[0].mxu0 %v2097
    %v2187 = vpop.f32.mrb[0].mxu0
    %v2188 = vadd.f32 0.0, %v2187
    %v2189 = vpop.f32.mrb[0].mxu0
    %2190 = vmatprep.mubr.f32.mxu0 0.0
    %2191 = vmatmul.mubr.f32.gmra.mrb[0].mxu0 %v2098
    %v2192 = vpop.f32.mrb[0].mxu0
    %v2193 = vadd.f32 0.0, %v2192
    %v2194 = vpop.f32.mrb[0].mxu0
    %2195 = vmatprep.mubr.f32.mxu0 0.0
    %2196 = vmatmul.mubr.f32.gmra.mrb[0].mxu0 %v2099
    %v2197 = vpop.f32.mrb[0].mxu0
    %v2198 = vadd.f32 0.0, %v2197
    %v2199 = vpop.f32.mrb[0].mxu0
    %2200 = vmatprep.mubr.f32.mxu0 0.0
    %2201 = vmatmul.mubr.f32.gmra.mrb[0].mxu0 %v2100
    %v2202 = vpop.f32.mrb[0].mxu0
    %v2203 = vadd.f32 0.0, %v2202
    %v2204 = vpop.f32.mrb[0].mxu0
    %2205 = vdwg.mxu0
    %v2206 = vadd.f32 %v1758, %v2168
    %v2207 = vadd.f32 %v1759, %v2173
    %v2208 = vadd.f32 %v1760, %v2178
    %v2209 = vadd.f32 %v1761, %v2183
    %v2210 = vadd.f32 %v1762, %v2188
    %v2211 = vadd.f32 %v1763, %v2193
    %v2212 = vadd.f32 %v1764, %v2198
    %v2213 = vadd.f32 %v1765, %v2203
    %v2214 = vrot.slane %v368, 3
    %v2215 = vlaneseq
    %v2216 = vshrl.u32 %v2215, 7
    %v2217 = vsub.s32 0, %v2216
    %v2218 = vrot.slane %v2214, %v2217
    %v2220 = vadd.f32 %v2206, %v2218
    %v2221 = vadd.f32 %v2207, %v2218
    %v2222 = vadd.f32 %v2208, %v2218
    %v2223 = vadd.f32 %v2209, %v2218
    %v2224 = vadd.f32 %v2210, %v2218
    %v2225 = vadd.f32 %v2211, %v2218
    %v2226 = vadd.f32 %v2212, %v2218
    %v2227 = vadd.f32 %v2213, %v2218
    %s2228 = scalar_lea.vmem %s4, 64
    %v2229 = vld [vmem:[%s2228] sm:$0xff]
    %v2230 = vld [vmem:[%s2228 + $0x8] sm:$0xff]
    %v2231 = vld [vmem:[%s2228 + $0x10] sm:$0xff]
    %v2232 = vld [vmem:[%s2228 + $0x18] sm:$0xff]
    %v2233 = vld [vmem:[%s2228 + $0x20] sm:$0xff]
    %v2234 = vld [vmem:[%s2228 + $0x28] sm:$0xff]
    %v2235 = vld [vmem:[%s2228 + $0x30] sm:$0xff]
    %v2236 = vld [vmem:[%s2228 + $0x38] sm:$0xff]
    %s2237 = scalar_lea.vmem %s5, 128
    %v2238 = vld [vmem:[%s2237] sm:$0xff]
    %v2239 = vld [vmem:[%s2237 + $0x8] sm:$0xff]
    %v2240 = vld [vmem:[%s2237 + $0x10] sm:$0xff]
    %v2241 = vld [vmem:[%s2237 + $0x18] sm:$0xff]
    %v2242 = vld [vmem:[%s2237 + $0x20] sm:$0xff]
    %v2243 = vld [vmem:[%s2237 + $0x28] sm:$0xff]
    %v2244 = vld [vmem:[%s2237 + $0x30] sm:$0xff]
    %v2245 = vld [vmem:[%s2237 + $0x38] sm:$0xff]
    %v2246 = vld [vmem:[%s2237 + $0x40] sm:$0xff]
    %v2247 = vld [vmem:[%s2237 + $0x48] sm:$0xff]
    %v2248 = vld [vmem:[%s2237 + $0x50] sm:$0xff]
    %v2249 = vld [vmem:[%s2237 + $0x58] sm:$0xff]
    %v2250 = vld [vmem:[%s2237 + $0x60] sm:$0xff]
    %v2251 = vld [vmem:[%s2237 + $0x68] sm:$0xff]
    %v2252 = vld [vmem:[%s2237 + $0x70] sm:$0xff]
    %v2253 = vld [vmem:[%s2237 + $0x78] sm:$0xff]
    %s2254 = scalar_lea.vmem %s6, 1
    %v2255 = vld [vmem:[%s2254] ss:$2 sm:$0xf]
    %v2256 = vsel %vm369, %v2220, 0.0
    %2257 = vadd.xlane.f32.xlu0 %v2256
    %v2258 = vpop.xlane.xlu0 %2257
    %v2259 = vsel %vm369, %v2221, 0.0
    %2260 = vadd.xlane.f32.xlu0 %v2259
    %v2261 = vpop.xlane.xlu0 %2260
    %v2262 = vsel %vm369, %v2222, 0.0
    %2263 = vadd.xlane.f32.xlu0 %v2262
    %v2264 = vpop.xlane.xlu0 %2263
    %v2265 = vsel %vm369, %v2223, 0.0
    %2266 = vadd.xlane.f32.xlu0 %v2265
    %v2267 = vpop.xlane.xlu0 %2266
    %v2268 = vsel %vm369, %v2224, 0.0
    %2269 = vadd.xlane.f32.xlu0 %v2268
    %v2270 = vpop.xlane.xlu0 %2269
    %v2271 = vsel %vm369, %v2225, 0.0
    %2272 = vadd.xlane.f32.xlu0 %v2271
    %v2273 = vpop.xlane.xlu0 %2272
    %v2274 = vsel %vm369, %v2226, 0.0
    %2275 = vadd.xlane.f32.xlu0 %v2274
    %v2276 = vpop.xlane.xlu0 %2275
    %v2277 = vsel %vm369, %v2227, 0.0
    %2278 = vadd.xlane.f32.xlu0 %v2277
    %v2279 = vpop.xlane.xlu0 %2278
    %v2280 = vmul.f32 %v2258, %v394
    %v2281 = vmul.f32 %v2261, %v394
    %v2282 = vmul.f32 %v2264, %v394
    %v2283 = vmul.f32 %v2267, %v394
    %v2284 = vmul.f32 %v2270, %v394
    %v2285 = vmul.f32 %v2273, %v394
    %v2286 = vmul.f32 %v2276, %v394
    %v2287 = vmul.f32 %v2279, %v394
    %v2288 = vsub.f32 %v2220, %v2280
    %v2289 = vsub.f32 %v2221, %v2281
    %v2290 = vsub.f32 %v2222, %v2282
    %v2291 = vsub.f32 %v2223, %v2283
    %v2292 = vsub.f32 %v2224, %v2284
    %v2293 = vsub.f32 %v2225, %v2285
    %v2294 = vsub.f32 %v2226, %v2286
    %v2295 = vsub.f32 %v2227, %v2287
    %v2296 = vmul.f32 %v2288, %v2288
    %v2297 = vmul.f32 %v2289, %v2289
    %v2298 = vmul.f32 %v2290, %v2290
    %v2299 = vmul.f32 %v2291, %v2291
    %v2300 = vmul.f32 %v2292, %v2292
    %v2301 = vmul.f32 %v2293, %v2293
    %v2302 = vmul.f32 %v2294, %v2294
    %v2303 = vmul.f32 %v2295, %v2295
    %v2304 = vsel %vm369, %v2296, 0.0
    %2305 = vadd.xlane.f32.xlu0 %v2304
    %v2306 = vpop.xlane.xlu0 %2305
    %v2307 = vsel %vm369, %v2297, 0.0
    %2308 = vadd.xlane.f32.xlu0 %v2307
    %v2309 = vpop.xlane.xlu0 %2308
    %v2310 = vsel %vm369, %v2298, 0.0
    %2311 = vadd.xlane.f32.xlu0 %v2310
    %v2312 = vpop.xlane.xlu0 %2311
    %v2313 = vsel %vm369, %v2299, 0.0
    %2314 = vadd.xlane.f32.xlu0 %v2313
    %v2315 = vpop.xlane.xlu0 %2314
    %v2316 = vsel %vm369, %v2300, 0.0
    %2317 = vadd.xlane.f32.xlu0 %v2316
    %v2318 = vpop.xlane.xlu0 %2317
    %v2319 = vsel %vm369, %v2301, 0.0
    %2320 = vadd.xlane.f32.xlu0 %v2319
    %v2321 = vpop.xlane.xlu0 %2320
    %v2322 = vsel %vm369, %v2302, 0.0
    %2323 = vadd.xlane.f32.xlu0 %v2322
    %v2324 = vpop.xlane.xlu0 %2323
    %v2325 = vsel %vm369, %v2303, 0.0
    %2326 = vadd.xlane.f32.xlu0 %v2325
    %v2327 = vpop.xlane.xlu0 %2326
    %v2328 = vmul.f32 %v2306, %v394
    %v2329 = vmul.f32 %v2309, %v394
    %v2330 = vmul.f32 %v2312, %v394
    %v2331 = vmul.f32 %v2315, %v394
    %v2332 = vmul.f32 %v2318, %v394
    %v2333 = vmul.f32 %v2321, %v394
    %v2334 = vmul.f32 %v2324, %v394
    %v2335 = vmul.f32 %v2327, %v394
    %v2336 = vadd.f32 %v2328, 1e-05
    %v2337 = vadd.f32 %v2329, 1e-05
    %v2338 = vadd.f32 %v2330, 1e-05
    %v2339 = vadd.f32 %v2331, 1e-05
    %v2340 = vadd.f32 %v2332, 1e-05
    %v2341 = vadd.f32 %v2333, 1e-05
    %v2342 = vadd.f32 %v2334, 1e-05
    %v2343 = vadd.f32 %v2335, 1e-05
    %v2344 = vrsqrt.pop %v2336
    %v2345 = vrsqrt.pop %v2337
    %v2346 = vrsqrt.pop %v2338
    %v2347 = vrsqrt.pop %v2339
    %v2348 = vrsqrt.pop %v2340
    %v2349 = vrsqrt.pop %v2341
    %v2350 = vrsqrt.pop %v2342
    %v2351 = vrsqrt.pop %v2343
    %v2352 = vmul.f32 %v2288, %v2344
    %v2353 = vmul.f32 %v2289, %v2345
    %v2354 = vmul.f32 %v2290, %v2346
    %v2355 = vmul.f32 %v2291, %v2347
    %v2356 = vmul.f32 %v2292, %v2348
    %v2357 = vmul.f32 %v2293, %v2349
    %v2358 = vmul.f32 %v2294, %v2350
    %v2359 = vmul.f32 %v2295, %v2351
    %v2361 = vlaneseq
    %v2362 = vshrl.u32 %v2361, 7
    %v2363 = vsub.s32 0, %v2362
    %v2364 = vrot.slane %v2255, %v2363
    %v2366 = vmul.f32 %v2352, %v2364
    %v2367 = vmul.f32 %v2353, %v2364
    %v2368 = vmul.f32 %v2354, %v2364
    %v2369 = vmul.f32 %v2355, %v2364
    %v2370 = vmul.f32 %v2356, %v2364
    %v2371 = vmul.f32 %v2357, %v2364
    %v2372 = vmul.f32 %v2358, %v2364
    %v2373 = vmul.f32 %v2359, %v2364
    %2374 = vrot.lane.b32.xlu0 %v2364, 96
    %v2375 = vpop.permute.xlu0 %2374
    %v2377 = vadd.f32 %v2366, %v2375
    %v2378 = vadd.f32 %v2367, %v2375
    %v2379 = vadd.f32 %v2368, %v2375
    %v2380 = vadd.f32 %v2369, %v2375
    %v2381 = vadd.f32 %v2370, %v2375
    %v2382 = vadd.f32 %v2371, %v2375
    %v2383 = vadd.f32 %v2372, %v2375
    %v2384 = vadd.f32 %v2373, %v2375
    %v2385 = vlaneseq
    %v2386 = vshrl.u32 %v2385, 7
    %v2387 = vsub.s32 1, %v2386
    %v2388 = vrot.slane %v2255, %v2387
    %2389 = vrot.lane.b32.xlu0 %v2364, 64
    %v2390 = vpop.permute.xlu0 %2389
    %2391 = vrot.lane.b32.xlu0 %v2388, 64
    %v2392 = vpop.permute.xlu0 %2391
    %v2393 = vsel %vm137, %v2390, %v2392
    %v2396 = vsel %vm369, %v2377, 0
    %v2399 = vsel %vm369, %v2378, 0
    %v2402 = vsel %vm369, %v2379, 0
    %v2405 = vsel %vm369, %v2380, 0
    %v2408 = vsel %vm369, %v2381, 0
    %v2411 = vsel %vm369, %v2382, 0
    %v2414 = vsel %vm369, %v2383, 0
    %v2417 = vsel %vm369, %v2384, 0
    %2419 = vmatprep.subr.mxu0 0.0
    %2420 = vmatpush1.msra.mxu0 %v2229
    %2421 = vmatprep.subr.mxu0 0.0
    %2422 = vmatpush1.msra.mxu0 %v2231
    %2423 = vmatprep.subr.mxu0 0.0
    %2424 = vmatpush1.msra.mxu0 %v2233
    %2425 = vmatprep.subr.mxu0 0.0
    %2426 = vmatpush1.msra.mxu0 %v2235
    %2427 = vmatprep.subr.mxu0 0.0
    %2428 = vmatpush1.msra.mxu0 0.0
    %2429 = vmatprep.subr.mxu0 0.0
    %2430 = vmatpush1.msra.mxu0 0.0
    %2431 = vmatprep.subr.mxu0 0.0
    %2432 = vmatpush1.msra.mxu0 0.0
    %2433 = vmatprep.subr.mxu0 0.0
    %2434 = vmatpush1.msra.mxu0 0.0
    %2435 = vmatprep.subr.mxu0 0.0
    %2436 = vmatpush1.msra.mxu0 0.0
    %2437 = vmatprep.subr.mxu0 0.0
    %2438 = vmatpush1.msra.mxu0 0.0
    %2439 = vmatprep.subr.mxu0 0.0
    %2440 = vmatpush1.msra.mxu0 0.0
    %2441 = vmatprep.subr.mxu0 0.0
    %2442 = vmatpush1.msra.mxu0 0.0
    %2443 = vmatprep.subr.mxu0 0.0
    %2444 = vmatpush1.msra.mxu0 0.0
    %2445 = vmatprep.subr.mxu0 0.0
    %2446 = vmatpush1.msra.mxu0 0.0
    %2447 = vmatprep.subr.mxu0 0.0
    %2448 = vmatpush1.msra.mxu0 0.0
    %2449 = vmatprep.subr.mxu0 0.0
    %2450 = vmatpush1.msra.mxu0 0.0
    %2451 = vmatprep.subr.mxu0 0.0
    %2452 = vmatpush1.msra.mxu0 0.0
    %2453 = vmatprep.subr.mxu0 0.0
    %2454 = vmatpush1.msra.mxu0 0.0
    %2455 = vmatprep.subr.mxu0 0.0
    %2456 = vmatpush1.msra.mxu0 0.0
    %2457 = vmatprep.subr.mxu0 0.0
    %2458 = vmatpush1.msra.mxu0 0.0
    %2459 = vmatprep.subr.mxu0 0.0
    %2460 = vmatpush1.msra.mxu0 0.0
    %2461 = vmatprep.subr.mxu0 0.0
    %2462 = vmatpush1.msra.mxu0 0.0
    %2463 = vmatprep.subr.mxu0 0.0
    %2464 = vmatpush1.msra.mxu0 0.0
    %2465 = vmatprep.subr.mxu0 0.0
    %2466 = vmatpush1.msra.mxu0 0.0
    %2467 = vmatprep.subr.mxu0 0.0
    %2468 = vmatpush1.msra.mxu0 0.0
    %2469 = vmatprep.subr.mxu0 0.0
    %2470 = vmatpush1.msra.mxu0 0.0
    %2471 = vmatprep.subr.mxu0 0.0
    %2472 = vmatpush1.msra.mxu0 0.0
    %2473 = vmatprep.subr.mxu0 0.0
    %2474 = vmatpush1.msra.mxu0 0.0
    %2475 = vmatprep.subr.mxu0 0.0
    %2476 = vmatpush1.msra.mxu0 0.0
    %2477 = vmatprep.subr.mxu0 0.0
    %2478 = vmatpush1.msra.mxu0 0.0
    %2479 = vmatprep.subr.mxu0 0.0
    %2480 = vmatpush1.msra.mxu0 0.0
    %2481 = vmatprep.subr.mxu0 0.0
    %2482 = vmatpush1.msra.mxu0 0.0
    %2483 = vmatprep.mubr.f32.mxu0 0.0
    %2484 = vmatmul.mubr.f32.gmra.mrb[0].mxu0 %v2396
    %v2485 = vpop.f32.mrb[0].mxu0
    %v2486 = vadd.f32 %v2393, %v2485
    %v2487 = vpop.f32.mrb[0].mxu0
    %2488 = vmatprep.mubr.f32.mxu0 0.0
    %2489 = vmatmul.mubr.f32.gmra.mrb[0].mxu0 %v2399
    %v2490 = vpop.f32.mrb[0].mxu0
    %v2491 = vadd.f32 %v2393, %v2490
    %v2492 = vpop.f32.mrb[0].mxu0
    %2493 = vmatprep.mubr.f32.mxu0 0.0
    %2494 = vmatmul.mubr.f32.gmra.mrb[0].mxu0 %v2402
    %v2495 = vpop.f32.mrb[0].mxu0
    %v2496 = vadd.f32 %v2393, %v2495
    %v2497 = vpop.f32.mrb[0].mxu0
    %2498 = vmatprep.mubr.f32.mxu0 0.0
    %2499 = vmatmul.mubr.f32.gmra.mrb[0].mxu0 %v2405
    %v2500 = vpop.f32.mrb[0].mxu0
    %v2501 = vadd.f32 %v2393, %v2500
    %v2502 = vpop.f32.mrb[0].mxu0
    %2503 = vmatprep.mubr.f32.mxu0 0.0
    %2504 = vmatmul.mubr.f32.gmra.mrb[0].mxu0 %v2408
    %v2505 = vpop.f32.mrb[0].mxu0
    %v2506 = vadd.f32 %v2393, %v2505
    %v2507 = vpop.f32.mrb[0].mxu0
    %2508 = vmatprep.mubr.f32.mxu0 0.0
    %2509 = vmatmul.mubr.f32.gmra.mrb[0].mxu0 %v2411
    %v2510 = vpop.f32.mrb[0].mxu0
    %v2511 = vadd.f32 %v2393, %v2510
    %v2512 = vpop.f32.mrb[0].mxu0
    %2513 = vmatprep.mubr.f32.mxu0 0.0
    %2514 = vmatmul.mubr.f32.gmra.mrb[0].mxu0 %v2414
    %v2515 = vpop.f32.mrb[0].mxu0
    %v2516 = vadd.f32 %v2393, %v2515
    %v2517 = vpop.f32.mrb[0].mxu0
    %2518 = vmatprep.mubr.f32.mxu0 0.0
    %2519 = vmatmul.mubr.f32.gmra.mrb[0].mxu0 %v2417
    %v2520 = vpop.f32.mrb[0].mxu0
    %v2521 = vadd.f32 %v2393, %v2520
    %v2522 = vpop.f32.mrb[0].mxu0
    %2523 = vdwg.mxu0
    %v2524 = vmul.f32 %v2486, 0.25
    %v2525 = vmul.f32 %v2491, 0.25
    %v2526 = vmul.f32 %v2496, 0.25
    %v2527 = vmul.f32 %v2501, 0.25
    %v2528 = vmul.f32 %v2506, 0.25
    %v2529 = vmul.f32 %v2511, 0.25
    %v2530 = vmul.f32 %v2516, 0.25
    %v2531 = vmul.f32 %v2521, 0.25
    %2540 = vrot.lane.b32.xlu0 %v2486, 96
    %v2541 = vpop.permute.xlu0 %2540
    %2542 = vrot.lane.b32.xlu0 %v2491, 96
    %v2543 = vpop.permute.xlu0 %2542
    %2544 = vrot.lane.b32.xlu0 %v2496, 96
    %v2545 = vpop.permute.xlu0 %2544
    %2546 = vrot.lane.b32.xlu0 %v2501, 96
    %v2547 = vpop.permute.xlu0 %2546
    %2548 = vrot.lane.b32.xlu0 %v2506, 96
    %v2549 = vpop.permute.xlu0 %2548
    %2550 = vrot.lane.b32.xlu0 %v2511, 96
    %v2551 = vpop.permute.xlu0 %2550
    %2552 = vrot.lane.b32.xlu0 %v2516, 96
    %v2553 = vpop.permute.xlu0 %2552
    %2554 = vrot.lane.b32.xlu0 %v2521, 96
    %v2555 = vpop.permute.xlu0 %2554
    %v2557 = vsel %vm671, %v2524, 0
    %v2560 = vsel %vm671, %v2525, 0
    %v2563 = vsel %vm671, %v2526, 0
    %v2566 = vsel %vm671, %v2527, 0
    %v2569 = vsel %vm671, %v2528, 0
    %v2572 = vsel %vm671, %v2529, 0
    %v2575 = vsel %vm671, %v2530, 0
    %v2578 = vsel %vm671, %v2531, 0
    %v2580 = vsel %vm671, %v2541, 0
    %v2582 = vsel %vm671, %v2543, 0
    %v2584 = vsel %vm671, %v2545, 0
    %v2586 = vsel %vm671, %v2547, 0
    %v2588 = vsel %vm671, %v2549, 0
    %v2590 = vsel %vm671, %v2551, 0
    %v2592 = vsel %vm671, %v2553, 0
    %v2594 = vsel %vm671, %v2555, 0
    %2596 = vmatprep.subr.mxu0 0.0
    %2597 = vmatpush1.xpose.msra.mxu0 %v2580
    %2598 = vmatprep.subr.mxu0 0.0
    %2599 = vmatpush1.xpose.msra.mxu0 %v2582
    %2600 = vmatprep.subr.mxu0 0.0
    %2601 = vmatpush1.xpose.msra.mxu0 %v2584
    %2602 = vmatprep.subr.mxu0 0.0
    %2603 = vmatpush1.xpose.msra.mxu0 %v2586
    %2604 = vmatprep.subr.mxu0 0.0
    %2605 = vmatpush1.xpose.msra.mxu0 %v2588
    %2606 = vmatprep.subr.mxu0 0.0
    %2607 = vmatpush1.xpose.msra.mxu0 %v2590
    %2608 = vmatprep.subr.mxu0 0.0
    %2609 = vmatpush1.xpose.msra.mxu0 %v2592
    %2610 = vmatprep.subr.mxu0 0.0
    %2611 = vmatpush1.xpose.msra.mxu0 %v2594
    %2612 = vmatprep.subr.mxu0 0.0
    %2613 = vmatpush1.xpose.msra.mxu0 0.0
    %2614 = vmatprep.subr.mxu0 0.0
    %2615 = vmatpush1.xpose.msra.mxu0 0.0
    %2616 = vmatprep.subr.mxu0 0.0
    %2617 = vmatpush1.xpose.msra.mxu0 0.0
    %2618 = vmatprep.subr.mxu0 0.0
    %2619 = vmatpush1.xpose.msra.mxu0 0.0
    %2620 = vmatprep.subr.mxu0 0.0
    %2621 = vmatpush1.xpose.msra.mxu0 0.0
    %2622 = vmatprep.subr.mxu0 0.0
    %2623 = vmatpush1.xpose.msra.mxu0 0.0
    %2624 = vmatprep.subr.mxu0 0.0
    %2625 = vmatpush1.xpose.msra.mxu0 0.0
    %2626 = vmatprep.subr.mxu0 0.0
    %2627 = vmatpush1.xpose.msra.mxu0 0.0
    %2628 = vmatprep.subr.mxu0 0.0
    %2629 = vmatpush1.xpose.msra.mxu0 0.0
    %2630 = vmatprep.subr.mxu0 0.0
    %2631 = vmatpush1.xpose.msra.mxu0 0.0
    %2632 = vmatprep.subr.mxu0 0.0
    %2633 = vmatpush1.xpose.msra.mxu0 0.0
    %2634 = vmatprep.subr.mxu0 0.0
    %2635 = vmatpush1.xpose.msra.mxu0 0.0
    %2636 = vmatprep.subr.mxu0 0.0
    %2637 = vmatpush1.xpose.msra.mxu0 0.0
    %2638 = vmatprep.subr.mxu0 0.0
    %2639 = vmatpush1.xpose.msra.mxu0 0.0
    %2640 = vmatprep.subr.mxu0 0.0
    %2641 = vmatpush1.xpose.msra.mxu0 0.0
    %2642 = vmatprep.subr.mxu0 0.0
    %2643 = vmatpush1.xpose.msra.mxu0 0.0
    %2644 = vmatprep.subr.mxu0 0.0
    %2645 = vmatpush1.xpose.msra.mxu0 0.0
    %2646 = vmatprep.subr.mxu0 0.0
    %2647 = vmatpush1.xpose.msra.mxu0 0.0
    %2648 = vmatprep.subr.mxu0 0.0
    %2649 = vmatpush1.xpose.msra.mxu0 0.0
    %2650 = vmatprep.subr.mxu0 0.0
    %2651 = vmatpush1.xpose.msra.mxu0 0.0
    %2652 = vmatprep.subr.mxu0 0.0
    %2653 = vmatpush1.xpose.msra.mxu0 0.0
    %2654 = vmatprep.subr.mxu0 0.0
    %2655 = vmatpush1.xpose.msra.mxu0 0.0
    %2656 = vmatprep.subr.mxu0 0.0
    %2657 = vmatpush1.xpose.msra.mxu0 0.0
    %2658 = vmatprep.subr.mxu0 0.0
    %2659 = vmatpush1.xpose.msra.mxu0 0.0
    %2660 = vmatprep.mubr.f32.mxu0 0.0
    %2661 = vmatmul.mubr.f32.gmra.mrb[0].mxu0 %v2557
    %v2662 = vpop.f32.mrb[0].mxu0
    %v2663 = vadd.f32 %v336, %v2662
    %v2664 = vpop.f32.mrb[0].mxu0
    %2665 = vmatprep.mubr.f32.mxu0 0.0
    %2666 = vmatmul.mubr.f32.gmra.mrb[0].mxu0 %v2560
    %v2667 = vpop.f32.mrb[0].mxu0
    %v2668 = vadd.f32 %v337, %v2667
    %v2669 = vpop.f32.mrb[0].mxu0
    %2670 = vmatprep.mubr.f32.mxu0 0.0
    %2671 = vmatmul.mubr.f32.gmra.mrb[0].mxu0 %v2563
    %v2672 = vpop.f32.mrb[0].mxu0
    %v2673 = vadd.f32 %v338, %v2672
    %v2674 = vpop.f32.mrb[0].mxu0
    %2675 = vmatprep.mubr.f32.mxu0 0.0
    %2676 = vmatmul.mubr.f32.gmra.mrb[0].mxu0 %v2566
    %v2677 = vpop.f32.mrb[0].mxu0
    %v2678 = vadd.f32 %v339, %v2677
    %v2679 = vpop.f32.mrb[0].mxu0
    %2680 = vmatprep.mubr.f32.mxu0 0.0
    %2681 = vmatmul.mubr.f32.gmra.mrb[0].mxu0 %v2569
    %v2682 = vpop.f32.mrb[0].mxu0
    %v2683 = vadd.f32 %v340, %v2682
    %v2684 = vpop.f32.mrb[0].mxu0
    %2685 = vmatprep.mubr.f32.mxu0 0.0
    %2686 = vmatmul.mubr.f32.gmra.mrb[0].mxu0 %v2572
    %v2687 = vpop.f32.mrb[0].mxu0
    %v2688 = vadd.f32 %v341, %v2687
    %v2689 = vpop.f32.mrb[0].mxu0
    %2690 = vmatprep.mubr.f32.mxu0 0.0
    %2691 = vmatmul.mubr.f32.gmra.mrb[0].mxu0 %v2575
    %v2692 = vpop.f32.mrb[0].mxu0
    %v2693 = vadd.f32 %v342, %v2692
    %v2694 = vpop.f32.mrb[0].mxu0
    %2695 = vmatprep.mubr.f32.mxu0 0.0
    %2696 = vmatmul.mubr.f32.gmra.mrb[0].mxu0 %v2578
    %v2697 = vpop.f32.mrb[0].mxu0
    %v2698 = vadd.f32 %v343, %v2697
    %v2699 = vpop.f32.mrb[0].mxu0
    %2700 = vdwg.mxu0
    %v2701 = vsel %vm137, %v2663, -inf
    %2702 = vmax.xlane.f32.xlu0 %v2701
    %v2703 = vpop.xlane.xlu0 %2702
    %v2704 = vsel %vm137, %v2668, -inf
    %2705 = vmax.xlane.f32.xlu0 %v2704
    %v2706 = vpop.xlane.xlu0 %2705
    %v2707 = vsel %vm137, %v2673, -inf
    %2708 = vmax.xlane.f32.xlu0 %v2707
    %v2709 = vpop.xlane.xlu0 %2708
    %v2710 = vsel %vm137, %v2678, -inf
    %2711 = vmax.xlane.f32.xlu0 %v2710
    %v2712 = vpop.xlane.xlu0 %2711
    %v2713 = vsel %vm137, %v2683, -inf
    %2714 = vmax.xlane.f32.xlu0 %v2713
    %v2715 = vpop.xlane.xlu0 %2714
    %v2716 = vsel %vm137, %v2688, -inf
    %2717 = vmax.xlane.f32.xlu0 %v2716
    %v2718 = vpop.xlane.xlu0 %2717
    %v2719 = vsel %vm137, %v2693, -inf
    %2720 = vmax.xlane.f32.xlu0 %v2719
    %v2721 = vpop.xlane.xlu0 %2720
    %v2722 = vsel %vm137, %v2698, -inf
    %2723 = vmax.xlane.f32.xlu0 %v2722
    %v2724 = vpop.xlane.xlu0 %2723
    %v2725 = vsub.f32 %v2663, %v2703
    %v2726 = vsub.f32 %v2668, %v2706
    %v2727 = vsub.f32 %v2673, %v2709
    %v2728 = vsub.f32 %v2678, %v2712
    %v2729 = vsub.f32 %v2683, %v2715
    %v2730 = vsub.f32 %v2688, %v2718
    %v2731 = vsub.f32 %v2693, %v2721
    %v2732 = vsub.f32 %v2698, %v2724
    %v2733 = vmul.f32 %v2725, 1.442695
    %v2734 = vpow.pop %v2733
    %v2735 = vmul.f32 %v2726, 1.442695
    %v2736 = vpow.pop %v2735
    %v2737 = vmul.f32 %v2727, 1.442695
    %v2738 = vpow.pop %v2737
    %v2739 = vmul.f32 %v2728, 1.442695
    %v2740 = vpow.pop %v2739
    %v2741 = vmul.f32 %v2729, 1.442695
    %v2742 = vpow.pop %v2741
    %v2743 = vmul.f32 %v2730, 1.442695
    %v2744 = vpow.pop %v2743
    %v2745 = vmul.f32 %v2731, 1.442695
    %v2746 = vpow.pop %v2745
    %v2747 = vmul.f32 %v2732, 1.442695
    %v2748 = vpow.pop %v2747
    %v2749 = vsel %vm137, %v2734, 0.0
    %2750 = vadd.xlane.f32.xlu0 %v2749
    %v2751 = vpop.xlane.xlu0 %2750
    %v2752 = vsel %vm137, %v2736, 0.0
    %2753 = vadd.xlane.f32.xlu0 %v2752
    %v2754 = vpop.xlane.xlu0 %2753
    %v2755 = vsel %vm137, %v2738, 0.0
    %2756 = vadd.xlane.f32.xlu0 %v2755
    %v2757 = vpop.xlane.xlu0 %2756
    %v2758 = vsel %vm137, %v2740, 0.0
    %2759 = vadd.xlane.f32.xlu0 %v2758
    %v2760 = vpop.xlane.xlu0 %2759
    %v2761 = vsel %vm137, %v2742, 0.0
    %2762 = vadd.xlane.f32.xlu0 %v2761
    %v2763 = vpop.xlane.xlu0 %2762
    %v2764 = vsel %vm137, %v2744, 0.0
    %2765 = vadd.xlane.f32.xlu0 %v2764
    %v2766 = vpop.xlane.xlu0 %2765
    %v2767 = vsel %vm137, %v2746, 0.0
    %2768 = vadd.xlane.f32.xlu0 %v2767
    %v2769 = vpop.xlane.xlu0 %2768
    %v2770 = vsel %vm137, %v2748, 0.0
    %2771 = vadd.xlane.f32.xlu0 %v2770
    %v2772 = vpop.xlane.xlu0 %2771
    %v2773 = vrcp.pop %v2751
    %v2774 = vmul.f32 %v2734, %v2773
    %v2775 = vrcp.pop %v2754
    %v2776 = vmul.f32 %v2736, %v2775
    %v2777 = vrcp.pop %v2757
    %v2778 = vmul.f32 %v2738, %v2777
    %v2779 = vrcp.pop %v2760
    %v2780 = vmul.f32 %v2740, %v2779
    %v2781 = vrcp.pop %v2763
    %v2782 = vmul.f32 %v2742, %v2781
    %v2783 = vrcp.pop %v2766
    %v2784 = vmul.f32 %v2744, %v2783
    %v2785 = vrcp.pop %v2769
    %v2786 = vmul.f32 %v2746, %v2785
    %v2787 = vrcp.pop %v2772
    %v2788 = vmul.f32 %v2748, %v2787
    %2789 = vrot.lane.b32.xlu0 %v2486, 64
    %v2790 = vpop.permute.xlu0 %2789
    %2791 = vrot.lane.b32.xlu0 %v2491, 64
    %v2792 = vpop.permute.xlu0 %2791
    %2793 = vrot.lane.b32.xlu0 %v2496, 64
    %v2794 = vpop.permute.xlu0 %2793
    %2795 = vrot.lane.b32.xlu0 %v2501, 64
    %v2796 = vpop.permute.xlu0 %2795
    %2797 = vrot.lane.b32.xlu0 %v2506, 64
    %v2798 = vpop.permute.xlu0 %2797
    %2799 = vrot.lane.b32.xlu0 %v2511, 64
    %v2800 = vpop.permute.xlu0 %2799
    %2801 = vrot.lane.b32.xlu0 %v2516, 64
    %v2802 = vpop.permute.xlu0 %2801
    %2803 = vrot.lane.b32.xlu0 %v2521, 64
    %v2804 = vpop.permute.xlu0 %2803
    %v2814 = vsel %vm137, %v2774, 0
    %v2817 = vsel %vm137, %v2776, 0
    %v2820 = vsel %vm137, %v2778, 0
    %v2823 = vsel %vm137, %v2780, 0
    %v2826 = vsel %vm137, %v2782, 0
    %v2829 = vsel %vm137, %v2784, 0
    %v2832 = vsel %vm137, %v2786, 0
    %v2835 = vsel %vm137, %v2788, 0
    %2837 = vmatprep.subr.mxu0 0.0
    %2838 = vmatpush1.msra.mxu0 %v2790
    %2839 = vmatprep.subr.mxu0 0.0
    %2840 = vmatpush1.msra.mxu0 %v2792
    %2841 = vmatprep.subr.mxu0 0.0
    %2842 = vmatpush1.msra.mxu0 %v2794
    %2843 = vmatprep.subr.mxu0 0.0
    %2844 = vmatpush1.msra.mxu0 %v2796
    %2845 = vmatprep.subr.mxu0 0.0
    %2846 = vmatpush1.msra.mxu0 %v2798
    %2847 = vmatprep.subr.mxu0 0.0
    %2848 = vmatpush1.msra.mxu0 %v2800
    %2849 = vmatprep.subr.mxu0 0.0
    %2850 = vmatpush1.msra.mxu0 %v2802
    %2851 = vmatprep.subr.mxu0 0.0
    %2852 = vmatpush1.msra.mxu0 %v2804
    %2853 = vmatprep.subr.mxu0 0.0
    %2854 = vmatpush1.msra.mxu0 0.0
    %2855 = vmatprep.subr.mxu0 0.0
    %2856 = vmatpush1.msra.mxu0 0.0
    %2857 = vmatprep.subr.mxu0 0.0
    %2858 = vmatpush1.msra.mxu0 0.0
    %2859 = vmatprep.subr.mxu0 0.0
    %2860 = vmatpush1.msra.mxu0 0.0
    %2861 = vmatprep.subr.mxu0 0.0
    %2862 = vmatpush1.msra.mxu0 0.0
    %2863 = vmatprep.subr.mxu0 0.0
    %2864 = vmatpush1.msra.mxu0 0.0
    %2865 = vmatprep.subr.mxu0 0.0
    %2866 = vmatpush1.msra.mxu0 0.0
    %2867 = vmatprep.subr.mxu0 0.0
    %2868 = vmatpush1.msra.mxu0 0.0
    %2869 = vmatprep.subr.mxu0 0.0
    %2870 = vmatpush1.msra.mxu0 0.0
    %2871 = vmatprep.subr.mxu0 0.0
    %2872 = vmatpush1.msra.mxu0 0.0
    %2873 = vmatprep.subr.mxu0 0.0
    %2874 = vmatpush1.msra.mxu0 0.0
    %2875 = vmatprep.subr.mxu0 0.0
    %2876 = vmatpush1.msra.mxu0 0.0
    %2877 = vmatprep.subr.mxu0 0.0
    %2878 = vmatpush1.msra.mxu0 0.0
    %2879 = vmatprep.subr.mxu0 0.0
    %2880 = vmatpush1.msra.mxu0 0.0
    %2881 = vmatprep.subr.mxu0 0.0
    %2882 = vmatpush1.msra.mxu0 0.0
    %2883 = vmatprep.subr.mxu0 0.0
    %2884 = vmatpush1.msra.mxu0 0.0
    %2885 = vmatprep.subr.mxu0 0.0
    %2886 = vmatpush1.msra.mxu0 0.0
    %2887 = vmatprep.subr.mxu0 0.0
    %2888 = vmatpush1.msra.mxu0 0.0
    %2889 = vmatprep.subr.mxu0 0.0
    %2890 = vmatpush1.msra.mxu0 0.0
    %2891 = vmatprep.subr.mxu0 0.0
    %2892 = vmatpush1.msra.mxu0 0.0
    %2893 = vmatprep.subr.mxu0 0.0
    %2894 = vmatpush1.msra.mxu0 0.0
    %2895 = vmatprep.subr.mxu0 0.0
    %2896 = vmatpush1.msra.mxu0 0.0
    %2897 = vmatprep.subr.mxu0 0.0
    %2898 = vmatpush1.msra.mxu0 0.0
    %2899 = vmatprep.subr.mxu0 0.0
    %2900 = vmatpush1.msra.mxu0 0.0
    %2901 = vmatprep.mubr.f32.mxu0 0.0
    %2902 = vmatmul.mubr.f32.gmra.mrb[0].mxu0 %v2814
    %v2903 = vpop.f32.mrb[0].mxu0
    %v2904 = vadd.f32 0.0, %v2903
    %v2905 = vpop.f32.mrb[0].mxu0
    %2906 = vmatprep.mubr.f32.mxu0 0.0
    %2907 = vmatmul.mubr.f32.gmra.mrb[0].mxu0 %v2817
    %v2908 = vpop.f32.mrb[0].mxu0
    %v2909 = vadd.f32 0.0, %v2908
    %v2910 = vpop.f32.mrb[0].mxu0
    %2911 = vmatprep.mubr.f32.mxu0 0.0
    %2912 = vmatmul.mubr.f32.gmra.mrb[0].mxu0 %v2820
    %v2913 = vpop.f32.mrb[0].mxu0
    %v2914 = vadd.f32 0.0, %v2913
    %v2915 = vpop.f32.mrb[0].mxu0
    %2916 = vmatprep.mubr.f32.mxu0 0.0
    %2917 = vmatmul.mubr.f32.gmra.mrb[0].mxu0 %v2823
    %v2918 = vpop.f32.mrb[0].mxu0
    %v2919 = vadd.f32 0.0, %v2918
    %v2920 = vpop.f32.mrb[0].mxu0
    %2921 = vmatprep.mubr.f32.mxu0 0.0
    %2922 = vmatmul.mubr.f32.gmra.mrb[0].mxu0 %v2826
    %v2923 = vpop.f32.mrb[0].mxu0
    %v2924 = vadd.f32 0.0, %v2923
    %v2925 = vpop.f32.mrb[0].mxu0
    %2926 = vmatprep.mubr.f32.mxu0 0.0
    %2927 = vmatmul.mubr.f32.gmra.mrb[0].mxu0 %v2829
    %v2928 = vpop.f32.mrb[0].mxu0
    %v2929 = vadd.f32 0.0, %v2928
    %v2930 = vpop.f32.mrb[0].mxu0
    %2931 = vmatprep.mubr.f32.mxu0 0.0
    %2932 = vmatmul.mubr.f32.gmra.mrb[0].mxu0 %v2832
    %v2933 = vpop.f32.mrb[0].mxu0
    %v2934 = vadd.f32 0.0, %v2933
    %v2935 = vpop.f32.mrb[0].mxu0
    %2936 = vmatprep.mubr.f32.mxu0 0.0
    %2937 = vmatmul.mubr.f32.gmra.mrb[0].mxu0 %v2835
    %v2938 = vpop.f32.mrb[0].mxu0
    %v2939 = vadd.f32 0.0, %v2938
    %v2940 = vpop.f32.mrb[0].mxu0
    %2941 = vdwg.mxu0
    %2942 = vrot.lane.b32.xlu0 %v2524, 112
    %v2943 = vpop.permute.xlu0 %2942
    %2944 = vrot.lane.b32.xlu0 %v2525, 112
    %v2945 = vpop.permute.xlu0 %2944
    %2946 = vrot.lane.b32.xlu0 %v2526, 112
    %v2947 = vpop.permute.xlu0 %2946
    %2948 = vrot.lane.b32.xlu0 %v2527, 112
    %v2949 = vpop.permute.xlu0 %2948
    %2950 = vrot.lane.b32.xlu0 %v2528, 112
    %v2951 = vpop.permute.xlu0 %2950
    %2952 = vrot.lane.b32.xlu0 %v2529, 112
    %v2953 = vpop.permute.xlu0 %2952
    %2954 = vrot.lane.b32.xlu0 %v2530, 112
    %v2955 = vpop.permute.xlu0 %2954
    %2956 = vrot.lane.b32.xlu0 %v2531, 112
    %v2957 = vpop.permute.xlu0 %2956
    %2958 = vrot.lane.b32.xlu0 %v2486, 80
    %v2959 = vpop.permute.xlu0 %2958
    %2960 = vrot.lane.b32.xlu0 %v2491, 80
    %v2961 = vpop.permute.xlu0 %2960
    %2962 = vrot.lane.b32.xlu0 %v2496, 80
    %v2963 = vpop.permute.xlu0 %2962
    %2964 = vrot.lane.b32.xlu0 %v2501, 80
    %v2965 = vpop.permute.xlu0 %2964
    %2966 = vrot.lane.b32.xlu0 %v2506, 80
    %v2967 = vpop.permute.xlu0 %2966
    %2968 = vrot.lane.b32.xlu0 %v2511, 80
    %v2969 = vpop.permute.xlu0 %2968
    %2970 = vrot.lane.b32.xlu0 %v2516, 80
    %v2971 = vpop.permute.xlu0 %2970
    %2972 = vrot.lane.b32.xlu0 %v2521, 80
    %v2973 = vpop.permute.xlu0 %2972
    %v2974 = vsel %vm671, %v2943, 0
    %v2976 = vsel %vm671, %v2945, 0
    %v2978 = vsel %vm671, %v2947, 0
    %v2980 = vsel %vm671, %v2949, 0
    %v2982 = vsel %vm671, %v2951, 0
    %v2984 = vsel %vm671, %v2953, 0
    %v2986 = vsel %vm671, %v2955, 0
    %v2988 = vsel %vm671, %v2957, 0
    %v2990 = vsel %vm671, %v2959, 0
    %v2992 = vsel %vm671, %v2961, 0
    %v2994 = vsel %vm671, %v2963, 0
    %v2996 = vsel %vm671, %v2965, 0
    %v2998 = vsel %vm671, %v2967, 0
    %v3000 = vsel %vm671, %v2969, 0
    %v3002 = vsel %vm671, %v2971, 0
    %v3004 = vsel %vm671, %v2973, 0
    %3006 = vmatprep.subr.mxu0 0.0
    %3007 = vmatpush1.xpose.msra.mxu0 %v2990
    %3008 = vmatprep.subr.mxu0 0.0
    %3009 = vmatpush1.xpose.msra.mxu0 %v2992
    %3010 = vmatprep.subr.mxu0 0.0
    %3011 = vmatpush1.xpose.msra.mxu0 %v2994
    %3012 = vmatprep.subr.mxu0 0.0
    %3013 = vmatpush1.xpose.msra.mxu0 %v2996
    %3014 = vmatprep.subr.mxu0 0.0
    %3015 = vmatpush1.xpose.msra.mxu0 %v2998
    %3016 = vmatprep.subr.mxu0 0.0
    %3017 = vmatpush1.xpose.msra.mxu0 %v3000
    %3018 = vmatprep.subr.mxu0 0.0
    %3019 = vmatpush1.xpose.msra.mxu0 %v3002
    %3020 = vmatprep.subr.mxu0 0.0
    %3021 = vmatpush1.xpose.msra.mxu0 %v3004
    %3022 = vmatprep.subr.mxu0 0.0
    %3023 = vmatpush1.xpose.msra.mxu0 0.0
    %3024 = vmatprep.subr.mxu0 0.0
    %3025 = vmatpush1.xpose.msra.mxu0 0.0
    %3026 = vmatprep.subr.mxu0 0.0
    %3027 = vmatpush1.xpose.msra.mxu0 0.0
    %3028 = vmatprep.subr.mxu0 0.0
    %3029 = vmatpush1.xpose.msra.mxu0 0.0
    %3030 = vmatprep.subr.mxu0 0.0
    %3031 = vmatpush1.xpose.msra.mxu0 0.0
    %3032 = vmatprep.subr.mxu0 0.0
    %3033 = vmatpush1.xpose.msra.mxu0 0.0
    %3034 = vmatprep.subr.mxu0 0.0
    %3035 = vmatpush1.xpose.msra.mxu0 0.0
    %3036 = vmatprep.subr.mxu0 0.0
    %3037 = vmatpush1.xpose.msra.mxu0 0.0
    %3038 = vmatprep.subr.mxu0 0.0
    %3039 = vmatpush1.xpose.msra.mxu0 0.0
    %3040 = vmatprep.subr.mxu0 0.0
    %3041 = vmatpush1.xpose.msra.mxu0 0.0
    %3042 = vmatprep.subr.mxu0 0.0
    %3043 = vmatpush1.xpose.msra.mxu0 0.0
    %3044 = vmatprep.subr.mxu0 0.0
    %3045 = vmatpush1.xpose.msra.mxu0 0.0
    %3046 = vmatprep.subr.mxu0 0.0
    %3047 = vmatpush1.xpose.msra.mxu0 0.0
    %3048 = vmatprep.subr.mxu0 0.0
    %3049 = vmatpush1.xpose.msra.mxu0 0.0
    %3050 = vmatprep.subr.mxu0 0.0
    %3051 = vmatpush1.xpose.msra.mxu0 0.0
    %3052 = vmatprep.subr.mxu0 0.0
    %3053 = vmatpush1.xpose.msra.mxu0 0.0
    %3054 = vmatprep.subr.mxu0 0.0
    %3055 = vmatpush1.xpose.msra.mxu0 0.0
    %3056 = vmatprep.subr.mxu0 0.0
    %3057 = vmatpush1.xpose.msra.mxu0 0.0
    %3058 = vmatprep.subr.mxu0 0.0
    %3059 = vmatpush1.xpose.msra.mxu0 0.0
    %3060 = vmatprep.subr.mxu0 0.0
    %3061 = vmatpush1.xpose.msra.mxu0 0.0
    %3062 = vmatprep.subr.mxu0 0.0
    %3063 = vmatpush1.xpose.msra.mxu0 0.0
    %3064 = vmatprep.subr.mxu0 0.0
    %3065 = vmatpush1.xpose.msra.mxu0 0.0
    %3066 = vmatprep.subr.mxu0 0.0
    %3067 = vmatpush1.xpose.msra.mxu0 0.0
    %3068 = vmatprep.subr.mxu0 0.0
    %3069 = vmatpush1.xpose.msra.mxu0 0.0
    %3070 = vmatprep.mubr.f32.mxu0 0.0
    %3071 = vmatmul.mubr.f32.gmra.mrb[0].mxu0 %v2974
    %v3072 = vpop.f32.mrb[0].mxu0
    %v3073 = vadd.f32 %v336, %v3072
    %v3074 = vpop.f32.mrb[0].mxu0
    %3075 = vmatprep.mubr.f32.mxu0 0.0
    %3076 = vmatmul.mubr.f32.gmra.mrb[0].mxu0 %v2976
    %v3077 = vpop.f32.mrb[0].mxu0
    %v3078 = vadd.f32 %v337, %v3077
    %v3079 = vpop.f32.mrb[0].mxu0
    %3080 = vmatprep.mubr.f32.mxu0 0.0
    %3081 = vmatmul.mubr.f32.gmra.mrb[0].mxu0 %v2978
    %v3082 = vpop.f32.mrb[0].mxu0
    %v3083 = vadd.f32 %v338, %v3082
    %v3084 = vpop.f32.mrb[0].mxu0
    %3085 = vmatprep.mubr.f32.mxu0 0.0
    %3086 = vmatmul.mubr.f32.gmra.mrb[0].mxu0 %v2980
    %v3087 = vpop.f32.mrb[0].mxu0
    %v3088 = vadd.f32 %v339, %v3087
    %v3089 = vpop.f32.mrb[0].mxu0
    %3090 = vmatprep.mubr.f32.mxu0 0.0
    %3091 = vmatmul.mubr.f32.gmra.mrb[0].mxu0 %v2982
    %v3092 = vpop.f32.mrb[0].mxu0
    %v3093 = vadd.f32 %v340, %v3092
    %v3094 = vpop.f32.mrb[0].mxu0
    %3095 = vmatprep.mubr.f32.mxu0 0.0
    %3096 = vmatmul.mubr.f32.gmra.mrb[0].mxu0 %v2984
    %v3097 = vpop.f32.mrb[0].mxu0
    %v3098 = vadd.f32 %v341, %v3097
    %v3099 = vpop.f32.mrb[0].mxu0
    %3100 = vmatprep.mubr.f32.mxu0 0.0
    %3101 = vmatmul.mubr.f32.gmra.mrb[0].mxu0 %v2986
    %v3102 = vpop.f32.mrb[0].mxu0
    %v3103 = vadd.f32 %v342, %v3102
    %v3104 = vpop.f32.mrb[0].mxu0
    %3105 = vmatprep.mubr.f32.mxu0 0.0
    %3106 = vmatmul.mubr.f32.gmra.mrb[0].mxu0 %v2988
    %v3107 = vpop.f32.mrb[0].mxu0
    %v3108 = vadd.f32 %v343, %v3107
    %v3109 = vpop.f32.mrb[0].mxu0
    %3110 = vdwg.mxu0
    %v3111 = vsel %vm137, %v3073, -inf
    %3112 = vmax.xlane.f32.xlu0 %v3111
    %v3113 = vpop.xlane.xlu0 %3112
    %v3114 = vsel %vm137, %v3078, -inf
    %3115 = vmax.xlane.f32.xlu0 %v3114
    %v3116 = vpop.xlane.xlu0 %3115
    %v3117 = vsel %vm137, %v3083, -inf
    %3118 = vmax.xlane.f32.xlu0 %v3117
    %v3119 = vpop.xlane.xlu0 %3118
    %v3120 = vsel %vm137, %v3088, -inf
    %3121 = vmax.xlane.f32.xlu0 %v3120
    %v3122 = vpop.xlane.xlu0 %3121
    %v3123 = vsel %vm137, %v3093, -inf
    %3124 = vmax.xlane.f32.xlu0 %v3123
    %v3125 = vpop.xlane.xlu0 %3124
    %v3126 = vsel %vm137, %v3098, -inf
    %3127 = vmax.xlane.f32.xlu0 %v3126
    %v3128 = vpop.xlane.xlu0 %3127
    %v3129 = vsel %vm137, %v3103, -inf
    %3130 = vmax.xlane.f32.xlu0 %v3129
    %v3131 = vpop.xlane.xlu0 %3130
    %v3132 = vsel %vm137, %v3108, -inf
    %3133 = vmax.xlane.f32.xlu0 %v3132
    %v3134 = vpop.xlane.xlu0 %3133
    %v3135 = vsub.f32 %v3073, %v3113
    %v3136 = vsub.f32 %v3078, %v3116
    %v3137 = vsub.f32 %v3083, %v3119
    %v3138 = vsub.f32 %v3088, %v3122
    %v3139 = vsub.f32 %v3093, %v3125
    %v3140 = vsub.f32 %v3098, %v3128
    %v3141 = vsub.f32 %v3103, %v3131
    %v3142 = vsub.f32 %v3108, %v3134
    %v3143 = vmul.f32 %v3135, 1.442695
    %v3144 = vpow.pop %v3143
    %v3145 = vmul.f32 %v3136, 1.442695
    %v3146 = vpow.pop %v3145
    %v3147 = vmul.f32 %v3137, 1.442695
    %v3148 = vpow.pop %v3147
    %v3149 = vmul.f32 %v3138, 1.442695
    %v3150 = vpow.pop %v3149
    %v3151 = vmul.f32 %v3139, 1.442695
    %v3152 = vpow.pop %v3151
    %v3153 = vmul.f32 %v3140, 1.442695
    %v3154 = vpow.pop %v3153
    %v3155 = vmul.f32 %v3141, 1.442695
    %v3156 = vpow.pop %v3155
    %v3157 = vmul.f32 %v3142, 1.442695
    %v3158 = vpow.pop %v3157
    %v3159 = vsel %vm137, %v3144, 0.0
    %3160 = vadd.xlane.f32.xlu0 %v3159
    %v3161 = vpop.xlane.xlu0 %3160
    %v3162 = vsel %vm137, %v3146, 0.0
    %3163 = vadd.xlane.f32.xlu0 %v3162
    %v3164 = vpop.xlane.xlu0 %3163
    %v3165 = vsel %vm137, %v3148, 0.0
    %3166 = vadd.xlane.f32.xlu0 %v3165
    %v3167 = vpop.xlane.xlu0 %3166
    %v3168 = vsel %vm137, %v3150, 0.0
    %3169 = vadd.xlane.f32.xlu0 %v3168
    %v3170 = vpop.xlane.xlu0 %3169
    %v3171 = vsel %vm137, %v3152, 0.0
    %3172 = vadd.xlane.f32.xlu0 %v3171
    %v3173 = vpop.xlane.xlu0 %3172
    %v3174 = vsel %vm137, %v3154, 0.0
    %3175 = vadd.xlane.f32.xlu0 %v3174
    %v3176 = vpop.xlane.xlu0 %3175
    %v3177 = vsel %vm137, %v3156, 0.0
    %3178 = vadd.xlane.f32.xlu0 %v3177
    %v3179 = vpop.xlane.xlu0 %3178
    %v3180 = vsel %vm137, %v3158, 0.0
    %3181 = vadd.xlane.f32.xlu0 %v3180
    %v3182 = vpop.xlane.xlu0 %3181
    %v3183 = vrcp.pop %v3161
    %v3184 = vmul.f32 %v3144, %v3183
    %v3185 = vrcp.pop %v3164
    %v3186 = vmul.f32 %v3146, %v3185
    %v3187 = vrcp.pop %v3167
    %v3188 = vmul.f32 %v3148, %v3187
    %v3189 = vrcp.pop %v3170
    %v3190 = vmul.f32 %v3150, %v3189
    %v3191 = vrcp.pop %v3173
    %v3192 = vmul.f32 %v3152, %v3191
    %v3193 = vrcp.pop %v3176
    %v3194 = vmul.f32 %v3154, %v3193
    %v3195 = vrcp.pop %v3179
    %v3196 = vmul.f32 %v3156, %v3195
    %v3197 = vrcp.pop %v3182
    %v3198 = vmul.f32 %v3158, %v3197
    %3199 = vrot.lane.b32.xlu0 %v2486, 48
    %v3200 = vpop.permute.xlu0 %3199
    %3201 = vrot.lane.b32.xlu0 %v2491, 48
    %v3202 = vpop.permute.xlu0 %3201
    %3203 = vrot.lane.b32.xlu0 %v2496, 48
    %v3204 = vpop.permute.xlu0 %3203
    %3205 = vrot.lane.b32.xlu0 %v2501, 48
    %v3206 = vpop.permute.xlu0 %3205
    %3207 = vrot.lane.b32.xlu0 %v2506, 48
    %v3208 = vpop.permute.xlu0 %3207
    %3209 = vrot.lane.b32.xlu0 %v2511, 48
    %v3210 = vpop.permute.xlu0 %3209
    %3211 = vrot.lane.b32.xlu0 %v2516, 48
    %v3212 = vpop.permute.xlu0 %3211
    %3213 = vrot.lane.b32.xlu0 %v2521, 48
    %v3214 = vpop.permute.xlu0 %3213
    %v3224 = vsel %vm137, %v3184, 0
    %v3227 = vsel %vm137, %v3186, 0
    %v3230 = vsel %vm137, %v3188, 0
    %v3233 = vsel %vm137, %v3190, 0
    %v3236 = vsel %vm137, %v3192, 0
    %v3239 = vsel %vm137, %v3194, 0
    %v3242 = vsel %vm137, %v3196, 0
    %v3245 = vsel %vm137, %v3198, 0
    %3247 = vmatprep.subr.mxu0 0.0
    %3248 = vmatpush1.msra.mxu0 %v3200
    %3249 = vmatprep.subr.mxu0 0.0
    %3250 = vmatpush1.msra.mxu0 %v3202
    %3251 = vmatprep.subr.mxu0 0.0
    %3252 = vmatpush1.msra.mxu0 %v3204
    %3253 = vmatprep.subr.mxu0 0.0
    %3254 = vmatpush1.msra.mxu0 %v3206
    %3255 = vmatprep.subr.mxu0 0.0
    %3256 = vmatpush1.msra.mxu0 %v3208
    %3257 = vmatprep.subr.mxu0 0.0
    %3258 = vmatpush1.msra.mxu0 %v3210
    %3259 = vmatprep.subr.mxu0 0.0
    %3260 = vmatpush1.msra.mxu0 %v3212
    %3261 = vmatprep.subr.mxu0 0.0
    %3262 = vmatpush1.msra.mxu0 %v3214
    %3263 = vmatprep.subr.mxu0 0.0
    %3264 = vmatpush1.msra.mxu0 0.0
    %3265 = vmatprep.subr.mxu0 0.0
    %3266 = vmatpush1.msra.mxu0 0.0
    %3267 = vmatprep.subr.mxu0 0.0
    %3268 = vmatpush1.msra.mxu0 0.0
    %3269 = vmatprep.subr.mxu0 0.0
    %3270 = vmatpush1.msra.mxu0 0.0
    %3271 = vmatprep.subr.mxu0 0.0
    %3272 = vmatpush1.msra.mxu0 0.0
    %3273 = vmatprep.subr.mxu0 0.0
    %3274 = vmatpush1.msra.mxu0 0.0
    %3275 = vmatprep.subr.mxu0 0.0
    %3276 = vmatpush1.msra.mxu0 0.0
    %3277 = vmatprep.subr.mxu0 0.0
    %3278 = vmatpush1.msra.mxu0 0.0
    %3279 = vmatprep.subr.mxu0 0.0
    %3280 = vmatpush1.msra.mxu0 0.0
    %3281 = vmatprep.subr.mxu0 0.0
    %3282 = vmatpush1.msra.mxu0 0.0
    %3283 = vmatprep.subr.mxu0 0.0
    %3284 = vmatpush1.msra.mxu0 0.0
    %3285 = vmatprep.subr.mxu0 0.0
    %3286 = vmatpush1.msra.mxu0 0.0
    %3287 = vmatprep.subr.mxu0 0.0
    %3288 = vmatpush1.msra.mxu0 0.0
    %3289 = vmatprep.subr.mxu0 0.0
    %3290 = vmatpush1.msra.mxu0 0.0
    %3291 = vmatprep.subr.mxu0 0.0
    %3292 = vmatpush1.msra.mxu0 0.0
    %3293 = vmatprep.subr.mxu0 0.0
    %3294 = vmatpush1.msra.mxu0 0.0
    %3295 = vmatprep.subr.mxu0 0.0
    %3296 = vmatpush1.msra.mxu0 0.0
    %3297 = vmatprep.subr.mxu0 0.0
    %3298 = vmatpush1.msra.mxu0 0.0
    %3299 = vmatprep.subr.mxu0 0.0
    %3300 = vmatpush1.msra.mxu0 0.0
    %3301 = vmatprep.subr.mxu0 0.0
    %3302 = vmatpush1.msra.mxu0 0.0
    %3303 = vmatprep.subr.mxu0 0.0
    %3304 = vmatpush1.msra.mxu0 0.0
    %3305 = vmatprep.subr.mxu0 0.0
    %3306 = vmatpush1.msra.mxu0 0.0
    %3307 = vmatprep.subr.mxu0 0.0
    %3308 = vmatpush1.msra.mxu0 0.0
    %3309 = vmatprep.subr.mxu0 0.0
    %3310 = vmatpush1.msra.mxu0 0.0
    %3311 = vmatprep.mubr.f32.mxu0 0.0
    %3312 = vmatmul.mubr.f32.gmra.mrb[0].mxu0 %v3224
    %v3313 = vpop.f32.mrb[0].mxu0
    %v3314 = vadd.f32 0.0, %v3313
    %v3315 = vpop.f32.mrb[0].mxu0
    %3316 = vmatprep.mubr.f32.mxu0 0.0
    %3317 = vmatmul.mubr.f32.gmra.mrb[0].mxu0 %v3227
    %v3318 = vpop.f32.mrb[0].mxu0
    %v3319 = vadd.f32 0.0, %v3318
    %v3320 = vpop.f32.mrb[0].mxu0
    %3321 = vmatprep.mubr.f32.mxu0 0.0
    %3322 = vmatmul.mubr.f32.gmra.mrb[0].mxu0 %v3230
    %v3323 = vpop.f32.mrb[0].mxu0
    %v3324 = vadd.f32 0.0, %v3323
    %v3325 = vpop.f32.mrb[0].mxu0
    %3326 = vmatprep.mubr.f32.mxu0 0.0
    %3327 = vmatmul.mubr.f32.gmra.mrb[0].mxu0 %v3233
    %v3328 = vpop.f32.mrb[0].mxu0
    %v3329 = vadd.f32 0.0, %v3328
    %v3330 = vpop.f32.mrb[0].mxu0
    %3331 = vmatprep.mubr.f32.mxu0 0.0
    %3332 = vmatmul.mubr.f32.gmra.mrb[0].mxu0 %v3236
    %v3333 = vpop.f32.mrb[0].mxu0
    %v3334 = vadd.f32 0.0, %v3333
    %v3335 = vpop.f32.mrb[0].mxu0
    %3336 = vmatprep.mubr.f32.mxu0 0.0
    %3337 = vmatmul.mubr.f32.gmra.mrb[0].mxu0 %v3239
    %v3338 = vpop.f32.mrb[0].mxu0
    %v3339 = vadd.f32 0.0, %v3338
    %v3340 = vpop.f32.mrb[0].mxu0
    %3341 = vmatprep.mubr.f32.mxu0 0.0
    %3342 = vmatmul.mubr.f32.gmra.mrb[0].mxu0 %v3242
    %v3343 = vpop.f32.mrb[0].mxu0
    %v3344 = vadd.f32 0.0, %v3343
    %v3345 = vpop.f32.mrb[0].mxu0
    %3346 = vmatprep.mubr.f32.mxu0 0.0
    %3347 = vmatmul.mubr.f32.gmra.mrb[0].mxu0 %v3245
    %v3348 = vpop.f32.mrb[0].mxu0
    %v3349 = vadd.f32 0.0, %v3348
    %v3350 = vpop.f32.mrb[0].mxu0
    %3351 = vdwg.mxu0
    %3354 = vrot.lane.b32.xlu0 %v2233, 32
    %v3355 = vpop.permute.xlu0 %3354
    %3356 = vrot.lane.b32.xlu0 %v2235, 32
    %v3357 = vpop.permute.xlu0 %3356
    %v3361 = vsel %vm671, %v3314, 0
    %v3364 = vsel %vm671, %v3319, 0
    %v3367 = vsel %vm671, %v3324, 0
    %v3370 = vsel %vm671, %v3329, 0
    %v3373 = vsel %vm671, %v3334, 0
    %v3376 = vsel %vm671, %v3339, 0
    %v3379 = vsel %vm671, %v3344, 0
    %v3382 = vsel %vm671, %v3349, 0
    %3384 = vmatprep.subr.mxu0 0.0
    %3385 = vmatpush1.msra.mxu0 %v3355
    %3386 = vmatprep.subr.mxu0 0.0
    %3387 = vmatpush1.msra.mxu0 %v3357
    %3388 = vmatprep.subr.mxu0 0.0
    %3389 = vmatpush1.msra.mxu0 0.0
    %3390 = vmatprep.subr.mxu0 0.0
    %3391 = vmatpush1.msra.mxu0 0.0
    %3392 = vmatprep.subr.mxu0 0.0
    %3393 = vmatpush1.msra.mxu0 0.0
    %3394 = vmatprep.subr.mxu0 0.0
    %3395 = vmatpush1.msra.mxu0 0.0
    %3396 = vmatprep.subr.mxu0 0.0
    %3397 = vmatpush1.msra.mxu0 0.0
    %3398 = vmatprep.subr.mxu0 0.0
    %3399 = vmatpush1.msra.mxu0 0.0
    %3400 = vmatprep.subr.mxu0 0.0
    %3401 = vmatpush1.msra.mxu0 0.0
    %3402 = vmatprep.subr.mxu0 0.0
    %3403 = vmatpush1.msra.mxu0 0.0
    %3404 = vmatprep.subr.mxu0 0.0
    %3405 = vmatpush1.msra.mxu0 0.0
    %3406 = vmatprep.subr.mxu0 0.0
    %3407 = vmatpush1.msra.mxu0 0.0
    %3408 = vmatprep.subr.mxu0 0.0
    %3409 = vmatpush1.msra.mxu0 0.0
    %3410 = vmatprep.subr.mxu0 0.0
    %3411 = vmatpush1.msra.mxu0 0.0
    %3412 = vmatprep.subr.mxu0 0.0
    %3413 = vmatpush1.msra.mxu0 0.0
    %3414 = vmatprep.subr.mxu0 0.0
    %3415 = vmatpush1.msra.mxu0 0.0
    %3416 = vmatprep.subr.mxu0 0.0
    %3417 = vmatpush1.msra.mxu0 0.0
    %3418 = vmatprep.subr.mxu0 0.0
    %3419 = vmatpush1.msra.mxu0 0.0
    %3420 = vmatprep.subr.mxu0 0.0
    %3421 = vmatpush1.msra.mxu0 0.0
    %3422 = vmatprep.subr.mxu0 0.0
    %3423 = vmatpush1.msra.mxu0 0.0
    %3424 = vmatprep.subr.mxu0 0.0
    %3425 = vmatpush1.msra.mxu0 0.0
    %3426 = vmatprep.subr.mxu0 0.0
    %3427 = vmatpush1.msra.mxu0 0.0
    %3428 = vmatprep.subr.mxu0 0.0
    %3429 = vmatpush1.msra.mxu0 0.0
    %3430 = vmatprep.subr.mxu0 0.0
    %3431 = vmatpush1.msra.mxu0 0.0
    %3432 = vmatprep.subr.mxu0 0.0
    %3433 = vmatpush1.msra.mxu0 0.0
    %3434 = vmatprep.subr.mxu0 0.0
    %3435 = vmatpush1.msra.mxu0 0.0
    %3436 = vmatprep.subr.mxu0 0.0
    %3437 = vmatpush1.msra.mxu0 0.0
    %3438 = vmatprep.subr.mxu0 0.0
    %3439 = vmatpush1.msra.mxu0 0.0
    %3440 = vmatprep.subr.mxu0 0.0
    %3441 = vmatpush1.msra.mxu0 0.0
    %3442 = vmatprep.subr.mxu0 0.0
    %3443 = vmatpush1.msra.mxu0 0.0
    %3444 = vmatprep.subr.mxu0 0.0
    %3445 = vmatpush1.msra.mxu0 0.0
    %3446 = vmatprep.subr.mxu0 0.0
    %3447 = vmatpush1.msra.mxu0 0.0
    %3448 = vmatprep.mubr.f32.mxu0 0.0
    %3449 = vmatmul.mubr.f32.gmra.mrb[0].mxu0 %v3361
    %v3450 = vpop.f32.mrb[0].mxu0
    %v3451 = vadd.f32 0.0, %v3450
    %v3452 = vpop.f32.mrb[0].mxu0
    %3453 = vmatprep.mubr.f32.mxu0 0.0
    %3454 = vmatmul.mubr.f32.gmra.mrb[0].mxu0 %v3364
    %v3455 = vpop.f32.mrb[0].mxu0
    %v3456 = vadd.f32 0.0, %v3455
    %v3457 = vpop.f32.mrb[0].mxu0
    %3458 = vmatprep.mubr.f32.mxu0 0.0
    %3459 = vmatmul.mubr.f32.gmra.mrb[0].mxu0 %v3367
    %v3460 = vpop.f32.mrb[0].mxu0
    %v3461 = vadd.f32 0.0, %v3460
    %v3462 = vpop.f32.mrb[0].mxu0
    %3463 = vmatprep.mubr.f32.mxu0 0.0
    %3464 = vmatmul.mubr.f32.gmra.mrb[0].mxu0 %v3370
    %v3465 = vpop.f32.mrb[0].mxu0
    %v3466 = vadd.f32 0.0, %v3465
    %v3467 = vpop.f32.mrb[0].mxu0
    %3468 = vmatprep.mubr.f32.mxu0 0.0
    %3469 = vmatmul.mubr.f32.gmra.mrb[0].mxu0 %v3373
    %v3470 = vpop.f32.mrb[0].mxu0
    %v3471 = vadd.f32 0.0, %v3470
    %v3472 = vpop.f32.mrb[0].mxu0
    %3473 = vmatprep.mubr.f32.mxu0 0.0
    %3474 = vmatmul.mubr.f32.gmra.mrb[0].mxu0 %v3376
    %v3475 = vpop.f32.mrb[0].mxu0
    %v3476 = vadd.f32 0.0, %v3475
    %v3477 = vpop.f32.mrb[0].mxu0
    %3478 = vmatprep.mubr.f32.mxu0 0.0
    %3479 = vmatmul.mubr.f32.gmra.mrb[0].mxu0 %v3379
    %v3480 = vpop.f32.mrb[0].mxu0
    %v3481 = vadd.f32 0.0, %v3480
    %v3482 = vpop.f32.mrb[0].mxu0
    %3483 = vmatprep.mubr.f32.mxu0 0.0
    %3484 = vmatmul.mubr.f32.gmra.mrb[0].mxu0 %v3382
    %v3485 = vpop.f32.mrb[0].mxu0
    %v3486 = vadd.f32 0.0, %v3485
    %v3487 = vpop.f32.mrb[0].mxu0
    %3488 = vdwg.mxu0
    %3491 = vrot.lane.b32.xlu0 %v2229, 32
    %v3492 = vpop.permute.xlu0 %3491
    %3493 = vrot.lane.b32.xlu0 %v2231, 32
    %v3494 = vpop.permute.xlu0 %3493
    %v3498 = vsel %vm671, %v2904, 0
    %v3501 = vsel %vm671, %v2909, 0
    %v3504 = vsel %vm671, %v2914, 0
    %v3507 = vsel %vm671, %v2919, 0
    %v3510 = vsel %vm671, %v2924, 0
    %v3513 = vsel %vm671, %v2929, 0
    %v3516 = vsel %vm671, %v2934, 0
    %v3519 = vsel %vm671, %v2939, 0
    %3521 = vmatprep.subr.mxu0 0.0
    %3522 = vmatpush1.msra.mxu0 %v3492
    %3523 = vmatprep.subr.mxu0 0.0
    %3524 = vmatpush1.msra.mxu0 %v3494
    %3525 = vmatprep.subr.mxu0 0.0
    %3526 = vmatpush1.msra.mxu0 0.0
    %3527 = vmatprep.subr.mxu0 0.0
    %3528 = vmatpush1.msra.mxu0 0.0
    %3529 = vmatprep.subr.mxu0 0.0
    %3530 = vmatpush1.msra.mxu0 0.0
    %3531 = vmatprep.subr.mxu0 0.0
    %3532 = vmatpush1.msra.mxu0 0.0
    %3533 = vmatprep.subr.mxu0 0.0
    %3534 = vmatpush1.msra.mxu0 0.0
    %3535 = vmatprep.subr.mxu0 0.0
    %3536 = vmatpush1.msra.mxu0 0.0
    %3537 = vmatprep.subr.mxu0 0.0
    %3538 = vmatpush1.msra.mxu0 0.0
    %3539 = vmatprep.subr.mxu0 0.0
    %3540 = vmatpush1.msra.mxu0 0.0
    %3541 = vmatprep.subr.mxu0 0.0
    %3542 = vmatpush1.msra.mxu0 0.0
    %3543 = vmatprep.subr.mxu0 0.0
    %3544 = vmatpush1.msra.mxu0 0.0
    %3545 = vmatprep.subr.mxu0 0.0
    %3546 = vmatpush1.msra.mxu0 0.0
    %3547 = vmatprep.subr.mxu0 0.0
    %3548 = vmatpush1.msra.mxu0 0.0
    %3549 = vmatprep.subr.mxu0 0.0
    %3550 = vmatpush1.msra.mxu0 0.0
    %3551 = vmatprep.subr.mxu0 0.0
    %3552 = vmatpush1.msra.mxu0 0.0
    %3553 = vmatprep.subr.mxu0 0.0
    %3554 = vmatpush1.msra.mxu0 0.0
    %3555 = vmatprep.subr.mxu0 0.0
    %3556 = vmatpush1.msra.mxu0 0.0
    %3557 = vmatprep.subr.mxu0 0.0
    %3558 = vmatpush1.msra.mxu0 0.0
    %3559 = vmatprep.subr.mxu0 0.0
    %3560 = vmatpush1.msra.mxu0 0.0
    %3561 = vmatprep.subr.mxu0 0.0
    %3562 = vmatpush1.msra.mxu0 0.0
    %3563 = vmatprep.subr.mxu0 0.0
    %3564 = vmatpush1.msra.mxu0 0.0
    %3565 = vmatprep.subr.mxu0 0.0
    %3566 = vmatpush1.msra.mxu0 0.0
    %3567 = vmatprep.subr.mxu0 0.0
    %3568 = vmatpush1.msra.mxu0 0.0
    %3569 = vmatprep.subr.mxu0 0.0
    %3570 = vmatpush1.msra.mxu0 0.0
    %3571 = vmatprep.subr.mxu0 0.0
    %3572 = vmatpush1.msra.mxu0 0.0
    %3573 = vmatprep.subr.mxu0 0.0
    %3574 = vmatpush1.msra.mxu0 0.0
    %3575 = vmatprep.subr.mxu0 0.0
    %3576 = vmatpush1.msra.mxu0 0.0
    %3577 = vmatprep.subr.mxu0 0.0
    %3578 = vmatpush1.msra.mxu0 0.0
    %3579 = vmatprep.subr.mxu0 0.0
    %3580 = vmatpush1.msra.mxu0 0.0
    %3581 = vmatprep.subr.mxu0 0.0
    %3582 = vmatpush1.msra.mxu0 0.0
    %3583 = vmatprep.subr.mxu0 0.0
    %3584 = vmatpush1.msra.mxu0 0.0
    %3585 = vmatprep.mubr.f32.mxu0 0.0
    %3586 = vmatmul.mubr.f32.gmra.mrb[0].mxu0 %v3498
    %v3587 = vpop.f32.mrb[0].mxu0
    %v3588 = vadd.f32 %v3451, %v3587
    %v3589 = vpop.f32.mrb[0].mxu0
    %3590 = vmatprep.mubr.f32.mxu0 0.0
    %3591 = vmatmul.mubr.f32.gmra.mrb[0].mxu0 %v3501
    %v3592 = vpop.f32.mrb[0].mxu0
    %v3593 = vadd.f32 %v3456, %v3592
    %v3594 = vpop.f32.mrb[0].mxu0
    %3595 = vmatprep.mubr.f32.mxu0 0.0
    %3596 = vmatmul.mubr.f32.gmra.mrb[0].mxu0 %v3504
    %v3597 = vpop.f32.mrb[0].mxu0
    %v3598 = vadd.f32 %v3461, %v3597
    %v3599 = vpop.f32.mrb[0].mxu0
    %3600 = vmatprep.mubr.f32.mxu0 0.0
    %3601 = vmatmul.mubr.f32.gmra.mrb[0].mxu0 %v3507
    %v3602 = vpop.f32.mrb[0].mxu0
    %v3603 = vadd.f32 %v3466, %v3602
    %v3604 = vpop.f32.mrb[0].mxu0
    %3605 = vmatprep.mubr.f32.mxu0 0.0
    %3606 = vmatmul.mubr.f32.gmra.mrb[0].mxu0 %v3510
    %v3607 = vpop.f32.mrb[0].mxu0
    %v3608 = vadd.f32 %v3471, %v3607
    %v3609 = vpop.f32.mrb[0].mxu0
    %3610 = vmatprep.mubr.f32.mxu0 0.0
    %3611 = vmatmul.mubr.f32.gmra.mrb[0].mxu0 %v3513
    %v3612 = vpop.f32.mrb[0].mxu0
    %v3613 = vadd.f32 %v3476, %v3612
    %v3614 = vpop.f32.mrb[0].mxu0
    %3615 = vmatprep.mubr.f32.mxu0 0.0
    %3616 = vmatmul.mubr.f32.gmra.mrb[0].mxu0 %v3516
    %v3617 = vpop.f32.mrb[0].mxu0
    %v3618 = vadd.f32 %v3481, %v3617
    %v3619 = vpop.f32.mrb[0].mxu0
    %3620 = vmatprep.mubr.f32.mxu0 0.0
    %3621 = vmatmul.mubr.f32.gmra.mrb[0].mxu0 %v3519
    %v3622 = vpop.f32.mrb[0].mxu0
    %v3623 = vadd.f32 %v3486, %v3622
    %v3624 = vpop.f32.mrb[0].mxu0
    %3625 = vdwg.mxu0
    %v3626 = vadd.f32 %v2220, %v3588
    %v3627 = vadd.f32 %v2221, %v3593
    %v3628 = vadd.f32 %v2222, %v3598
    %v3629 = vadd.f32 %v2223, %v3603
    %v3630 = vadd.f32 %v2224, %v3608
    %v3631 = vadd.f32 %v2225, %v3613
    %v3632 = vadd.f32 %v2226, %v3618
    %v3633 = vadd.f32 %v2227, %v3623
    %3634 = vrot.lane.b32.xlu0 %v2255, 96
    %v3635 = vpop.permute.xlu0 %3634
    %v3636 = vrot.slane %v3635, 1
    %v3637 = vlaneseq
    %v3638 = vshrl.u32 %v3637, 7
    %v3639 = vsub.s32 0, %v3638
    %v3640 = vrot.slane %v3636, %v3639
    %v3642 = vadd.f32 %v3626, %v3640
    %v3643 = vadd.f32 %v3627, %v3640
    %v3644 = vadd.f32 %v3628, %v3640
    %v3645 = vadd.f32 %v3629, %v3640
    %v3646 = vadd.f32 %v3630, %v3640
    %v3647 = vadd.f32 %v3631, %v3640
    %v3648 = vadd.f32 %v3632, %v3640
    %v3649 = vadd.f32 %v3633, %v3640
    %v3650 = vsel %vm369, %v3642, 0.0
    %3651 = vadd.xlane.f32.xlu0 %v3650
    %v3652 = vpop.xlane.xlu0 %3651
    %v3653 = vsel %vm369, %v3643, 0.0
    %3654 = vadd.xlane.f32.xlu0 %v3653
    %v3655 = vpop.xlane.xlu0 %3654
    %v3656 = vsel %vm369, %v3644, 0.0
    %3657 = vadd.xlane.f32.xlu0 %v3656
    %v3658 = vpop.xlane.xlu0 %3657
    %v3659 = vsel %vm369, %v3645, 0.0
    %3660 = vadd.xlane.f32.xlu0 %v3659
    %v3661 = vpop.xlane.xlu0 %3660
    %v3662 = vsel %vm369, %v3646, 0.0
    %3663 = vadd.xlane.f32.xlu0 %v3662
    %v3664 = vpop.xlane.xlu0 %3663
    %v3665 = vsel %vm369, %v3647, 0.0
    %3666 = vadd.xlane.f32.xlu0 %v3665
    %v3667 = vpop.xlane.xlu0 %3666
    %v3668 = vsel %vm369, %v3648, 0.0
    %3669 = vadd.xlane.f32.xlu0 %v3668
    %v3670 = vpop.xlane.xlu0 %3669
    %v3671 = vsel %vm369, %v3649, 0.0
    %3672 = vadd.xlane.f32.xlu0 %v3671
    %v3673 = vpop.xlane.xlu0 %3672
    %v3674 = vmul.f32 %v3652, %v394
    %v3675 = vmul.f32 %v3655, %v394
    %v3676 = vmul.f32 %v3658, %v394
    %v3677 = vmul.f32 %v3661, %v394
    %v3678 = vmul.f32 %v3664, %v394
    %v3679 = vmul.f32 %v3667, %v394
    %v3680 = vmul.f32 %v3670, %v394
    %v3681 = vmul.f32 %v3673, %v394
    %v3682 = vsub.f32 %v3642, %v3674
    %v3683 = vsub.f32 %v3643, %v3675
    %v3684 = vsub.f32 %v3644, %v3676
    %v3685 = vsub.f32 %v3645, %v3677
    %v3686 = vsub.f32 %v3646, %v3678
    %v3687 = vsub.f32 %v3647, %v3679
    %v3688 = vsub.f32 %v3648, %v3680
    %v3689 = vsub.f32 %v3649, %v3681
    %v3690 = vmul.f32 %v3682, %v3682
    %v3691 = vmul.f32 %v3683, %v3683
    %v3692 = vmul.f32 %v3684, %v3684
    %v3693 = vmul.f32 %v3685, %v3685
    %v3694 = vmul.f32 %v3686, %v3686
    %v3695 = vmul.f32 %v3687, %v3687
    %v3696 = vmul.f32 %v3688, %v3688
    %v3697 = vmul.f32 %v3689, %v3689
    %v3698 = vsel %vm369, %v3690, 0.0
    %3699 = vadd.xlane.f32.xlu0 %v3698
    %v3700 = vpop.xlane.xlu0 %3699
    %v3701 = vsel %vm369, %v3691, 0.0
    %3702 = vadd.xlane.f32.xlu0 %v3701
    %v3703 = vpop.xlane.xlu0 %3702
    %v3704 = vsel %vm369, %v3692, 0.0
    %3705 = vadd.xlane.f32.xlu0 %v3704
    %v3706 = vpop.xlane.xlu0 %3705
    %v3707 = vsel %vm369, %v3693, 0.0
    %3708 = vadd.xlane.f32.xlu0 %v3707
    %v3709 = vpop.xlane.xlu0 %3708
    %v3710 = vsel %vm369, %v3694, 0.0
    %3711 = vadd.xlane.f32.xlu0 %v3710
    %v3712 = vpop.xlane.xlu0 %3711
    %v3713 = vsel %vm369, %v3695, 0.0
    %3714 = vadd.xlane.f32.xlu0 %v3713
    %v3715 = vpop.xlane.xlu0 %3714
    %v3716 = vsel %vm369, %v3696, 0.0
    %3717 = vadd.xlane.f32.xlu0 %v3716
    %v3718 = vpop.xlane.xlu0 %3717
    %v3719 = vsel %vm369, %v3697, 0.0
    %3720 = vadd.xlane.f32.xlu0 %v3719
    %v3721 = vpop.xlane.xlu0 %3720
    %v3722 = vmul.f32 %v3700, %v394
    %v3723 = vmul.f32 %v3703, %v394
    %v3724 = vmul.f32 %v3706, %v394
    %v3725 = vmul.f32 %v3709, %v394
    %v3726 = vmul.f32 %v3712, %v394
    %v3727 = vmul.f32 %v3715, %v394
    %v3728 = vmul.f32 %v3718, %v394
    %v3729 = vmul.f32 %v3721, %v394
    %v3730 = vadd.f32 %v3722, 1e-05
    %v3731 = vadd.f32 %v3723, 1e-05
    %v3732 = vadd.f32 %v3724, 1e-05
    %v3733 = vadd.f32 %v3725, 1e-05
    %v3734 = vadd.f32 %v3726, 1e-05
    %v3735 = vadd.f32 %v3727, 1e-05
    %v3736 = vadd.f32 %v3728, 1e-05
    %v3737 = vadd.f32 %v3729, 1e-05
    %v3738 = vrsqrt.pop %v3730
    %v3739 = vrsqrt.pop %v3731
    %v3740 = vrsqrt.pop %v3732
    %v3741 = vrsqrt.pop %v3733
    %v3742 = vrsqrt.pop %v3734
    %v3743 = vrsqrt.pop %v3735
    %v3744 = vrsqrt.pop %v3736
    %v3745 = vrsqrt.pop %v3737
    %v3746 = vmul.f32 %v3682, %v3738
    %v3747 = vmul.f32 %v3683, %v3739
    %v3748 = vmul.f32 %v3684, %v3740
    %v3749 = vmul.f32 %v3685, %v3741
    %v3750 = vmul.f32 %v3686, %v3742
    %v3751 = vmul.f32 %v3687, %v3743
    %v3752 = vmul.f32 %v3688, %v3744
    %v3753 = vmul.f32 %v3689, %v3745
    %3754 = vrot.lane.b32.xlu0 %v2255, 64
    %v3755 = vpop.permute.xlu0 %3754
    %v3756 = vrot.slane %v3755, 1
    %v3757 = vlaneseq
    %v3758 = vshrl.u32 %v3757, 7
    %v3759 = vsub.s32 0, %v3758
    %v3760 = vrot.slane %v3756, %v3759
    %v3762 = vmul.f32 %v3746, %v3760
    %v3763 = vmul.f32 %v3747, %v3760
    %v3764 = vmul.f32 %v3748, %v3760
    %v3765 = vmul.f32 %v3749, %v3760
    %v3766 = vmul.f32 %v3750, %v3760
    %v3767 = vmul.f32 %v3751, %v3760
    %v3768 = vmul.f32 %v3752, %v3760
    %v3769 = vmul.f32 %v3753, %v3760
    %3770 = vrot.lane.b32.xlu0 %v2255, 32
    %v3771 = vpop.permute.xlu0 %3770
    %v3772 = vrot.slane %v3771, 1
    %v3773 = vlaneseq
    %v3774 = vshrl.u32 %v3773, 7
    %v3775 = vsub.s32 0, %v3774
    %v3776 = vrot.slane %v3772, %v3775
    %v3778 = vadd.f32 %v3762, %v3776
    %v3779 = vadd.f32 %v3763, %v3776
    %v3780 = vadd.f32 %v3764, %v3776
    %v3781 = vadd.f32 %v3765, %v3776
    %v3782 = vadd.f32 %v3766, %v3776
    %v3783 = vadd.f32 %v3767, %v3776
    %v3784 = vadd.f32 %v3768, %v3776
    %v3785 = vadd.f32 %v3769, %v3776
    %v3786 = vrot.slane %v2255, 2
    %v3787 = vlaneseq
    %v3788 = vshrl.u32 %v3787, 7
    %v3789 = vsub.s32 0, %v3788
    %v3790 = vrot.slane %v3786, %v3789
    %v3793 = vsel %vm369, %v3778, 0
    %v3796 = vsel %vm369, %v3779, 0
    %v3799 = vsel %vm369, %v3780, 0
    %v3802 = vsel %vm369, %v3781, 0
    %v3805 = vsel %vm369, %v3782, 0
    %v3808 = vsel %vm369, %v3783, 0
    %v3811 = vsel %vm369, %v3784, 0
    %v3814 = vsel %vm369, %v3785, 0
    %3816 = vmatprep.subr.mxu0 0.0
    %3817 = vmatpush1.msra.mxu0 %v2230
    %3818 = vmatprep.subr.mxu0 0.0
    %3819 = vmatpush1.msra.mxu0 %v2232
    %3820 = vmatprep.subr.mxu0 0.0
    %3821 = vmatpush1.msra.mxu0 %v2234
    %3822 = vmatprep.subr.mxu0 0.0
    %3823 = vmatpush1.msra.mxu0 %v2236
    %3824 = vmatprep.subr.mxu0 0.0
    %3825 = vmatpush1.msra.mxu0 0.0
    %3826 = vmatprep.subr.mxu0 0.0
    %3827 = vmatpush1.msra.mxu0 0.0
    %3828 = vmatprep.subr.mxu0 0.0
    %3829 = vmatpush1.msra.mxu0 0.0
    %3830 = vmatprep.subr.mxu0 0.0
    %3831 = vmatpush1.msra.mxu0 0.0
    %3832 = vmatprep.subr.mxu0 0.0
    %3833 = vmatpush1.msra.mxu0 0.0
    %3834 = vmatprep.subr.mxu0 0.0
    %3835 = vmatpush1.msra.mxu0 0.0
    %3836 = vmatprep.subr.mxu0 0.0
    %3837 = vmatpush1.msra.mxu0 0.0
    %3838 = vmatprep.subr.mxu0 0.0
    %3839 = vmatpush1.msra.mxu0 0.0
    %3840 = vmatprep.subr.mxu0 0.0
    %3841 = vmatpush1.msra.mxu0 0.0
    %3842 = vmatprep.subr.mxu0 0.0
    %3843 = vmatpush1.msra.mxu0 0.0
    %3844 = vmatprep.subr.mxu0 0.0
    %3845 = vmatpush1.msra.mxu0 0.0
    %3846 = vmatprep.subr.mxu0 0.0
    %3847 = vmatpush1.msra.mxu0 0.0
    %3848 = vmatprep.subr.mxu0 0.0
    %3849 = vmatpush1.msra.mxu0 0.0
    %3850 = vmatprep.subr.mxu0 0.0
    %3851 = vmatpush1.msra.mxu0 0.0
    %3852 = vmatprep.subr.mxu0 0.0
    %3853 = vmatpush1.msra.mxu0 0.0
    %3854 = vmatprep.subr.mxu0 0.0
    %3855 = vmatpush1.msra.mxu0 0.0
    %3856 = vmatprep.subr.mxu0 0.0
    %3857 = vmatpush1.msra.mxu0 0.0
    %3858 = vmatprep.subr.mxu0 0.0
    %3859 = vmatpush1.msra.mxu0 0.0
    %3860 = vmatprep.subr.mxu0 0.0
    %3861 = vmatpush1.msra.mxu0 0.0
    %3862 = vmatprep.subr.mxu0 0.0
    %3863 = vmatpush1.msra.mxu0 0.0
    %3864 = vmatprep.subr.mxu0 0.0
    %3865 = vmatpush1.msra.mxu0 0.0
    %3866 = vmatprep.subr.mxu0 0.0
    %3867 = vmatpush1.msra.mxu0 0.0
    %3868 = vmatprep.subr.mxu0 0.0
    %3869 = vmatpush1.msra.mxu0 0.0
    %3870 = vmatprep.subr.mxu0 0.0
    %3871 = vmatpush1.msra.mxu0 0.0
    %3872 = vmatprep.subr.mxu0 0.0
    %3873 = vmatpush1.msra.mxu0 0.0
    %3874 = vmatprep.subr.mxu0 0.0
    %3875 = vmatpush1.msra.mxu0 0.0
    %3876 = vmatprep.subr.mxu0 0.0
    %3877 = vmatpush1.msra.mxu0 0.0
    %3878 = vmatprep.subr.mxu0 0.0
    %3879 = vmatpush1.msra.mxu0 0.0
    %3880 = vmatprep.mubr.f32.mxu0 0.0
    %3881 = vmatmul.mubr.f32.gmra.mrb[0].mxu0 %v3793
    %v3882 = vpop.f32.mrb[0].mxu0
    %v3883 = vadd.f32 %v3790, %v3882
    %v3884 = vpop.f32.mrb[0].mxu0
    %3885 = vmatprep.mubr.f32.mxu0 0.0
    %3886 = vmatmul.mubr.f32.gmra.mrb[0].mxu0 %v3796
    %v3887 = vpop.f32.mrb[0].mxu0
    %v3888 = vadd.f32 %v3790, %v3887
    %v3889 = vpop.f32.mrb[0].mxu0
    %3890 = vmatprep.mubr.f32.mxu0 0.0
    %3891 = vmatmul.mubr.f32.gmra.mrb[0].mxu0 %v3799
    %v3892 = vpop.f32.mrb[0].mxu0
    %v3893 = vadd.f32 %v3790, %v3892
    %v3894 = vpop.f32.mrb[0].mxu0
    %3895 = vmatprep.mubr.f32.mxu0 0.0
    %3896 = vmatmul.mubr.f32.gmra.mrb[0].mxu0 %v3802
    %v3897 = vpop.f32.mrb[0].mxu0
    %v3898 = vadd.f32 %v3790, %v3897
    %v3899 = vpop.f32.mrb[0].mxu0
    %3900 = vmatprep.mubr.f32.mxu0 0.0
    %3901 = vmatmul.mubr.f32.gmra.mrb[0].mxu0 %v3805
    %v3902 = vpop.f32.mrb[0].mxu0
    %v3903 = vadd.f32 %v3790, %v3902
    %v3904 = vpop.f32.mrb[0].mxu0
    %3905 = vmatprep.mubr.f32.mxu0 0.0
    %3906 = vmatmul.mubr.f32.gmra.mrb[0].mxu0 %v3808
    %v3907 = vpop.f32.mrb[0].mxu0
    %v3908 = vadd.f32 %v3790, %v3907
    %v3909 = vpop.f32.mrb[0].mxu0
    %3910 = vmatprep.mubr.f32.mxu0 0.0
    %3911 = vmatmul.mubr.f32.gmra.mrb[0].mxu0 %v3811
    %v3912 = vpop.f32.mrb[0].mxu0
    %v3913 = vadd.f32 %v3790, %v3912
    %v3914 = vpop.f32.mrb[0].mxu0
    %3915 = vmatprep.mubr.f32.mxu0 0.0
    %3916 = vmatmul.mubr.f32.gmra.mrb[0].mxu0 %v3814
    %v3917 = vpop.f32.mrb[0].mxu0
    %v3918 = vadd.f32 %v3790, %v3917
    %v3919 = vpop.f32.mrb[0].mxu0
    %3920 = vdwg.mxu0
    %v3921 = vmul.f32 %v3883, 1.702
    %v3922 = vmul.f32 %v3888, 1.702
    %v3923 = vmul.f32 %v3893, 1.702
    %v3924 = vmul.f32 %v3898, 1.702
    %v3925 = vmul.f32 %v3903, 1.702
    %v3926 = vmul.f32 %v3908, 1.702
    %v3927 = vmul.f32 %v3913, 1.702
    %v3928 = vmul.f32 %v3918, 1.702
    %v3929 = vxor.u32 %v3921, 2147483648
    %v3930 = vxor.u32 %v3922, 2147483648
    %v3931 = vxor.u32 %v3923, 2147483648
    %v3932 = vxor.u32 %v3924, 2147483648
    %v3933 = vxor.u32 %v3925, 2147483648
    %v3934 = vxor.u32 %v3926, 2147483648
    %v3935 = vxor.u32 %v3927, 2147483648
    %v3936 = vxor.u32 %v3928, 2147483648
    %v3937 = vmul.f32 %v3929, 1.442695
    %v3938 = vpow.pop %v3937
    %v3939 = vmul.f32 %v3930, 1.442695
    %v3940 = vpow.pop %v3939
    %v3941 = vmul.f32 %v3931, 1.442695
    %v3942 = vpow.pop %v3941
    %v3943 = vmul.f32 %v3932, 1.442695
    %v3944 = vpow.pop %v3943
    %v3945 = vmul.f32 %v3933, 1.442695
    %v3946 = vpow.pop %v3945
    %v3947 = vmul.f32 %v3934, 1.442695
    %v3948 = vpow.pop %v3947
    %v3949 = vmul.f32 %v3935, 1.442695
    %v3950 = vpow.pop %v3949
    %v3951 = vmul.f32 %v3936, 1.442695
    %v3952 = vpow.pop %v3951
    %v3953 = vadd.f32 %v3938, 1.0
    %v3954 = vadd.f32 %v3940, 1.0
    %v3955 = vadd.f32 %v3942, 1.0
    %v3956 = vadd.f32 %v3944, 1.0
    %v3957 = vadd.f32 %v3946, 1.0
    %v3958 = vadd.f32 %v3948, 1.0
    %v3959 = vadd.f32 %v3950, 1.0
    %v3960 = vadd.f32 %v3952, 1.0
    %v3961 = vrcp.pop %v3953
    %v3962 = vmul.f32 1.0, %v3961
    %v3963 = vrcp.pop %v3954
    %v3964 = vmul.f32 1.0, %v3963
    %v3965 = vrcp.pop %v3955
    %v3966 = vmul.f32 1.0, %v3965
    %v3967 = vrcp.pop %v3956
    %v3968 = vmul.f32 1.0, %v3967
    %v3969 = vrcp.pop %v3957
    %v3970 = vmul.f32 1.0, %v3969
    %v3971 = vrcp.pop %v3958
    %v3972 = vmul.f32 1.0, %v3971
    %v3973 = vrcp.pop %v3959
    %v3974 = vmul.f32 1.0, %v3973
    %v3975 = vrcp.pop %v3960
    %v3976 = vmul.f32 1.0, %v3975
    %v3977 = vmul.f32 %v3883, %v3962
    %v3978 = vmul.f32 %v3888, %v3964
    %v3979 = vmul.f32 %v3893, %v3966
    %v3980 = vmul.f32 %v3898, %v3968
    %v3981 = vmul.f32 %v3903, %v3970
    %v3982 = vmul.f32 %v3908, %v3972
    %v3983 = vmul.f32 %v3913, %v3974
    %v3984 = vmul.f32 %v3918, %v3976
    %3985 = vmatprep.subr.mxu0 0.0
    %3986 = vmatpush1.msra.mxu0 %v2238
    %3987 = vmatprep.subr.mxu0 0.0
    %3988 = vmatpush1.msra.mxu0 %v2239
    %3989 = vmatprep.subr.mxu0 0.0
    %3990 = vmatpush1.msra.mxu0 %v2240
    %3991 = vmatprep.subr.mxu0 0.0
    %3992 = vmatpush1.msra.mxu0 %v2241
    %3993 = vmatprep.subr.mxu0 0.0
    %3994 = vmatpush1.msra.mxu0 %v2242
    %3995 = vmatprep.subr.mxu0 0.0
    %3996 = vmatpush1.msra.mxu0 %v2243
    %3997 = vmatprep.subr.mxu0 0.0
    %3998 = vmatpush1.msra.mxu0 %v2244
    %3999 = vmatprep.subr.mxu0 0.0
    %4000 = vmatpush1.msra.mxu0 %v2245
    %4001 = vmatprep.subr.mxu0 0.0
    %4002 = vmatpush1.msra.mxu0 %v2246
    %4003 = vmatprep.subr.mxu0 0.0
    %4004 = vmatpush1.msra.mxu0 %v2247
    %4005 = vmatprep.subr.mxu0 0.0
    %4006 = vmatpush1.msra.mxu0 %v2248
    %4007 = vmatprep.subr.mxu0 0.0
    %4008 = vmatpush1.msra.mxu0 %v2249
    %4009 = vmatprep.subr.mxu0 0.0
    %4010 = vmatpush1.msra.mxu0 %v2250
    %4011 = vmatprep.subr.mxu0 0.0
    %4012 = vmatpush1.msra.mxu0 %v2251
    %4013 = vmatprep.subr.mxu0 0.0
    %4014 = vmatpush1.msra.mxu0 %v2252
    %4015 = vmatprep.subr.mxu0 0.0
    %4016 = vmatpush1.msra.mxu0 %v2253
    %4017 = vmatprep.subr.mxu0 0.0
    %4018 = vmatpush1.msra.mxu0 0.0
    %4019 = vmatprep.subr.mxu0 0.0
    %4020 = vmatpush1.msra.mxu0 0.0
    %4021 = vmatprep.subr.mxu0 0.0
    %4022 = vmatpush1.msra.mxu0 0.0
    %4023 = vmatprep.subr.mxu0 0.0
    %4024 = vmatpush1.msra.mxu0 0.0
    %4025 = vmatprep.subr.mxu0 0.0
    %4026 = vmatpush1.msra.mxu0 0.0
    %4027 = vmatprep.subr.mxu0 0.0
    %4028 = vmatpush1.msra.mxu0 0.0
    %4029 = vmatprep.subr.mxu0 0.0
    %4030 = vmatpush1.msra.mxu0 0.0
    %4031 = vmatprep.subr.mxu0 0.0
    %4032 = vmatpush1.msra.mxu0 0.0
    %4033 = vmatprep.subr.mxu0 0.0
    %4034 = vmatpush1.msra.mxu0 0.0
    %4035 = vmatprep.subr.mxu0 0.0
    %4036 = vmatpush1.msra.mxu0 0.0
    %4037 = vmatprep.subr.mxu0 0.0
    %4038 = vmatpush1.msra.mxu0 0.0
    %4039 = vmatprep.subr.mxu0 0.0
    %4040 = vmatpush1.msra.mxu0 0.0
    %4041 = vmatprep.subr.mxu0 0.0
    %4042 = vmatpush1.msra.mxu0 0.0
    %4043 = vmatprep.subr.mxu0 0.0
    %4044 = vmatpush1.msra.mxu0 0.0
    %4045 = vmatprep.subr.mxu0 0.0
    %4046 = vmatpush1.msra.mxu0 0.0
    %4047 = vmatprep.subr.mxu0 0.0
    %4048 = vmatpush1.msra.mxu0 0.0
    %4049 = vmatprep.mubr.f32.mxu0 0.0
    %4050 = vmatmul.mubr.f32.gmra.mrb[0].mxu0 %v3977
    %v4051 = vpop.f32.mrb[0].mxu0
    %v4052 = vadd.f32 0.0, %v4051
    %v4053 = vpop.f32.mrb[0].mxu0
    %4054 = vmatprep.mubr.f32.mxu0 0.0
    %4055 = vmatmul.mubr.f32.gmra.mrb[0].mxu0 %v3978
    %v4056 = vpop.f32.mrb[0].mxu0
    %v4057 = vadd.f32 0.0, %v4056
    %v4058 = vpop.f32.mrb[0].mxu0
    %4059 = vmatprep.mubr.f32.mxu0 0.0
    %4060 = vmatmul.mubr.f32.gmra.mrb[0].mxu0 %v3979
    %v4061 = vpop.f32.mrb[0].mxu0
    %v4062 = vadd.f32 0.0, %v4061
    %v4063 = vpop.f32.mrb[0].mxu0
    %4064 = vmatprep.mubr.f32.mxu0 0.0
    %4065 = vmatmul.mubr.f32.gmra.mrb[0].mxu0 %v3980
    %v4066 = vpop.f32.mrb[0].mxu0
    %v4067 = vadd.f32 0.0, %v4066
    %v4068 = vpop.f32.mrb[0].mxu0
    %4069 = vmatprep.mubr.f32.mxu0 0.0
    %4070 = vmatmul.mubr.f32.gmra.mrb[0].mxu0 %v3981
    %v4071 = vpop.f32.mrb[0].mxu0
    %v4072 = vadd.f32 0.0, %v4071
    %v4073 = vpop.f32.mrb[0].mxu0
    %4074 = vmatprep.mubr.f32.mxu0 0.0
    %4075 = vmatmul.mubr.f32.gmra.mrb[0].mxu0 %v3982
    %v4076 = vpop.f32.mrb[0].mxu0
    %v4077 = vadd.f32 0.0, %v4076
    %v4078 = vpop.f32.mrb[0].mxu0
    %4079 = vmatprep.mubr.f32.mxu0 0.0
    %4080 = vmatmul.mubr.f32.gmra.mrb[0].mxu0 %v3983
    %v4081 = vpop.f32.mrb[0].mxu0
    %v4082 = vadd.f32 0.0, %v4081
    %v4083 = vpop.f32.mrb[0].mxu0
    %4084 = vmatprep.mubr.f32.mxu0 0.0
    %4085 = vmatmul.mubr.f32.gmra.mrb[0].mxu0 %v3984
    %v4086 = vpop.f32.mrb[0].mxu0
    %v4087 = vadd.f32 0.0, %v4086
    %v4088 = vpop.f32.mrb[0].mxu0
    %4089 = vdwg.mxu0
    %v4090 = vadd.f32 %v3642, %v4052
    %v4091 = vadd.f32 %v3643, %v4057
    %v4092 = vadd.f32 %v3644, %v4062
    %v4093 = vadd.f32 %v3645, %v4067
    %v4094 = vadd.f32 %v3646, %v4072
    %v4095 = vadd.f32 %v3647, %v4077
    %v4096 = vadd.f32 %v3648, %v4082
    %v4097 = vadd.f32 %v3649, %v4087
    %v4098 = vrot.slane %v2255, 3
    %v4099 = vlaneseq
    %v4100 = vshrl.u32 %v4099, 7
    %v4101 = vsub.s32 0, %v4100
    %v4102 = vrot.slane %v4098, %v4101
    %v4104 = vadd.f32 %v4090, %v4102
    %v4105 = vadd.f32 %v4091, %v4102
    %v4106 = vadd.f32 %v4092, %v4102
    %v4107 = vadd.f32 %v4093, %v4102
    %v4108 = vadd.f32 %v4094, %v4102
    %v4109 = vadd.f32 %v4095, %v4102
    %v4110 = vadd.f32 %v4096, %v4102
    %v4111 = vadd.f32 %v4097, %v4102
    %v4112 = vld [vmem:[%s7] sm:$0x3]
    %v4113 = vsel %vm369, %v4104, 0.0
    %4114 = vadd.xlane.f32.xlu0 %v4113
    %v4115 = vpop.xlane.xlu0 %4114
    %v4116 = vsel %vm369, %v4105, 0.0
    %4117 = vadd.xlane.f32.xlu0 %v4116
    %v4118 = vpop.xlane.xlu0 %4117
    %v4119 = vsel %vm369, %v4106, 0.0
    %4120 = vadd.xlane.f32.xlu0 %v4119
    %v4121 = vpop.xlane.xlu0 %4120
    %v4122 = vsel %vm369, %v4107, 0.0
    %4123 = vadd.xlane.f32.xlu0 %v4122
    %v4124 = vpop.xlane.xlu0 %4123
    %v4125 = vsel %vm369, %v4108, 0.0
    %4126 = vadd.xlane.f32.xlu0 %v4125
    %v4127 = vpop.xlane.xlu0 %4126
    %v4128 = vsel %vm369, %v4109, 0.0
    %4129 = vadd.xlane.f32.xlu0 %v4128
    %v4130 = vpop.xlane.xlu0 %4129
    %v4131 = vsel %vm369, %v4110, 0.0
    %4132 = vadd.xlane.f32.xlu0 %v4131
    %v4133 = vpop.xlane.xlu0 %4132
    %v4134 = vsel %vm369, %v4111, 0.0
    %4135 = vadd.xlane.f32.xlu0 %v4134
    %v4136 = vpop.xlane.xlu0 %4135
    %v4137 = vmul.f32 %v4115, %v394
    %v4138 = vmul.f32 %v4118, %v394
    %v4139 = vmul.f32 %v4121, %v394
    %v4140 = vmul.f32 %v4124, %v394
    %v4141 = vmul.f32 %v4127, %v394
    %v4142 = vmul.f32 %v4130, %v394
    %v4143 = vmul.f32 %v4133, %v394
    %v4144 = vmul.f32 %v4136, %v394
    %v4145 = vsub.f32 %v4104, %v4137
    %v4146 = vsub.f32 %v4105, %v4138
    %v4147 = vsub.f32 %v4106, %v4139
    %v4148 = vsub.f32 %v4107, %v4140
    %v4149 = vsub.f32 %v4108, %v4141
    %v4150 = vsub.f32 %v4109, %v4142
    %v4151 = vsub.f32 %v4110, %v4143
    %v4152 = vsub.f32 %v4111, %v4144
    %v4153 = vmul.f32 %v4145, %v4145
    %v4154 = vmul.f32 %v4146, %v4146
    %v4155 = vmul.f32 %v4147, %v4147
    %v4156 = vmul.f32 %v4148, %v4148
    %v4157 = vmul.f32 %v4149, %v4149
    %v4158 = vmul.f32 %v4150, %v4150
    %v4159 = vmul.f32 %v4151, %v4151
    %v4160 = vmul.f32 %v4152, %v4152
    %v4161 = vsel %vm369, %v4153, 0.0
    %4162 = vadd.xlane.f32.xlu0 %v4161
    %v4163 = vpop.xlane.xlu0 %4162
    %v4164 = vsel %vm369, %v4154, 0.0
    %4165 = vadd.xlane.f32.xlu0 %v4164
    %v4166 = vpop.xlane.xlu0 %4165
    %v4167 = vsel %vm369, %v4155, 0.0
    %4168 = vadd.xlane.f32.xlu0 %v4167
    %v4169 = vpop.xlane.xlu0 %4168
    %v4170 = vsel %vm369, %v4156, 0.0
    %4171 = vadd.xlane.f32.xlu0 %v4170
    %v4172 = vpop.xlane.xlu0 %4171
    %v4173 = vsel %vm369, %v4157, 0.0
    %4174 = vadd.xlane.f32.xlu0 %v4173
    %v4175 = vpop.xlane.xlu0 %4174
    %v4176 = vsel %vm369, %v4158, 0.0
    %4177 = vadd.xlane.f32.xlu0 %v4176
    %v4178 = vpop.xlane.xlu0 %4177
    %v4179 = vsel %vm369, %v4159, 0.0
    %4180 = vadd.xlane.f32.xlu0 %v4179
    %v4181 = vpop.xlane.xlu0 %4180
    %v4182 = vsel %vm369, %v4160, 0.0
    %4183 = vadd.xlane.f32.xlu0 %v4182
    %v4184 = vpop.xlane.xlu0 %4183
    %v4185 = vmul.f32 %v4163, %v394
    %v4186 = vmul.f32 %v4166, %v394
    %v4187 = vmul.f32 %v4169, %v394
    %v4188 = vmul.f32 %v4172, %v394
    %v4189 = vmul.f32 %v4175, %v394
    %v4190 = vmul.f32 %v4178, %v394
    %v4191 = vmul.f32 %v4181, %v394
    %v4192 = vmul.f32 %v4184, %v394
    %v4193 = vadd.f32 %v4185, 1e-05
    %v4194 = vadd.f32 %v4186, 1e-05
    %v4195 = vadd.f32 %v4187, 1e-05
    %v4196 = vadd.f32 %v4188, 1e-05
    %v4197 = vadd.f32 %v4189, 1e-05
    %v4198 = vadd.f32 %v4190, 1e-05
    %v4199 = vadd.f32 %v4191, 1e-05
    %v4200 = vadd.f32 %v4192, 1e-05
    %v4201 = vrsqrt.pop %v4193
    %v4202 = vrsqrt.pop %v4194
    %v4203 = vrsqrt.pop %v4195
    %v4204 = vrsqrt.pop %v4196
    %v4205 = vrsqrt.pop %v4197
    %v4206 = vrsqrt.pop %v4198
    %v4207 = vrsqrt.pop %v4199
    %v4208 = vrsqrt.pop %v4200
    %v4209 = vmul.f32 %v4145, %v4201
    %v4210 = vmul.f32 %v4146, %v4202
    %v4211 = vmul.f32 %v4147, %v4203
    %v4212 = vmul.f32 %v4148, %v4204
    %v4213 = vmul.f32 %v4149, %v4205
    %v4214 = vmul.f32 %v4150, %v4206
    %v4215 = vmul.f32 %v4151, %v4207
    %v4216 = vmul.f32 %v4152, %v4208
    %v4218 = vlaneseq
    %v4219 = vshrl.u32 %v4218, 7
    %v4220 = vsub.s32 0, %v4219
    %v4221 = vrot.slane %v4112, %v4220
    %v4223 = vmul.f32 %v4209, %v4221
    %v4224 = vmul.f32 %v4210, %v4221
    %v4225 = vmul.f32 %v4211, %v4221
    %v4226 = vmul.f32 %v4212, %v4221
    %v4227 = vmul.f32 %v4213, %v4221
    %v4228 = vmul.f32 %v4214, %v4221
    %v4229 = vmul.f32 %v4215, %v4221
    %v4230 = vmul.f32 %v4216, %v4221
    %4231 = vrot.lane.b32.xlu0 %v4221, 96
    %v4232 = vpop.permute.xlu0 %4231
    %v4234 = vadd.f32 %v4223, %v4232
    %v4235 = vadd.f32 %v4224, %v4232
    %v4236 = vadd.f32 %v4225, %v4232
    %v4237 = vadd.f32 %v4226, %v4232
    %v4238 = vadd.f32 %v4227, %v4232
    %v4239 = vadd.f32 %v4228, %v4232
    %v4240 = vadd.f32 %v4229, %v4232
    %v4241 = vadd.f32 %v4230, %v4232
    %v4242 = vmul.u32 %v277, 8
    %vm4243 = vcmp.eq.s32.totalorder %v80, %v4242
    %v4244 = vsel %vm4243, 1, 0
    %v4245 = vcvt.s32.f32 %v4244
    %v4247 = vsel %vm137, %v4245, 0
    %4249 = vmatprep.subr.mxu0 0.0
    %4250 = vmatpush1.msra.mxu0 %v4234
    %4251 = vmatprep.subr.mxu0 0.0
    %4252 = vmatpush1.msra.mxu0 %v4235
    %4253 = vmatprep.subr.mxu0 0.0
    %4254 = vmatpush1.msra.mxu0 %v4236
    %4255 = vmatprep.subr.mxu0 0.0
    %4256 = vmatpush1.msra.mxu0 %v4237
    %4257 = vmatprep.subr.mxu0 0.0
    %4258 = vmatpush1.msra.mxu0 %v4238
    %4259 = vmatprep.subr.mxu0 0.0
    %4260 = vmatpush1.msra.mxu0 %v4239
    %4261 = vmatprep.subr.mxu0 0.0
    %4262 = vmatpush1.msra.mxu0 %v4240
    %4263 = vmatprep.subr.mxu0 0.0
    %4264 = vmatpush1.msra.mxu0 %v4241
    %4265 = vmatprep.subr.mxu0 0.0
    %4266 = vmatpush1.msra.mxu0 0.0
    %4267 = vmatprep.subr.mxu0 0.0
    %4268 = vmatpush1.msra.mxu0 0.0
    %4269 = vmatprep.subr.mxu0 0.0
    %4270 = vmatpush1.msra.mxu0 0.0
    %4271 = vmatprep.subr.mxu0 0.0
    %4272 = vmatpush1.msra.mxu0 0.0
    %4273 = vmatprep.subr.mxu0 0.0
    %4274 = vmatpush1.msra.mxu0 0.0
    %4275 = vmatprep.subr.mxu0 0.0
    %4276 = vmatpush1.msra.mxu0 0.0
    %4277 = vmatprep.subr.mxu0 0.0
    %4278 = vmatpush1.msra.mxu0 0.0
    %4279 = vmatprep.subr.mxu0 0.0
    %4280 = vmatpush1.msra.mxu0 0.0
    %4281 = vmatprep.subr.mxu0 0.0
    %4282 = vmatpush1.msra.mxu0 0.0
    %4283 = vmatprep.subr.mxu0 0.0
    %4284 = vmatpush1.msra.mxu0 0.0
    %4285 = vmatprep.subr.mxu0 0.0
    %4286 = vmatpush1.msra.mxu0 0.0
    %4287 = vmatprep.subr.mxu0 0.0
    %4288 = vmatpush1.msra.mxu0 0.0
    %4289 = vmatprep.subr.mxu0 0.0
    %4290 = vmatpush1.msra.mxu0 0.0
    %4291 = vmatprep.subr.mxu0 0.0
    %4292 = vmatpush1.msra.mxu0 0.0
    %4293 = vmatprep.subr.mxu0 0.0
    %4294 = vmatpush1.msra.mxu0 0.0
    %4295 = vmatprep.subr.mxu0 0.0
    %4296 = vmatpush1.msra.mxu0 0.0
    %4297 = vmatprep.subr.mxu0 0.0
    %4298 = vmatpush1.msra.mxu0 0.0
    %4299 = vmatprep.subr.mxu0 0.0
    %4300 = vmatpush1.msra.mxu0 0.0
    %4301 = vmatprep.subr.mxu0 0.0
    %4302 = vmatpush1.msra.mxu0 0.0
    %4303 = vmatprep.subr.mxu0 0.0
    %4304 = vmatpush1.msra.mxu0 0.0
    %4305 = vmatprep.subr.mxu0 0.0
    %4306 = vmatpush1.msra.mxu0 0.0
    %4307 = vmatprep.subr.mxu0 0.0
    %4308 = vmatpush1.msra.mxu0 0.0
    %4309 = vmatprep.subr.mxu0 0.0
    %4310 = vmatpush1.msra.mxu0 0.0
    %4311 = vmatprep.subr.mxu0 0.0
    %4312 = vmatpush1.msra.mxu0 0.0
    %4313 = vmatprep.mubr.f32.mxu0 0.0
    %4314 = vmatmul.mubr.f32.gmra.mrb[0].mxu0 %v4247
    %v4315 = vpop.f32.mrb[0].mxu0
    %v4316 = vadd.f32 0.0, %v4315
    %v4317 = vpop.f32.mrb[0].mxu0
    %4318 = vdwg.mxu0
    %v4319 = vld [vmem:[%s8] sm:$0xff]
    %v4320 = vld [vmem:[%s8 + $0x8] sm:$0xff]
    %v4321 = vld [vmem:[%s8 + $0x10] sm:$0xff]
    %v4322 = vld [vmem:[%s8 + $0x18] sm:$0xff]
    %4323 = vrot.lane.b32.xlu0 %v4221, 64
    %v4324 = vpop.permute.xlu0 %4323
    %v4327 = vsel %vm369, %v4316, 0
    %4329 = vmatprep.subr.mxu0 0.0
    %4330 = vmatpush1.msra.mxu0 %v4319
    %4331 = vmatprep.subr.mxu0 0.0
    %4332 = vmatpush1.msra.mxu0 %v4320
    %4333 = vmatprep.subr.mxu0 0.0
    %4334 = vmatpush1.msra.mxu0 %v4321
    %4335 = vmatprep.subr.mxu0 0.0
    %4336 = vmatpush1.msra.mxu0 %v4322
    %4337 = vmatprep.subr.mxu0 0.0
    %4338 = vmatpush1.msra.mxu0 0.0
    %4339 = vmatprep.subr.mxu0 0.0
    %4340 = vmatpush1.msra.mxu0 0.0
    %4341 = vmatprep.subr.mxu0 0.0
    %4342 = vmatpush1.msra.mxu0 0.0
    %4343 = vmatprep.subr.mxu0 0.0
    %4344 = vmatpush1.msra.mxu0 0.0
    %4345 = vmatprep.subr.mxu0 0.0
    %4346 = vmatpush1.msra.mxu0 0.0
    %4347 = vmatprep.subr.mxu0 0.0
    %4348 = vmatpush1.msra.mxu0 0.0
    %4349 = vmatprep.subr.mxu0 0.0
    %4350 = vmatpush1.msra.mxu0 0.0
    %4351 = vmatprep.subr.mxu0 0.0
    %4352 = vmatpush1.msra.mxu0 0.0
    %4353 = vmatprep.subr.mxu0 0.0
    %4354 = vmatpush1.msra.mxu0 0.0
    %4355 = vmatprep.subr.mxu0 0.0
    %4356 = vmatpush1.msra.mxu0 0.0
    %4357 = vmatprep.subr.mxu0 0.0
    %4358 = vmatpush1.msra.mxu0 0.0
    %4359 = vmatprep.subr.mxu0 0.0
    %4360 = vmatpush1.msra.mxu0 0.0
    %4361 = vmatprep.subr.mxu0 0.0
    %4362 = vmatpush1.msra.mxu0 0.0
    %4363 = vmatprep.subr.mxu0 0.0
    %4364 = vmatpush1.msra.mxu0 0.0
    %4365 = vmatprep.subr.mxu0 0.0
    %4366 = vmatpush1.msra.mxu0 0.0
    %4367 = vmatprep.subr.mxu0 0.0
    %4368 = vmatpush1.msra.mxu0 0.0
    %4369 = vmatprep.subr.mxu0 0.0
    %4370 = vmatpush1.msra.mxu0 0.0
    %4371 = vmatprep.subr.mxu0 0.0
    %4372 = vmatpush1.msra.mxu0 0.0
    %4373 = vmatprep.subr.mxu0 0.0
    %4374 = vmatpush1.msra.mxu0 0.0
    %4375 = vmatprep.subr.mxu0 0.0
    %4376 = vmatpush1.msra.mxu0 0.0
    %4377 = vmatprep.subr.mxu0 0.0
    %4378 = vmatpush1.msra.mxu0 0.0
    %4379 = vmatprep.subr.mxu0 0.0
    %4380 = vmatpush1.msra.mxu0 0.0
    %4381 = vmatprep.subr.mxu0 0.0
    %4382 = vmatpush1.msra.mxu0 0.0
    %4383 = vmatprep.subr.mxu0 0.0
    %4384 = vmatpush1.msra.mxu0 0.0
    %4385 = vmatprep.subr.mxu0 0.0
    %4386 = vmatpush1.msra.mxu0 0.0
    %4387 = vmatprep.subr.mxu0 0.0
    %4388 = vmatpush1.msra.mxu0 0.0
    %4389 = vmatprep.subr.mxu0 0.0
    %4390 = vmatpush1.msra.mxu0 0.0
    %4391 = vmatprep.subr.mxu0 0.0
    %4392 = vmatpush1.msra.mxu0 0.0
    %4393 = vmatprep.mubr.f32.mxu0 0.0
    %4394 = vmatmul.mubr.f32.gmra.mrb[0].mxu0 %v4327
    %v4395 = vpop.f32.mrb[0].mxu0
    %v4396 = vadd.f32 %v4324, %v4395
    %v4397 = vpop.f32.mrb[0].mxu0
    %4398 = vdwg.mxu0
    %vm4399 = vcmp.ge.f32.partialorder %v4396, 0.0
    %v4400 = vmul.f32 %v4396, 0.01
    %v4401 = vsel %vm4399, %v4396, %v4400
    %v4402 = vld [vmem:[%s9] sm:$0xff]
    %v4403 = vld [vmem:[%s9 + $0x8] sm:$0xff]
    %v4404 = vld [vmem:[%s9 + $0x10] sm:$0xff]
    %v4405 = vld [vmem:[%s9 + $0x18] sm:$0xff]
    %v4406 = vld [vmem:[%s9 + $0x20] sm:$0xff]
    %v4407 = vld [vmem:[%s9 + $0x28] sm:$0xff]
    %v4408 = vld [vmem:[%s9 + $0x30] sm:$0xff]
    %v4409 = vld [vmem:[%s9 + $0x38] sm:$0xff]
    %v4410 = vrot.slane %v4112, 1
    %v4411 = vlaneseq
    %v4412 = vshrl.u32 %v4411, 7
    %v4413 = vsub.s32 0, %v4412
    %v4414 = vrot.slane %v4410, %v4413
    %v4417 = vsel %vm137, %v4401, 0
    %4419 = vmatprep.subr.mxu0 0.0
    %4420 = vmatpush1.msra.mxu0 %v4402
    %4421 = vmatprep.subr.mxu0 0.0
    %4422 = vmatpush1.msra.mxu0 %v4403
    %4423 = vmatprep.subr.mxu0 0.0
    %4424 = vmatpush1.msra.mxu0 %v4404
    %4425 = vmatprep.subr.mxu0 0.0
    %4426 = vmatpush1.msra.mxu0 %v4405
    %4427 = vmatprep.subr.mxu0 0.0
    %4428 = vmatpush1.msra.mxu0 %v4406
    %4429 = vmatprep.subr.mxu0 0.0
    %4430 = vmatpush1.msra.mxu0 %v4407
    %4431 = vmatprep.subr.mxu0 0.0
    %4432 = vmatpush1.msra.mxu0 %v4408
    %4433 = vmatprep.subr.mxu0 0.0
    %4434 = vmatpush1.msra.mxu0 %v4409
    %4435 = vmatprep.subr.mxu0 0.0
    %4436 = vmatpush1.msra.mxu0 0.0
    %4437 = vmatprep.subr.mxu0 0.0
    %4438 = vmatpush1.msra.mxu0 0.0
    %4439 = vmatprep.subr.mxu0 0.0
    %4440 = vmatpush1.msra.mxu0 0.0
    %4441 = vmatprep.subr.mxu0 0.0
    %4442 = vmatpush1.msra.mxu0 0.0
    %4443 = vmatprep.subr.mxu0 0.0
    %4444 = vmatpush1.msra.mxu0 0.0
    %4445 = vmatprep.subr.mxu0 0.0
    %4446 = vmatpush1.msra.mxu0 0.0
    %4447 = vmatprep.subr.mxu0 0.0
    %4448 = vmatpush1.msra.mxu0 0.0
    %4449 = vmatprep.subr.mxu0 0.0
    %4450 = vmatpush1.msra.mxu0 0.0
    %4451 = vmatprep.subr.mxu0 0.0
    %4452 = vmatpush1.msra.mxu0 0.0
    %4453 = vmatprep.subr.mxu0 0.0
    %4454 = vmatpush1.msra.mxu0 0.0
    %4455 = vmatprep.subr.mxu0 0.0
    %4456 = vmatpush1.msra.mxu0 0.0
    %4457 = vmatprep.subr.mxu0 0.0
    %4458 = vmatpush1.msra.mxu0 0.0
    %4459 = vmatprep.subr.mxu0 0.0
    %4460 = vmatpush1.msra.mxu0 0.0
    %4461 = vmatprep.subr.mxu0 0.0
    %4462 = vmatpush1.msra.mxu0 0.0
    %4463 = vmatprep.subr.mxu0 0.0
    %4464 = vmatpush1.msra.mxu0 0.0
    %4465 = vmatprep.subr.mxu0 0.0
    %4466 = vmatpush1.msra.mxu0 0.0
    %4467 = vmatprep.subr.mxu0 0.0
    %4468 = vmatpush1.msra.mxu0 0.0
    %4469 = vmatprep.subr.mxu0 0.0
    %4470 = vmatpush1.msra.mxu0 0.0
    %4471 = vmatprep.subr.mxu0 0.0
    %4472 = vmatpush1.msra.mxu0 0.0
    %4473 = vmatprep.subr.mxu0 0.0
    %4474 = vmatpush1.msra.mxu0 0.0
    %4475 = vmatprep.subr.mxu0 0.0
    %4476 = vmatpush1.msra.mxu0 0.0
    %4477 = vmatprep.subr.mxu0 0.0
    %4478 = vmatpush1.msra.mxu0 0.0
    %4479 = vmatprep.subr.mxu0 0.0
    %4480 = vmatpush1.msra.mxu0 0.0
    %4481 = vmatprep.subr.mxu0 0.0
    %4482 = vmatpush1.msra.mxu0 0.0
    %4483 = vmatprep.mubr.f32.mxu0 0.0
    %4484 = vmatmul.mubr.f32.gmra.mrb[0].mxu0 %v4417
    %v4485 = vpop.f32.mrb[0].mxu0
    %v4486 = vadd.f32 %v4414, %v4485
    %v4487 = vpop.f32.mrb[0].mxu0
    %4488 = vdwg.mxu0
    %v4489 = vld [vmem:[%s11] sm:$0xff]
    %v4490 = vld [vmem:[%s11 + $0x8] sm:$0x7]
    %v4491 = vld [vmem:[%s1] sm:$0xff]
    %v4492 = vld [vmem:[%s1 + $0x8] sm:$0xff]
    %v4493 = vld [vmem:[%s1 + $0x10] sm:$0xff]
    %v4494 = vld [vmem:[%s1 + $0x18] sm:$0xff]
    %v4495 = vld [vmem:[%s10] sm:$0xff]
    %v4496 = vld [vmem:[%s10 + $0x8] sm:$0xff]
    %v4497 = vld [vmem:[%s10 + $0x10] sm:$0xff]
    %v4498 = vld [vmem:[%s10 + $0x18] sm:$0xff]
    %v4499 = vld [vmem:[%s10 + $0x20] sm:$0xff]
    %v4500 = vld [vmem:[%s10 + $0x28] sm:$0xff]
    %v4501 = vld [vmem:[%s10 + $0x30] sm:$0xff]
    %v4502 = vld [vmem:[%s10 + $0x38] sm:$0xff]
    %v4503 = vld [vmem:[%s10 + $0x40] sm:$0xff]
    %v4504 = vld [vmem:[%s10 + $0x48] sm:$0xff]
    %v4505 = vld [vmem:[%s10 + $0x50] sm:$0xff]
    %v4506 = vld [vmem:[%s10 + $0x58] sm:$0xff]
    %v4507 = vld [vmem:[%s10 + $0x60] sm:$0xff]
    %v4508 = vld [vmem:[%s10 + $0x68] sm:$0xff]
    %v4509 = vld [vmem:[%s10 + $0x70] sm:$0xff]
    %v4510 = vld [vmem:[%s10 + $0x78] sm:$0xff]
    %v4511 = vld [vmem:[%s10 + $0x80] sm:$0xff]
    %v4512 = vld [vmem:[%s10 + $0x88] sm:$0xff]
    %v4513 = vld [vmem:[%s10 + $0x90] sm:$0xff]
    %v4514 = vld [vmem:[%s10 + $0x98] sm:$0xff]
    %v4515 = vld [vmem:[%s10 + $0xa0] sm:$0xff]
    %v4516 = vld [vmem:[%s10 + $0xa8] sm:$0xff]
    %v4517 = vld [vmem:[%s10 + $0xb0] sm:$0xff]
    %v4518 = vld [vmem:[%s10 + $0xb8] sm:$0xff]
    %v4520 = vsel %vm137, %v4492, 0
    %v4523 = vsel %vm137, %v4494, 0
    %4525 = vmatprep.subr.mxu0 0.0
    %4526 = vmatpush1.msra.mxu0 %v4495
    %4527 = vmatprep.subr.mxu0 0.0
    %4528 = vmatpush1.msra.mxu0 %v4496
    %4529 = vmatprep.subr.mxu0 0.0
    %4530 = vmatpush1.msra.mxu0 %v4497
    %4531 = vmatprep.subr.mxu0 0.0
    %4532 = vmatpush1.msra.mxu0 %v4498
    %4533 = vmatprep.subr.mxu0 0.0
    %4534 = vmatpush1.msra.mxu0 %v4499
    %4535 = vmatprep.subr.mxu0 0.0
    %4536 = vmatpush1.msra.mxu0 %v4500
    %4537 = vmatprep.subr.mxu0 0.0
    %4538 = vmatpush1.msra.mxu0 %v4501
    %4539 = vmatprep.subr.mxu0 0.0
    %4540 = vmatpush1.msra.mxu0 %v4502
    %4541 = vmatprep.subr.mxu0 0.0
    %4542 = vmatpush1.msra.mxu0 %v4503
    %4543 = vmatprep.subr.mxu0 0.0
    %4544 = vmatpush1.msra.mxu0 %v4504
    %4545 = vmatprep.subr.mxu0 0.0
    %4546 = vmatpush1.msra.mxu0 %v4505
    %4547 = vmatprep.subr.mxu0 0.0
    %4548 = vmatpush1.msra.mxu0 %v4506
    %4549 = vmatprep.subr.mxu0 0.0
    %4550 = vmatpush1.msra.mxu0 %v4507
    %4551 = vmatprep.subr.mxu0 0.0
    %4552 = vmatpush1.msra.mxu0 %v4508
    %4553 = vmatprep.subr.mxu0 0.0
    %4554 = vmatpush1.msra.mxu0 %v4509
    %4555 = vmatprep.subr.mxu0 0.0
    %4556 = vmatpush1.msra.mxu0 %v4510
    %4557 = vmatprep.subr.mxu0 0.0
    %4558 = vmatpush1.msra.mxu0 %v4511
    %4559 = vmatprep.subr.mxu0 0.0
    %4560 = vmatpush1.msra.mxu0 %v4512
    %4561 = vmatprep.subr.mxu0 0.0
    %4562 = vmatpush1.msra.mxu0 %v4513
    %4563 = vmatprep.subr.mxu0 0.0
    %4564 = vmatpush1.msra.mxu0 %v4514
    %4565 = vmatprep.subr.mxu0 0.0
    %4566 = vmatpush1.msra.mxu0 %v4515
    %4567 = vmatprep.subr.mxu0 0.0
    %4568 = vmatpush1.msra.mxu0 %v4516
    %4569 = vmatprep.subr.mxu0 0.0
    %4570 = vmatpush1.msra.mxu0 %v4517
    %4571 = vmatprep.subr.mxu0 0.0
    %4572 = vmatpush1.msra.mxu0 %v4518
    %4573 = vmatprep.subr.mxu0 0.0
    %4574 = vmatpush1.msra.mxu0 0.0
    %4575 = vmatprep.subr.mxu0 0.0
    %4576 = vmatpush1.msra.mxu0 0.0
    %4577 = vmatprep.subr.mxu0 0.0
    %4578 = vmatpush1.msra.mxu0 0.0
    %4579 = vmatprep.subr.mxu0 0.0
    %4580 = vmatpush1.msra.mxu0 0.0
    %4581 = vmatprep.subr.mxu0 0.0
    %4582 = vmatpush1.msra.mxu0 0.0
    %4583 = vmatprep.subr.mxu0 0.0
    %4584 = vmatpush1.msra.mxu0 0.0
    %4585 = vmatprep.subr.mxu0 0.0
    %4586 = vmatpush1.msra.mxu0 0.0
    %4587 = vmatprep.subr.mxu0 0.0
    %4588 = vmatpush1.msra.mxu0 0.0
    %4589 = vmatprep.mubr.f32.mxu0 %v4520
    %4590 = vmatmul.mubr.f32.gmra.mrb[0].mxu0 %v4491
    %v4591 = vpop.f32.mrb[0].mxu0
    %v4592 = vadd.f32 0.0, %v4591
    %v4593 = vpop.f32.mrb[0].mxu0
    %4594 = vmatprep.mubr.f32.mxu0 %v4523
    %4595 = vmatmul.mubr.f32.gmra.mrb[0].mxu0 %v4493
    %v4596 = vpop.f32.mrb[0].mxu0
    %v4597 = vadd.f32 0.0, %v4596
    %v4598 = vpop.f32.mrb[0].mxu0
    %4599 = vdwg.mxu0
    %vm4600 = vcmp.eq.s32.totalorder %v277, 0
    %v4601 = vlaneseq
    %v4602 = vshrl.u32 %v4601, 7
    %v4603 = vsub.s32 0, %v4602
    %v4604 = vrot.slane %v4489, %v4603
    %v4605 = vsel %vm4600, %v4604, 0.0
    %v4607 = vrot.slane %v4605, 7
    %v4609 = vadd.f32 %v4489, %v4607
    %v4610 = vadd.f32 %v4490, %v4607
    %vm4613 = vcmask 1046528
    %v4614 = vrot.slane %v4609, 1
    %v4615 = vrot.slane %v4610, 1
    %v4616 = vsel %vm4613, %v4614, %v4615
    %v4618 = vadd.f32 %v4592, %v4616
    %v4619 = vadd.f32 %v4597, %v4616
    %v4620 = vsel %vm369, %v4618, 0.0
    %4621 = vadd.xlane.f32.xlu0 %v4620
    %v4622 = vpop.xlane.xlu0 %4621
    %v4623 = vsel %vm369, %v4619, 0.0
    %4624 = vadd.xlane.f32.xlu0 %v4623
    %v4625 = vpop.xlane.xlu0 %4624
    %v4626 = vmul.f32 %v4622, %v394
    %v4627 = vmul.f32 %v4625, %v394
    %v4628 = vsub.f32 %v4618, %v4626
    %v4629 = vsub.f32 %v4619, %v4627
    %v4630 = vmul.f32 %v4628, %v4628
    %v4631 = vmul.f32 %v4629, %v4629
    %v4632 = vsel %vm369, %v4630, 0.0
    %4633 = vadd.xlane.f32.xlu0 %v4632
    %v4634 = vpop.xlane.xlu0 %4633
    %v4635 = vsel %vm369, %v4631, 0.0
    %4636 = vadd.xlane.f32.xlu0 %v4635
    %v4637 = vpop.xlane.xlu0 %4636
    %v4638 = vmul.f32 %v4634, %v394
    %v4639 = vmul.f32 %v4637, %v394
    %v4640 = vadd.f32 %v4638, 1e-05
    %v4641 = vadd.f32 %v4639, 1e-05
    %v4642 = vrsqrt.pop %v4640
    %v4643 = vrsqrt.pop %v4641
    %v4644 = vmul.f32 %v4628, %v4642
    %v4645 = vmul.f32 %v4629, %v4643
    %v4646 = vlaneseq
    %v4647 = vshrl.u32 %v4646, 7
    %v4648 = vsub.s32 1, %v4647
    %v4649 = vrot.slane %v4490, %v4648
    %v4650 = vmul.f32 %v4644, %v4649
    %v4651 = vmul.f32 %v4645, %v4649
    %v4652 = vlaneseq
    %v4653 = vshrl.u32 %v4652, 7
    %v4654 = vsub.s32 2, %v4653
    %v4655 = vrot.slane %v4490, %v4654
    %v4656 = vadd.f32 %v4650, %v4655
    %v4657 = vadd.f32 %v4651, %v4655
    %vm4658 = vcmp.lt.s32.totalorder %v302, 5
    %vm4659 = vmand %vm294, %vm4658
    %vm4660 = vmand %vm295, %vm4658
    %v4661 = vsel %vm4659, 0.0, -1e+09
    %v4662 = vsel %vm4660, 0.0, -1e+09
    %v4663 = vld [vmem:[%s12] sm:$0xff]
    %v4664 = vld [vmem:[%s12 + $0x8] sm:$0xff]
    %v4665 = vld [vmem:[%s12 + $0x10] sm:$0xff]
    %v4666 = vld [vmem:[%s12 + $0x18] sm:$0xff]
    %v4667 = vld [vmem:[%s12 + $0x20] sm:$0xff]
    %v4668 = vld [vmem:[%s12 + $0x28] sm:$0xff]
    %v4669 = vld [vmem:[%s12 + $0x30] sm:$0xff]
    %v4670 = vld [vmem:[%s12 + $0x38] sm:$0xff]
    %v4671 = vld [vmem:[%s13] sm:$0xff]
    %v4672 = vld [vmem:[%s13 + $0x8] sm:$0xff]
    %v4673 = vld [vmem:[%s13 + $0x10] sm:$0xff]
    %v4674 = vld [vmem:[%s13 + $0x18] sm:$0xff]
    %v4675 = vld [vmem:[%s13 + $0x20] sm:$0xff]
    %v4676 = vld [vmem:[%s13 + $0x28] sm:$0xff]
    %v4677 = vld [vmem:[%s13 + $0x30] sm:$0xff]
    %v4678 = vld [vmem:[%s13 + $0x38] sm:$0xff]
    %v4679 = vld [vmem:[%s13 + $0x40] sm:$0xff]
    %v4680 = vld [vmem:[%s13 + $0x48] sm:$0xff]
    %v4681 = vld [vmem:[%s13 + $0x50] sm:$0xff]
    %v4682 = vld [vmem:[%s13 + $0x58] sm:$0xff]
    %v4683 = vld [vmem:[%s13 + $0x60] sm:$0xff]
    %v4684 = vld [vmem:[%s13 + $0x68] sm:$0xff]
    %v4685 = vld [vmem:[%s13 + $0x70] sm:$0xff]
    %v4686 = vld [vmem:[%s13 + $0x78] sm:$0xff]
    %v4687 = vld [vmem:[%s14] ss:$2 sm:$0xf]
    %v4688 = vsel %vm369, %v4656, 0.0
    %4689 = vadd.xlane.f32.xlu0 %v4688
    %v4690 = vpop.xlane.xlu0 %4689
    %v4691 = vsel %vm369, %v4657, 0.0
    %4692 = vadd.xlane.f32.xlu0 %v4691
    %v4693 = vpop.xlane.xlu0 %4692
    %v4694 = vmul.f32 %v4690, %v394
    %v4695 = vmul.f32 %v4693, %v394
    %v4696 = vsub.f32 %v4656, %v4694
    %v4697 = vsub.f32 %v4657, %v4695
    %v4698 = vmul.f32 %v4696, %v4696
    %v4699 = vmul.f32 %v4697, %v4697
    %v4700 = vsel %vm369, %v4698, 0.0
    %4701 = vadd.xlane.f32.xlu0 %v4700
    %v4702 = vpop.xlane.xlu0 %4701
    %v4703 = vsel %vm369, %v4699, 0.0
    %4704 = vadd.xlane.f32.xlu0 %v4703
    %v4705 = vpop.xlane.xlu0 %4704
    %v4706 = vmul.f32 %v4702, %v394
    %v4707 = vmul.f32 %v4705, %v394
    %v4708 = vadd.f32 %v4706, 1e-05
    %v4709 = vadd.f32 %v4707, 1e-05
    %v4710 = vrsqrt.pop %v4708
    %v4711 = vrsqrt.pop %v4709
    %v4712 = vmul.f32 %v4696, %v4710
    %v4713 = vmul.f32 %v4697, %v4711
    %v4715 = vlaneseq
    %v4716 = vshrl.u32 %v4715, 7
    %v4717 = vsub.s32 0, %v4716
    %v4718 = vrot.slane %v4687, %v4717
    %v4720 = vmul.f32 %v4712, %v4718
    %v4721 = vmul.f32 %v4713, %v4718
    %4722 = vrot.lane.b32.xlu0 %v4718, 96
    %v4723 = vpop.permute.xlu0 %4722
    %v4725 = vadd.f32 %v4720, %v4723
    %v4726 = vadd.f32 %v4721, %v4723
    %v4727 = vlaneseq
    %v4728 = vshrl.u32 %v4727, 7
    %v4729 = vsub.s32 1, %v4728
    %v4730 = vrot.slane %v4687, %v4729
    %4731 = vrot.lane.b32.xlu0 %v4718, 64
    %v4732 = vpop.permute.xlu0 %4731
    %4733 = vrot.lane.b32.xlu0 %v4730, 64
    %v4734 = vpop.permute.xlu0 %4733
    %v4735 = vsel %vm137, %v4732, %v4734
    %v4738 = vsel %vm369, %v4725, 0
    %v4741 = vsel %vm369, %v4726, 0
    %4743 = vmatprep.subr.mxu0 0.0
    %4744 = vmatpush1.msra.mxu0 %v4663
    %4745 = vmatprep.subr.mxu0 0.0
    %4746 = vmatpush1.msra.mxu0 %v4665
    %4747 = vmatprep.subr.mxu0 0.0
    %4748 = vmatpush1.msra.mxu0 %v4667
    %4749 = vmatprep.subr.mxu0 0.0
    %4750 = vmatpush1.msra.mxu0 %v4669
    %4751 = vmatprep.subr.mxu0 0.0
    %4752 = vmatpush1.msra.mxu0 0.0
    %4753 = vmatprep.subr.mxu0 0.0
    %4754 = vmatpush1.msra.mxu0 0.0
    %4755 = vmatprep.subr.mxu0 0.0
    %4756 = vmatpush1.msra.mxu0 0.0
    %4757 = vmatprep.subr.mxu0 0.0
    %4758 = vmatpush1.msra.mxu0 0.0
    %4759 = vmatprep.subr.mxu0 0.0
    %4760 = vmatpush1.msra.mxu0 0.0
    %4761 = vmatprep.subr.mxu0 0.0
    %4762 = vmatpush1.msra.mxu0 0.0
    %4763 = vmatprep.subr.mxu0 0.0
    %4764 = vmatpush1.msra.mxu0 0.0
    %4765 = vmatprep.subr.mxu0 0.0
    %4766 = vmatpush1.msra.mxu0 0.0
    %4767 = vmatprep.subr.mxu0 0.0
    %4768 = vmatpush1.msra.mxu0 0.0
    %4769 = vmatprep.subr.mxu0 0.0
    %4770 = vmatpush1.msra.mxu0 0.0
    %4771 = vmatprep.subr.mxu0 0.0
    %4772 = vmatpush1.msra.mxu0 0.0
    %4773 = vmatprep.subr.mxu0 0.0
    %4774 = vmatpush1.msra.mxu0 0.0
    %4775 = vmatprep.subr.mxu0 0.0
    %4776 = vmatpush1.msra.mxu0 0.0
    %4777 = vmatprep.subr.mxu0 0.0
    %4778 = vmatpush1.msra.mxu0 0.0
    %4779 = vmatprep.subr.mxu0 0.0
    %4780 = vmatpush1.msra.mxu0 0.0
    %4781 = vmatprep.subr.mxu0 0.0
    %4782 = vmatpush1.msra.mxu0 0.0
    %4783 = vmatprep.subr.mxu0 0.0
    %4784 = vmatpush1.msra.mxu0 0.0
    %4785 = vmatprep.subr.mxu0 0.0
    %4786 = vmatpush1.msra.mxu0 0.0
    %4787 = vmatprep.subr.mxu0 0.0
    %4788 = vmatpush1.msra.mxu0 0.0
    %4789 = vmatprep.subr.mxu0 0.0
    %4790 = vmatpush1.msra.mxu0 0.0
    %4791 = vmatprep.subr.mxu0 0.0
    %4792 = vmatpush1.msra.mxu0 0.0
    %4793 = vmatprep.subr.mxu0 0.0
    %4794 = vmatpush1.msra.mxu0 0.0
    %4795 = vmatprep.subr.mxu0 0.0
    %4796 = vmatpush1.msra.mxu0 0.0
    %4797 = vmatprep.subr.mxu0 0.0
    %4798 = vmatpush1.msra.mxu0 0.0
    %4799 = vmatprep.subr.mxu0 0.0
    %4800 = vmatpush1.msra.mxu0 0.0
    %4801 = vmatprep.subr.mxu0 0.0
    %4802 = vmatpush1.msra.mxu0 0.0
    %4803 = vmatprep.subr.mxu0 0.0
    %4804 = vmatpush1.msra.mxu0 0.0
    %4805 = vmatprep.subr.mxu0 0.0
    %4806 = vmatpush1.msra.mxu0 0.0
    %4807 = vmatprep.mubr.f32.mxu0 0.0
    %4808 = vmatmul.mubr.f32.gmra.mrb[0].mxu0 %v4738
    %v4809 = vpop.f32.mrb[0].mxu0
    %v4810 = vadd.f32 %v4735, %v4809
    %v4811 = vpop.f32.mrb[0].mxu0
    %4812 = vmatprep.mubr.f32.mxu0 0.0
    %4813 = vmatmul.mubr.f32.gmra.mrb[0].mxu0 %v4741
    %v4814 = vpop.f32.mrb[0].mxu0
    %v4815 = vadd.f32 %v4735, %v4814
    %v4816 = vpop.f32.mrb[0].mxu0
    %4817 = vdwg.mxu0
    %v4818 = vmul.f32 %v4810, 0.25
    %v4819 = vmul.f32 %v4815, 0.25
    %4822 = vrot.lane.b32.xlu0 %v4810, 96
    %v4823 = vpop.permute.xlu0 %4822
    %4824 = vrot.lane.b32.xlu0 %v4815, 96
    %v4825 = vpop.permute.xlu0 %4824
    %v4827 = vsel %vm671, %v4818, 0
    %v4830 = vsel %vm671, %v4819, 0
    %v4832 = vsel %vm671, %v4823, 0
    %v4834 = vsel %vm671, %v4825, 0
    %4836 = vmatprep.subr.mxu0 0.0
    %4837 = vmatpush1.xpose.msra.mxu0 %v4832
    %4838 = vmatprep.subr.mxu0 0.0
    %4839 = vmatpush1.xpose.msra.mxu0 %v4834
    %4840 = vmatprep.subr.mxu0 0.0
    %4841 = vmatpush1.xpose.msra.mxu0 0.0
    %4842 = vmatprep.subr.mxu0 0.0
    %4843 = vmatpush1.xpose.msra.mxu0 0.0
    %4844 = vmatprep.subr.mxu0 0.0
    %4845 = vmatpush1.xpose.msra.mxu0 0.0
    %4846 = vmatprep.subr.mxu0 0.0
    %4847 = vmatpush1.xpose.msra.mxu0 0.0
    %4848 = vmatprep.subr.mxu0 0.0
    %4849 = vmatpush1.xpose.msra.mxu0 0.0
    %4850 = vmatprep.subr.mxu0 0.0
    %4851 = vmatpush1.xpose.msra.mxu0 0.0
    %4852 = vmatprep.subr.mxu0 0.0
    %4853 = vmatpush1.xpose.msra.mxu0 0.0
    %4854 = vmatprep.subr.mxu0 0.0
    %4855 = vmatpush1.xpose.msra.mxu0 0.0
    %4856 = vmatprep.subr.mxu0 0.0
    %4857 = vmatpush1.xpose.msra.mxu0 0.0
    %4858 = vmatprep.subr.mxu0 0.0
    %4859 = vmatpush1.xpose.msra.mxu0 0.0
    %4860 = vmatprep.subr.mxu0 0.0
    %4861 = vmatpush1.xpose.msra.mxu0 0.0
    %4862 = vmatprep.subr.mxu0 0.0
    %4863 = vmatpush1.xpose.msra.mxu0 0.0
    %4864 = vmatprep.subr.mxu0 0.0
    %4865 = vmatpush1.xpose.msra.mxu0 0.0
    %4866 = vmatprep.subr.mxu0 0.0
    %4867 = vmatpush1.xpose.msra.mxu0 0.0
    %4868 = vmatprep.subr.mxu0 0.0
    %4869 = vmatpush1.xpose.msra.mxu0 0.0
    %4870 = vmatprep.subr.mxu0 0.0
    %4871 = vmatpush1.xpose.msra.mxu0 0.0
    %4872 = vmatprep.subr.mxu0 0.0
    %4873 = vmatpush1.xpose.msra.mxu0 0.0
    %4874 = vmatprep.subr.mxu0 0.0
    %4875 = vmatpush1.xpose.msra.mxu0 0.0
    %4876 = vmatprep.subr.mxu0 0.0
    %4877 = vmatpush1.xpose.msra.mxu0 0.0
    %4878 = vmatprep.subr.mxu0 0.0
    %4879 = vmatpush1.xpose.msra.mxu0 0.0
    %4880 = vmatprep.subr.mxu0 0.0
    %4881 = vmatpush1.xpose.msra.mxu0 0.0
    %4882 = vmatprep.subr.mxu0 0.0
    %4883 = vmatpush1.xpose.msra.mxu0 0.0
    %4884 = vmatprep.subr.mxu0 0.0
    %4885 = vmatpush1.xpose.msra.mxu0 0.0
    %4886 = vmatprep.subr.mxu0 0.0
    %4887 = vmatpush1.xpose.msra.mxu0 0.0
    %4888 = vmatprep.subr.mxu0 0.0
    %4889 = vmatpush1.xpose.msra.mxu0 0.0
    %4890 = vmatprep.subr.mxu0 0.0
    %4891 = vmatpush1.xpose.msra.mxu0 0.0
    %4892 = vmatprep.subr.mxu0 0.0
    %4893 = vmatpush1.xpose.msra.mxu0 0.0
    %4894 = vmatprep.subr.mxu0 0.0
    %4895 = vmatpush1.xpose.msra.mxu0 0.0
    %4896 = vmatprep.subr.mxu0 0.0
    %4897 = vmatpush1.xpose.msra.mxu0 0.0
    %4898 = vmatprep.subr.mxu0 0.0
    %4899 = vmatpush1.xpose.msra.mxu0 0.0
    %4900 = vmatprep.mubr.f32.mxu0 0.0
    %4901 = vmatmul.mubr.f32.gmra.mrb[0].mxu0 %v4827
    %v4902 = vpop.f32.mrb[0].mxu0
    %v4903 = vadd.f32 %v4661, %v4902
    %v4904 = vpop.f32.mrb[0].mxu0
    %4905 = vmatprep.mubr.f32.mxu0 0.0
    %4906 = vmatmul.mubr.f32.gmra.mrb[0].mxu0 %v4830
    %v4907 = vpop.f32.mrb[0].mxu0
    %v4908 = vadd.f32 %v4662, %v4907
    %v4909 = vpop.f32.mrb[0].mxu0
    %4910 = vdwg.mxu0
    %v4911 = vsel %vm671, %v4903, -inf
    %4912 = vmax.xlane.f32.xlu0 %v4911
    %v4913 = vpop.xlane.xlu0 %4912
    %v4914 = vsel %vm671, %v4908, -inf
    %4915 = vmax.xlane.f32.xlu0 %v4914
    %v4916 = vpop.xlane.xlu0 %4915
    %v4917 = vsub.f32 %v4903, %v4913
    %v4918 = vsub.f32 %v4908, %v4916
    %v4919 = vmul.f32 %v4917, 1.442695
    %v4920 = vpow.pop %v4919
    %v4921 = vmul.f32 %v4918, 1.442695
    %v4922 = vpow.pop %v4921
    %v4923 = vsel %vm671, %v4920, 0.0
    %4924 = vadd.xlane.f32.xlu0 %v4923
    %v4925 = vpop.xlane.xlu0 %4924
    %v4926 = vsel %vm671, %v4922, 0.0
    %4927 = vadd.xlane.f32.xlu0 %v4926
    %v4928 = vpop.xlane.xlu0 %4927
    %v4929 = vrcp.pop %v4925
    %v4930 = vmul.f32 %v4920, %v4929
    %v4931 = vrcp.pop %v4928
    %v4932 = vmul.f32 %v4922, %v4931
    %4933 = vrot.lane.b32.xlu0 %v4810, 64
    %v4934 = vpop.permute.xlu0 %4933
    %4935 = vrot.lane.b32.xlu0 %v4815, 64
    %v4936 = vpop.permute.xlu0 %4935
    %v4940 = vsel %vm671, %v4930, 0
    %v4943 = vsel %vm671, %v4932, 0
    %4945 = vmatprep.subr.mxu0 0.0
    %4946 = vmatpush1.msra.mxu0 %v4934
    %4947 = vmatprep.subr.mxu0 0.0
    %4948 = vmatpush1.msra.mxu0 %v4936
    %4949 = vmatprep.subr.mxu0 0.0
    %4950 = vmatpush1.msra.mxu0 0.0
    %4951 = vmatprep.subr.mxu0 0.0
    %4952 = vmatpush1.msra.mxu0 0.0
    %4953 = vmatprep.subr.mxu0 0.0
    %4954 = vmatpush1.msra.mxu0 0.0
    %4955 = vmatprep.subr.mxu0 0.0
    %4956 = vmatpush1.msra.mxu0 0.0
    %4957 = vmatprep.subr.mxu0 0.0
    %4958 = vmatpush1.msra.mxu0 0.0
    %4959 = vmatprep.subr.mxu0 0.0
    %4960 = vmatpush1.msra.mxu0 0.0
    %4961 = vmatprep.subr.mxu0 0.0
    %4962 = vmatpush1.msra.mxu0 0.0
    %4963 = vmatprep.subr.mxu0 0.0
    %4964 = vmatpush1.msra.mxu0 0.0
    %4965 = vmatprep.subr.mxu0 0.0
    %4966 = vmatpush1.msra.mxu0 0.0
    %4967 = vmatprep.subr.mxu0 0.0
    %4968 = vmatpush1.msra.mxu0 0.0
    %4969 = vmatprep.subr.mxu0 0.0
    %4970 = vmatpush1.msra.mxu0 0.0
    %4971 = vmatprep.subr.mxu0 0.0
    %4972 = vmatpush1.msra.mxu0 0.0
    %4973 = vmatprep.subr.mxu0 0.0
    %4974 = vmatpush1.msra.mxu0 0.0
    %4975 = vmatprep.subr.mxu0 0.0
    %4976 = vmatpush1.msra.mxu0 0.0
    %4977 = vmatprep.subr.mxu0 0.0
    %4978 = vmatpush1.msra.mxu0 0.0
    %4979 = vmatprep.subr.mxu0 0.0
    %4980 = vmatpush1.msra.mxu0 0.0
    %4981 = vmatprep.subr.mxu0 0.0
    %4982 = vmatpush1.msra.mxu0 0.0
    %4983 = vmatprep.subr.mxu0 0.0
    %4984 = vmatpush1.msra.mxu0 0.0
    %4985 = vmatprep.subr.mxu0 0.0
    %4986 = vmatpush1.msra.mxu0 0.0
    %4987 = vmatprep.subr.mxu0 0.0
    %4988 = vmatpush1.msra.mxu0 0.0
    %4989 = vmatprep.subr.mxu0 0.0
    %4990 = vmatpush1.msra.mxu0 0.0
    %4991 = vmatprep.subr.mxu0 0.0
    %4992 = vmatpush1.msra.mxu0 0.0
    %4993 = vmatprep.subr.mxu0 0.0
    %4994 = vmatpush1.msra.mxu0 0.0
    %4995 = vmatprep.subr.mxu0 0.0
    %4996 = vmatpush1.msra.mxu0 0.0
    %4997 = vmatprep.subr.mxu0 0.0
    %4998 = vmatpush1.msra.mxu0 0.0
    %4999 = vmatprep.subr.mxu0 0.0
    %5000 = vmatpush1.msra.mxu0 0.0
    %5001 = vmatprep.subr.mxu0 0.0
    %5002 = vmatpush1.msra.mxu0 0.0
    %5003 = vmatprep.subr.mxu0 0.0
    %5004 = vmatpush1.msra.mxu0 0.0
    %5005 = vmatprep.subr.mxu0 0.0
    %5006 = vmatpush1.msra.mxu0 0.0
    %5007 = vmatprep.subr.mxu0 0.0
    %5008 = vmatpush1.msra.mxu0 0.0
    %5009 = vmatprep.mubr.f32.mxu0 0.0
    %5010 = vmatmul.mubr.f32.gmra.mrb[0].mxu0 %v4940
    %v5011 = vpop.f32.mrb[0].mxu0
    %v5012 = vadd.f32 0.0, %v5011
    %v5013 = vpop.f32.mrb[0].mxu0
    %5014 = vmatprep.mubr.f32.mxu0 0.0
    %5015 = vmatmul.mubr.f32.gmra.mrb[0].mxu0 %v4943
    %v5016 = vpop.f32.mrb[0].mxu0
    %v5017 = vadd.f32 0.0, %v5016
    %v5018 = vpop.f32.mrb[0].mxu0
    %5019 = vdwg.mxu0
    %5020 = vrot.lane.b32.xlu0 %v4818, 112
    %v5021 = vpop.permute.xlu0 %5020
    %5022 = vrot.lane.b32.xlu0 %v4819, 112
    %v5023 = vpop.permute.xlu0 %5022
    %5024 = vrot.lane.b32.xlu0 %v4810, 80
    %v5025 = vpop.permute.xlu0 %5024
    %5026 = vrot.lane.b32.xlu0 %v4815, 80
    %v5027 = vpop.permute.xlu0 %5026
    %v5028 = vsel %vm671, %v5021, 0
    %v5030 = vsel %vm671, %v5023, 0
    %v5032 = vsel %vm671, %v5025, 0
    %v5034 = vsel %vm671, %v5027, 0
    %5036 = vmatprep.subr.mxu0 0.0
    %5037 = vmatpush1.xpose.msra.mxu0 %v5032
    %5038 = vmatprep.subr.mxu0 0.0
    %5039 = vmatpush1.xpose.msra.mxu0 %v5034
    %5040 = vmatprep.subr.mxu0 0.0
    %5041 = vmatpush1.xpose.msra.mxu0 0.0
    %5042 = vmatprep.subr.mxu0 0.0
    %5043 = vmatpush1.xpose.msra.mxu0 0.0
    %5044 = vmatprep.subr.mxu0 0.0
    %5045 = vmatpush1.xpose.msra.mxu0 0.0
    %5046 = vmatprep.subr.mxu0 0.0
    %5047 = vmatpush1.xpose.msra.mxu0 0.0
    %5048 = vmatprep.subr.mxu0 0.0
    %5049 = vmatpush1.xpose.msra.mxu0 0.0
    %5050 = vmatprep.subr.mxu0 0.0
    %5051 = vmatpush1.xpose.msra.mxu0 0.0
    %5052 = vmatprep.subr.mxu0 0.0
    %5053 = vmatpush1.xpose.msra.mxu0 0.0
    %5054 = vmatprep.subr.mxu0 0.0
    %5055 = vmatpush1.xpose.msra.mxu0 0.0
    %5056 = vmatprep.subr.mxu0 0.0
    %5057 = vmatpush1.xpose.msra.mxu0 0.0
    %5058 = vmatprep.subr.mxu0 0.0
    %5059 = vmatpush1.xpose.msra.mxu0 0.0
    %5060 = vmatprep.subr.mxu0 0.0
    %5061 = vmatpush1.xpose.msra.mxu0 0.0
    %5062 = vmatprep.subr.mxu0 0.0
    %5063 = vmatpush1.xpose.msra.mxu0 0.0
    %5064 = vmatprep.subr.mxu0 0.0
    %5065 = vmatpush1.xpose.msra.mxu0 0.0
    %5066 = vmatprep.subr.mxu0 0.0
    %5067 = vmatpush1.xpose.msra.mxu0 0.0
    %5068 = vmatprep.subr.mxu0 0.0
    %5069 = vmatpush1.xpose.msra.mxu0 0.0
    %5070 = vmatprep.subr.mxu0 0.0
    %5071 = vmatpush1.xpose.msra.mxu0 0.0
    %5072 = vmatprep.subr.mxu0 0.0
    %5073 = vmatpush1.xpose.msra.mxu0 0.0
    %5074 = vmatprep.subr.mxu0 0.0
    %5075 = vmatpush1.xpose.msra.mxu0 0.0
    %5076 = vmatprep.subr.mxu0 0.0
    %5077 = vmatpush1.xpose.msra.mxu0 0.0
    %5078 = vmatprep.subr.mxu0 0.0
    %5079 = vmatpush1.xpose.msra.mxu0 0.0
    %5080 = vmatprep.subr.mxu0 0.0
    %5081 = vmatpush1.xpose.msra.mxu0 0.0
    %5082 = vmatprep.subr.mxu0 0.0
    %5083 = vmatpush1.xpose.msra.mxu0 0.0
    %5084 = vmatprep.subr.mxu0 0.0
    %5085 = vmatpush1.xpose.msra.mxu0 0.0
    %5086 = vmatprep.subr.mxu0 0.0
    %5087 = vmatpush1.xpose.msra.mxu0 0.0
    %5088 = vmatprep.subr.mxu0 0.0
    %5089 = vmatpush1.xpose.msra.mxu0 0.0
    %5090 = vmatprep.subr.mxu0 0.0
    %5091 = vmatpush1.xpose.msra.mxu0 0.0
    %5092 = vmatprep.subr.mxu0 0.0
    %5093 = vmatpush1.xpose.msra.mxu0 0.0
    %5094 = vmatprep.subr.mxu0 0.0
    %5095 = vmatpush1.xpose.msra.mxu0 0.0
    %5096 = vmatprep.subr.mxu0 0.0
    %5097 = vmatpush1.xpose.msra.mxu0 0.0
    %5098 = vmatprep.subr.mxu0 0.0
    %5099 = vmatpush1.xpose.msra.mxu0 0.0
    %5100 = vmatprep.mubr.f32.mxu0 0.0
    %5101 = vmatmul.mubr.f32.gmra.mrb[0].mxu0 %v5028
    %v5102 = vpop.f32.mrb[0].mxu0
    %v5103 = vadd.f32 %v4661, %v5102
    %v5104 = vpop.f32.mrb[0].mxu0
    %5105 = vmatprep.mubr.f32.mxu0 0.0
    %5106 = vmatmul.mubr.f32.gmra.mrb[0].mxu0 %v5030
    %v5107 = vpop.f32.mrb[0].mxu0
    %v5108 = vadd.f32 %v4662, %v5107
    %v5109 = vpop.f32.mrb[0].mxu0
    %5110 = vdwg.mxu0
    %v5111 = vsel %vm671, %v5103, -inf
    %5112 = vmax.xlane.f32.xlu0 %v5111
    %v5113 = vpop.xlane.xlu0 %5112
    %v5114 = vsel %vm671, %v5108, -inf
    %5115 = vmax.xlane.f32.xlu0 %v5114
    %v5116 = vpop.xlane.xlu0 %5115
    %v5117 = vsub.f32 %v5103, %v5113
    %v5118 = vsub.f32 %v5108, %v5116
    %v5119 = vmul.f32 %v5117, 1.442695
    %v5120 = vpow.pop %v5119
    %v5121 = vmul.f32 %v5118, 1.442695
    %v5122 = vpow.pop %v5121
    %v5123 = vsel %vm671, %v5120, 0.0
    %5124 = vadd.xlane.f32.xlu0 %v5123
    %v5125 = vpop.xlane.xlu0 %5124
    %v5126 = vsel %vm671, %v5122, 0.0
    %5127 = vadd.xlane.f32.xlu0 %v5126
    %v5128 = vpop.xlane.xlu0 %5127
    %v5129 = vrcp.pop %v5125
    %v5130 = vmul.f32 %v5120, %v5129
    %v5131 = vrcp.pop %v5128
    %v5132 = vmul.f32 %v5122, %v5131
    %5133 = vrot.lane.b32.xlu0 %v4810, 48
    %v5134 = vpop.permute.xlu0 %5133
    %5135 = vrot.lane.b32.xlu0 %v4815, 48
    %v5136 = vpop.permute.xlu0 %5135
    %v5140 = vsel %vm671, %v5130, 0
    %v5143 = vsel %vm671, %v5132, 0
    %5145 = vmatprep.subr.mxu0 0.0
    %5146 = vmatpush1.msra.mxu0 %v5134
    %5147 = vmatprep.subr.mxu0 0.0
    %5148 = vmatpush1.msra.mxu0 %v5136
    %5149 = vmatprep.subr.mxu0 0.0
    %5150 = vmatpush1.msra.mxu0 0.0
    %5151 = vmatprep.subr.mxu0 0.0
    %5152 = vmatpush1.msra.mxu0 0.0
    %5153 = vmatprep.subr.mxu0 0.0
    %5154 = vmatpush1.msra.mxu0 0.0
    %5155 = vmatprep.subr.mxu0 0.0
    %5156 = vmatpush1.msra.mxu0 0.0
    %5157 = vmatprep.subr.mxu0 0.0
    %5158 = vmatpush1.msra.mxu0 0.0
    %5159 = vmatprep.subr.mxu0 0.0
    %5160 = vmatpush1.msra.mxu0 0.0
    %5161 = vmatprep.subr.mxu0 0.0
    %5162 = vmatpush1.msra.mxu0 0.0
    %5163 = vmatprep.subr.mxu0 0.0
    %5164 = vmatpush1.msra.mxu0 0.0
    %5165 = vmatprep.subr.mxu0 0.0
    %5166 = vmatpush1.msra.mxu0 0.0
    %5167 = vmatprep.subr.mxu0 0.0
    %5168 = vmatpush1.msra.mxu0 0.0
    %5169 = vmatprep.subr.mxu0 0.0
    %5170 = vmatpush1.msra.mxu0 0.0
    %5171 = vmatprep.subr.mxu0 0.0
    %5172 = vmatpush1.msra.mxu0 0.0
    %5173 = vmatprep.subr.mxu0 0.0
    %5174 = vmatpush1.msra.mxu0 0.0
    %5175 = vmatprep.subr.mxu0 0.0
    %5176 = vmatpush1.msra.mxu0 0.0
    %5177 = vmatprep.subr.mxu0 0.0
    %5178 = vmatpush1.msra.mxu0 0.0
    %5179 = vmatprep.subr.mxu0 0.0
    %5180 = vmatpush1.msra.mxu0 0.0
    %5181 = vmatprep.subr.mxu0 0.0
    %5182 = vmatpush1.msra.mxu0 0.0
    %5183 = vmatprep.subr.mxu0 0.0
    %5184 = vmatpush1.msra.mxu0 0.0
    %5185 = vmatprep.subr.mxu0 0.0
    %5186 = vmatpush1.msra.mxu0 0.0
    %5187 = vmatprep.subr.mxu0 0.0
    %5188 = vmatpush1.msra.mxu0 0.0
    %5189 = vmatprep.subr.mxu0 0.0
    %5190 = vmatpush1.msra.mxu0 0.0
    %5191 = vmatprep.subr.mxu0 0.0
    %5192 = vmatpush1.msra.mxu0 0.0
    %5193 = vmatprep.subr.mxu0 0.0
    %5194 = vmatpush1.msra.mxu0 0.0
    %5195 = vmatprep.subr.mxu0 0.0
    %5196 = vmatpush1.msra.mxu0 0.0
    %5197 = vmatprep.subr.mxu0 0.0
    %5198 = vmatpush1.msra.mxu0 0.0
    %5199 = vmatprep.subr.mxu0 0.0
    %5200 = vmatpush1.msra.mxu0 0.0
    %5201 = vmatprep.subr.mxu0 0.0
    %5202 = vmatpush1.msra.mxu0 0.0
    %5203 = vmatprep.subr.mxu0 0.0
    %5204 = vmatpush1.msra.mxu0 0.0
    %5205 = vmatprep.subr.mxu0 0.0
    %5206 = vmatpush1.msra.mxu0 0.0
    %5207 = vmatprep.subr.mxu0 0.0
    %5208 = vmatpush1.msra.mxu0 0.0
    %5209 = vmatprep.mubr.f32.mxu0 0.0
    %5210 = vmatmul.mubr.f32.gmra.mrb[0].mxu0 %v5140
    %v5211 = vpop.f32.mrb[0].mxu0
    %v5212 = vadd.f32 0.0, %v5211
    %v5213 = vpop.f32.mrb[0].mxu0
    %5214 = vmatprep.mubr.f32.mxu0 0.0
    %5215 = vmatmul.mubr.f32.gmra.mrb[0].mxu0 %v5143
    %v5216 = vpop.f32.mrb[0].mxu0
    %v5217 = vadd.f32 0.0, %v5216
    %v5218 = vpop.f32.mrb[0].mxu0
    %5219 = vdwg.mxu0
    %5222 = vrot.lane.b32.xlu0 %v4667, 32
    %v5223 = vpop.permute.xlu0 %5222
    %5224 = vrot.lane.b32.xlu0 %v4669, 32
    %v5225 = vpop.permute.xlu0 %5224
    %v5229 = vsel %vm671, %v5212, 0
    %v5232 = vsel %vm671, %v5217, 0
    %5234 = vmatprep.subr.mxu0 0.0
    %5235 = vmatpush1.msra.mxu0 %v5223
    %5236 = vmatprep.subr.mxu0 0.0
    %5237 = vmatpush1.msra.mxu0 %v5225
    %5238 = vmatprep.subr.mxu0 0.0
    %5239 = vmatpush1.msra.mxu0 0.0
    %5240 = vmatprep.subr.mxu0 0.0
    %5241 = vmatpush1.msra.mxu0 0.0
    %5242 = vmatprep.subr.mxu0 0.0
    %5243 = vmatpush1.msra.mxu0 0.0
    %5244 = vmatprep.subr.mxu0 0.0
    %5245 = vmatpush1.msra.mxu0 0.0
    %5246 = vmatprep.subr.mxu0 0.0
    %5247 = vmatpush1.msra.mxu0 0.0
    %5248 = vmatprep.subr.mxu0 0.0
    %5249 = vmatpush1.msra.mxu0 0.0
    %5250 = vmatprep.subr.mxu0 0.0
    %5251 = vmatpush1.msra.mxu0 0.0
    %5252 = vmatprep.subr.mxu0 0.0
    %5253 = vmatpush1.msra.mxu0 0.0
    %5254 = vmatprep.subr.mxu0 0.0
    %5255 = vmatpush1.msra.mxu0 0.0
    %5256 = vmatprep.subr.mxu0 0.0
    %5257 = vmatpush1.msra.mxu0 0.0
    %5258 = vmatprep.subr.mxu0 0.0
    %5259 = vmatpush1.msra.mxu0 0.0
    %5260 = vmatprep.subr.mxu0 0.0
    %5261 = vmatpush1.msra.mxu0 0.0
    %5262 = vmatprep.subr.mxu0 0.0
    %5263 = vmatpush1.msra.mxu0 0.0
    %5264 = vmatprep.subr.mxu0 0.0
    %5265 = vmatpush1.msra.mxu0 0.0
    %5266 = vmatprep.subr.mxu0 0.0
    %5267 = vmatpush1.msra.mxu0 0.0
    %5268 = vmatprep.subr.mxu0 0.0
    %5269 = vmatpush1.msra.mxu0 0.0
    %5270 = vmatprep.subr.mxu0 0.0
    %5271 = vmatpush1.msra.mxu0 0.0
    %5272 = vmatprep.subr.mxu0 0.0
    %5273 = vmatpush1.msra.mxu0 0.0
    %5274 = vmatprep.subr.mxu0 0.0
    %5275 = vmatpush1.msra.mxu0 0.0
    %5276 = vmatprep.subr.mxu0 0.0
    %5277 = vmatpush1.msra.mxu0 0.0
    %5278 = vmatprep.subr.mxu0 0.0
    %5279 = vmatpush1.msra.mxu0 0.0
    %5280 = vmatprep.subr.mxu0 0.0
    %5281 = vmatpush1.msra.mxu0 0.0
    %5282 = vmatprep.subr.mxu0 0.0
    %5283 = vmatpush1.msra.mxu0 0.0
    %5284 = vmatprep.subr.mxu0 0.0
    %5285 = vmatpush1.msra.mxu0 0.0
    %5286 = vmatprep.subr.mxu0 0.0
    %5287 = vmatpush1.msra.mxu0 0.0
    %5288 = vmatprep.subr.mxu0 0.0
    %5289 = vmatpush1.msra.mxu0 0.0
    %5290 = vmatprep.subr.mxu0 0.0
    %5291 = vmatpush1.msra.mxu0 0.0
    %5292 = vmatprep.subr.mxu0 0.0
    %5293 = vmatpush1.msra.mxu0 0.0
    %5294 = vmatprep.subr.mxu0 0.0
    %5295 = vmatpush1.msra.mxu0 0.0
    %5296 = vmatprep.subr.mxu0 0.0
    %5297 = vmatpush1.msra.mxu0 0.0
    %5298 = vmatprep.mubr.f32.mxu0 0.0
    %5299 = vmatmul.mubr.f32.gmra.mrb[0].mxu0 %v5229
    %v5300 = vpop.f32.mrb[0].mxu0
    %v5301 = vadd.f32 0.0, %v5300
    %v5302 = vpop.f32.mrb[0].mxu0
    %5303 = vmatprep.mubr.f32.mxu0 0.0
    %5304 = vmatmul.mubr.f32.gmra.mrb[0].mxu0 %v5232
    %v5305 = vpop.f32.mrb[0].mxu0
    %v5306 = vadd.f32 0.0, %v5305
    %v5307 = vpop.f32.mrb[0].mxu0
    %5308 = vdwg.mxu0
    %5311 = vrot.lane.b32.xlu0 %v4663, 32
    %v5312 = vpop.permute.xlu0 %5311
    %5313 = vrot.lane.b32.xlu0 %v4665, 32
    %v5314 = vpop.permute.xlu0 %5313
    %v5318 = vsel %vm671, %v5012, 0
    %v5321 = vsel %vm671, %v5017, 0
    %5323 = vmatprep.subr.mxu0 0.0
    %5324 = vmatpush1.msra.mxu0 %v5312
    %5325 = vmatprep.subr.mxu0 0.0
    %5326 = vmatpush1.msra.mxu0 %v5314
    %5327 = vmatprep.subr.mxu0 0.0
    %5328 = vmatpush1.msra.mxu0 0.0
    %5329 = vmatprep.subr.mxu0 0.0
    %5330 = vmatpush1.msra.mxu0 0.0
    %5331 = vmatprep.subr.mxu0 0.0
    %5332 = vmatpush1.msra.mxu0 0.0
    %5333 = vmatprep.subr.mxu0 0.0
    %5334 = vmatpush1.msra.mxu0 0.0
    %5335 = vmatprep.subr.mxu0 0.0
    %5336 = vmatpush1.msra.mxu0 0.0
    %5337 = vmatprep.subr.mxu0 0.0
    %5338 = vmatpush1.msra.mxu0 0.0
    %5339 = vmatprep.subr.mxu0 0.0
    %5340 = vmatpush1.msra.mxu0 0.0
    %5341 = vmatprep.subr.mxu0 0.0
    %5342 = vmatpush1.msra.mxu0 0.0
    %5343 = vmatprep.subr.mxu0 0.0
    %5344 = vmatpush1.msra.mxu0 0.0
    %5345 = vmatprep.subr.mxu0 0.0
    %5346 = vmatpush1.msra.mxu0 0.0
    %5347 = vmatprep.subr.mxu0 0.0
    %5348 = vmatpush1.msra.mxu0 0.0
    %5349 = vmatprep.subr.mxu0 0.0
    %5350 = vmatpush1.msra.mxu0 0.0
    %5351 = vmatprep.subr.mxu0 0.0
    %5352 = vmatpush1.msra.mxu0 0.0
    %5353 = vmatprep.subr.mxu0 0.0
    %5354 = vmatpush1.msra.mxu0 0.0
    %5355 = vmatprep.subr.mxu0 0.0
    %5356 = vmatpush1.msra.mxu0 0.0
    %5357 = vmatprep.subr.mxu0 0.0
    %5358 = vmatpush1.msra.mxu0 0.0
    %5359 = vmatprep.subr.mxu0 0.0
    %5360 = vmatpush1.msra.mxu0 0.0
    %5361 = vmatprep.subr.mxu0 0.0
    %5362 = vmatpush1.msra.mxu0 0.0
    %5363 = vmatprep.subr.mxu0 0.0
    %5364 = vmatpush1.msra.mxu0 0.0
    %5365 = vmatprep.subr.mxu0 0.0
    %5366 = vmatpush1.msra.mxu0 0.0
    %5367 = vmatprep.subr.mxu0 0.0
    %5368 = vmatpush1.msra.mxu0 0.0
    %5369 = vmatprep.subr.mxu0 0.0
    %5370 = vmatpush1.msra.mxu0 0.0
    %5371 = vmatprep.subr.mxu0 0.0
    %5372 = vmatpush1.msra.mxu0 0.0
    %5373 = vmatprep.subr.mxu0 0.0
    %5374 = vmatpush1.msra.mxu0 0.0
    %5375 = vmatprep.subr.mxu0 0.0
    %5376 = vmatpush1.msra.mxu0 0.0
    %5377 = vmatprep.subr.mxu0 0.0
    %5378 = vmatpush1.msra.mxu0 0.0
    %5379 = vmatprep.subr.mxu0 0.0
    %5380 = vmatpush1.msra.mxu0 0.0
    %5381 = vmatprep.subr.mxu0 0.0
    %5382 = vmatpush1.msra.mxu0 0.0
    %5383 = vmatprep.subr.mxu0 0.0
    %5384 = vmatpush1.msra.mxu0 0.0
    %5385 = vmatprep.subr.mxu0 0.0
    %5386 = vmatpush1.msra.mxu0 0.0
    %5387 = vmatprep.mubr.f32.mxu0 0.0
    %5388 = vmatmul.mubr.f32.gmra.mrb[0].mxu0 %v5318
    %v5389 = vpop.f32.mrb[0].mxu0
    %v5390 = vadd.f32 %v5301, %v5389
    %v5391 = vpop.f32.mrb[0].mxu0
    %5392 = vmatprep.mubr.f32.mxu0 0.0
    %5393 = vmatmul.mubr.f32.gmra.mrb[0].mxu0 %v5321
    %v5394 = vpop.f32.mrb[0].mxu0
    %v5395 = vadd.f32 %v5306, %v5394
    %v5396 = vpop.f32.mrb[0].mxu0
    %5397 = vdwg.mxu0
    %v5398 = vadd.f32 %v4656, %v5390
    %v5399 = vadd.f32 %v4657, %v5395
    %5400 = vrot.lane.b32.xlu0 %v4687, 96
    %v5401 = vpop.permute.xlu0 %5400
    %v5402 = vrot.slane %v5401, 1
    %v5403 = vlaneseq
    %v5404 = vshrl.u32 %v5403, 7
    %v5405 = vsub.s32 0, %v5404
    %v5406 = vrot.slane %v5402, %v5405
    %v5408 = vadd.f32 %v5398, %v5406
    %v5409 = vadd.f32 %v5399, %v5406
    %v5410 = vsel %vm369, %v5408, 0.0
    %5411 = vadd.xlane.f32.xlu0 %v5410
    %v5412 = vpop.xlane.xlu0 %5411
    %v5413 = vsel %vm369, %v5409, 0.0
    %5414 = vadd.xlane.f32.xlu0 %v5413
    %v5415 = vpop.xlane.xlu0 %5414
    %v5416 = vmul.f32 %v5412, %v394
    %v5417 = vmul.f32 %v5415, %v394
    %v5418 = vsub.f32 %v5408, %v5416
    %v5419 = vsub.f32 %v5409, %v5417
    %v5420 = vmul.f32 %v5418, %v5418
    %v5421 = vmul.f32 %v5419, %v5419
    %v5422 = vsel %vm369, %v5420, 0.0
    %5423 = vadd.xlane.f32.xlu0 %v5422
    %v5424 = vpop.xlane.xlu0 %5423
    %v5425 = vsel %vm369, %v5421, 0.0
    %5426 = vadd.xlane.f32.xlu0 %v5425
    %v5427 = vpop.xlane.xlu0 %5426
    %v5428 = vmul.f32 %v5424, %v394
    %v5429 = vmul.f32 %v5427, %v394
    %v5430 = vadd.f32 %v5428, 1e-05
    %v5431 = vadd.f32 %v5429, 1e-05
    %v5432 = vrsqrt.pop %v5430
    %v5433 = vrsqrt.pop %v5431
    %v5434 = vmul.f32 %v5418, %v5432
    %v5435 = vmul.f32 %v5419, %v5433
    %5436 = vrot.lane.b32.xlu0 %v4687, 64
    %v5437 = vpop.permute.xlu0 %5436
    %v5438 = vrot.slane %v5437, 1
    %v5439 = vlaneseq
    %v5440 = vshrl.u32 %v5439, 7
    %v5441 = vsub.s32 0, %v5440
    %v5442 = vrot.slane %v5438, %v5441
    %v5444 = vmul.f32 %v5434, %v5442
    %v5445 = vmul.f32 %v5435, %v5442
    %5446 = vrot.lane.b32.xlu0 %v4687, 32
    %v5447 = vpop.permute.xlu0 %5446
    %v5448 = vrot.slane %v5447, 1
    %v5449 = vlaneseq
    %v5450 = vshrl.u32 %v5449, 7
    %v5451 = vsub.s32 0, %v5450
    %v5452 = vrot.slane %v5448, %v5451
    %v5454 = vadd.f32 %v5444, %v5452
    %v5455 = vadd.f32 %v5445, %v5452
    %v5456 = vrot.slane %v4687, 2
    %v5457 = vlaneseq
    %v5458 = vshrl.u32 %v5457, 7
    %v5459 = vsub.s32 0, %v5458
    %v5460 = vrot.slane %v5456, %v5459
    %v5463 = vsel %vm369, %v5454, 0
    %v5466 = vsel %vm369, %v5455, 0
    %5468 = vmatprep.subr.mxu0 0.0
    %5469 = vmatpush1.msra.mxu0 %v4664
    %5470 = vmatprep.subr.mxu0 0.0
    %5471 = vmatpush1.msra.mxu0 %v4666
    %5472 = vmatprep.subr.mxu0 0.0
    %5473 = vmatpush1.msra.mxu0 %v4668
    %5474 = vmatprep.subr.mxu0 0.0
    %5475 = vmatpush1.msra.mxu0 %v4670
    %5476 = vmatprep.subr.mxu0 0.0
    %5477 = vmatpush1.msra.mxu0 0.0
    %5478 = vmatprep.subr.mxu0 0.0
    %5479 = vmatpush1.msra.mxu0 0.0
    %5480 = vmatprep.subr.mxu0 0.0
    %5481 = vmatpush1.msra.mxu0 0.0
    %5482 = vmatprep.subr.mxu0 0.0
    %5483 = vmatpush1.msra.mxu0 0.0
    %5484 = vmatprep.subr.mxu0 0.0
    %5485 = vmatpush1.msra.mxu0 0.0
    %5486 = vmatprep.subr.mxu0 0.0
    %5487 = vmatpush1.msra.mxu0 0.0
    %5488 = vmatprep.subr.mxu0 0.0
    %5489 = vmatpush1.msra.mxu0 0.0
    %5490 = vmatprep.subr.mxu0 0.0
    %5491 = vmatpush1.msra.mxu0 0.0
    %5492 = vmatprep.subr.mxu0 0.0
    %5493 = vmatpush1.msra.mxu0 0.0
    %5494 = vmatprep.subr.mxu0 0.0
    %5495 = vmatpush1.msra.mxu0 0.0
    %5496 = vmatprep.subr.mxu0 0.0
    %5497 = vmatpush1.msra.mxu0 0.0
    %5498 = vmatprep.subr.mxu0 0.0
    %5499 = vmatpush1.msra.mxu0 0.0
    %5500 = vmatprep.subr.mxu0 0.0
    %5501 = vmatpush1.msra.mxu0 0.0
    %5502 = vmatprep.subr.mxu0 0.0
    %5503 = vmatpush1.msra.mxu0 0.0
    %5504 = vmatprep.subr.mxu0 0.0
    %5505 = vmatpush1.msra.mxu0 0.0
    %5506 = vmatprep.subr.mxu0 0.0
    %5507 = vmatpush1.msra.mxu0 0.0
    %5508 = vmatprep.subr.mxu0 0.0
    %5509 = vmatpush1.msra.mxu0 0.0
    %5510 = vmatprep.subr.mxu0 0.0
    %5511 = vmatpush1.msra.mxu0 0.0
    %5512 = vmatprep.subr.mxu0 0.0
    %5513 = vmatpush1.msra.mxu0 0.0
    %5514 = vmatprep.subr.mxu0 0.0
    %5515 = vmatpush1.msra.mxu0 0.0
    %5516 = vmatprep.subr.mxu0 0.0
    %5517 = vmatpush1.msra.mxu0 0.0
    %5518 = vmatprep.subr.mxu0 0.0
    %5519 = vmatpush1.msra.mxu0 0.0
    %5520 = vmatprep.subr.mxu0 0.0
    %5521 = vmatpush1.msra.mxu0 0.0
    %5522 = vmatprep.subr.mxu0 0.0
    %5523 = vmatpush1.msra.mxu0 0.0
    %5524 = vmatprep.subr.mxu0 0.0
    %5525 = vmatpush1.msra.mxu0 0.0
    %5526 = vmatprep.subr.mxu0 0.0
    %5527 = vmatpush1.msra.mxu0 0.0
    %5528 = vmatprep.subr.mxu0 0.0
    %5529 = vmatpush1.msra.mxu0 0.0
    %5530 = vmatprep.subr.mxu0 0.0
    %5531 = vmatpush1.msra.mxu0 0.0
    %5532 = vmatprep.mubr.f32.mxu0 0.0
    %5533 = vmatmul.mubr.f32.gmra.mrb[0].mxu0 %v5463
    %v5534 = vpop.f32.mrb[0].mxu0
    %v5535 = vadd.f32 %v5460, %v5534
    %v5536 = vpop.f32.mrb[0].mxu0
    %5537 = vmatprep.mubr.f32.mxu0 0.0
    %5538 = vmatmul.mubr.f32.gmra.mrb[0].mxu0 %v5466
    %v5539 = vpop.f32.mrb[0].mxu0
    %v5540 = vadd.f32 %v5460, %v5539
    %v5541 = vpop.f32.mrb[0].mxu0
    %5542 = vdwg.mxu0
    %v5543 = vmul.f32 %v5535, 1.702
    %v5544 = vmul.f32 %v5540, 1.702
    %v5545 = vxor.u32 %v5543, 2147483648
    %v5546 = vxor.u32 %v5544, 2147483648
    %v5547 = vmul.f32 %v5545, 1.442695
    %v5548 = vpow.pop %v5547
    %v5549 = vmul.f32 %v5546, 1.442695
    %v5550 = vpow.pop %v5549
    %v5551 = vadd.f32 %v5548, 1.0
    %v5552 = vadd.f32 %v5550, 1.0
    %v5553 = vrcp.pop %v5551
    %v5554 = vmul.f32 1.0, %v5553
    %v5555 = vrcp.pop %v5552
    %v5556 = vmul.f32 1.0, %v5555
    %v5557 = vmul.f32 %v5535, %v5554
    %v5558 = vmul.f32 %v5540, %v5556
    %5559 = vmatprep.subr.mxu0 0.0
    %5560 = vmatpush1.msra.mxu0 %v4671
    %5561 = vmatprep.subr.mxu0 0.0
    %5562 = vmatpush1.msra.mxu0 %v4672
    %5563 = vmatprep.subr.mxu0 0.0
    %5564 = vmatpush1.msra.mxu0 %v4673
    %5565 = vmatprep.subr.mxu0 0.0
    %5566 = vmatpush1.msra.mxu0 %v4674
    %5567 = vmatprep.subr.mxu0 0.0
    %5568 = vmatpush1.msra.mxu0 %v4675
    %5569 = vmatprep.subr.mxu0 0.0
    %5570 = vmatpush1.msra.mxu0 %v4676
    %5571 = vmatprep.subr.mxu0 0.0
    %5572 = vmatpush1.msra.mxu0 %v4677
    %5573 = vmatprep.subr.mxu0 0.0
    %5574 = vmatpush1.msra.mxu0 %v4678
    %5575 = vmatprep.subr.mxu0 0.0
    %5576 = vmatpush1.msra.mxu0 %v4679
    %5577 = vmatprep.subr.mxu0 0.0
    %5578 = vmatpush1.msra.mxu0 %v4680
    %5579 = vmatprep.subr.mxu0 0.0
    %5580 = vmatpush1.msra.mxu0 %v4681
    %5581 = vmatprep.subr.mxu0 0.0
    %5582 = vmatpush1.msra.mxu0 %v4682
    %5583 = vmatprep.subr.mxu0 0.0
    %5584 = vmatpush1.msra.mxu0 %v4683
    %5585 = vmatprep.subr.mxu0 0.0
    %5586 = vmatpush1.msra.mxu0 %v4684
    %5587 = vmatprep.subr.mxu0 0.0
    %5588 = vmatpush1.msra.mxu0 %v4685
    %5589 = vmatprep.subr.mxu0 0.0
    %5590 = vmatpush1.msra.mxu0 %v4686
    %5591 = vmatprep.subr.mxu0 0.0
    %5592 = vmatpush1.msra.mxu0 0.0
    %5593 = vmatprep.subr.mxu0 0.0
    %5594 = vmatpush1.msra.mxu0 0.0
    %5595 = vmatprep.subr.mxu0 0.0
    %5596 = vmatpush1.msra.mxu0 0.0
    %5597 = vmatprep.subr.mxu0 0.0
    %5598 = vmatpush1.msra.mxu0 0.0
    %5599 = vmatprep.subr.mxu0 0.0
    %5600 = vmatpush1.msra.mxu0 0.0
    %5601 = vmatprep.subr.mxu0 0.0
    %5602 = vmatpush1.msra.mxu0 0.0
    %5603 = vmatprep.subr.mxu0 0.0
    %5604 = vmatpush1.msra.mxu0 0.0
    %5605 = vmatprep.subr.mxu0 0.0
    %5606 = vmatpush1.msra.mxu0 0.0
    %5607 = vmatprep.subr.mxu0 0.0
    %5608 = vmatpush1.msra.mxu0 0.0
    %5609 = vmatprep.subr.mxu0 0.0
    %5610 = vmatpush1.msra.mxu0 0.0
    %5611 = vmatprep.subr.mxu0 0.0
    %5612 = vmatpush1.msra.mxu0 0.0
    %5613 = vmatprep.subr.mxu0 0.0
    %5614 = vmatpush1.msra.mxu0 0.0
    %5615 = vmatprep.subr.mxu0 0.0
    %5616 = vmatpush1.msra.mxu0 0.0
    %5617 = vmatprep.subr.mxu0 0.0
    %5618 = vmatpush1.msra.mxu0 0.0
    %5619 = vmatprep.subr.mxu0 0.0
    %5620 = vmatpush1.msra.mxu0 0.0
    %5621 = vmatprep.subr.mxu0 0.0
    %5622 = vmatpush1.msra.mxu0 0.0
    %5623 = vmatprep.mubr.f32.mxu0 0.0
    %5624 = vmatmul.mubr.f32.gmra.mrb[0].mxu0 %v5557
    %v5625 = vpop.f32.mrb[0].mxu0
    %v5626 = vadd.f32 0.0, %v5625
    %v5627 = vpop.f32.mrb[0].mxu0
    %5628 = vmatprep.mubr.f32.mxu0 0.0
    %5629 = vmatmul.mubr.f32.gmra.mrb[0].mxu0 %v5558
    %v5630 = vpop.f32.mrb[0].mxu0
    %v5631 = vadd.f32 0.0, %v5630
    %v5632 = vpop.f32.mrb[0].mxu0
    %5633 = vdwg.mxu0
    %v5634 = vadd.f32 %v5408, %v5626
    %v5635 = vadd.f32 %v5409, %v5631
    %v5636 = vrot.slane %v4687, 3
    %v5637 = vlaneseq
    %v5638 = vshrl.u32 %v5637, 7
    %v5639 = vsub.s32 0, %v5638
    %v5640 = vrot.slane %v5636, %v5639
    %v5642 = vadd.f32 %v5634, %v5640
    %v5643 = vadd.f32 %v5635, %v5640
    %s5644 = scalar_lea.vmem %s12, 64
    %v5645 = vld [vmem:[%s5644] sm:$0xff]
    %v5646 = vld [vmem:[%s5644 + $0x8] sm:$0xff]
    %v5647 = vld [vmem:[%s5644 + $0x10] sm:$0xff]
    %v5648 = vld [vmem:[%s5644 + $0x18] sm:$0xff]
    %v5649 = vld [vmem:[%s5644 + $0x20] sm:$0xff]
    %v5650 = vld [vmem:[%s5644 + $0x28] sm:$0xff]
    %v5651 = vld [vmem:[%s5644 + $0x30] sm:$0xff]
    %v5652 = vld [vmem:[%s5644 + $0x38] sm:$0xff]
    %s5653 = scalar_lea.vmem %s13, 128
    %v5654 = vld [vmem:[%s5653] sm:$0xff]
    %v5655 = vld [vmem:[%s5653 + $0x8] sm:$0xff]
    %v5656 = vld [vmem:[%s5653 + $0x10] sm:$0xff]
    %v5657 = vld [vmem:[%s5653 + $0x18] sm:$0xff]
    %v5658 = vld [vmem:[%s5653 + $0x20] sm:$0xff]
    %v5659 = vld [vmem:[%s5653 + $0x28] sm:$0xff]
    %v5660 = vld [vmem:[%s5653 + $0x30] sm:$0xff]
    %v5661 = vld [vmem:[%s5653 + $0x38] sm:$0xff]
    %v5662 = vld [vmem:[%s5653 + $0x40] sm:$0xff]
    %v5663 = vld [vmem:[%s5653 + $0x48] sm:$0xff]
    %v5664 = vld [vmem:[%s5653 + $0x50] sm:$0xff]
    %v5665 = vld [vmem:[%s5653 + $0x58] sm:$0xff]
    %v5666 = vld [vmem:[%s5653 + $0x60] sm:$0xff]
    %v5667 = vld [vmem:[%s5653 + $0x68] sm:$0xff]
    %v5668 = vld [vmem:[%s5653 + $0x70] sm:$0xff]
    %v5669 = vld [vmem:[%s5653 + $0x78] sm:$0xff]
    %s5670 = scalar_lea.vmem %s14, 1
    %v5671 = vld [vmem:[%s5670] ss:$2 sm:$0xf]
    %v5672 = vsel %vm369, %v5642, 0.0
    %5673 = vadd.xlane.f32.xlu0 %v5672
    %v5674 = vpop.xlane.xlu0 %5673
    %v5675 = vsel %vm369, %v5643, 0.0
    %5676 = vadd.xlane.f32.xlu0 %v5675
    %v5677 = vpop.xlane.xlu0 %5676
    %v5678 = vmul.f32 %v5674, %v394
    %v5679 = vmul.f32 %v5677, %v394
    %v5680 = vsub.f32 %v5642, %v5678
    %v5681 = vsub.f32 %v5643, %v5679
    %v5682 = vmul.f32 %v5680, %v5680
    %v5683 = vmul.f32 %v5681, %v5681
    %v5684 = vsel %vm369, %v5682, 0.0
    %5685 = vadd.xlane.f32.xlu0 %v5684
    %v5686 = vpop.xlane.xlu0 %5685
    %v5687 = vsel %vm369, %v5683, 0.0
    %5688 = vadd.xlane.f32.xlu0 %v5687
    %v5689 = vpop.xlane.xlu0 %5688
    %v5690 = vmul.f32 %v5686, %v394
    %v5691 = vmul.f32 %v5689, %v394
    %v5692 = vadd.f32 %v5690, 1e-05
    %v5693 = vadd.f32 %v5691, 1e-05
    %v5694 = vrsqrt.pop %v5692
    %v5695 = vrsqrt.pop %v5693
    %v5696 = vmul.f32 %v5680, %v5694
    %v5697 = vmul.f32 %v5681, %v5695
    %v5699 = vlaneseq
    %v5700 = vshrl.u32 %v5699, 7
    %v5701 = vsub.s32 0, %v5700
    %v5702 = vrot.slane %v5671, %v5701
    %v5704 = vmul.f32 %v5696, %v5702
    %v5705 = vmul.f32 %v5697, %v5702
    %5706 = vrot.lane.b32.xlu0 %v5702, 96
    %v5707 = vpop.permute.xlu0 %5706
    %v5709 = vadd.f32 %v5704, %v5707
    %v5710 = vadd.f32 %v5705, %v5707
    %v5711 = vlaneseq
    %v5712 = vshrl.u32 %v5711, 7
    %v5713 = vsub.s32 1, %v5712
    %v5714 = vrot.slane %v5671, %v5713
    %5715 = vrot.lane.b32.xlu0 %v5702, 64
    %v5716 = vpop.permute.xlu0 %5715
    %5717 = vrot.lane.b32.xlu0 %v5714, 64
    %v5718 = vpop.permute.xlu0 %5717
    %v5719 = vsel %vm137, %v5716, %v5718
    %v5722 = vsel %vm369, %v5709, 0
    %v5725 = vsel %vm369, %v5710, 0
    %5727 = vmatprep.subr.mxu0 0.0
    %5728 = vmatpush1.msra.mxu0 %v5645
    %5729 = vmatprep.subr.mxu0 0.0
    %5730 = vmatpush1.msra.mxu0 %v5647
    %5731 = vmatprep.subr.mxu0 0.0
    %5732 = vmatpush1.msra.mxu0 %v5649
    %5733 = vmatprep.subr.mxu0 0.0
    %5734 = vmatpush1.msra.mxu0 %v5651
    %5735 = vmatprep.subr.mxu0 0.0
    %5736 = vmatpush1.msra.mxu0 0.0
    %5737 = vmatprep.subr.mxu0 0.0
    %5738 = vmatpush1.msra.mxu0 0.0
    %5739 = vmatprep.subr.mxu0 0.0
    %5740 = vmatpush1.msra.mxu0 0.0
    %5741 = vmatprep.subr.mxu0 0.0
    %5742 = vmatpush1.msra.mxu0 0.0
    %5743 = vmatprep.subr.mxu0 0.0
    %5744 = vmatpush1.msra.mxu0 0.0
    %5745 = vmatprep.subr.mxu0 0.0
    %5746 = vmatpush1.msra.mxu0 0.0
    %5747 = vmatprep.subr.mxu0 0.0
    %5748 = vmatpush1.msra.mxu0 0.0
    %5749 = vmatprep.subr.mxu0 0.0
    %5750 = vmatpush1.msra.mxu0 0.0
    %5751 = vmatprep.subr.mxu0 0.0
    %5752 = vmatpush1.msra.mxu0 0.0
    %5753 = vmatprep.subr.mxu0 0.0
    %5754 = vmatpush1.msra.mxu0 0.0
    %5755 = vmatprep.subr.mxu0 0.0
    %5756 = vmatpush1.msra.mxu0 0.0
    %5757 = vmatprep.subr.mxu0 0.0
    %5758 = vmatpush1.msra.mxu0 0.0
    %5759 = vmatprep.subr.mxu0 0.0
    %5760 = vmatpush1.msra.mxu0 0.0
    %5761 = vmatprep.subr.mxu0 0.0
    %5762 = vmatpush1.msra.mxu0 0.0
    %5763 = vmatprep.subr.mxu0 0.0
    %5764 = vmatpush1.msra.mxu0 0.0
    %5765 = vmatprep.subr.mxu0 0.0
    %5766 = vmatpush1.msra.mxu0 0.0
    %5767 = vmatprep.subr.mxu0 0.0
    %5768 = vmatpush1.msra.mxu0 0.0
    %5769 = vmatprep.subr.mxu0 0.0
    %5770 = vmatpush1.msra.mxu0 0.0
    %5771 = vmatprep.subr.mxu0 0.0
    %5772 = vmatpush1.msra.mxu0 0.0
    %5773 = vmatprep.subr.mxu0 0.0
    %5774 = vmatpush1.msra.mxu0 0.0
    %5775 = vmatprep.subr.mxu0 0.0
    %5776 = vmatpush1.msra.mxu0 0.0
    %5777 = vmatprep.subr.mxu0 0.0
    %5778 = vmatpush1.msra.mxu0 0.0
    %5779 = vmatprep.subr.mxu0 0.0
    %5780 = vmatpush1.msra.mxu0 0.0
    %5781 = vmatprep.subr.mxu0 0.0
    %5782 = vmatpush1.msra.mxu0 0.0
    %5783 = vmatprep.subr.mxu0 0.0
    %5784 = vmatpush1.msra.mxu0 0.0
    %5785 = vmatprep.subr.mxu0 0.0
    %5786 = vmatpush1.msra.mxu0 0.0
    %5787 = vmatprep.subr.mxu0 0.0
    %5788 = vmatpush1.msra.mxu0 0.0
    %5789 = vmatprep.subr.mxu0 0.0
    %5790 = vmatpush1.msra.mxu0 0.0
    %5791 = vmatprep.mubr.f32.mxu0 0.0
    %5792 = vmatmul.mubr.f32.gmra.mrb[0].mxu0 %v5722
    %v5793 = vpop.f32.mrb[0].mxu0
    %v5794 = vadd.f32 %v5719, %v5793
    %v5795 = vpop.f32.mrb[0].mxu0
    %5796 = vmatprep.mubr.f32.mxu0 0.0
    %5797 = vmatmul.mubr.f32.gmra.mrb[0].mxu0 %v5725
    %v5798 = vpop.f32.mrb[0].mxu0
    %v5799 = vadd.f32 %v5719, %v5798
    %v5800 = vpop.f32.mrb[0].mxu0
    %5801 = vdwg.mxu0
    %v5802 = vmul.f32 %v5794, 0.25
    %v5803 = vmul.f32 %v5799, 0.25
    %5806 = vrot.lane.b32.xlu0 %v5794, 96
    %v5807 = vpop.permute.xlu0 %5806
    %5808 = vrot.lane.b32.xlu0 %v5799, 96
    %v5809 = vpop.permute.xlu0 %5808
    %v5811 = vsel %vm671, %v5802, 0
    %v5814 = vsel %vm671, %v5803, 0
    %v5816 = vsel %vm671, %v5807, 0
    %v5818 = vsel %vm671, %v5809, 0
    %5820 = vmatprep.subr.mxu0 0.0
    %5821 = vmatpush1.xpose.msra.mxu0 %v5816
    %5822 = vmatprep.subr.mxu0 0.0
    %5823 = vmatpush1.xpose.msra.mxu0 %v5818
    %5824 = vmatprep.subr.mxu0 0.0
    %5825 = vmatpush1.xpose.msra.mxu0 0.0
    %5826 = vmatprep.subr.mxu0 0.0
    %5827 = vmatpush1.xpose.msra.mxu0 0.0
    %5828 = vmatprep.subr.mxu0 0.0
    %5829 = vmatpush1.xpose.msra.mxu0 0.0
    %5830 = vmatprep.subr.mxu0 0.0
    %5831 = vmatpush1.xpose.msra.mxu0 0.0
    %5832 = vmatprep.subr.mxu0 0.0
    %5833 = vmatpush1.xpose.msra.mxu0 0.0
    %5834 = vmatprep.subr.mxu0 0.0
    %5835 = vmatpush1.xpose.msra.mxu0 0.0
    %5836 = vmatprep.subr.mxu0 0.0
    %5837 = vmatpush1.xpose.msra.mxu0 0.0
    %5838 = vmatprep.subr.mxu0 0.0
    %5839 = vmatpush1.xpose.msra.mxu0 0.0
    %5840 = vmatprep.subr.mxu0 0.0
    %5841 = vmatpush1.xpose.msra.mxu0 0.0
    %5842 = vmatprep.subr.mxu0 0.0
    %5843 = vmatpush1.xpose.msra.mxu0 0.0
    %5844 = vmatprep.subr.mxu0 0.0
    %5845 = vmatpush1.xpose.msra.mxu0 0.0
    %5846 = vmatprep.subr.mxu0 0.0
    %5847 = vmatpush1.xpose.msra.mxu0 0.0
    %5848 = vmatprep.subr.mxu0 0.0
    %5849 = vmatpush1.xpose.msra.mxu0 0.0
    %5850 = vmatprep.subr.mxu0 0.0
    %5851 = vmatpush1.xpose.msra.mxu0 0.0
    %5852 = vmatprep.subr.mxu0 0.0
    %5853 = vmatpush1.xpose.msra.mxu0 0.0
    %5854 = vmatprep.subr.mxu0 0.0
    %5855 = vmatpush1.xpose.msra.mxu0 0.0
    %5856 = vmatprep.subr.mxu0 0.0
    %5857 = vmatpush1.xpose.msra.mxu0 0.0
    %5858 = vmatprep.subr.mxu0 0.0
    %5859 = vmatpush1.xpose.msra.mxu0 0.0
    %5860 = vmatprep.subr.mxu0 0.0
    %5861 = vmatpush1.xpose.msra.mxu0 0.0
    %5862 = vmatprep.subr.mxu0 0.0
    %5863 = vmatpush1.xpose.msra.mxu0 0.0
    %5864 = vmatprep.subr.mxu0 0.0
    %5865 = vmatpush1.xpose.msra.mxu0 0.0
    %5866 = vmatprep.subr.mxu0 0.0
    %5867 = vmatpush1.xpose.msra.mxu0 0.0
    %5868 = vmatprep.subr.mxu0 0.0
    %5869 = vmatpush1.xpose.msra.mxu0 0.0
    %5870 = vmatprep.subr.mxu0 0.0
    %5871 = vmatpush1.xpose.msra.mxu0 0.0
    %5872 = vmatprep.subr.mxu0 0.0
    %5873 = vmatpush1.xpose.msra.mxu0 0.0
    %5874 = vmatprep.subr.mxu0 0.0
    %5875 = vmatpush1.xpose.msra.mxu0 0.0
    %5876 = vmatprep.subr.mxu0 0.0
    %5877 = vmatpush1.xpose.msra.mxu0 0.0
    %5878 = vmatprep.subr.mxu0 0.0
    %5879 = vmatpush1.xpose.msra.mxu0 0.0
    %5880 = vmatprep.subr.mxu0 0.0
    %5881 = vmatpush1.xpose.msra.mxu0 0.0
    %5882 = vmatprep.subr.mxu0 0.0
    %5883 = vmatpush1.xpose.msra.mxu0 0.0
    %5884 = vmatprep.mubr.f32.mxu0 0.0
    %5885 = vmatmul.mubr.f32.gmra.mrb[0].mxu0 %v5811
    %v5886 = vpop.f32.mrb[0].mxu0
    %v5887 = vadd.f32 %v4661, %v5886
    %v5888 = vpop.f32.mrb[0].mxu0
    %5889 = vmatprep.mubr.f32.mxu0 0.0
    %5890 = vmatmul.mubr.f32.gmra.mrb[0].mxu0 %v5814
    %v5891 = vpop.f32.mrb[0].mxu0
    %v5892 = vadd.f32 %v4662, %v5891
    %v5893 = vpop.f32.mrb[0].mxu0
    %5894 = vdwg.mxu0
    %v5895 = vsel %vm671, %v5887, -inf
    %5896 = vmax.xlane.f32.xlu0 %v5895
    %v5897 = vpop.xlane.xlu0 %5896
    %v5898 = vsel %vm671, %v5892, -inf
    %5899 = vmax.xlane.f32.xlu0 %v5898
    %v5900 = vpop.xlane.xlu0 %5899
    %v5901 = vsub.f32 %v5887, %v5897
    %v5902 = vsub.f32 %v5892, %v5900
    %v5903 = vmul.f32 %v5901, 1.442695
    %v5904 = vpow.pop %v5903
    %v5905 = vmul.f32 %v5902, 1.442695
    %v5906 = vpow.pop %v5905
    %v5907 = vsel %vm671, %v5904, 0.0
    %5908 = vadd.xlane.f32.xlu0 %v5907
    %v5909 = vpop.xlane.xlu0 %5908
    %v5910 = vsel %vm671, %v5906, 0.0
    %5911 = vadd.xlane.f32.xlu0 %v5910
    %v5912 = vpop.xlane.xlu0 %5911
    %v5913 = vrcp.pop %v5909
    %v5914 = vmul.f32 %v5904, %v5913
    %v5915 = vrcp.pop %v5912
    %v5916 = vmul.f32 %v5906, %v5915
    %5917 = vrot.lane.b32.xlu0 %v5794, 64
    %v5918 = vpop.permute.xlu0 %5917
    %5919 = vrot.lane.b32.xlu0 %v5799, 64
    %v5920 = vpop.permute.xlu0 %5919
    %v5924 = vsel %vm671, %v5914, 0
    %v5927 = vsel %vm671, %v5916, 0
    %5929 = vmatprep.subr.mxu0 0.0
    %5930 = vmatpush1.msra.mxu0 %v5918
    %5931 = vmatprep.subr.mxu0 0.0
    %5932 = vmatpush1.msra.mxu0 %v5920
    %5933 = vmatprep.subr.mxu0 0.0
    %5934 = vmatpush1.msra.mxu0 0.0
    %5935 = vmatprep.subr.mxu0 0.0
    %5936 = vmatpush1.msra.mxu0 0.0
    %5937 = vmatprep.subr.mxu0 0.0
    %5938 = vmatpush1.msra.mxu0 0.0
    %5939 = vmatprep.subr.mxu0 0.0
    %5940 = vmatpush1.msra.mxu0 0.0
    %5941 = vmatprep.subr.mxu0 0.0
    %5942 = vmatpush1.msra.mxu0 0.0
    %5943 = vmatprep.subr.mxu0 0.0
    %5944 = vmatpush1.msra.mxu0 0.0
    %5945 = vmatprep.subr.mxu0 0.0
    %5946 = vmatpush1.msra.mxu0 0.0
    %5947 = vmatprep.subr.mxu0 0.0
    %5948 = vmatpush1.msra.mxu0 0.0
    %5949 = vmatprep.subr.mxu0 0.0
    %5950 = vmatpush1.msra.mxu0 0.0
    %5951 = vmatprep.subr.mxu0 0.0
    %5952 = vmatpush1.msra.mxu0 0.0
    %5953 = vmatprep.subr.mxu0 0.0
    %5954 = vmatpush1.msra.mxu0 0.0
    %5955 = vmatprep.subr.mxu0 0.0
    %5956 = vmatpush1.msra.mxu0 0.0
    %5957 = vmatprep.subr.mxu0 0.0
    %5958 = vmatpush1.msra.mxu0 0.0
    %5959 = vmatprep.subr.mxu0 0.0
    %5960 = vmatpush1.msra.mxu0 0.0
    %5961 = vmatprep.subr.mxu0 0.0
    %5962 = vmatpush1.msra.mxu0 0.0
    %5963 = vmatprep.subr.mxu0 0.0
    %5964 = vmatpush1.msra.mxu0 0.0
    %5965 = vmatprep.subr.mxu0 0.0
    %5966 = vmatpush1.msra.mxu0 0.0
    %5967 = vmatprep.subr.mxu0 0.0
    %5968 = vmatpush1.msra.mxu0 0.0
    %5969 = vmatprep.subr.mxu0 0.0
    %5970 = vmatpush1.msra.mxu0 0.0
    %5971 = vmatprep.subr.mxu0 0.0
    %5972 = vmatpush1.msra.mxu0 0.0
    %5973 = vmatprep.subr.mxu0 0.0
    %5974 = vmatpush1.msra.mxu0 0.0
    %5975 = vmatprep.subr.mxu0 0.0
    %5976 = vmatpush1.msra.mxu0 0.0
    %5977 = vmatprep.subr.mxu0 0.0
    %5978 = vmatpush1.msra.mxu0 0.0
    %5979 = vmatprep.subr.mxu0 0.0
    %5980 = vmatpush1.msra.mxu0 0.0
    %5981 = vmatprep.subr.mxu0 0.0
    %5982 = vmatpush1.msra.mxu0 0.0
    %5983 = vmatprep.subr.mxu0 0.0
    %5984 = vmatpush1.msra.mxu0 0.0
    %5985 = vmatprep.subr.mxu0 0.0
    %5986 = vmatpush1.msra.mxu0 0.0
    %5987 = vmatprep.subr.mxu0 0.0
    %5988 = vmatpush1.msra.mxu0 0.0
    %5989 = vmatprep.subr.mxu0 0.0
    %5990 = vmatpush1.msra.mxu0 0.0
    %5991 = vmatprep.subr.mxu0 0.0
    %5992 = vmatpush1.msra.mxu0 0.0
    %5993 = vmatprep.mubr.f32.mxu0 0.0
    %5994 = vmatmul.mubr.f32.gmra.mrb[0].mxu0 %v5924
    %v5995 = vpop.f32.mrb[0].mxu0
    %v5996 = vadd.f32 0.0, %v5995
    %v5997 = vpop.f32.mrb[0].mxu0
    %5998 = vmatprep.mubr.f32.mxu0 0.0
    %5999 = vmatmul.mubr.f32.gmra.mrb[0].mxu0 %v5927
    %v6000 = vpop.f32.mrb[0].mxu0
    %v6001 = vadd.f32 0.0, %v6000
    %v6002 = vpop.f32.mrb[0].mxu0
    %6003 = vdwg.mxu0
    %6004 = vrot.lane.b32.xlu0 %v5802, 112
    %v6005 = vpop.permute.xlu0 %6004
    %6006 = vrot.lane.b32.xlu0 %v5803, 112
    %v6007 = vpop.permute.xlu0 %6006
    %6008 = vrot.lane.b32.xlu0 %v5794, 80
    %v6009 = vpop.permute.xlu0 %6008
    %6010 = vrot.lane.b32.xlu0 %v5799, 80
    %v6011 = vpop.permute.xlu0 %6010
    %v6012 = vsel %vm671, %v6005, 0
    %v6014 = vsel %vm671, %v6007, 0
    %v6016 = vsel %vm671, %v6009, 0
    %v6018 = vsel %vm671, %v6011, 0
    %6020 = vmatprep.subr.mxu0 0.0
    %6021 = vmatpush1.xpose.msra.mxu0 %v6016
    %6022 = vmatprep.subr.mxu0 0.0
    %6023 = vmatpush1.xpose.msra.mxu0 %v6018
    %6024 = vmatprep.subr.mxu0 0.0
    %6025 = vmatpush1.xpose.msra.mxu0 0.0
    %6026 = vmatprep.subr.mxu0 0.0
    %6027 = vmatpush1.xpose.msra.mxu0 0.0
    %6028 = vmatprep.subr.mxu0 0.0
    %6029 = vmatpush1.xpose.msra.mxu0 0.0
    %6030 = vmatprep.subr.mxu0 0.0
    %6031 = vmatpush1.xpose.msra.mxu0 0.0
    %6032 = vmatprep.subr.mxu0 0.0
    %6033 = vmatpush1.xpose.msra.mxu0 0.0
    %6034 = vmatprep.subr.mxu0 0.0
    %6035 = vmatpush1.xpose.msra.mxu0 0.0
    %6036 = vmatprep.subr.mxu0 0.0
    %6037 = vmatpush1.xpose.msra.mxu0 0.0
    %6038 = vmatprep.subr.mxu0 0.0
    %6039 = vmatpush1.xpose.msra.mxu0 0.0
    %6040 = vmatprep.subr.mxu0 0.0
    %6041 = vmatpush1.xpose.msra.mxu0 0.0
    %6042 = vmatprep.subr.mxu0 0.0
    %6043 = vmatpush1.xpose.msra.mxu0 0.0
    %6044 = vmatprep.subr.mxu0 0.0
    %6045 = vmatpush1.xpose.msra.mxu0 0.0
    %6046 = vmatprep.subr.mxu0 0.0
    %6047 = vmatpush1.xpose.msra.mxu0 0.0
    %6048 = vmatprep.subr.mxu0 0.0
    %6049 = vmatpush1.xpose.msra.mxu0 0.0
    %6050 = vmatprep.subr.mxu0 0.0
    %6051 = vmatpush1.xpose.msra.mxu0 0.0
    %6052 = vmatprep.subr.mxu0 0.0
    %6053 = vmatpush1.xpose.msra.mxu0 0.0
    %6054 = vmatprep.subr.mxu0 0.0
    %6055 = vmatpush1.xpose.msra.mxu0 0.0
    %6056 = vmatprep.subr.mxu0 0.0
    %6057 = vmatpush1.xpose.msra.mxu0 0.0
    %6058 = vmatprep.subr.mxu0 0.0
    %6059 = vmatpush1.xpose.msra.mxu0 0.0
    %6060 = vmatprep.subr.mxu0 0.0
    %6061 = vmatpush1.xpose.msra.mxu0 0.0
    %6062 = vmatprep.subr.mxu0 0.0
    %6063 = vmatpush1.xpose.msra.mxu0 0.0
    %6064 = vmatprep.subr.mxu0 0.0
    %6065 = vmatpush1.xpose.msra.mxu0 0.0
    %6066 = vmatprep.subr.mxu0 0.0
    %6067 = vmatpush1.xpose.msra.mxu0 0.0
    %6068 = vmatprep.subr.mxu0 0.0
    %6069 = vmatpush1.xpose.msra.mxu0 0.0
    %6070 = vmatprep.subr.mxu0 0.0
    %6071 = vmatpush1.xpose.msra.mxu0 0.0
    %6072 = vmatprep.subr.mxu0 0.0
    %6073 = vmatpush1.xpose.msra.mxu0 0.0
    %6074 = vmatprep.subr.mxu0 0.0
    %6075 = vmatpush1.xpose.msra.mxu0 0.0
    %6076 = vmatprep.subr.mxu0 0.0
    %6077 = vmatpush1.xpose.msra.mxu0 0.0
    %6078 = vmatprep.subr.mxu0 0.0
    %6079 = vmatpush1.xpose.msra.mxu0 0.0
    %6080 = vmatprep.subr.mxu0 0.0
    %6081 = vmatpush1.xpose.msra.mxu0 0.0
    %6082 = vmatprep.subr.mxu0 0.0
    %6083 = vmatpush1.xpose.msra.mxu0 0.0
    %6084 = vmatprep.mubr.f32.mxu0 0.0
    %6085 = vmatmul.mubr.f32.gmra.mrb[0].mxu0 %v6012
    %v6086 = vpop.f32.mrb[0].mxu0
    %v6087 = vadd.f32 %v4661, %v6086
    %v6088 = vpop.f32.mrb[0].mxu0
    %6089 = vmatprep.mubr.f32.mxu0 0.0
    %6090 = vmatmul.mubr.f32.gmra.mrb[0].mxu0 %v6014
    %v6091 = vpop.f32.mrb[0].mxu0
    %v6092 = vadd.f32 %v4662, %v6091
    %v6093 = vpop.f32.mrb[0].mxu0
    %6094 = vdwg.mxu0
    %v6095 = vsel %vm671, %v6087, -inf
    %6096 = vmax.xlane.f32.xlu0 %v6095
    %v6097 = vpop.xlane.xlu0 %6096
    %v6098 = vsel %vm671, %v6092, -inf
    %6099 = vmax.xlane.f32.xlu0 %v6098
    %v6100 = vpop.xlane.xlu0 %6099
    %v6101 = vsub.f32 %v6087, %v6097
    %v6102 = vsub.f32 %v6092, %v6100
    %v6103 = vmul.f32 %v6101, 1.442695
    %v6104 = vpow.pop %v6103
    %v6105 = vmul.f32 %v6102, 1.442695
    %v6106 = vpow.pop %v6105
    %v6107 = vsel %vm671, %v6104, 0.0
    %6108 = vadd.xlane.f32.xlu0 %v6107
    %v6109 = vpop.xlane.xlu0 %6108
    %v6110 = vsel %vm671, %v6106, 0.0
    %6111 = vadd.xlane.f32.xlu0 %v6110
    %v6112 = vpop.xlane.xlu0 %6111
    %v6113 = vrcp.pop %v6109
    %v6114 = vmul.f32 %v6104, %v6113
    %v6115 = vrcp.pop %v6112
    %v6116 = vmul.f32 %v6106, %v6115
    %6117 = vrot.lane.b32.xlu0 %v5794, 48
    %v6118 = vpop.permute.xlu0 %6117
    %6119 = vrot.lane.b32.xlu0 %v5799, 48
    %v6120 = vpop.permute.xlu0 %6119
    %v6124 = vsel %vm671, %v6114, 0
    %v6127 = vsel %vm671, %v6116, 0
    %6129 = vmatprep.subr.mxu0 0.0
    %6130 = vmatpush1.msra.mxu0 %v6118
    %6131 = vmatprep.subr.mxu0 0.0
    %6132 = vmatpush1.msra.mxu0 %v6120
    %6133 = vmatprep.subr.mxu0 0.0
    %6134 = vmatpush1.msra.mxu0 0.0
    %6135 = vmatprep.subr.mxu0 0.0
    %6136 = vmatpush1.msra.mxu0 0.0
    %6137 = vmatprep.subr.mxu0 0.0
    %6138 = vmatpush1.msra.mxu0 0.0
    %6139 = vmatprep.subr.mxu0 0.0
    %6140 = vmatpush1.msra.mxu0 0.0
    %6141 = vmatprep.subr.mxu0 0.0
    %6142 = vmatpush1.msra.mxu0 0.0
    %6143 = vmatprep.subr.mxu0 0.0
    %6144 = vmatpush1.msra.mxu0 0.0
    %6145 = vmatprep.subr.mxu0 0.0
    %6146 = vmatpush1.msra.mxu0 0.0
    %6147 = vmatprep.subr.mxu0 0.0
    %6148 = vmatpush1.msra.mxu0 0.0
    %6149 = vmatprep.subr.mxu0 0.0
    %6150 = vmatpush1.msra.mxu0 0.0
    %6151 = vmatprep.subr.mxu0 0.0
    %6152 = vmatpush1.msra.mxu0 0.0
    %6153 = vmatprep.subr.mxu0 0.0
    %6154 = vmatpush1.msra.mxu0 0.0
    %6155 = vmatprep.subr.mxu0 0.0
    %6156 = vmatpush1.msra.mxu0 0.0
    %6157 = vmatprep.subr.mxu0 0.0
    %6158 = vmatpush1.msra.mxu0 0.0
    %6159 = vmatprep.subr.mxu0 0.0
    %6160 = vmatpush1.msra.mxu0 0.0
    %6161 = vmatprep.subr.mxu0 0.0
    %6162 = vmatpush1.msra.mxu0 0.0
    %6163 = vmatprep.subr.mxu0 0.0
    %6164 = vmatpush1.msra.mxu0 0.0
    %6165 = vmatprep.subr.mxu0 0.0
    %6166 = vmatpush1.msra.mxu0 0.0
    %6167 = vmatprep.subr.mxu0 0.0
    %6168 = vmatpush1.msra.mxu0 0.0
    %6169 = vmatprep.subr.mxu0 0.0
    %6170 = vmatpush1.msra.mxu0 0.0
    %6171 = vmatprep.subr.mxu0 0.0
    %6172 = vmatpush1.msra.mxu0 0.0
    %6173 = vmatprep.subr.mxu0 0.0
    %6174 = vmatpush1.msra.mxu0 0.0
    %6175 = vmatprep.subr.mxu0 0.0
    %6176 = vmatpush1.msra.mxu0 0.0
    %6177 = vmatprep.subr.mxu0 0.0
    %6178 = vmatpush1.msra.mxu0 0.0
    %6179 = vmatprep.subr.mxu0 0.0
    %6180 = vmatpush1.msra.mxu0 0.0
    %6181 = vmatprep.subr.mxu0 0.0
    %6182 = vmatpush1.msra.mxu0 0.0
    %6183 = vmatprep.subr.mxu0 0.0
    %6184 = vmatpush1.msra.mxu0 0.0
    %6185 = vmatprep.subr.mxu0 0.0
    %6186 = vmatpush1.msra.mxu0 0.0
    %6187 = vmatprep.subr.mxu0 0.0
    %6188 = vmatpush1.msra.mxu0 0.0
    %6189 = vmatprep.subr.mxu0 0.0
    %6190 = vmatpush1.msra.mxu0 0.0
    %6191 = vmatprep.subr.mxu0 0.0
    %6192 = vmatpush1.msra.mxu0 0.0
    %6193 = vmatprep.mubr.f32.mxu0 0.0
    %6194 = vmatmul.mubr.f32.gmra.mrb[0].mxu0 %v6124
    %v6195 = vpop.f32.mrb[0].mxu0
    %v6196 = vadd.f32 0.0, %v6195
    %v6197 = vpop.f32.mrb[0].mxu0
    %6198 = vmatprep.mubr.f32.mxu0 0.0
    %6199 = vmatmul.mubr.f32.gmra.mrb[0].mxu0 %v6127
    %v6200 = vpop.f32.mrb[0].mxu0
    %v6201 = vadd.f32 0.0, %v6200
    %v6202 = vpop.f32.mrb[0].mxu0
    %6203 = vdwg.mxu0
    %6206 = vrot.lane.b32.xlu0 %v5649, 32
    %v6207 = vpop.permute.xlu0 %6206
    %6208 = vrot.lane.b32.xlu0 %v5651, 32
    %v6209 = vpop.permute.xlu0 %6208
    %v6213 = vsel %vm671, %v6196, 0
    %v6216 = vsel %vm671, %v6201, 0
    %6218 = vmatprep.subr.mxu0 0.0
    %6219 = vmatpush1.msra.mxu0 %v6207
    %6220 = vmatprep.subr.mxu0 0.0
    %6221 = vmatpush1.msra.mxu0 %v6209
    %6222 = vmatprep.subr.mxu0 0.0
    %6223 = vmatpush1.msra.mxu0 0.0
    %6224 = vmatprep.subr.mxu0 0.0
    %6225 = vmatpush1.msra.mxu0 0.0
    %6226 = vmatprep.subr.mxu0 0.0
    %6227 = vmatpush1.msra.mxu0 0.0
    %6228 = vmatprep.subr.mxu0 0.0
    %6229 = vmatpush1.msra.mxu0 0.0
    %6230 = vmatprep.subr.mxu0 0.0
    %6231 = vmatpush1.msra.mxu0 0.0
    %6232 = vmatprep.subr.mxu0 0.0
    %6233 = vmatpush1.msra.mxu0 0.0
    %6234 = vmatprep.subr.mxu0 0.0
    %6235 = vmatpush1.msra.mxu0 0.0
    %6236 = vmatprep.subr.mxu0 0.0
    %6237 = vmatpush1.msra.mxu0 0.0
    %6238 = vmatprep.subr.mxu0 0.0
    %6239 = vmatpush1.msra.mxu0 0.0
    %6240 = vmatprep.subr.mxu0 0.0
    %6241 = vmatpush1.msra.mxu0 0.0
    %6242 = vmatprep.subr.mxu0 0.0
    %6243 = vmatpush1.msra.mxu0 0.0
    %6244 = vmatprep.subr.mxu0 0.0
    %6245 = vmatpush1.msra.mxu0 0.0
    %6246 = vmatprep.subr.mxu0 0.0
    %6247 = vmatpush1.msra.mxu0 0.0
    %6248 = vmatprep.subr.mxu0 0.0
    %6249 = vmatpush1.msra.mxu0 0.0
    %6250 = vmatprep.subr.mxu0 0.0
    %6251 = vmatpush1.msra.mxu0 0.0
    %6252 = vmatprep.subr.mxu0 0.0
    %6253 = vmatpush1.msra.mxu0 0.0
    %6254 = vmatprep.subr.mxu0 0.0
    %6255 = vmatpush1.msra.mxu0 0.0
    %6256 = vmatprep.subr.mxu0 0.0
    %6257 = vmatpush1.msra.mxu0 0.0
    %6258 = vmatprep.subr.mxu0 0.0
    %6259 = vmatpush1.msra.mxu0 0.0
    %6260 = vmatprep.subr.mxu0 0.0
    %6261 = vmatpush1.msra.mxu0 0.0
    %6262 = vmatprep.subr.mxu0 0.0
    %6263 = vmatpush1.msra.mxu0 0.0
    %6264 = vmatprep.subr.mxu0 0.0
    %6265 = vmatpush1.msra.mxu0 0.0
    %6266 = vmatprep.subr.mxu0 0.0
    %6267 = vmatpush1.msra.mxu0 0.0
    %6268 = vmatprep.subr.mxu0 0.0
    %6269 = vmatpush1.msra.mxu0 0.0
    %6270 = vmatprep.subr.mxu0 0.0
    %6271 = vmatpush1.msra.mxu0 0.0
    %6272 = vmatprep.subr.mxu0 0.0
    %6273 = vmatpush1.msra.mxu0 0.0
    %6274 = vmatprep.subr.mxu0 0.0
    %6275 = vmatpush1.msra.mxu0 0.0
    %6276 = vmatprep.subr.mxu0 0.0
    %6277 = vmatpush1.msra.mxu0 0.0
    %6278 = vmatprep.subr.mxu0 0.0
    %6279 = vmatpush1.msra.mxu0 0.0
    %6280 = vmatprep.subr.mxu0 0.0
    %6281 = vmatpush1.msra.mxu0 0.0
    %6282 = vmatprep.mubr.f32.mxu0 0.0
    %6283 = vmatmul.mubr.f32.gmra.mrb[0].mxu0 %v6213
    %v6284 = vpop.f32.mrb[0].mxu0
    %v6285 = vadd.f32 0.0, %v6284
    %v6286 = vpop.f32.mrb[0].mxu0
    %6287 = vmatprep.mubr.f32.mxu0 0.0
    %6288 = vmatmul.mubr.f32.gmra.mrb[0].mxu0 %v6216
    %v6289 = vpop.f32.mrb[0].mxu0
    %v6290 = vadd.f32 0.0, %v6289
    %v6291 = vpop.f32.mrb[0].mxu0
    %6292 = vdwg.mxu0
    %6295 = vrot.lane.b32.xlu0 %v5645, 32
    %v6296 = vpop.permute.xlu0 %6295
    %6297 = vrot.lane.b32.xlu0 %v5647, 32
    %v6298 = vpop.permute.xlu0 %6297
    %v6302 = vsel %vm671, %v5996, 0
    %v6305 = vsel %vm671, %v6001, 0
    %6307 = vmatprep.subr.mxu0 0.0
    %6308 = vmatpush1.msra.mxu0 %v6296
    %6309 = vmatprep.subr.mxu0 0.0
    %6310 = vmatpush1.msra.mxu0 %v6298
    %6311 = vmatprep.subr.mxu0 0.0
    %6312 = vmatpush1.msra.mxu0 0.0
    %6313 = vmatprep.subr.mxu0 0.0
    %6314 = vmatpush1.msra.mxu0 0.0
    %6315 = vmatprep.subr.mxu0 0.0
    %6316 = vmatpush1.msra.mxu0 0.0
    %6317 = vmatprep.subr.mxu0 0.0
    %6318 = vmatpush1.msra.mxu0 0.0
    %6319 = vmatprep.subr.mxu0 0.0
    %6320 = vmatpush1.msra.mxu0 0.0
    %6321 = vmatprep.subr.mxu0 0.0
    %6322 = vmatpush1.msra.mxu0 0.0
    %6323 = vmatprep.subr.mxu0 0.0
    %6324 = vmatpush1.msra.mxu0 0.0
    %6325 = vmatprep.subr.mxu0 0.0
    %6326 = vmatpush1.msra.mxu0 0.0
    %6327 = vmatprep.subr.mxu0 0.0
    %6328 = vmatpush1.msra.mxu0 0.0
    %6329 = vmatprep.subr.mxu0 0.0
    %6330 = vmatpush1.msra.mxu0 0.0
    %6331 = vmatprep.subr.mxu0 0.0
    %6332 = vmatpush1.msra.mxu0 0.0
    %6333 = vmatprep.subr.mxu0 0.0
    %6334 = vmatpush1.msra.mxu0 0.0
    %6335 = vmatprep.subr.mxu0 0.0
    %6336 = vmatpush1.msra.mxu0 0.0
    %6337 = vmatprep.subr.mxu0 0.0
    %6338 = vmatpush1.msra.mxu0 0.0
    %6339 = vmatprep.subr.mxu0 0.0
    %6340 = vmatpush1.msra.mxu0 0.0
    %6341 = vmatprep.subr.mxu0 0.0
    %6342 = vmatpush1.msra.mxu0 0.0
    %6343 = vmatprep.subr.mxu0 0.0
    %6344 = vmatpush1.msra.mxu0 0.0
    %6345 = vmatprep.subr.mxu0 0.0
    %6346 = vmatpush1.msra.mxu0 0.0
    %6347 = vmatprep.subr.mxu0 0.0
    %6348 = vmatpush1.msra.mxu0 0.0
    %6349 = vmatprep.subr.mxu0 0.0
    %6350 = vmatpush1.msra.mxu0 0.0
    %6351 = vmatprep.subr.mxu0 0.0
    %6352 = vmatpush1.msra.mxu0 0.0
    %6353 = vmatprep.subr.mxu0 0.0
    %6354 = vmatpush1.msra.mxu0 0.0
    %6355 = vmatprep.subr.mxu0 0.0
    %6356 = vmatpush1.msra.mxu0 0.0
    %6357 = vmatprep.subr.mxu0 0.0
    %6358 = vmatpush1.msra.mxu0 0.0
    %6359 = vmatprep.subr.mxu0 0.0
    %6360 = vmatpush1.msra.mxu0 0.0
    %6361 = vmatprep.subr.mxu0 0.0
    %6362 = vmatpush1.msra.mxu0 0.0
    %6363 = vmatprep.subr.mxu0 0.0
    %6364 = vmatpush1.msra.mxu0 0.0
    %6365 = vmatprep.subr.mxu0 0.0
    %6366 = vmatpush1.msra.mxu0 0.0
    %6367 = vmatprep.subr.mxu0 0.0
    %6368 = vmatpush1.msra.mxu0 0.0
    %6369 = vmatprep.subr.mxu0 0.0
    %6370 = vmatpush1.msra.mxu0 0.0
    %6371 = vmatprep.mubr.f32.mxu0 0.0
    %6372 = vmatmul.mubr.f32.gmra.mrb[0].mxu0 %v6302
    %v6373 = vpop.f32.mrb[0].mxu0
    %v6374 = vadd.f32 %v6285, %v6373
    %v6375 = vpop.f32.mrb[0].mxu0
    %6376 = vmatprep.mubr.f32.mxu0 0.0
    %6377 = vmatmul.mubr.f32.gmra.mrb[0].mxu0 %v6305
    %v6378 = vpop.f32.mrb[0].mxu0
    %v6379 = vadd.f32 %v6290, %v6378
    %v6380 = vpop.f32.mrb[0].mxu0
    %6381 = vdwg.mxu0
    %v6382 = vadd.f32 %v5642, %v6374
    %v6383 = vadd.f32 %v5643, %v6379
    %6384 = vrot.lane.b32.xlu0 %v5671, 96
    %v6385 = vpop.permute.xlu0 %6384
    %v6386 = vrot.slane %v6385, 1
    %v6387 = vlaneseq
    %v6388 = vshrl.u32 %v6387, 7
    %v6389 = vsub.s32 0, %v6388
    %v6390 = vrot.slane %v6386, %v6389
    %v6392 = vadd.f32 %v6382, %v6390
    %v6393 = vadd.f32 %v6383, %v6390
    %v6394 = vsel %vm369, %v6392, 0.0
    %6395 = vadd.xlane.f32.xlu0 %v6394
    %v6396 = vpop.xlane.xlu0 %6395
    %v6397 = vsel %vm369, %v6393, 0.0
    %6398 = vadd.xlane.f32.xlu0 %v6397
    %v6399 = vpop.xlane.xlu0 %6398
    %v6400 = vmul.f32 %v6396, %v394
    %v6401 = vmul.f32 %v6399, %v394
    %v6402 = vsub.f32 %v6392, %v6400
    %v6403 = vsub.f32 %v6393, %v6401
    %v6404 = vmul.f32 %v6402, %v6402
    %v6405 = vmul.f32 %v6403, %v6403
    %v6406 = vsel %vm369, %v6404, 0.0
    %6407 = vadd.xlane.f32.xlu0 %v6406
    %v6408 = vpop.xlane.xlu0 %6407
    %v6409 = vsel %vm369, %v6405, 0.0
    %6410 = vadd.xlane.f32.xlu0 %v6409
    %v6411 = vpop.xlane.xlu0 %6410
    %v6412 = vmul.f32 %v6408, %v394
    %v6413 = vmul.f32 %v6411, %v394
    %v6414 = vadd.f32 %v6412, 1e-05
    %v6415 = vadd.f32 %v6413, 1e-05
    %v6416 = vrsqrt.pop %v6414
    %v6417 = vrsqrt.pop %v6415
    %v6418 = vmul.f32 %v6402, %v6416
    %v6419 = vmul.f32 %v6403, %v6417
    %6420 = vrot.lane.b32.xlu0 %v5671, 64
    %v6421 = vpop.permute.xlu0 %6420
    %v6422 = vrot.slane %v6421, 1
    %v6423 = vlaneseq
    %v6424 = vshrl.u32 %v6423, 7
    %v6425 = vsub.s32 0, %v6424
    %v6426 = vrot.slane %v6422, %v6425
    %v6428 = vmul.f32 %v6418, %v6426
    %v6429 = vmul.f32 %v6419, %v6426
    %6430 = vrot.lane.b32.xlu0 %v5671, 32
    %v6431 = vpop.permute.xlu0 %6430
    %v6432 = vrot.slane %v6431, 1
    %v6433 = vlaneseq
    %v6434 = vshrl.u32 %v6433, 7
    %v6435 = vsub.s32 0, %v6434
    %v6436 = vrot.slane %v6432, %v6435
    %v6438 = vadd.f32 %v6428, %v6436
    %v6439 = vadd.f32 %v6429, %v6436
    %v6440 = vrot.slane %v5671, 2
    %v6441 = vlaneseq
    %v6442 = vshrl.u32 %v6441, 7
    %v6443 = vsub.s32 0, %v6442
    %v6444 = vrot.slane %v6440, %v6443
    %v6447 = vsel %vm369, %v6438, 0
    %v6450 = vsel %vm369, %v6439, 0
    %6452 = vmatprep.subr.mxu0 0.0
    %6453 = vmatpush1.msra.mxu0 %v5646
    %6454 = vmatprep.subr.mxu0 0.0
    %6455 = vmatpush1.msra.mxu0 %v5648
    %6456 = vmatprep.subr.mxu0 0.0
    %6457 = vmatpush1.msra.mxu0 %v5650
    %6458 = vmatprep.subr.mxu0 0.0
    %6459 = vmatpush1.msra.mxu0 %v5652
    %6460 = vmatprep.subr.mxu0 0.0
    %6461 = vmatpush1.msra.mxu0 0.0
    %6462 = vmatprep.subr.mxu0 0.0
    %6463 = vmatpush1.msra.mxu0 0.0
    %6464 = vmatprep.subr.mxu0 0.0
    %6465 = vmatpush1.msra.mxu0 0.0
    %6466 = vmatprep.subr.mxu0 0.0
    %6467 = vmatpush1.msra.mxu0 0.0
    %6468 = vmatprep.subr.mxu0 0.0
    %6469 = vmatpush1.msra.mxu0 0.0
    %6470 = vmatprep.subr.mxu0 0.0
    %6471 = vmatpush1.msra.mxu0 0.0
    %6472 = vmatprep.subr.mxu0 0.0
    %6473 = vmatpush1.msra.mxu0 0.0
    %6474 = vmatprep.subr.mxu0 0.0
    %6475 = vmatpush1.msra.mxu0 0.0
    %6476 = vmatprep.subr.mxu0 0.0
    %6477 = vmatpush1.msra.mxu0 0.0
    %6478 = vmatprep.subr.mxu0 0.0
    %6479 = vmatpush1.msra.mxu0 0.0
    %6480 = vmatprep.subr.mxu0 0.0
    %6481 = vmatpush1.msra.mxu0 0.0
    %6482 = vmatprep.subr.mxu0 0.0
    %6483 = vmatpush1.msra.mxu0 0.0
    %6484 = vmatprep.subr.mxu0 0.0
    %6485 = vmatpush1.msra.mxu0 0.0
    %6486 = vmatprep.subr.mxu0 0.0
    %6487 = vmatpush1.msra.mxu0 0.0
    %6488 = vmatprep.subr.mxu0 0.0
    %6489 = vmatpush1.msra.mxu0 0.0
    %6490 = vmatprep.subr.mxu0 0.0
    %6491 = vmatpush1.msra.mxu0 0.0
    %6492 = vmatprep.subr.mxu0 0.0
    %6493 = vmatpush1.msra.mxu0 0.0
    %6494 = vmatprep.subr.mxu0 0.0
    %6495 = vmatpush1.msra.mxu0 0.0
    %6496 = vmatprep.subr.mxu0 0.0
    %6497 = vmatpush1.msra.mxu0 0.0
    %6498 = vmatprep.subr.mxu0 0.0
    %6499 = vmatpush1.msra.mxu0 0.0
    %6500 = vmatprep.subr.mxu0 0.0
    %6501 = vmatpush1.msra.mxu0 0.0
    %6502 = vmatprep.subr.mxu0 0.0
    %6503 = vmatpush1.msra.mxu0 0.0
    %6504 = vmatprep.subr.mxu0 0.0
    %6505 = vmatpush1.msra.mxu0 0.0
    %6506 = vmatprep.subr.mxu0 0.0
    %6507 = vmatpush1.msra.mxu0 0.0
    %6508 = vmatprep.subr.mxu0 0.0
    %6509 = vmatpush1.msra.mxu0 0.0
    %6510 = vmatprep.subr.mxu0 0.0
    %6511 = vmatpush1.msra.mxu0 0.0
    %6512 = vmatprep.subr.mxu0 0.0
    %6513 = vmatpush1.msra.mxu0 0.0
    %6514 = vmatprep.subr.mxu0 0.0
    %6515 = vmatpush1.msra.mxu0 0.0
    %6516 = vmatprep.mubr.f32.mxu0 0.0
    %6517 = vmatmul.mubr.f32.gmra.mrb[0].mxu0 %v6447
    %v6518 = vpop.f32.mrb[0].mxu0
    %v6519 = vadd.f32 %v6444, %v6518
    %v6520 = vpop.f32.mrb[0].mxu0
    %6521 = vmatprep.mubr.f32.mxu0 0.0
    %6522 = vmatmul.mubr.f32.gmra.mrb[0].mxu0 %v6450
    %v6523 = vpop.f32.mrb[0].mxu0
    %v6524 = vadd.f32 %v6444, %v6523
    %v6525 = vpop.f32.mrb[0].mxu0
    %6526 = vdwg.mxu0
    %v6527 = vmul.f32 %v6519, 1.702
    %v6528 = vmul.f32 %v6524, 1.702
    %v6529 = vxor.u32 %v6527, 2147483648
    %v6530 = vxor.u32 %v6528, 2147483648
    %v6531 = vmul.f32 %v6529, 1.442695
    %v6532 = vpow.pop %v6531
    %v6533 = vmul.f32 %v6530, 1.442695
    %v6534 = vpow.pop %v6533
    %v6535 = vadd.f32 %v6532, 1.0
    %v6536 = vadd.f32 %v6534, 1.0
    %v6537 = vrcp.pop %v6535
    %v6538 = vmul.f32 1.0, %v6537
    %v6539 = vrcp.pop %v6536
    %v6540 = vmul.f32 1.0, %v6539
    %v6541 = vmul.f32 %v6519, %v6538
    %v6542 = vmul.f32 %v6524, %v6540
    %6543 = vmatprep.subr.mxu0 0.0
    %6544 = vmatpush1.msra.mxu0 %v5654
    %6545 = vmatprep.subr.mxu0 0.0
    %6546 = vmatpush1.msra.mxu0 %v5655
    %6547 = vmatprep.subr.mxu0 0.0
    %6548 = vmatpush1.msra.mxu0 %v5656
    %6549 = vmatprep.subr.mxu0 0.0
    %6550 = vmatpush1.msra.mxu0 %v5657
    %6551 = vmatprep.subr.mxu0 0.0
    %6552 = vmatpush1.msra.mxu0 %v5658
    %6553 = vmatprep.subr.mxu0 0.0
    %6554 = vmatpush1.msra.mxu0 %v5659
    %6555 = vmatprep.subr.mxu0 0.0
    %6556 = vmatpush1.msra.mxu0 %v5660
    %6557 = vmatprep.subr.mxu0 0.0
    %6558 = vmatpush1.msra.mxu0 %v5661
    %6559 = vmatprep.subr.mxu0 0.0
    %6560 = vmatpush1.msra.mxu0 %v5662
    %6561 = vmatprep.subr.mxu0 0.0
    %6562 = vmatpush1.msra.mxu0 %v5663
    %6563 = vmatprep.subr.mxu0 0.0
    %6564 = vmatpush1.msra.mxu0 %v5664
    %6565 = vmatprep.subr.mxu0 0.0
    %6566 = vmatpush1.msra.mxu0 %v5665
    %6567 = vmatprep.subr.mxu0 0.0
    %6568 = vmatpush1.msra.mxu0 %v5666
    %6569 = vmatprep.subr.mxu0 0.0
    %6570 = vmatpush1.msra.mxu0 %v5667
    %6571 = vmatprep.subr.mxu0 0.0
    %6572 = vmatpush1.msra.mxu0 %v5668
    %6573 = vmatprep.subr.mxu0 0.0
    %6574 = vmatpush1.msra.mxu0 %v5669
    %6575 = vmatprep.subr.mxu0 0.0
    %6576 = vmatpush1.msra.mxu0 0.0
    %6577 = vmatprep.subr.mxu0 0.0
    %6578 = vmatpush1.msra.mxu0 0.0
    %6579 = vmatprep.subr.mxu0 0.0
    %6580 = vmatpush1.msra.mxu0 0.0
    %6581 = vmatprep.subr.mxu0 0.0
    %6582 = vmatpush1.msra.mxu0 0.0
    %6583 = vmatprep.subr.mxu0 0.0
    %6584 = vmatpush1.msra.mxu0 0.0
    %6585 = vmatprep.subr.mxu0 0.0
    %6586 = vmatpush1.msra.mxu0 0.0
    %6587 = vmatprep.subr.mxu0 0.0
    %6588 = vmatpush1.msra.mxu0 0.0
    %6589 = vmatprep.subr.mxu0 0.0
    %6590 = vmatpush1.msra.mxu0 0.0
    %6591 = vmatprep.subr.mxu0 0.0
    %6592 = vmatpush1.msra.mxu0 0.0
    %6593 = vmatprep.subr.mxu0 0.0
    %6594 = vmatpush1.msra.mxu0 0.0
    %6595 = vmatprep.subr.mxu0 0.0
    %6596 = vmatpush1.msra.mxu0 0.0
    %6597 = vmatprep.subr.mxu0 0.0
    %6598 = vmatpush1.msra.mxu0 0.0
    %6599 = vmatprep.subr.mxu0 0.0
    %6600 = vmatpush1.msra.mxu0 0.0
    %6601 = vmatprep.subr.mxu0 0.0
    %6602 = vmatpush1.msra.mxu0 0.0
    %6603 = vmatprep.subr.mxu0 0.0
    %6604 = vmatpush1.msra.mxu0 0.0
    %6605 = vmatprep.subr.mxu0 0.0
    %6606 = vmatpush1.msra.mxu0 0.0
    %6607 = vmatprep.mubr.f32.mxu0 0.0
    %6608 = vmatmul.mubr.f32.gmra.mrb[0].mxu0 %v6541
    %v6609 = vpop.f32.mrb[0].mxu0
    %v6610 = vadd.f32 0.0, %v6609
    %v6611 = vpop.f32.mrb[0].mxu0
    %6612 = vmatprep.mubr.f32.mxu0 0.0
    %6613 = vmatmul.mubr.f32.gmra.mrb[0].mxu0 %v6542
    %v6614 = vpop.f32.mrb[0].mxu0
    %v6615 = vadd.f32 0.0, %v6614
    %v6616 = vpop.f32.mrb[0].mxu0
    %6617 = vdwg.mxu0
    %v6618 = vadd.f32 %v6392, %v6610
    %v6619 = vadd.f32 %v6393, %v6615
    %v6620 = vrot.slane %v5671, 3
    %v6621 = vlaneseq
    %v6622 = vshrl.u32 %v6621, 7
    %v6623 = vsub.s32 0, %v6622
    %v6624 = vrot.slane %v6620, %v6623
    %v6626 = vadd.f32 %v6618, %v6624
    %v6627 = vadd.f32 %v6619, %v6624
    %v6628 = vld [vmem:[%s15] sm:$0x3]
    %v6629 = vsel %vm671, %v4245, 0
    %6631 = vmatprep.subr.mxu0 0.0
    %6632 = vmatpush1.msra.mxu0 %v6626
    %6633 = vmatprep.subr.mxu0 0.0
    %6634 = vmatpush1.msra.mxu0 %v6627
    %6635 = vmatprep.subr.mxu0 0.0
    %6636 = vmatpush1.msra.mxu0 0.0
    %6637 = vmatprep.subr.mxu0 0.0
    %6638 = vmatpush1.msra.mxu0 0.0
    %6639 = vmatprep.subr.mxu0 0.0
    %6640 = vmatpush1.msra.mxu0 0.0
    %6641 = vmatprep.subr.mxu0 0.0
    %6642 = vmatpush1.msra.mxu0 0.0
    %6643 = vmatprep.subr.mxu0 0.0
    %6644 = vmatpush1.msra.mxu0 0.0
    %6645 = vmatprep.subr.mxu0 0.0
    %6646 = vmatpush1.msra.mxu0 0.0
    %6647 = vmatprep.subr.mxu0 0.0
    %6648 = vmatpush1.msra.mxu0 0.0
    %6649 = vmatprep.subr.mxu0 0.0
    %6650 = vmatpush1.msra.mxu0 0.0
    %6651 = vmatprep.subr.mxu0 0.0
    %6652 = vmatpush1.msra.mxu0 0.0
    %6653 = vmatprep.subr.mxu0 0.0
    %6654 = vmatpush1.msra.mxu0 0.0
    %6655 = vmatprep.subr.mxu0 0.0
    %6656 = vmatpush1.msra.mxu0 0.0
    %6657 = vmatprep.subr.mxu0 0.0
    %6658 = vmatpush1.msra.mxu0 0.0
    %6659 = vmatprep.subr.mxu0 0.0
    %6660 = vmatpush1.msra.mxu0 0.0
    %6661 = vmatprep.subr.mxu0 0.0
    %6662 = vmatpush1.msra.mxu0 0.0
    %6663 = vmatprep.subr.mxu0 0.0
    %6664 = vmatpush1.msra.mxu0 0.0
    %6665 = vmatprep.subr.mxu0 0.0
    %6666 = vmatpush1.msra.mxu0 0.0
    %6667 = vmatprep.subr.mxu0 0.0
    %6668 = vmatpush1.msra.mxu0 0.0
    %6669 = vmatprep.subr.mxu0 0.0
    %6670 = vmatpush1.msra.mxu0 0.0
    %6671 = vmatprep.subr.mxu0 0.0
    %6672 = vmatpush1.msra.mxu0 0.0
    %6673 = vmatprep.subr.mxu0 0.0
    %6674 = vmatpush1.msra.mxu0 0.0
    %6675 = vmatprep.subr.mxu0 0.0
    %6676 = vmatpush1.msra.mxu0 0.0
    %6677 = vmatprep.subr.mxu0 0.0
    %6678 = vmatpush1.msra.mxu0 0.0
    %6679 = vmatprep.subr.mxu0 0.0
    %6680 = vmatpush1.msra.mxu0 0.0
    %6681 = vmatprep.subr.mxu0 0.0
    %6682 = vmatpush1.msra.mxu0 0.0
    %6683 = vmatprep.subr.mxu0 0.0
    %6684 = vmatpush1.msra.mxu0 0.0
    %6685 = vmatprep.subr.mxu0 0.0
    %6686 = vmatpush1.msra.mxu0 0.0
    %6687 = vmatprep.subr.mxu0 0.0
    %6688 = vmatpush1.msra.mxu0 0.0
    %6689 = vmatprep.subr.mxu0 0.0
    %6690 = vmatpush1.msra.mxu0 0.0
    %6691 = vmatprep.subr.mxu0 0.0
    %6692 = vmatpush1.msra.mxu0 0.0
    %6693 = vmatprep.subr.mxu0 0.0
    %6694 = vmatpush1.msra.mxu0 0.0
    %6695 = vmatprep.mubr.f32.mxu0 0.0
    %6696 = vmatmul.mubr.f32.gmra.mrb[0].mxu0 %v6629
    %v6697 = vpop.f32.mrb[0].mxu0
    %v6698 = vadd.f32 0.0, %v6697
    %v6699 = vpop.f32.mrb[0].mxu0
    %6700 = vdwg.mxu0
    %vm6701 = vcmask 254976
    %v6702 = vsel %vm6701, %v6698, 0.0
    %6703 = vadd.xlane.f32.xlu0 %v6702
    %v6704 = vpop.xlane.xlu0 %6703
    %v6705 = vmul.f32 %v6704, %v394
    %v6706 = vsub.f32 %v6698, %v6705
    %v6707 = vmul.f32 %v6706, %v6706
    %v6708 = vsel %vm6701, %v6707, 0.0
    %6709 = vadd.xlane.f32.xlu0 %v6708
    %v6710 = vpop.xlane.xlu0 %6709
    %v6711 = vmul.f32 %v6710, %v394
    %v6712 = vadd.f32 %v6711, 1e-05
    %v6713 = vrsqrt.pop %v6712
    %v6714 = vmul.f32 %v6706, %v6713
    %v6716 = vlaneseq
    %v6717 = vshrl.u32 %v6716, 7
    %v6718 = vsub.s32 0, %v6717
    %v6719 = vrot.slane %v6628, %v6718
    %v6721 = vmul.f32 %v6714, %v6719
    %6722 = vrot.lane.b32.xlu0 %v6719, 96
    %v6723 = vpop.permute.xlu0 %6722
    %v6725 = vadd.f32 %v6721, %v6723
    %v6726 = vld [vmem:[%s16] sm:$0xff]
    %v6727 = vld [vmem:[%s16 + $0x8] sm:$0xff]
    %v6728 = vld [vmem:[%s16 + $0x10] sm:$0xff]
    %v6729 = vld [vmem:[%s16 + $0x18] sm:$0xff]
    %v6731 = vsel %vm369, %v6725, 0
    %6733 = vmatprep.subr.mxu0 0.0
    %6734 = vmatpush1.msra.mxu0 %v6726
    %6735 = vmatprep.subr.mxu0 0.0
    %6736 = vmatpush1.msra.mxu0 %v6727
    %6737 = vmatprep.subr.mxu0 0.0
    %6738 = vmatpush1.msra.mxu0 %v6728
    %6739 = vmatprep.subr.mxu0 0.0
    %6740 = vmatpush1.msra.mxu0 %v6729
    %6741 = vmatprep.subr.mxu0 0.0
    %6742 = vmatpush1.msra.mxu0 0.0
    %6743 = vmatprep.subr.mxu0 0.0
    %6744 = vmatpush1.msra.mxu0 0.0
    %6745 = vmatprep.subr.mxu0 0.0
    %6746 = vmatpush1.msra.mxu0 0.0
    %6747 = vmatprep.subr.mxu0 0.0
    %6748 = vmatpush1.msra.mxu0 0.0
    %6749 = vmatprep.subr.mxu0 0.0
    %6750 = vmatpush1.msra.mxu0 0.0
    %6751 = vmatprep.subr.mxu0 0.0
    %6752 = vmatpush1.msra.mxu0 0.0
    %6753 = vmatprep.subr.mxu0 0.0
    %6754 = vmatpush1.msra.mxu0 0.0
    %6755 = vmatprep.subr.mxu0 0.0
    %6756 = vmatpush1.msra.mxu0 0.0
    %6757 = vmatprep.subr.mxu0 0.0
    %6758 = vmatpush1.msra.mxu0 0.0
    %6759 = vmatprep.subr.mxu0 0.0
    %6760 = vmatpush1.msra.mxu0 0.0
    %6761 = vmatprep.subr.mxu0 0.0
    %6762 = vmatpush1.msra.mxu0 0.0
    %6763 = vmatprep.subr.mxu0 0.0
    %6764 = vmatpush1.msra.mxu0 0.0
    %6765 = vmatprep.subr.mxu0 0.0
    %6766 = vmatpush1.msra.mxu0 0.0
    %6767 = vmatprep.subr.mxu0 0.0
    %6768 = vmatpush1.msra.mxu0 0.0
    %6769 = vmatprep.subr.mxu0 0.0
    %6770 = vmatpush1.msra.mxu0 0.0
    %6771 = vmatprep.subr.mxu0 0.0
    %6772 = vmatpush1.msra.mxu0 0.0
    %6773 = vmatprep.subr.mxu0 0.0
    %6774 = vmatpush1.msra.mxu0 0.0
    %6775 = vmatprep.subr.mxu0 0.0
    %6776 = vmatpush1.msra.mxu0 0.0
    %6777 = vmatprep.subr.mxu0 0.0
    %6778 = vmatpush1.msra.mxu0 0.0
    %6779 = vmatprep.subr.mxu0 0.0
    %6780 = vmatpush1.msra.mxu0 0.0
    %6781 = vmatprep.subr.mxu0 0.0
    %6782 = vmatpush1.msra.mxu0 0.0
    %6783 = vmatprep.subr.mxu0 0.0
    %6784 = vmatpush1.msra.mxu0 0.0
    %6785 = vmatprep.subr.mxu0 0.0
    %6786 = vmatpush1.msra.mxu0 0.0
    %6787 = vmatprep.subr.mxu0 0.0
    %6788 = vmatpush1.msra.mxu0 0.0
    %6789 = vmatprep.subr.mxu0 0.0
    %6790 = vmatpush1.msra.mxu0 0.0
    %6791 = vmatprep.subr.mxu0 0.0
    %6792 = vmatpush1.msra.mxu0 0.0
    %6793 = vmatprep.subr.mxu0 0.0
    %6794 = vmatpush1.msra.mxu0 0.0
    %6795 = vmatprep.subr.mxu0 0.0
    %6796 = vmatpush1.msra.mxu0 0.0
    %6797 = vmatprep.mubr.f32.mxu0 0.0
    %6798 = vmatmul.mubr.f32.gmra.mrb[0].mxu0 %v6731
    %v6799 = vpop.f32.mrb[0].mxu0
    %v6800 = vadd.f32 0.0, %v6799
    %v6801 = vpop.f32.mrb[0].mxu0
    %6802 = vdwg.mxu0
    %v6803 = vld [vmem:[%s17] sm:$0xff]
    %v6804 = vld [vmem:[%s17 + $0x8] sm:$0xff]
    %v6805 = vld [vmem:[%s17 + $0x10] sm:$0xff]
    %v6806 = vld [vmem:[%s17 + $0x18] sm:$0xff]
    %v6807 = vld [vmem:[%s17 + $0x20] sm:$0xff]
    %v6808 = vld [vmem:[%s17 + $0x28] sm:$0xff]
    %6809 = vrot.lane.b32.xlu0 %v6719, 64
    %v6810 = vpop.permute.xlu0 %6809
    %vm6812 = vcmask 392192
    %v6814 = vsel %vm6812, %v6800, 0
    %6816 = vmatprep.subr.mxu0 0.0
    %6817 = vmatpush1.msra.mxu0 %v6803
    %6818 = vmatprep.subr.mxu0 0.0
    %6819 = vmatpush1.msra.mxu0 %v6804
    %6820 = vmatprep.subr.mxu0 0.0
    %6821 = vmatpush1.msra.mxu0 %v6805
    %6822 = vmatprep.subr.mxu0 0.0
    %6823 = vmatpush1.msra.mxu0 %v6806
    %6824 = vmatprep.subr.mxu0 0.0
    %6825 = vmatpush1.msra.mxu0 %v6807
    %6826 = vmatprep.subr.mxu0 0.0
    %6827 = vmatpush1.msra.mxu0 %v6808
    %6828 = vmatprep.subr.mxu0 0.0
    %6829 = vmatpush1.msra.mxu0 0.0
    %6830 = vmatprep.subr.mxu0 0.0
    %6831 = vmatpush1.msra.mxu0 0.0
    %6832 = vmatprep.subr.mxu0 0.0
    %6833 = vmatpush1.msra.mxu0 0.0
    %6834 = vmatprep.subr.mxu0 0.0
    %6835 = vmatpush1.msra.mxu0 0.0
    %6836 = vmatprep.subr.mxu0 0.0
    %6837 = vmatpush1.msra.mxu0 0.0
    %6838 = vmatprep.subr.mxu0 0.0
    %6839 = vmatpush1.msra.mxu0 0.0
    %6840 = vmatprep.subr.mxu0 0.0
    %6841 = vmatpush1.msra.mxu0 0.0
    %6842 = vmatprep.subr.mxu0 0.0
    %6843 = vmatpush1.msra.mxu0 0.0
    %6844 = vmatprep.subr.mxu0 0.0
    %6845 = vmatpush1.msra.mxu0 0.0
    %6846 = vmatprep.subr.mxu0 0.0
    %6847 = vmatpush1.msra.mxu0 0.0
    %6848 = vmatprep.subr.mxu0 0.0
    %6849 = vmatpush1.msra.mxu0 0.0
    %6850 = vmatprep.subr.mxu0 0.0
    %6851 = vmatpush1.msra.mxu0 0.0
    %6852 = vmatprep.subr.mxu0 0.0
    %6853 = vmatpush1.msra.mxu0 0.0
    %6854 = vmatprep.subr.mxu0 0.0
    %6855 = vmatpush1.msra.mxu0 0.0
    %6856 = vmatprep.subr.mxu0 0.0
    %6857 = vmatpush1.msra.mxu0 0.0
    %6858 = vmatprep.subr.mxu0 0.0
    %6859 = vmatpush1.msra.mxu0 0.0
    %6860 = vmatprep.subr.mxu0 0.0
    %6861 = vmatpush1.msra.mxu0 0.0
    %6862 = vmatprep.subr.mxu0 0.0
    %6863 = vmatpush1.msra.mxu0 0.0
    %6864 = vmatprep.subr.mxu0 0.0
    %6865 = vmatpush1.msra.mxu0 0.0
    %6866 = vmatprep.subr.mxu0 0.0
    %6867 = vmatpush1.msra.mxu0 0.0
    %6868 = vmatprep.subr.mxu0 0.0
    %6869 = vmatpush1.msra.mxu0 0.0
    %6870 = vmatprep.subr.mxu0 0.0
    %6871 = vmatpush1.msra.mxu0 0.0
    %6872 = vmatprep.subr.mxu0 0.0
    %6873 = vmatpush1.msra.mxu0 0.0
    %6874 = vmatprep.subr.mxu0 0.0
    %6875 = vmatpush1.msra.mxu0 0.0
    %6876 = vmatprep.subr.mxu0 0.0
    %6877 = vmatpush1.msra.mxu0 0.0
    %6878 = vmatprep.subr.mxu0 0.0
    %6879 = vmatpush1.msra.mxu0 0.0
    %6880 = vmatprep.mubr.f32.mxu0 0.0
    %6881 = vmatmul.mubr.f32.gmra.mrb[0].mxu0 %v6814
    %v6882 = vpop.f32.mrb[0].mxu0
    %v6883 = vadd.f32 %v6810, %v6882
    %v6884 = vpop.f32.mrb[0].mxu0
    %6885 = vdwg.mxu0
    %v6886 = vld [vmem:[%s18] sm:$0xff]
    %v6887 = vld [vmem:[%s18 + $0x8] sm:$0xff]
    %v6888 = vld [vmem:[%s18 + $0x10] sm:$0xff]
    %v6889 = vld [vmem:[%s18 + $0x18] sm:$0xff]
    %v6890 = vlaneseq
    %v6891 = vshrl.u32 %v6890, 7
    %v6892 = vsub.s32 1, %v6891
    %v6893 = vrot.slane %v6628, %v6892
    %6894 = vrot.lane.b32.xlu0 %v6719, 32
    %v6895 = vpop.permute.xlu0 %6894
    %6896 = vrot.lane.b32.xlu0 %v6893, 32
    %v6897 = vpop.permute.xlu0 %6896
    %v6898 = vsel %vm369, %v6895, %v6897
    %v6901 = vsel %vm369, %v6883, 0
    %6903 = vmatprep.subr.mxu0 0.0
    %6904 = vmatpush1.msra.mxu0 %v6886
    %6905 = vmatprep.subr.mxu0 0.0
    %6906 = vmatpush1.msra.mxu0 %v6887
    %6907 = vmatprep.subr.mxu0 0.0
    %6908 = vmatpush1.msra.mxu0 %v6888
    %6909 = vmatprep.subr.mxu0 0.0
    %6910 = vmatpush1.msra.mxu0 %v6889
    %6911 = vmatprep.subr.mxu0 0.0
    %6912 = vmatpush1.msra.mxu0 0.0
    %6913 = vmatprep.subr.mxu0 0.0
    %6914 = vmatpush1.msra.mxu0 0.0
    %6915 = vmatprep.subr.mxu0 0.0
    %6916 = vmatpush1.msra.mxu0 0.0
    %6917 = vmatprep.subr.mxu0 0.0
    %6918 = vmatpush1.msra.mxu0 0.0
    %6919 = vmatprep.subr.mxu0 0.0
    %6920 = vmatpush1.msra.mxu0 0.0
    %6921 = vmatprep.subr.mxu0 0.0
    %6922 = vmatpush1.msra.mxu0 0.0
    %6923 = vmatprep.subr.mxu0 0.0
    %6924 = vmatpush1.msra.mxu0 0.0
    %6925 = vmatprep.subr.mxu0 0.0
    %6926 = vmatpush1.msra.mxu0 0.0
    %6927 = vmatprep.subr.mxu0 0.0
    %6928 = vmatpush1.msra.mxu0 0.0
    %6929 = vmatprep.subr.mxu0 0.0
    %6930 = vmatpush1.msra.mxu0 0.0
    %6931 = vmatprep.subr.mxu0 0.0
    %6932 = vmatpush1.msra.mxu0 0.0
    %6933 = vmatprep.subr.mxu0 0.0
    %6934 = vmatpush1.msra.mxu0 0.0
    %6935 = vmatprep.subr.mxu0 0.0
    %6936 = vmatpush1.msra.mxu0 0.0
    %6937 = vmatprep.subr.mxu0 0.0
    %6938 = vmatpush1.msra.mxu0 0.0
    %6939 = vmatprep.subr.mxu0 0.0
    %6940 = vmatpush1.msra.mxu0 0.0
    %6941 = vmatprep.subr.mxu0 0.0
    %6942 = vmatpush1.msra.mxu0 0.0
    %6943 = vmatprep.subr.mxu0 0.0
    %6944 = vmatpush1.msra.mxu0 0.0
    %6945 = vmatprep.subr.mxu0 0.0
    %6946 = vmatpush1.msra.mxu0 0.0
    %6947 = vmatprep.subr.mxu0 0.0
    %6948 = vmatpush1.msra.mxu0 0.0
    %6949 = vmatprep.subr.mxu0 0.0
    %6950 = vmatpush1.msra.mxu0 0.0
    %6951 = vmatprep.subr.mxu0 0.0
    %6952 = vmatpush1.msra.mxu0 0.0
    %6953 = vmatprep.subr.mxu0 0.0
    %6954 = vmatpush1.msra.mxu0 0.0
    %6955 = vmatprep.subr.mxu0 0.0
    %6956 = vmatpush1.msra.mxu0 0.0
    %6957 = vmatprep.subr.mxu0 0.0
    %6958 = vmatpush1.msra.mxu0 0.0
    %6959 = vmatprep.subr.mxu0 0.0
    %6960 = vmatpush1.msra.mxu0 0.0
    %6961 = vmatprep.subr.mxu0 0.0
    %6962 = vmatpush1.msra.mxu0 0.0
    %6963 = vmatprep.subr.mxu0 0.0
    %6964 = vmatpush1.msra.mxu0 0.0
    %6965 = vmatprep.subr.mxu0 0.0
    %6966 = vmatpush1.msra.mxu0 0.0
    %6967 = vmatprep.mubr.f32.mxu0 0.0
    %6968 = vmatmul.mubr.f32.gmra.mrb[0].mxu0 %v6901
    %v6969 = vpop.f32.mrb[0].mxu0
    %v6970 = vadd.f32 %v6898, %v6969
    %v6971 = vpop.f32.mrb[0].mxu0
    %6972 = vdwg.mxu0
    %vm6973 = vcmp.ge.f32.partialorder %v6970, 0.0
    %v6974 = vmul.f32 %v6970, 0.01
    %v6975 = vsel %vm6973, %v6970, %v6974
    %v6976 = vld [vmem:[%s19] sm:$0xff]
    %v6977 = vld [vmem:[%s19 + $0x8] sm:$0xff]
    %v6978 = vld [vmem:[%s19 + $0x10] sm:$0xff]
    %v6979 = vld [vmem:[%s19 + $0x18] sm:$0xff]
    %v6980 = vld [vmem:[%s19 + $0x20] sm:$0xff]
    %v6981 = vld [vmem:[%s19 + $0x28] sm:$0xff]
    %v6982 = vld [vmem:[%s19 + $0x30] sm:$0xff]
    %v6983 = vld [vmem:[%s19 + $0x38] sm:$0xff]
    %6984 = vrot.lane.b32.xlu0 %v6628, 96
    %v6985 = vpop.permute.xlu0 %6984
    %v6986 = vrot.slane %v6985, 1
    %v6987 = vlaneseq
    %v6988 = vshrl.u32 %v6987, 7
    %v6989 = vsub.s32 0, %v6988
    %v6990 = vrot.slane %v6986, %v6989
    %v6993 = vsel %vm137, %v6975, 0
    %6995 = vmatprep.subr.mxu0 0.0
    %6996 = vmatpush1.msra.mxu0 %v6976
    %6997 = vmatprep.subr.mxu0 0.0
    %6998 = vmatpush1.msra.mxu0 %v6977
    %6999 = vmatprep.subr.mxu0 0.0
    %7000 = vmatpush1.msra.mxu0 %v6978
    %7001 = vmatprep.subr.mxu0 0.0
    %7002 = vmatpush1.msra.mxu0 %v6979
    %7003 = vmatprep.subr.mxu0 0.0
    %7004 = vmatpush1.msra.mxu0 %v6980
    %7005 = vmatprep.subr.mxu0 0.0
    %7006 = vmatpush1.msra.mxu0 %v6981
    %7007 = vmatprep.subr.mxu0 0.0
    %7008 = vmatpush1.msra.mxu0 %v6982
    %7009 = vmatprep.subr.mxu0 0.0
    %7010 = vmatpush1.msra.mxu0 %v6983
    %7011 = vmatprep.subr.mxu0 0.0
    %7012 = vmatpush1.msra.mxu0 0.0
    %7013 = vmatprep.subr.mxu0 0.0
    %7014 = vmatpush1.msra.mxu0 0.0
    %7015 = vmatprep.subr.mxu0 0.0
    %7016 = vmatpush1.msra.mxu0 0.0
    %7017 = vmatprep.subr.mxu0 0.0
    %7018 = vmatpush1.msra.mxu0 0.0
    %7019 = vmatprep.subr.mxu0 0.0
    %7020 = vmatpush1.msra.mxu0 0.0
    %7021 = vmatprep.subr.mxu0 0.0
    %7022 = vmatpush1.msra.mxu0 0.0
    %7023 = vmatprep.subr.mxu0 0.0
    %7024 = vmatpush1.msra.mxu0 0.0
    %7025 = vmatprep.subr.mxu0 0.0
    %7026 = vmatpush1.msra.mxu0 0.0
    %7027 = vmatprep.subr.mxu0 0.0
    %7028 = vmatpush1.msra.mxu0 0.0
    %7029 = vmatprep.subr.mxu0 0.0
    %7030 = vmatpush1.msra.mxu0 0.0
    %7031 = vmatprep.subr.mxu0 0.0
    %7032 = vmatpush1.msra.mxu0 0.0
    %7033 = vmatprep.subr.mxu0 0.0
    %7034 = vmatpush1.msra.mxu0 0.0
    %7035 = vmatprep.subr.mxu0 0.0
    %7036 = vmatpush1.msra.mxu0 0.0
    %7037 = vmatprep.subr.mxu0 0.0
    %7038 = vmatpush1.msra.mxu0 0.0
    %7039 = vmatprep.subr.mxu0 0.0
    %7040 = vmatpush1.msra.mxu0 0.0
    %7041 = vmatprep.subr.mxu0 0.0
    %7042 = vmatpush1.msra.mxu0 0.0
    %7043 = vmatprep.subr.mxu0 0.0
    %7044 = vmatpush1.msra.mxu0 0.0
    %7045 = vmatprep.subr.mxu0 0.0
    %7046 = vmatpush1.msra.mxu0 0.0
    %7047 = vmatprep.subr.mxu0 0.0
    %7048 = vmatpush1.msra.mxu0 0.0
    %7049 = vmatprep.subr.mxu0 0.0
    %7050 = vmatpush1.msra.mxu0 0.0
    %7051 = vmatprep.subr.mxu0 0.0
    %7052 = vmatpush1.msra.mxu0 0.0
    %7053 = vmatprep.subr.mxu0 0.0
    %7054 = vmatpush1.msra.mxu0 0.0
    %7055 = vmatprep.subr.mxu0 0.0
    %7056 = vmatpush1.msra.mxu0 0.0
    %7057 = vmatprep.subr.mxu0 0.0
    %7058 = vmatpush1.msra.mxu0 0.0
    %7059 = vmatprep.mubr.f32.mxu0 0.0
    %7060 = vmatmul.mubr.f32.gmra.mrb[0].mxu0 %v6993
    %v7061 = vpop.f32.mrb[0].mxu0
    %v7062 = vadd.f32 %v6990, %v7061
    %v7063 = vpop.f32.mrb[0].mxu0
    %7064 = vdwg.mxu0
    %v7066 = vsel %vm369, %v7062, 0
    %v7069 = vsel %vm369, %v4486, 0
    %7071 = vmatprep.subr.mxu0 0.0
    %7072 = vmatpush1.xpose.msra.mxu0 %v7069
    %7073 = vmatprep.subr.mxu0 0.0
    %7074 = vmatpush1.xpose.msra.mxu0 0.0
    %7075 = vmatprep.subr.mxu0 0.0
    %7076 = vmatpush1.xpose.msra.mxu0 0.0
    %7077 = vmatprep.subr.mxu0 0.0
    %7078 = vmatpush1.xpose.msra.mxu0 0.0
    %7079 = vmatprep.subr.mxu0 0.0
    %7080 = vmatpush1.xpose.msra.mxu0 0.0
    %7081 = vmatprep.subr.mxu0 0.0
    %7082 = vmatpush1.xpose.msra.mxu0 0.0
    %7083 = vmatprep.subr.mxu0 0.0
    %7084 = vmatpush1.xpose.msra.mxu0 0.0
    %7085 = vmatprep.subr.mxu0 0.0
    %7086 = vmatpush1.xpose.msra.mxu0 0.0
    %7087 = vmatprep.subr.mxu0 0.0
    %7088 = vmatpush1.xpose.msra.mxu0 0.0
    %7089 = vmatprep.subr.mxu0 0.0
    %7090 = vmatpush1.xpose.msra.mxu0 0.0
    %7091 = vmatprep.subr.mxu0 0.0
    %7092 = vmatpush1.xpose.msra.mxu0 0.0
    %7093 = vmatprep.subr.mxu0 0.0
    %7094 = vmatpush1.xpose.msra.mxu0 0.0
    %7095 = vmatprep.subr.mxu0 0.0
    %7096 = vmatpush1.xpose.msra.mxu0 0.0
    %7097 = vmatprep.subr.mxu0 0.0
    %7098 = vmatpush1.xpose.msra.mxu0 0.0
    %7099 = vmatprep.subr.mxu0 0.0
    %7100 = vmatpush1.xpose.msra.mxu0 0.0
    %7101 = vmatprep.subr.mxu0 0.0
    %7102 = vmatpush1.xpose.msra.mxu0 0.0
    %7103 = vmatprep.subr.mxu0 0.0
    %7104 = vmatpush1.xpose.msra.mxu0 0.0
    %7105 = vmatprep.subr.mxu0 0.0
    %7106 = vmatpush1.xpose.msra.mxu0 0.0
    %7107 = vmatprep.subr.mxu0 0.0
    %7108 = vmatpush1.xpose.msra.mxu0 0.0
    %7109 = vmatprep.subr.mxu0 0.0
    %7110 = vmatpush1.xpose.msra.mxu0 0.0
    %7111 = vmatprep.subr.mxu0 0.0
    %7112 = vmatpush1.xpose.msra.mxu0 0.0
    %7113 = vmatprep.subr.mxu0 0.0
    %7114 = vmatpush1.xpose.msra.mxu0 0.0
    %7115 = vmatprep.subr.mxu0 0.0
    %7116 = vmatpush1.xpose.msra.mxu0 0.0
    %7117 = vmatprep.subr.mxu0 0.0
    %7118 = vmatpush1.xpose.msra.mxu0 0.0
    %7119 = vmatprep.subr.mxu0 0.0
    %7120 = vmatpush1.xpose.msra.mxu0 0.0
    %7121 = vmatprep.subr.mxu0 0.0
    %7122 = vmatpush1.xpose.msra.mxu0 0.0
    %7123 = vmatprep.subr.mxu0 0.0
    %7124 = vmatpush1.xpose.msra.mxu0 0.0
    %7125 = vmatprep.subr.mxu0 0.0
    %7126 = vmatpush1.xpose.msra.mxu0 0.0
    %7127 = vmatprep.subr.mxu0 0.0
    %7128 = vmatpush1.xpose.msra.mxu0 0.0
    %7129 = vmatprep.subr.mxu0 0.0
    %7130 = vmatpush1.xpose.msra.mxu0 0.0
    %7131 = vmatprep.subr.mxu0 0.0
    %7132 = vmatpush1.xpose.msra.mxu0 0.0
    %7133 = vmatprep.subr.mxu0 0.0
    %7134 = vmatpush1.xpose.msra.mxu0 0.0
    %7135 = vmatprep.mubr.f32.mxu0 0.0
    %7136 = vmatmul.mubr.f32.gmra.mrb[0].mxu0 %v7066
    %v7137 = vpop.f32.mrb[0].mxu0
    %v7138 = vadd.f32 0.0, %v7137
    %v7139 = vpop.f32.mrb[0].mxu0
    %7140 = vdwg.mxu0
    %v7141 = vadd.s32 %v80, 128
    %7142 = vset.pattern.permute.xlu0 0
    %7143 = vperm.xlu0 %7142, %v78
    %v7144 = vpop.permute.xlu0 %7143
    %vm7145 = vcmp.eq.s32.totalorder %v7144, %v80
    %vm7146 = vcmp.eq.s32.totalorder %v7144, %v7141
    %v7147 = vsel %vm7145, 1, 0
    %v7148 = vsel %vm7146, 1, 0
    %v7149 = vcvt.s32.f32 %v7147
    %v7150 = vcvt.s32.f32 %v7148
    %s7151 = sld [smem:[#allocation2]]
    %v7152 = vstv %s7151
    %vm7153 = vcmask 64512
    %v7155 = vsel %vm7153, %v7138, 0
    %7157 = vmatprep.subr.mxu0 %v7150
    %7158 = vmatpush1.msra.mxu0 %v7149
    %7159 = vmatprep.subr.mxu0 0.0
    %7160 = vmatpush1.msra.mxu0 0.0
    %7161 = vmatprep.subr.mxu0 0.0
    %7162 = vmatpush1.msra.mxu0 0.0
    %7163 = vmatprep.subr.mxu0 0.0
    %7164 = vmatpush1.msra.mxu0 0.0
    %7165 = vmatprep.subr.mxu0 0.0
    %7166 = vmatpush1.msra.mxu0 0.0
    %7167 = vmatprep.subr.mxu0 0.0
    %7168 = vmatpush1.msra.mxu0 0.0
    %7169 = vmatprep.subr.mxu0 0.0
    %7170 = vmatpush1.msra.mxu0 0.0
    %7171 = vmatprep.subr.mxu0 0.0
    %7172 = vmatpush1.msra.mxu0 0.0
    %7173 = vmatprep.subr.mxu0 0.0
    %7174 = vmatpush1.msra.mxu0 0.0
    %7175 = vmatprep.subr.mxu0 0.0
    %7176 = vmatpush1.msra.mxu0 0.0
    %7177 = vmatprep.subr.mxu0 0.0
    %7178 = vmatpush1.msra.mxu0 0.0
    %7179 = vmatprep.subr.mxu0 0.0
    %7180 = vmatpush1.msra.mxu0 0.0
    %7181 = vmatprep.subr.mxu0 0.0
    %7182 = vmatpush1.msra.mxu0 0.0
    %7183 = vmatprep.subr.mxu0 0.0
    %7184 = vmatpush1.msra.mxu0 0.0
    %7185 = vmatprep.subr.mxu0 0.0
    %7186 = vmatpush1.msra.mxu0 0.0
    %7187 = vmatprep.subr.mxu0 0.0
    %7188 = vmatpush1.msra.mxu0 0.0
    %7189 = vmatprep.subr.mxu0 0.0
    %7190 = vmatpush1.msra.mxu0 0.0
    %7191 = vmatprep.subr.mxu0 0.0
    %7192 = vmatpush1.msra.mxu0 0.0
    %7193 = vmatprep.subr.mxu0 0.0
    %7194 = vmatpush1.msra.mxu0 0.0
    %7195 = vmatprep.subr.mxu0 0.0
    %7196 = vmatpush1.msra.mxu0 0.0
    %7197 = vmatprep.subr.mxu0 0.0
    %7198 = vmatpush1.msra.mxu0 0.0
    %7199 = vmatprep.subr.mxu0 0.0
    %7200 = vmatpush1.msra.mxu0 0.0
    %7201 = vmatprep.subr.mxu0 0.0
    %7202 = vmatpush1.msra.mxu0 0.0
    %7203 = vmatprep.subr.mxu0 0.0
    %7204 = vmatpush1.msra.mxu0 0.0
    %7205 = vmatprep.subr.mxu0 0.0
    %7206 = vmatpush1.msra.mxu0 0.0
    %7207 = vmatprep.subr.mxu0 0.0
    %7208 = vmatpush1.msra.mxu0 0.0
    %7209 = vmatprep.subr.mxu0 0.0
    %7210 = vmatpush1.msra.mxu0 0.0
    %7211 = vmatprep.subr.mxu0 0.0
    %7212 = vmatpush1.msra.mxu0 0.0
    %7213 = vmatprep.subr.mxu0 0.0
    %7214 = vmatpush1.msra.mxu0 0.0
    %7215 = vmatprep.subr.mxu0 0.0
    %7216 = vmatpush1.msra.mxu0 0.0
    %7217 = vmatprep.subr.mxu0 0.0
    %7218 = vmatpush1.msra.mxu0 0.0
    %7219 = vmatprep.subr.mxu0 0.0
    %7220 = vmatpush1.msra.mxu0 0.0
    %7221 = vmatprep.mubr.f32.mxu0 0.0
    %7222 = vmatmul.mubr.f32.gmra.mrb[0].mxu0 %v7155
    %v7223 = vpop.f32.mrb[0].mxu0
    %v7224 = vadd.f32 %v7152, %v7223
    %v7225 = vpop.f32.mrb[0].mxu0
    %v7226 = vadd.f32 %v7152, %v7225
    %7227 = vdwg.mxu0
    %v7230 = vcombine.low %v7224, %v7226
    %v7232 = vunpack.c.l.s4 1983009808
    %v7233 = vunpack.c.0.s8 %v7232
    %v7234 = vlaneseq
    %v7235 = vshrl.u32 %v7234, 7
    %v7236 = vsub.s32 %v7233, %v7235
    %v7237 = vrot.slane %v7230, %v7236
    %7239 = vst [vmem:[#allocation3] sm:$0xf] %v7237
    // Predicated region
    $region86: #{guided_clip_cub_forward.1} parent=1 // pred_check
      _
    $region87: #{guided_clip_cub_forward.1} parent=1 // pred_check_branch
      %7241 = sbr.rel (0) target = $region89
    $region88: #{guided_clip_cub_forward.1} parent=1 // pred_region
      %s7243 = ssub.s32 64, 64
      %7244 = vsyncadd [#allocation4], %s7243
      %s7246 = sshll.u32 [#allocation3], 4
      %s7247 = int_to_ptr.vmem [resolvable:$true] %s7246
      %7249 = dma.vmem_to_hbm [thread:$0]  %s7247, 64, %s21, [#allocation4]
    $region89: #{guided_clip_cub_forward.1} parent=1 // pred_fallthru
      _
    // Predicated region
    $region90: #{guided_clip_cub_forward.1} parent=1 // pred_check
      _
    $region91: #{guided_clip_cub_forward.1} parent=1 // pred_check_branch
      %7251 = sbr.rel (0) target = $region93
    $region92: #{guided_clip_cub_forward.1} parent=1 // pred_region
      %7252 = dma.done [#allocation4], 64
    $region93: #{guided_clip_cub_forward.1} parent=1 // pred_fallthru
      _
    %7253 = vsyncpa [#allocation4], 1

</llo_original>
